<compile_context>
chip_gen: v7x
topology: tpu7x:2x2x1
jax: 0.10.0
libtpu: 0.0.40
codegen_flags: <defaults>
</compile_context>

<pallas_src>
import functools
import math

import jax
import jax.numpy as jnp
from jax.experimental import pallas as pl
from jax.experimental.pallas import tpu as pltpu


# ----------------------------------------------------------------------------
# Fused encoder-stack kernel (one grid program per batch element)
# ----------------------------------------------------------------------------
def _scene_encoder_kernel(
    x_ref,                       # (S, Dp) f32   -- one batch element, lane-padded
    wqkv_ref, bqkv_ref,          # (L, Dp, 3*Dp) bf16, (L, 1, 3*Dp) f32
    wo_ref, bo_ref,              # (L, D, Dp) bf16,    (L, 1, Dp) f32
    ln1_g_ref, ln1_b_ref,        # (L, 1, Dp) f32
    ln2_g_ref, ln2_b_ref,        # (L, 1, Dp) f32
    w1_ref, b1_ref,              # (L, Dp, F) bf16,    (L, 1, F) f32
    w2_ref, b2_ref,              # (L, F, Dp) bf16,    (L, 1, Dp) f32
    o_ref,                       # (S, Dp) f32
    *, num_layers, nhead, d_real, eps):

    x = x_ref[...].astype(jnp.float32)          # (S, Dp)
    seq, d_pad = x.shape
    dh = d_real // nhead

    # mask of the real (non-padded) feature lanes; compile-time constant
    lane_mask = (jax.lax.broadcasted_iota(jnp.int32, (1, d_pad), 1) < d_real
                 ).astype(jnp.float32)
    inv_d = 1.0 / d_real

    def layer_norm(v, g, b):
        # padded lanes of v are exactly zero, so the plain sum is the real sum
        mu = jnp.sum(v, axis=-1, keepdims=True) * inv_d
        diff = (v - mu) * lane_mask                      # mask so pad lanes don't pollute var
        var = jnp.sum(diff * diff, axis=-1, keepdims=True) * inv_d
        return diff * jax.lax.rsqrt(var + eps) * g + b   # g,b are zero in padded lanes

    for l in range(num_layers):
        # -------- fused QKV projection (scale + bias folded into packing) ----
        qkv = jnp.dot(x.astype(jnp.bfloat16), wqkv_ref[l],
                      preferred_element_type=jnp.float32) + bqkv_ref[l]   # (S, 3*Dp)
        qkv_bf = qkv.astype(jnp.bfloat16)
        q = qkv_bf[:, 0:d_pad]            # lane-aligned slices (0 / 128 / 256)
        k = qkv_bf[:, d_pad:2 * d_pad]
        v = qkv_bf[:, 2 * d_pad:3 * d_pad]

        # -------- per-head attention (softmax in f32) -------------------------
        ctx_heads = []
        for h in range(nhead):
            lo, hi = h * dh, (h + 1) * dh
            qh = q[:, lo:hi]                                             # (S, dh) bf16
            kh = k[:, lo:hi]
            vh = v[:, lo:hi]
            s = jnp.einsum('qd,kd->qk', qh, kh,
                           preferred_element_type=jnp.float32)           # (S, S)
            s = s - jnp.max(s, axis=-1, keepdims=True)
            p = jnp.exp(s)
            p = p * pl.reciprocal(jnp.sum(p, axis=-1, keepdims=True), approx=True)
            ctx_heads.append(jnp.dot(p.astype(jnp.bfloat16), vh,
                                     preferred_element_type=jnp.float32))  # (S, dh)
        ctx = jnp.concatenate(ctx_heads, axis=-1)                        # (S, D)

        # -------- fused output projection + residual + LayerNorm -------------
        attn = jnp.dot(ctx.astype(jnp.bfloat16), wo_ref[l],
                       preferred_element_type=jnp.float32) + bo_ref[l]   # (S, Dp)
        x = layer_norm(x + attn, ln1_g_ref[l], ln1_b_ref[l])

        # -------- feed-forward (tanh GELU -> EUP) + residual + LayerNorm ------
        hdn = jnp.dot(x.astype(jnp.bfloat16), w1_ref[l],
                      preferred_element_type=jnp.float32) + b1_ref[l]    # (S, F)
        hdn = jax.nn.gelu(hdn, approximate=True)
        ff = jnp.dot(hdn.astype(jnp.bfloat16), w2_ref[l],
                     preferred_element_type=jnp.float32) + b2_ref[l]     # (S, Dp)
        x = layer_norm(x + ff, ln2_g_ref[l], ln2_b_ref[l])

    o_ref[...] = x.astype(o_ref.dtype)   # dense, lane-aligned (S, 128) store


# ----------------------------------------------------------------------------
# Forward wrapper (only layout plumbing outside the kernel)
# ----------------------------------------------------------------------------
def scene_encoder_forward(scene_features, params, nhead=12, eps=1e-5):
    """scene_features: (b, n_inp, patch, D) -> scene encoding (n_inp*patch, b, D)."""
    b, n_inp, n_patch, d = scene_features.shape
    s = n_inp * n_patch
    num_layers, d_pad, _ = params["wqkv"].shape

    x2d = scene_features.reshape(b * s, d).astype(jnp.float32)
    x2d = jnp.pad(x2d, ((0, 0), (0, d_pad - d)))          # lane-pad D -> 128

    kernel = functools.partial(
        _scene_encoder_kernel,
        num_layers=num_layers, nhead=nhead, d_real=d, eps=eps)

    weight_names = ["wqkv", "bqkv", "wo", "bo", "ln1_g", "ln1_b",
                    "ln2_g", "ln2_b", "w1", "b1", "w2", "b2"]
    weight_args = [params[n] for n in weight_names]

    in_specs = [pl.BlockSpec((s, d_pad), lambda i: (i, 0))]           # per-batch rows
    in_specs += [pl.BlockSpec(a.shape, lambda i: (0, 0, 0))           # weights resident
                 for a in weight_args]
    out_specs = pl.BlockSpec((s, d_pad), lambda i: (0, i))            # per-batch lane block

    out = pl.pallas_call(
        kernel,
        grid=(b,),
        in_specs=in_specs,
        out_specs=out_specs,
        out_shape=jax.ShapeDtypeStruct((s, b * d_pad), jnp.float32),
        compiler_params=pltpu.CompilerParams(
            dimension_semantics=("parallel",)),
    )(x2d, *weight_args)

    # (S, B*Dp) -> (S, B, Dp) -> drop lane padding; already sequence-first.
    return out.reshape(s, b, d_pad)[:, :, :d]


# ----------------------------------------------------------------------------
# Deterministic parameters: raw per-layer weights (for the reference) plus the
# packed / padded / bf16 layout the kernel expects.
# ----------------------------------------------------------------------------
def make_params(key, d_model, num_layers, nhead, dff, d_pad):
    dh = d_model // nhead
    scale = 1.0 / math.sqrt(dh)
    kpl = 16
    keys = jax.random.split(key, num_layers * kpl)

    names = ["wqkv", "bqkv", "wo", "bo", "ln1_g", "ln1_b",
             "ln2_g", "ln2_b", "w1", "b1", "w2", "b2"]
    packed = {n: [] for n in names}
    raw_layers = []

    def rnd(kk, shape, s=0.02):
        return (s * jax.random.normal(kk, shape)).astype(jnp.float32)

    for l in range(num_layers):
        ks = keys[l * kpl:(l + 1) * kpl]
        Wq, bq = rnd(ks[0], (d_model, d_model)), rnd(ks[1], (d_model,))
        Wk, bk = rnd(ks[2], (d_model, d_model)), rnd(ks[3], (d_model,))
        Wv, bv = rnd(ks[4], (d_model, d_model)), rnd(ks[5], (d_model,))
        Wo, bo = rnd(ks[6], (d_model, d_model)), rnd(ks[7], (d_model,))
        W1, b1 = rnd(ks[8], (d_model, dff)), rnd(ks[9], (dff,))
        W2, b2 = rnd(ks[10], (dff, d_model)), rnd(ks[11], (d_model,))
        g1 = 1.0 + rnd(ks[12], (d_model,), 0.1)
        be1 = rnd(ks[13], (d_model,), 0.1)
        g2 = 1.0 + rnd(ks[14], (d_model,), 0.1)
        be2 = rnd(ks[15], (d_model,), 0.1)

        raw_layers.append(dict(Wq=Wq, bq=bq, Wk=Wk, bk=bk, Wv=Wv, bv=bv,
                               Wo=Wo, bo=bo, W1=W1, b1=b1, W2=W2, b2=b2,
                               g1=g1, be1=be1, g2=g2, be2=be2))

        # ---- pack: fuse QKV, fold 1/sqrt(dh) into Q, lane-pad D -> d_pad ----
        wqkv = jnp.zeros((d_pad, 3 * d_pad), jnp.float32)
        wqkv = wqkv.at[:d_model, 0:d_model].set(Wq * scale)
        wqkv = wqkv.at[:d_model, d_pad:d_pad + d_model].set(Wk)
        wqkv = wqkv.at[:d_model, 2 * d_pad:2 * d_pad + d_model].set(Wv)
        bqkv = jnp.zeros((1, 3 * d_pad), jnp.float32)
        bqkv = bqkv.at[0, 0:d_model].set(bq * scale)
        bqkv = bqkv.at[0, d_pad:d_pad + d_model].set(bk)
        bqkv = bqkv.at[0, 2 * d_pad:2 * d_pad + d_model].set(bv)

        def pad_row(vec):
            return jnp.zeros((1, d_pad), jnp.float32).at[0, :d_model].set(vec)

        packed["wqkv"].append(wqkv.astype(jnp.bfloat16))
        packed["bqkv"].append(bqkv)
        packed["wo"].append(
            jnp.zeros((d_model, d_pad), jnp.float32).at[:, :d_model].set(Wo)
            .astype(jnp.bfloat16))
        packed["bo"].append(pad_row(bo))
        packed["ln1_g"].append(pad_row(g1))   # padded lanes get gamma = 0
        packed["ln1_b"].append(pad_row(be1))
        packed["ln2_g"].append(pad_row(g2))
        packed["ln2_b"].append(pad_row(be2))
        packed["w1"].append(
            jnp.zeros((d_pad, dff), jnp.float32).at[:d_model, :].set(W1)
            .astype(jnp.bfloat16))
        packed["b1"].append(b1.reshape(1, dff))
        packed["w2"].append(
            jnp.zeros((dff, d_pad), jnp.float32).at[:, :d_model].set(W2)
            .astype(jnp.bfloat16))
        packed["b2"].append(pad_row(b2))

    params = {n: jnp.stack(v, axis=0) for n, v in packed.items()}
    return params, raw_layers


# ----------------------------------------------------------------------------
# Pure-JAX f32 reference (standard post-LN encoder) for a sanity check
# ----------------------------------------------------------------------------
def reference_forward(scene_features, raw_layers, nhead, eps):
    b, n_inp, n_patch, d = scene_features.shape
    s = n_inp * n_patch
    dh = d // nhead
    x = scene_features.reshape(b, s, d).astype(jnp.float32)

    def ln(v, g, bta):
        mu = jnp.mean(v, axis=-1, keepdims=True)
        var = jnp.mean(jnp.square(v - mu), axis=-1, keepdims=True)
        return (v - mu) * jax.lax.rsqrt(var + eps) * g + bta

    for p in raw_layers:
        q = (x @ p["Wq"] + p["bq"]).reshape(b, s, nhead, dh).transpose(0, 2, 1, 3)
        k = (x @ p["Wk"] + p["bk"]).reshape(b, s, nhead, dh).transpose(0, 2, 1, 3)
        v = (x @ p["Wv"] + p["bv"]).reshape(b, s, nhead, dh).transpose(0, 2, 1, 3)
        sc = jnp.einsum('bhqd,bhkd->bhqk', q, k) / math.sqrt(dh)
        w = jax.nn.softmax(sc, axis=-1)
        ctx = jnp.einsum('bhqk,bhkd->bhqd', w, v).transpose(0, 2, 1, 3).reshape(b, s, d)
        x = ln(x + ctx @ p["Wo"] + p["bo"], p["g1"], p["be1"])
        hdn = jax.nn.gelu(x @ p["W1"] + p["b1"], approximate=True)
        x = ln(x + hdn @ p["W2"] + p["b2"], p["g2"], p["be2"])
    return x.transpose(1, 0, 2)   # (S, B, D)


# ----------------------------------------------------------------------------
# Main
# ----------------------------------------------------------------------------
if __name__ == "__main__":
    B = 2            # batch
    N_INP = 2        # number of input views
    PATCH = 8        # patches per view -> sequence length S = 16
    D = 96           # transformer_dim (12 heads x head_dim 8)
    NHEAD = 12
    NUM_LAYERS = 2   # num_encoder_layers
    DFF = 4 * D      # TODO(synk): dim_feedforward of the original block not shown; 4*d_model assumed.
    D_PAD = 128      # lane-padded model dim

    key = jax.random.PRNGKey(0)
    k_x, k_p = jax.random.split(key)
    scene_features = jax.random.normal(k_x, (B, N_INP, PATCH, D), dtype=jnp.float32)
    params, raw_layers = make_params(k_p, D, NUM_LAYERS, NHEAD, DFF, D_PAD)

    out = scene_encoder_forward(scene_features, params, nhead=NHEAD)
    out = jax.block_until_ready(out)

    assert out.shape == (N_INP * PATCH, B, D), out.shape
    assert bool(jnp.all(jnp.isfinite(out)))

    ref = reference_forward(scene_features, raw_layers, NHEAD, 1e-5)
    max_err = float(jnp.max(jnp.abs(out - ref)))
    assert max_err < 5e-2, f"max abs error vs reference: {max_err}"

    print("KERNEL_OK")
</pallas_src>

<mosaic_0001>
module attributes {stable_mosaic.version = 11 : i64} {
  func.func @_scene_encoder_kernel(%arg0: i32, %arg1: memref<16x128xf32, #tpu.memory_space<vmem>>, %arg2: memref<2x128x384xbf16, #tpu.memory_space<vmem>>, %arg3: memref<2x1x384xf32, #tpu.memory_space<vmem>>, %arg4: memref<2x96x128xbf16, #tpu.memory_space<vmem>>, %arg5: memref<2x1x128xf32, #tpu.memory_space<vmem>>, %arg6: memref<2x1x128xf32, #tpu.memory_space<vmem>>, %arg7: memref<2x1x128xf32, #tpu.memory_space<vmem>>, %arg8: memref<2x1x128xf32, #tpu.memory_space<vmem>>, %arg9: memref<2x1x128xf32, #tpu.memory_space<vmem>>, %arg10: memref<2x128x384xbf16, #tpu.memory_space<vmem>>, %arg11: memref<2x1x384xf32, #tpu.memory_space<vmem>>, %arg12: memref<2x384x128xbf16, #tpu.memory_space<vmem>>, %arg13: memref<2x1x128xf32, #tpu.memory_space<vmem>>, %arg14: memref<16x128xf32, #tpu.memory_space<vmem>>) attributes {dimension_semantics = [#tpu.dimension_semantics<parallel>], iteration_bounds = array<i64: 2>, scalar_prefetch = 0 : i64, scratch_operands = 0 : i64, tpu.core_type = #tpu.core_type<tc>, window_params = [{transform_indices = @transform_0, window_bounds = array<i64: 16, 128>}, {pipeline_mode = #tpu.pipeline_mode<synchronous>, transform_indices = @transform_1, window_bounds = array<i64: 2, 128, 384>}, {pipeline_mode = #tpu.pipeline_mode<synchronous>, transform_indices = @transform_2, window_bounds = array<i64: 2, 1, 384>}, {pipeline_mode = #tpu.pipeline_mode<synchronous>, transform_indices = @transform_3, window_bounds = array<i64: 2, 96, 128>}, {pipeline_mode = #tpu.pipeline_mode<synchronous>, transform_indices = @transform_4, window_bounds = array<i64: 2, 1, 128>}, {pipeline_mode = #tpu.pipeline_mode<synchronous>, transform_indices = @transform_5, window_bounds = array<i64: 2, 1, 128>}, {pipeline_mode = #tpu.pipeline_mode<synchronous>, transform_indices = @transform_6, window_bounds = array<i64: 2, 1, 128>}, {pipeline_mode = #tpu.pipeline_mode<synchronous>, transform_indices = @transform_7, window_bounds = array<i64: 2, 1, 128>}, {pipeline_mode = #tpu.pipeline_mode<synchronous>, transform_indices = @transform_8, window_bounds = array<i64: 2, 1, 128>}, {pipeline_mode = #tpu.pipeline_mode<synchronous>, transform_indices = @transform_9, window_bounds = array<i64: 2, 128, 384>}, {pipeline_mode = #tpu.pipeline_mode<synchronous>, transform_indices = @transform_10, window_bounds = array<i64: 2, 1, 384>}, {pipeline_mode = #tpu.pipeline_mode<synchronous>, transform_indices = @transform_11, window_bounds = array<i64: 2, 384, 128>}, {pipeline_mode = #tpu.pipeline_mode<synchronous>, transform_indices = @transform_12, window_bounds = array<i64: 2, 1, 128>}, {transform_indices = @transform_13, window_bounds = array<i64: 16, 128>}]} {
    %c0 = arith.constant 0 : index
    %c0_0 = arith.constant 0 : index
    %0 = vector.load %arg1[%c0, %c0_0] : memref<16x128xf32, #tpu.memory_space<vmem>>, vector<16x128xf32>
    %1 = tpu.iota {dimensions = array<i32: 1>} : vector<1x128xi32>
    %c96_i32 = arith.constant 96 : i32
    %2 = vector.broadcast %c96_i32 : i32 to vector<1x128xi32>
    %3 = arith.cmpi slt, %1, %2 : vector<1x128xi32>
    %4 = arith.extui %3 : vector<1x128xi1> to vector<1x128xi32>
    %5 = arith.sitofp %4 : vector<1x128xi32> to vector<1x128xf32>
    %6 = arith.truncf %0 : vector<16x128xf32> to vector<16x128xbf16>
    %c0_1 = arith.constant 0 : index
    %c0_2 = arith.constant 0 : index
    %c0_3 = arith.constant 0 : index
    %7 = vector.load %arg2[%c0_1, %c0_2, %c0_3] : memref<2x128x384xbf16, #tpu.memory_space<vmem>>, vector<1x128x384xbf16>
    %8 = vector.shape_cast %7 : vector<1x128x384xbf16> to vector<128x384xbf16>
    %cst = arith.constant dense<0.000000e+00> : vector<16x384xf32>
    %9 = tpu.matmul %6, %8, %cst {dimension_numbers = #tpu.dot_dimension_numbers<[1], [0], [0], [1], [0, 0, 1, 1], [], []>} : vector<16x128xbf16>, vector<128x384xbf16>, vector<16x384xf32> -> vector<16x384xf32>
    %c0_4 = arith.constant 0 : index
    %c0_5 = arith.constant 0 : index
    %c0_6 = arith.constant 0 : index
    %10 = vector.load %arg3[%c0_4, %c0_5, %c0_6] : memref<2x1x384xf32, #tpu.memory_space<vmem>>, vector<1x1x384xf32>
    %11 = vector.shape_cast %10 : vector<1x1x384xf32> to vector<1x384xf32>
    %12 = vector.broadcast %11 : vector<1x384xf32> to vector<16x384xf32>
    %13 = arith.addf %9, %12 : vector<16x384xf32>
    %14 = arith.truncf %13 : vector<16x384xf32> to vector<16x384xbf16>
    %15 = vector.extract_strided_slice %14 {offsets = [0, 0], sizes = [16, 128], strides = [1, 1]} : vector<16x384xbf16> to vector<16x128xbf16>
    %16 = vector.extract_strided_slice %14 {offsets = [0, 128], sizes = [16, 128], strides = [1, 1]} : vector<16x384xbf16> to vector<16x128xbf16>
    %17 = vector.extract_strided_slice %14 {offsets = [0, 256], sizes = [16, 128], strides = [1, 1]} : vector<16x384xbf16> to vector<16x128xbf16>
    %18 = vector.extract_strided_slice %15 {offsets = [0, 0], sizes = [16, 8], strides = [1, 1]} : vector<16x128xbf16> to vector<16x8xbf16>
    %19 = vector.extract_strided_slice %16 {offsets = [0, 0], sizes = [16, 8], strides = [1, 1]} : vector<16x128xbf16> to vector<16x8xbf16>
    %20 = vector.extract_strided_slice %17 {offsets = [0, 0], sizes = [16, 8], strides = [1, 1]} : vector<16x128xbf16> to vector<16x8xbf16>
    "tpu.trace_start"() <{level = 10 : i32, message = "qd,kd->qk"}> : () -> ()
    %cst_7 = arith.constant dense<0.000000e+00> : vector<16x16xf32>
    %21 = tpu.matmul %18, %19, %cst_7 {dimension_numbers = #tpu.dot_dimension_numbers<[1], [1], [0], [0], [0, 0, 1, 0], [], []>} : vector<16x8xbf16>, vector<16x8xbf16>, vector<16x16xf32> -> vector<16x16xf32>
    "tpu.trace_stop"() : () -> ()
    %cst_8 = arith.constant dense<0xFF800000> : vector<16xf32>
    %22 = vector.multi_reduction <maximumf>, %21, %cst_8 [1] : vector<16x16xf32> to vector<16xf32>
    %23 = vector.shape_cast %22 : vector<16xf32> to vector<16x1xf32>
    %24 = vector.broadcast %23 : vector<16x1xf32> to vector<16x16xf32>
    %25 = arith.subf %21, %24 : vector<16x16xf32>
    %26 = math.exp %25 : vector<16x16xf32>
    %cst_9 = arith.constant dense<0.000000e+00> : vector<16xf32>
    %27 = vector.multi_reduction <add>, %26, %cst_9 [1] : vector<16x16xf32> to vector<16xf32>
    %28 = vector.shape_cast %27 : vector<16xf32> to vector<16x1xf32>
    %29 = tpu.reciprocal %28 {approx = true} : vector<16x1xf32> -> vector<16x1xf32>
    %30 = vector.broadcast %29 : vector<16x1xf32> to vector<16x16xf32>
    %31 = arith.mulf %26, %30 : vector<16x16xf32>
    %32 = arith.truncf %31 : vector<16x16xf32> to vector<16x16xbf16>
    %cst_10 = arith.constant dense<0.000000e+00> : vector<16x8xf32>
    %33 = tpu.matmul %32, %20, %cst_10 {dimension_numbers = #tpu.dot_dimension_numbers<[1], [0], [0], [1], [0, 0, 1, 1], [], []>} : vector<16x16xbf16>, vector<16x8xbf16>, vector<16x8xf32> -> vector<16x8xf32>
    %34 = vector.extract_strided_slice %15 {offsets = [0, 8], sizes = [16, 8], strides = [1, 1]} : vector<16x128xbf16> to vector<16x8xbf16>
    %35 = vector.extract_strided_slice %16 {offsets = [0, 8], sizes = [16, 8], strides = [1, 1]} : vector<16x128xbf16> to vector<16x8xbf16>
    %36 = vector.extract_strided_slice %17 {offsets = [0, 8], sizes = [16, 8], strides = [1, 1]} : vector<16x128xbf16> to vector<16x8xbf16>
    "tpu.trace_start"() <{level = 10 : i32, message = "qd,kd->qk"}> : () -> ()
    %cst_11 = arith.constant dense<0.000000e+00> : vector<16x16xf32>
    %37 = tpu.matmul %34, %35, %cst_11 {dimension_numbers = #tpu.dot_dimension_numbers<[1], [1], [0], [0], [0, 0, 1, 0], [], []>} : vector<16x8xbf16>, vector<16x8xbf16>, vector<16x16xf32> -> vector<16x16xf32>
    "tpu.trace_stop"() : () -> ()
    %cst_12 = arith.constant dense<0xFF800000> : vector<16xf32>
    %38 = vector.multi_reduction <maximumf>, %37, %cst_12 [1] : vector<16x16xf32> to vector<16xf32>
    %39 = vector.shape_cast %38 : vector<16xf32> to vector<16x1xf32>
    %40 = vector.broadcast %39 : vector<16x1xf32> to vector<16x16xf32>
    %41 = arith.subf %37, %40 : vector<16x16xf32>
    %42 = math.exp %41 : vector<16x16xf32>
    %cst_13 = arith.constant dense<0.000000e+00> : vector<16xf32>
    %43 = vector.multi_reduction <add>, %42, %cst_13 [1] : vector<16x16xf32> to vector<16xf32>
    %44 = vector.shape_cast %43 : vector<16xf32> to vector<16x1xf32>
    %45 = tpu.reciprocal %44 {approx = true} : vector<16x1xf32> -> vector<16x1xf32>
    %46 = vector.broadcast %45 : vector<16x1xf32> to vector<16x16xf32>
    %47 = arith.mulf %42, %46 : vector<16x16xf32>
    %48 = arith.truncf %47 : vector<16x16xf32> to vector<16x16xbf16>
    %cst_14 = arith.constant dense<0.000000e+00> : vector<16x8xf32>
    %49 = tpu.matmul %48, %36, %cst_14 {dimension_numbers = #tpu.dot_dimension_numbers<[1], [0], [0], [1], [0, 0, 1, 1], [], []>} : vector<16x16xbf16>, vector<16x8xbf16>, vector<16x8xf32> -> vector<16x8xf32>
    %50 = vector.extract_strided_slice %15 {offsets = [0, 16], sizes = [16, 8], strides = [1, 1]} : vector<16x128xbf16> to vector<16x8xbf16>
    %51 = vector.extract_strided_slice %16 {offsets = [0, 16], sizes = [16, 8], strides = [1, 1]} : vector<16x128xbf16> to vector<16x8xbf16>
    %52 = vector.extract_strided_slice %17 {offsets = [0, 16], sizes = [16, 8], strides = [1, 1]} : vector<16x128xbf16> to vector<16x8xbf16>
    "tpu.trace_start"() <{level = 10 : i32, message = "qd,kd->qk"}> : () -> ()
    %cst_15 = arith.constant dense<0.000000e+00> : vector<16x16xf32>
    %53 = tpu.matmul %50, %51, %cst_15 {dimension_numbers = #tpu.dot_dimension_numbers<[1], [1], [0], [0], [0, 0, 1, 0], [], []>} : vector<16x8xbf16>, vector<16x8xbf16>, vector<16x16xf32> -> vector<16x16xf32>
    "tpu.trace_stop"() : () -> ()
    %cst_16 = arith.constant dense<0xFF800000> : vector<16xf32>
    %54 = vector.multi_reduction <maximumf>, %53, %cst_16 [1] : vector<16x16xf32> to vector<16xf32>
    %55 = vector.shape_cast %54 : vector<16xf32> to vector<16x1xf32>
    %56 = vector.broadcast %55 : vector<16x1xf32> to vector<16x16xf32>
    %57 = arith.subf %53, %56 : vector<16x16xf32>
    %58 = math.exp %57 : vector<16x16xf32>
    %cst_17 = arith.constant dense<0.000000e+00> : vector<16xf32>
    %59 = vector.multi_reduction <add>, %58, %cst_17 [1] : vector<16x16xf32> to vector<16xf32>
    %60 = vector.shape_cast %59 : vector<16xf32> to vector<16x1xf32>
    %61 = tpu.reciprocal %60 {approx = true} : vector<16x1xf32> -> vector<16x1xf32>
    %62 = vector.broadcast %61 : vector<16x1xf32> to vector<16x16xf32>
    %63 = arith.mulf %58, %62 : vector<16x16xf32>
    %64 = arith.truncf %63 : vector<16x16xf32> to vector<16x16xbf16>
    %cst_18 = arith.constant dense<0.000000e+00> : vector<16x8xf32>
    %65 = tpu.matmul %64, %52, %cst_18 {dimension_numbers = #tpu.dot_dimension_numbers<[1], [0], [0], [1], [0, 0, 1, 1], [], []>} : vector<16x16xbf16>, vector<16x8xbf16>, vector<16x8xf32> -> vector<16x8xf32>
    %66 = vector.extract_strided_slice %15 {offsets = [0, 24], sizes = [16, 8], strides = [1, 1]} : vector<16x128xbf16> to vector<16x8xbf16>
    %67 = vector.extract_strided_slice %16 {offsets = [0, 24], sizes = [16, 8], strides = [1, 1]} : vector<16x128xbf16> to vector<16x8xbf16>
    %68 = vector.extract_strided_slice %17 {offsets = [0, 24], sizes = [16, 8], strides = [1, 1]} : vector<16x128xbf16> to vector<16x8xbf16>
    "tpu.trace_start"() <{level = 10 : i32, message = "qd,kd->qk"}> : () -> ()
    %cst_19 = arith.constant dense<0.000000e+00> : vector<16x16xf32>
    %69 = tpu.matmul %66, %67, %cst_19 {dimension_numbers = #tpu.dot_dimension_numbers<[1], [1], [0], [0], [0, 0, 1, 0], [], []>} : vector<16x8xbf16>, vector<16x8xbf16>, vector<16x16xf32> -> vector<16x16xf32>
    "tpu.trace_stop"() : () -> ()
    %cst_20 = arith.constant dense<0xFF800000> : vector<16xf32>
    %70 = vector.multi_reduction <maximumf>, %69, %cst_20 [1] : vector<16x16xf32> to vector<16xf32>
    %71 = vector.shape_cast %70 : vector<16xf32> to vector<16x1xf32>
    %72 = vector.broadcast %71 : vector<16x1xf32> to vector<16x16xf32>
    %73 = arith.subf %69, %72 : vector<16x16xf32>
    %74 = math.exp %73 : vector<16x16xf32>
    %cst_21 = arith.constant dense<0.000000e+00> : vector<16xf32>
    %75 = vector.multi_reduction <add>, %74, %cst_21 [1] : vector<16x16xf32> to vector<16xf32>
    %76 = vector.shape_cast %75 : vector<16xf32> to vector<16x1xf32>
    %77 = tpu.reciprocal %76 {approx = true} : vector<16x1xf32> -> vector<16x1xf32>
    %78 = vector.broadcast %77 : vector<16x1xf32> to vector<16x16xf32>
    %79 = arith.mulf %74, %78 : vector<16x16xf32>
    %80 = arith.truncf %79 : vector<16x16xf32> to vector<16x16xbf16>
    %cst_22 = arith.constant dense<0.000000e+00> : vector<16x8xf32>
    %81 = tpu.matmul %80, %68, %cst_22 {dimension_numbers = #tpu.dot_dimension_numbers<[1], [0], [0], [1], [0, 0, 1, 1], [], []>} : vector<16x16xbf16>, vector<16x8xbf16>, vector<16x8xf32> -> vector<16x8xf32>
    %82 = vector.extract_strided_slice %15 {offsets = [0, 32], sizes = [16, 8], strides = [1, 1]} : vector<16x128xbf16> to vector<16x8xbf16>
    %83 = vector.extract_strided_slice %16 {offsets = [0, 32], sizes = [16, 8], strides = [1, 1]} : vector<16x128xbf16> to vector<16x8xbf16>
    %84 = vector.extract_strided_slice %17 {offsets = [0, 32], sizes = [16, 8], strides = [1, 1]} : vector<16x128xbf16> to vector<16x8xbf16>
    "tpu.trace_start"() <{level = 10 : i32, message = "qd,kd->qk"}> : () -> ()
    %cst_23 = arith.constant dense<0.000000e+00> : vector<16x16xf32>
    %85 = tpu.matmul %82, %83, %cst_23 {dimension_numbers = #tpu.dot_dimension_numbers<[1], [1], [0], [0], [0, 0, 1, 0], [], []>} : vector<16x8xbf16>, vector<16x8xbf16>, vector<16x16xf32> -> vector<16x16xf32>
    "tpu.trace_stop"() : () -> ()
    %cst_24 = arith.constant dense<0xFF800000> : vector<16xf32>
    %86 = vector.multi_reduction <maximumf>, %85, %cst_24 [1] : vector<16x16xf32> to vector<16xf32>
    %87 = vector.shape_cast %86 : vector<16xf32> to vector<16x1xf32>
    %88 = vector.broadcast %87 : vector<16x1xf32> to vector<16x16xf32>
    %89 = arith.subf %85, %88 : vector<16x16xf32>
    %90 = math.exp %89 : vector<16x16xf32>
    %cst_25 = arith.constant dense<0.000000e+00> : vector<16xf32>
    %91 = vector.multi_reduction <add>, %90, %cst_25 [1] : vector<16x16xf32> to vector<16xf32>
    %92 = vector.shape_cast %91 : vector<16xf32> to vector<16x1xf32>
    %93 = tpu.reciprocal %92 {approx = true} : vector<16x1xf32> -> vector<16x1xf32>
    %94 = vector.broadcast %93 : vector<16x1xf32> to vector<16x16xf32>
    %95 = arith.mulf %90, %94 : vector<16x16xf32>
    %96 = arith.truncf %95 : vector<16x16xf32> to vector<16x16xbf16>
    %cst_26 = arith.constant dense<0.000000e+00> : vector<16x8xf32>
    %97 = tpu.matmul %96, %84, %cst_26 {dimension_numbers = #tpu.dot_dimension_numbers<[1], [0], [0], [1], [0, 0, 1, 1], [], []>} : vector<16x16xbf16>, vector<16x8xbf16>, vector<16x8xf32> -> vector<16x8xf32>
    %98 = vector.extract_strided_slice %15 {offsets = [0, 40], sizes = [16, 8], strides = [1, 1]} : vector<16x128xbf16> to vector<16x8xbf16>
    %99 = vector.extract_strided_slice %16 {offsets = [0, 40], sizes = [16, 8], strides = [1, 1]} : vector<16x128xbf16> to vector<16x8xbf16>
    %100 = vector.extract_strided_slice %17 {offsets = [0, 40], sizes = [16, 8], strides = [1, 1]} : vector<16x128xbf16> to vector<16x8xbf16>
    "tpu.trace_start"() <{level = 10 : i32, message = "qd,kd->qk"}> : () -> ()
    %cst_27 = arith.constant dense<0.000000e+00> : vector<16x16xf32>
    %101 = tpu.matmul %98, %99, %cst_27 {dimension_numbers = #tpu.dot_dimension_numbers<[1], [1], [0], [0], [0, 0, 1, 0], [], []>} : vector<16x8xbf16>, vector<16x8xbf16>, vector<16x16xf32> -> vector<16x16xf32>
    "tpu.trace_stop"() : () -> ()
    %cst_28 = arith.constant dense<0xFF800000> : vector<16xf32>
    %102 = vector.multi_reduction <maximumf>, %101, %cst_28 [1] : vector<16x16xf32> to vector<16xf32>
    %103 = vector.shape_cast %102 : vector<16xf32> to vector<16x1xf32>
    %104 = vector.broadcast %103 : vector<16x1xf32> to vector<16x16xf32>
    %105 = arith.subf %101, %104 : vector<16x16xf32>
    %106 = math.exp %105 : vector<16x16xf32>
    %cst_29 = arith.constant dense<0.000000e+00> : vector<16xf32>
    %107 = vector.multi_reduction <add>, %106, %cst_29 [1] : vector<16x16xf32> to vector<16xf32>
    %108 = vector.shape_cast %107 : vector<16xf32> to vector<16x1xf32>
    %109 = tpu.reciprocal %108 {approx = true} : vector<16x1xf32> -> vector<16x1xf32>
    %110 = vector.broadcast %109 : vector<16x1xf32> to vector<16x16xf32>
    %111 = arith.mulf %106, %110 : vector<16x16xf32>
    %112 = arith.truncf %111 : vector<16x16xf32> to vector<16x16xbf16>
    %cst_30 = arith.constant dense<0.000000e+00> : vector<16x8xf32>
    %113 = tpu.matmul %112, %100, %cst_30 {dimension_numbers = #tpu.dot_dimension_numbers<[1], [0], [0], [1], [0, 0, 1, 1], [], []>} : vector<16x16xbf16>, vector<16x8xbf16>, vector<16x8xf32> -> vector<16x8xf32>
    %114 = vector.extract_strided_slice %15 {offsets = [0, 48], sizes = [16, 8], strides = [1, 1]} : vector<16x128xbf16> to vector<16x8xbf16>
    %115 = vector.extract_strided_slice %16 {offsets = [0, 48], sizes = [16, 8], strides = [1, 1]} : vector<16x128xbf16> to vector<16x8xbf16>
    %116 = vector.extract_strided_slice %17 {offsets = [0, 48], sizes = [16, 8], strides = [1, 1]} : vector<16x128xbf16> to vector<16x8xbf16>
    "tpu.trace_start"() <{level = 10 : i32, message = "qd,kd->qk"}> : () -> ()
    %cst_31 = arith.constant dense<0.000000e+00> : vector<16x16xf32>
    %117 = tpu.matmul %114, %115, %cst_31 {dimension_numbers = #tpu.dot_dimension_numbers<[1], [1], [0], [0], [0, 0, 1, 0], [], []>} : vector<16x8xbf16>, vector<16x8xbf16>, vector<16x16xf32> -> vector<16x16xf32>
    "tpu.trace_stop"() : () -> ()
    %cst_32 = arith.constant dense<0xFF800000> : vector<16xf32>
    %118 = vector.multi_reduction <maximumf>, %117, %cst_32 [1] : vector<16x16xf32> to vector<16xf32>
    %119 = vector.shape_cast %118 : vector<16xf32> to vector<16x1xf32>
    %120 = vector.broadcast %119 : vector<16x1xf32> to vector<16x16xf32>
    %121 = arith.subf %117, %120 : vector<16x16xf32>
    %122 = math.exp %121 : vector<16x16xf32>
    %cst_33 = arith.constant dense<0.000000e+00> : vector<16xf32>
    %123 = vector.multi_reduction <add>, %122, %cst_33 [1] : vector<16x16xf32> to vector<16xf32>
    %124 = vector.shape_cast %123 : vector<16xf32> to vector<16x1xf32>
    %125 = tpu.reciprocal %124 {approx = true} : vector<16x1xf32> -> vector<16x1xf32>
    %126 = vector.broadcast %125 : vector<16x1xf32> to vector<16x16xf32>
    %127 = arith.mulf %122, %126 : vector<16x16xf32>
    %128 = arith.truncf %127 : vector<16x16xf32> to vector<16x16xbf16>
    %cst_34 = arith.constant dense<0.000000e+00> : vector<16x8xf32>
    %129 = tpu.matmul %128, %116, %cst_34 {dimension_numbers = #tpu.dot_dimension_numbers<[1], [0], [0], [1], [0, 0, 1, 1], [], []>} : vector<16x16xbf16>, vector<16x8xbf16>, vector<16x8xf32> -> vector<16x8xf32>
    %130 = vector.extract_strided_slice %15 {offsets = [0, 56], sizes = [16, 8], strides = [1, 1]} : vector<16x128xbf16> to vector<16x8xbf16>
    %131 = vector.extract_strided_slice %16 {offsets = [0, 56], sizes = [16, 8], strides = [1, 1]} : vector<16x128xbf16> to vector<16x8xbf16>
    %132 = vector.extract_strided_slice %17 {offsets = [0, 56], sizes = [16, 8], strides = [1, 1]} : vector<16x128xbf16> to vector<16x8xbf16>
    "tpu.trace_start"() <{level = 10 : i32, message = "qd,kd->qk"}> : () -> ()
    %cst_35 = arith.constant dense<0.000000e+00> : vector<16x16xf32>
    %133 = tpu.matmul %130, %131, %cst_35 {dimension_numbers = #tpu.dot_dimension_numbers<[1], [1], [0], [0], [0, 0, 1, 0], [], []>} : vector<16x8xbf16>, vector<16x8xbf16>, vector<16x16xf32> -> vector<16x16xf32>
    "tpu.trace_stop"() : () -> ()
    %cst_36 = arith.constant dense<0xFF800000> : vector<16xf32>
    %134 = vector.multi_reduction <maximumf>, %133, %cst_36 [1] : vector<16x16xf32> to vector<16xf32>
    %135 = vector.shape_cast %134 : vector<16xf32> to vector<16x1xf32>
    %136 = vector.broadcast %135 : vector<16x1xf32> to vector<16x16xf32>
    %137 = arith.subf %133, %136 : vector<16x16xf32>
    %138 = math.exp %137 : vector<16x16xf32>
    %cst_37 = arith.constant dense<0.000000e+00> : vector<16xf32>
    %139 = vector.multi_reduction <add>, %138, %cst_37 [1] : vector<16x16xf32> to vector<16xf32>
    %140 = vector.shape_cast %139 : vector<16xf32> to vector<16x1xf32>
    %141 = tpu.reciprocal %140 {approx = true} : vector<16x1xf32> -> vector<16x1xf32>
    %142 = vector.broadcast %141 : vector<16x1xf32> to vector<16x16xf32>
    %143 = arith.mulf %138, %142 : vector<16x16xf32>
    %144 = arith.truncf %143 : vector<16x16xf32> to vector<16x16xbf16>
    %cst_38 = arith.constant dense<0.000000e+00> : vector<16x8xf32>
    %145 = tpu.matmul %144, %132, %cst_38 {dimension_numbers = #tpu.dot_dimension_numbers<[1], [0], [0], [1], [0, 0, 1, 1], [], []>} : vector<16x16xbf16>, vector<16x8xbf16>, vector<16x8xf32> -> vector<16x8xf32>
    %146 = vector.extract_strided_slice %15 {offsets = [0, 64], sizes = [16, 8], strides = [1, 1]} : vector<16x128xbf16> to vector<16x8xbf16>
    %147 = vector.extract_strided_slice %16 {offsets = [0, 64], sizes = [16, 8], strides = [1, 1]} : vector<16x128xbf16> to vector<16x8xbf16>
    %148 = vector.extract_strided_slice %17 {offsets = [0, 64], sizes = [16, 8], strides = [1, 1]} : vector<16x128xbf16> to vector<16x8xbf16>
    "tpu.trace_start"() <{level = 10 : i32, message = "qd,kd->qk"}> : () -> ()
    %cst_39 = arith.constant dense<0.000000e+00> : vector<16x16xf32>
    %149 = tpu.matmul %146, %147, %cst_39 {dimension_numbers = #tpu.dot_dimension_numbers<[1], [1], [0], [0], [0, 0, 1, 0], [], []>} : vector<16x8xbf16>, vector<16x8xbf16>, vector<16x16xf32> -> vector<16x16xf32>
    "tpu.trace_stop"() : () -> ()
    %cst_40 = arith.constant dense<0xFF800000> : vector<16xf32>
    %150 = vector.multi_reduction <maximumf>, %149, %cst_40 [1] : vector<16x16xf32> to vector<16xf32>
    %151 = vector.shape_cast %150 : vector<16xf32> to vector<16x1xf32>
    %152 = vector.broadcast %151 : vector<16x1xf32> to vector<16x16xf32>
    %153 = arith.subf %149, %152 : vector<16x16xf32>
    %154 = math.exp %153 : vector<16x16xf32>
    %cst_41 = arith.constant dense<0.000000e+00> : vector<16xf32>
    %155 = vector.multi_reduction <add>, %154, %cst_41 [1] : vector<16x16xf32> to vector<16xf32>
    %156 = vector.shape_cast %155 : vector<16xf32> to vector<16x1xf32>
    %157 = tpu.reciprocal %156 {approx = true} : vector<16x1xf32> -> vector<16x1xf32>
    %158 = vector.broadcast %157 : vector<16x1xf32> to vector<16x16xf32>
    %159 = arith.mulf %154, %158 : vector<16x16xf32>
    %160 = arith.truncf %159 : vector<16x16xf32> to vector<16x16xbf16>
    %cst_42 = arith.constant dense<0.000000e+00> : vector<16x8xf32>
    %161 = tpu.matmul %160, %148, %cst_42 {dimension_numbers = #tpu.dot_dimension_numbers<[1], [0], [0], [1], [0, 0, 1, 1], [], []>} : vector<16x16xbf16>, vector<16x8xbf16>, vector<16x8xf32> -> vector<16x8xf32>
    %162 = vector.extract_strided_slice %15 {offsets = [0, 72], sizes = [16, 8], strides = [1, 1]} : vector<16x128xbf16> to vector<16x8xbf16>
    %163 = vector.extract_strided_slice %16 {offsets = [0, 72], sizes = [16, 8], strides = [1, 1]} : vector<16x128xbf16> to vector<16x8xbf16>
    %164 = vector.extract_strided_slice %17 {offsets = [0, 72], sizes = [16, 8], strides = [1, 1]} : vector<16x128xbf16> to vector<16x8xbf16>
    "tpu.trace_start"() <{level = 10 : i32, message = "qd,kd->qk"}> : () -> ()
    %cst_43 = arith.constant dense<0.000000e+00> : vector<16x16xf32>
    %165 = tpu.matmul %162, %163, %cst_43 {dimension_numbers = #tpu.dot_dimension_numbers<[1], [1], [0], [0], [0, 0, 1, 0], [], []>} : vector<16x8xbf16>, vector<16x8xbf16>, vector<16x16xf32> -> vector<16x16xf32>
    "tpu.trace_stop"() : () -> ()
    %cst_44 = arith.constant dense<0xFF800000> : vector<16xf32>
    %166 = vector.multi_reduction <maximumf>, %165, %cst_44 [1] : vector<16x16xf32> to vector<16xf32>
    %167 = vector.shape_cast %166 : vector<16xf32> to vector<16x1xf32>
    %168 = vector.broadcast %167 : vector<16x1xf32> to vector<16x16xf32>
    %169 = arith.subf %165, %168 : vector<16x16xf32>
    %170 = math.exp %169 : vector<16x16xf32>
    %cst_45 = arith.constant dense<0.000000e+00> : vector<16xf32>
    %171 = vector.multi_reduction <add>, %170, %cst_45 [1] : vector<16x16xf32> to vector<16xf32>
    %172 = vector.shape_cast %171 : vector<16xf32> to vector<16x1xf32>
    %173 = tpu.reciprocal %172 {approx = true} : vector<16x1xf32> -> vector<16x1xf32>
    %174 = vector.broadcast %173 : vector<16x1xf32> to vector<16x16xf32>
    %175 = arith.mulf %170, %174 : vector<16x16xf32>
    %176 = arith.truncf %175 : vector<16x16xf32> to vector<16x16xbf16>
    %cst_46 = arith.constant dense<0.000000e+00> : vector<16x8xf32>
    %177 = tpu.matmul %176, %164, %cst_46 {dimension_numbers = #tpu.dot_dimension_numbers<[1], [0], [0], [1], [0, 0, 1, 1], [], []>} : vector<16x16xbf16>, vector<16x8xbf16>, vector<16x8xf32> -> vector<16x8xf32>
    %178 = vector.extract_strided_slice %15 {offsets = [0, 80], sizes = [16, 8], strides = [1, 1]} : vector<16x128xbf16> to vector<16x8xbf16>
    %179 = vector.extract_strided_slice %16 {offsets = [0, 80], sizes = [16, 8], strides = [1, 1]} : vector<16x128xbf16> to vector<16x8xbf16>
    %180 = vector.extract_strided_slice %17 {offsets = [0, 80], sizes = [16, 8], strides = [1, 1]} : vector<16x128xbf16> to vector<16x8xbf16>
    "tpu.trace_start"() <{level = 10 : i32, message = "qd,kd->qk"}> : () -> ()
    %cst_47 = arith.constant dense<0.000000e+00> : vector<16x16xf32>
    %181 = tpu.matmul %178, %179, %cst_47 {dimension_numbers = #tpu.dot_dimension_numbers<[1], [1], [0], [0], [0, 0, 1, 0], [], []>} : vector<16x8xbf16>, vector<16x8xbf16>, vector<16x16xf32> -> vector<16x16xf32>
    "tpu.trace_stop"() : () -> ()
    %cst_48 = arith.constant dense<0xFF800000> : vector<16xf32>
    %182 = vector.multi_reduction <maximumf>, %181, %cst_48 [1] : vector<16x16xf32> to vector<16xf32>
    %183 = vector.shape_cast %182 : vector<16xf32> to vector<16x1xf32>
    %184 = vector.broadcast %183 : vector<16x1xf32> to vector<16x16xf32>
    %185 = arith.subf %181, %184 : vector<16x16xf32>
    %186 = math.exp %185 : vector<16x16xf32>
    %cst_49 = arith.constant dense<0.000000e+00> : vector<16xf32>
    %187 = vector.multi_reduction <add>, %186, %cst_49 [1] : vector<16x16xf32> to vector<16xf32>
    %188 = vector.shape_cast %187 : vector<16xf32> to vector<16x1xf32>
    %189 = tpu.reciprocal %188 {approx = true} : vector<16x1xf32> -> vector<16x1xf32>
    %190 = vector.broadcast %189 : vector<16x1xf32> to vector<16x16xf32>
    %191 = arith.mulf %186, %190 : vector<16x16xf32>
    %192 = arith.truncf %191 : vector<16x16xf32> to vector<16x16xbf16>
    %cst_50 = arith.constant dense<0.000000e+00> : vector<16x8xf32>
    %193 = tpu.matmul %192, %180, %cst_50 {dimension_numbers = #tpu.dot_dimension_numbers<[1], [0], [0], [1], [0, 0, 1, 1], [], []>} : vector<16x16xbf16>, vector<16x8xbf16>, vector<16x8xf32> -> vector<16x8xf32>
    %194 = vector.extract_strided_slice %15 {offsets = [0, 88], sizes = [16, 8], strides = [1, 1]} : vector<16x128xbf16> to vector<16x8xbf16>
    %195 = vector.extract_strided_slice %16 {offsets = [0, 88], sizes = [16, 8], strides = [1, 1]} : vector<16x128xbf16> to vector<16x8xbf16>
    %196 = vector.extract_strided_slice %17 {offsets = [0, 88], sizes = [16, 8], strides = [1, 1]} : vector<16x128xbf16> to vector<16x8xbf16>
    "tpu.trace_start"() <{level = 10 : i32, message = "qd,kd->qk"}> : () -> ()
    %cst_51 = arith.constant dense<0.000000e+00> : vector<16x16xf32>
    %197 = tpu.matmul %194, %195, %cst_51 {dimension_numbers = #tpu.dot_dimension_numbers<[1], [1], [0], [0], [0, 0, 1, 0], [], []>} : vector<16x8xbf16>, vector<16x8xbf16>, vector<16x16xf32> -> vector<16x16xf32>
    "tpu.trace_stop"() : () -> ()
    %cst_52 = arith.constant dense<0xFF800000> : vector<16xf32>
    %198 = vector.multi_reduction <maximumf>, %197, %cst_52 [1] : vector<16x16xf32> to vector<16xf32>
    %199 = vector.shape_cast %198 : vector<16xf32> to vector<16x1xf32>
    %200 = vector.broadcast %199 : vector<16x1xf32> to vector<16x16xf32>
    %201 = arith.subf %197, %200 : vector<16x16xf32>
    %202 = math.exp %201 : vector<16x16xf32>
    %cst_53 = arith.constant dense<0.000000e+00> : vector<16xf32>
    %203 = vector.multi_reduction <add>, %202, %cst_53 [1] : vector<16x16xf32> to vector<16xf32>
    %204 = vector.shape_cast %203 : vector<16xf32> to vector<16x1xf32>
    %205 = tpu.reciprocal %204 {approx = true} : vector<16x1xf32> -> vector<16x1xf32>
    %206 = vector.broadcast %205 : vector<16x1xf32> to vector<16x16xf32>
    %207 = arith.mulf %202, %206 : vector<16x16xf32>
    %208 = arith.truncf %207 : vector<16x16xf32> to vector<16x16xbf16>
    %cst_54 = arith.constant dense<0.000000e+00> : vector<16x8xf32>
    %209 = tpu.matmul %208, %196, %cst_54 {dimension_numbers = #tpu.dot_dimension_numbers<[1], [0], [0], [1], [0, 0, 1, 1], [], []>} : vector<16x16xbf16>, vector<16x8xbf16>, vector<16x8xf32> -> vector<16x8xf32>
    %210 = tpu.concatenate %33, %49, %65, %81, %97, %113, %129, %145, %161, %177, %193, %209 in 1 : vector<16x8xf32>, vector<16x8xf32>, vector<16x8xf32>, vector<16x8xf32>, vector<16x8xf32>, vector<16x8xf32>, vector<16x8xf32>, vector<16x8xf32>, vector<16x8xf32>, vector<16x8xf32>, vector<16x8xf32>, vector<16x8xf32> -> vector<16x96xf32>
    %211 = arith.truncf %210 : vector<16x96xf32> to vector<16x96xbf16>
    %c0_55 = arith.constant 0 : index
    %c0_56 = arith.constant 0 : index
    %c0_57 = arith.constant 0 : index
    %212 = vector.load %arg4[%c0_55, %c0_56, %c0_57] : memref<2x96x128xbf16, #tpu.memory_space<vmem>>, vector<1x96x128xbf16>
    %213 = vector.shape_cast %212 : vector<1x96x128xbf16> to vector<96x128xbf16>
    %cst_58 = arith.constant dense<0.000000e+00> : vector<16x128xf32>
    %214 = tpu.matmul %211, %213, %cst_58 {dimension_numbers = #tpu.dot_dimension_numbers<[1], [0], [0], [1], [0, 0, 1, 1], [], []>} : vector<16x96xbf16>, vector<96x128xbf16>, vector<16x128xf32> -> vector<16x128xf32>
    %c0_59 = arith.constant 0 : index
    %c0_60 = arith.constant 0 : index
    %c0_61 = arith.constant 0 : index
    %215 = vector.load %arg5[%c0_59, %c0_60, %c0_61] : memref<2x1x128xf32, #tpu.memory_space<vmem>>, vector<1x1x128xf32>
    %216 = vector.shape_cast %215 : vector<1x1x128xf32> to vector<1x128xf32>
    %217 = vector.broadcast %216 : vector<1x128xf32> to vector<16x128xf32>
    %218 = arith.addf %214, %217 : vector<16x128xf32>
    %219 = arith.addf %0, %218 : vector<16x128xf32>
    %c0_62 = arith.constant 0 : index
    %c0_63 = arith.constant 0 : index
    %c0_64 = arith.constant 0 : index
    %220 = vector.load %arg6[%c0_62, %c0_63, %c0_64] : memref<2x1x128xf32, #tpu.memory_space<vmem>>, vector<1x1x128xf32>
    %221 = vector.shape_cast %220 : vector<1x1x128xf32> to vector<1x128xf32>
    %c0_65 = arith.constant 0 : index
    %c0_66 = arith.constant 0 : index
    %c0_67 = arith.constant 0 : index
    %222 = vector.load %arg7[%c0_65, %c0_66, %c0_67] : memref<2x1x128xf32, #tpu.memory_space<vmem>>, vector<1x1x128xf32>
    %223 = vector.shape_cast %222 : vector<1x1x128xf32> to vector<1x128xf32>
    %cst_68 = arith.constant dense<0.000000e+00> : vector<16xf32>
    %224 = vector.multi_reduction <add>, %219, %cst_68 [1] : vector<16x128xf32> to vector<16xf32>
    %225 = vector.shape_cast %224 : vector<16xf32> to vector<16x1xf32>
    %cst_69 = arith.constant 0.010416667 : f32
    %226 = vector.broadcast %cst_69 : f32 to vector<16x1xf32>
    %227 = arith.mulf %225, %226 : vector<16x1xf32>
    %228 = vector.broadcast %227 : vector<16x1xf32> to vector<16x128xf32>
    %229 = arith.subf %219, %228 : vector<16x128xf32>
    %230 = vector.broadcast %5 : vector<1x128xf32> to vector<16x128xf32>
    %231 = arith.mulf %229, %230 : vector<16x128xf32>
    %232 = arith.mulf %231, %231 : vector<16x128xf32>
    %cst_70 = arith.constant dense<0.000000e+00> : vector<16xf32>
    %233 = vector.multi_reduction <add>, %232, %cst_70 [1] : vector<16x128xf32> to vector<16xf32>
    %234 = vector.shape_cast %233 : vector<16xf32> to vector<16x1xf32>
    %cst_71 = arith.constant 0.010416667 : f32
    %235 = vector.broadcast %cst_71 : f32 to vector<16x1xf32>
    %236 = arith.mulf %234, %235 : vector<16x1xf32>
    %cst_72 = arith.constant 9.99999974E-6 : f32
    %237 = vector.broadcast %cst_72 : f32 to vector<16x1xf32>
    %238 = arith.addf %236, %237 : vector<16x1xf32>
    %239 = math.rsqrt %238 : vector<16x1xf32>
    %240 = vector.broadcast %239 : vector<16x1xf32> to vector<16x128xf32>
    %241 = arith.mulf %231, %240 : vector<16x128xf32>
    %242 = vector.broadcast %221 : vector<1x128xf32> to vector<16x128xf32>
    %243 = arith.mulf %241, %242 : vector<16x128xf32>
    %244 = vector.broadcast %223 : vector<1x128xf32> to vector<16x128xf32>
    %245 = arith.addf %243, %244 : vector<16x128xf32>
    %246 = arith.truncf %245 : vector<16x128xf32> to vector<16x128xbf16>
    %c0_73 = arith.constant 0 : index
    %c0_74 = arith.constant 0 : index
    %c0_75 = arith.constant 0 : index
    %247 = vector.load %arg10[%c0_73, %c0_74, %c0_75] : memref<2x128x384xbf16, #tpu.memory_space<vmem>>, vector<1x128x384xbf16>
    %248 = vector.shape_cast %247 : vector<1x128x384xbf16> to vector<128x384xbf16>
    %cst_76 = arith.constant dense<0.000000e+00> : vector<16x384xf32>
    %249 = tpu.matmul %246, %248, %cst_76 {dimension_numbers = #tpu.dot_dimension_numbers<[1], [0], [0], [1], [0, 0, 1, 1], [], []>} : vector<16x128xbf16>, vector<128x384xbf16>, vector<16x384xf32> -> vector<16x384xf32>
    %c0_77 = arith.constant 0 : index
    %c0_78 = arith.constant 0 : index
    %c0_79 = arith.constant 0 : index
    %250 = vector.load %arg11[%c0_77, %c0_78, %c0_79] : memref<2x1x384xf32, #tpu.memory_space<vmem>>, vector<1x1x384xf32>
    %251 = vector.shape_cast %250 : vector<1x1x384xf32> to vector<1x384xf32>
    %252 = vector.broadcast %251 : vector<1x384xf32> to vector<16x384xf32>
    %253 = arith.addf %249, %252 : vector<16x384xf32>
    %254 = arith.mulf %253, %253 : vector<16x384xf32>
    %255 = arith.mulf %253, %254 : vector<16x384xf32>
    %cst_80 = arith.constant 4.471500e-02 : f32
    %256 = vector.broadcast %cst_80 : f32 to vector<16x384xf32>
    %257 = arith.mulf %256, %255 : vector<16x384xf32>
    %258 = arith.addf %253, %257 : vector<16x384xf32>
    %cst_81 = arith.constant 0.797884583 : f32
    %259 = vector.broadcast %cst_81 : f32 to vector<16x384xf32>
    %260 = arith.mulf %259, %258 : vector<16x384xf32>
    %261 = math.tanh %260 : vector<16x384xf32>
    %cst_82 = arith.constant 1.000000e+00 : f32
    %262 = vector.broadcast %cst_82 : f32 to vector<16x384xf32>
    %263 = arith.addf %262, %261 : vector<16x384xf32>
    %cst_83 = arith.constant 5.000000e-01 : f32
    %264 = vector.broadcast %cst_83 : f32 to vector<16x384xf32>
    %265 = arith.mulf %264, %263 : vector<16x384xf32>
    %266 = arith.mulf %253, %265 : vector<16x384xf32>
    %267 = arith.truncf %266 : vector<16x384xf32> to vector<16x384xbf16>
    %c0_84 = arith.constant 0 : index
    %c0_85 = arith.constant 0 : index
    %c0_86 = arith.constant 0 : index
    %268 = vector.load %arg12[%c0_84, %c0_85, %c0_86] : memref<2x384x128xbf16, #tpu.memory_space<vmem>>, vector<1x384x128xbf16>
    %269 = vector.shape_cast %268 : vector<1x384x128xbf16> to vector<384x128xbf16>
    %cst_87 = arith.constant dense<0.000000e+00> : vector<16x128xf32>
    %270 = tpu.matmul %267, %269, %cst_87 {dimension_numbers = #tpu.dot_dimension_numbers<[1], [0], [0], [1], [0, 0, 1, 1], [], []>} : vector<16x384xbf16>, vector<384x128xbf16>, vector<16x128xf32> -> vector<16x128xf32>
    %c0_88 = arith.constant 0 : index
    %c0_89 = arith.constant 0 : index
    %c0_90 = arith.constant 0 : index
    %271 = vector.load %arg13[%c0_88, %c0_89, %c0_90] : memref<2x1x128xf32, #tpu.memory_space<vmem>>, vector<1x1x128xf32>
    %272 = vector.shape_cast %271 : vector<1x1x128xf32> to vector<1x128xf32>
    %273 = vector.broadcast %272 : vector<1x128xf32> to vector<16x128xf32>
    %274 = arith.addf %270, %273 : vector<16x128xf32>
    %275 = arith.addf %245, %274 : vector<16x128xf32>
    %c0_91 = arith.constant 0 : index
    %c0_92 = arith.constant 0 : index
    %c0_93 = arith.constant 0 : index
    %276 = vector.load %arg8[%c0_91, %c0_92, %c0_93] : memref<2x1x128xf32, #tpu.memory_space<vmem>>, vector<1x1x128xf32>
    %277 = vector.shape_cast %276 : vector<1x1x128xf32> to vector<1x128xf32>
    %c0_94 = arith.constant 0 : index
    %c0_95 = arith.constant 0 : index
    %c0_96 = arith.constant 0 : index
    %278 = vector.load %arg9[%c0_94, %c0_95, %c0_96] : memref<2x1x128xf32, #tpu.memory_space<vmem>>, vector<1x1x128xf32>
    %279 = vector.shape_cast %278 : vector<1x1x128xf32> to vector<1x128xf32>
    %cst_97 = arith.constant dense<0.000000e+00> : vector<16xf32>
    %280 = vector.multi_reduction <add>, %275, %cst_97 [1] : vector<16x128xf32> to vector<16xf32>
    %281 = vector.shape_cast %280 : vector<16xf32> to vector<16x1xf32>
    %cst_98 = arith.constant 0.010416667 : f32
    %282 = vector.broadcast %cst_98 : f32 to vector<16x1xf32>
    %283 = arith.mulf %281, %282 : vector<16x1xf32>
    %284 = vector.broadcast %283 : vector<16x1xf32> to vector<16x128xf32>
    %285 = arith.subf %275, %284 : vector<16x128xf32>
    %286 = vector.broadcast %5 : vector<1x128xf32> to vector<16x128xf32>
    %287 = arith.mulf %285, %286 : vector<16x128xf32>
    %288 = arith.mulf %287, %287 : vector<16x128xf32>
    %cst_99 = arith.constant dense<0.000000e+00> : vector<16xf32>
    %289 = vector.multi_reduction <add>, %288, %cst_99 [1] : vector<16x128xf32> to vector<16xf32>
    %290 = vector.shape_cast %289 : vector<16xf32> to vector<16x1xf32>
    %cst_100 = arith.constant 0.010416667 : f32
    %291 = vector.broadcast %cst_100 : f32 to vector<16x1xf32>
    %292 = arith.mulf %290, %291 : vector<16x1xf32>
    %cst_101 = arith.constant 9.99999974E-6 : f32
    %293 = vector.broadcast %cst_101 : f32 to vector<16x1xf32>
    %294 = arith.addf %292, %293 : vector<16x1xf32>
    %295 = math.rsqrt %294 : vector<16x1xf32>
    %296 = vector.broadcast %295 : vector<16x1xf32> to vector<16x128xf32>
    %297 = arith.mulf %287, %296 : vector<16x128xf32>
    %298 = vector.broadcast %277 : vector<1x128xf32> to vector<16x128xf32>
    %299 = arith.mulf %297, %298 : vector<16x128xf32>
    %300 = vector.broadcast %279 : vector<1x128xf32> to vector<16x128xf32>
    %301 = arith.addf %299, %300 : vector<16x128xf32>
    %302 = arith.truncf %301 : vector<16x128xf32> to vector<16x128xbf16>
    %c1 = arith.constant 1 : index
    %c0_102 = arith.constant 0 : index
    %c0_103 = arith.constant 0 : index
    %303 = vector.load %arg2[%c1, %c0_102, %c0_103] : memref<2x128x384xbf16, #tpu.memory_space<vmem>>, vector<1x128x384xbf16>
    %304 = vector.shape_cast %303 : vector<1x128x384xbf16> to vector<128x384xbf16>
    %cst_104 = arith.constant dense<0.000000e+00> : vector<16x384xf32>
    %305 = tpu.matmul %302, %304, %cst_104 {dimension_numbers = #tpu.dot_dimension_numbers<[1], [0], [0], [1], [0, 0, 1, 1], [], []>} : vector<16x128xbf16>, vector<128x384xbf16>, vector<16x384xf32> -> vector<16x384xf32>
    %c1_105 = arith.constant 1 : index
    %c0_106 = arith.constant 0 : index
    %c0_107 = arith.constant 0 : index
    %306 = vector.load %arg3[%c1_105, %c0_106, %c0_107] : memref<2x1x384xf32, #tpu.memory_space<vmem>>, vector<1x1x384xf32>
    %307 = vector.shape_cast %306 : vector<1x1x384xf32> to vector<1x384xf32>
    %308 = vector.broadcast %307 : vector<1x384xf32> to vector<16x384xf32>
    %309 = arith.addf %305, %308 : vector<16x384xf32>
    %310 = arith.truncf %309 : vector<16x384xf32> to vector<16x384xbf16>
    %311 = vector.extract_strided_slice %310 {offsets = [0, 0], sizes = [16, 128], strides = [1, 1]} : vector<16x384xbf16> to vector<16x128xbf16>
    %312 = vector.extract_strided_slice %310 {offsets = [0, 128], sizes = [16, 128], strides = [1, 1]} : vector<16x384xbf16> to vector<16x128xbf16>
    %313 = vector.extract_strided_slice %310 {offsets = [0, 256], sizes = [16, 128], strides = [1, 1]} : vector<16x384xbf16> to vector<16x128xbf16>
    %314 = vector.extract_strided_slice %311 {offsets = [0, 0], sizes = [16, 8], strides = [1, 1]} : vector<16x128xbf16> to vector<16x8xbf16>
    %315 = vector.extract_strided_slice %312 {offsets = [0, 0], sizes = [16, 8], strides = [1, 1]} : vector<16x128xbf16> to vector<16x8xbf16>
    %316 = vector.extract_strided_slice %313 {offsets = [0, 0], sizes = [16, 8], strides = [1, 1]} : vector<16x128xbf16> to vector<16x8xbf16>
    "tpu.trace_start"() <{level = 10 : i32, message = "qd,kd->qk"}> : () -> ()
    %cst_108 = arith.constant dense<0.000000e+00> : vector<16x16xf32>
    %317 = tpu.matmul %314, %315, %cst_108 {dimension_numbers = #tpu.dot_dimension_numbers<[1], [1], [0], [0], [0, 0, 1, 0], [], []>} : vector<16x8xbf16>, vector<16x8xbf16>, vector<16x16xf32> -> vector<16x16xf32>
    "tpu.trace_stop"() : () -> ()
    %cst_109 = arith.constant dense<0xFF800000> : vector<16xf32>
    %318 = vector.multi_reduction <maximumf>, %317, %cst_109 [1] : vector<16x16xf32> to vector<16xf32>
    %319 = vector.shape_cast %318 : vector<16xf32> to vector<16x1xf32>
    %320 = vector.broadcast %319 : vector<16x1xf32> to vector<16x16xf32>
    %321 = arith.subf %317, %320 : vector<16x16xf32>
    %322 = math.exp %321 : vector<16x16xf32>
    %cst_110 = arith.constant dense<0.000000e+00> : vector<16xf32>
    %323 = vector.multi_reduction <add>, %322, %cst_110 [1] : vector<16x16xf32> to vector<16xf32>
    %324 = vector.shape_cast %323 : vector<16xf32> to vector<16x1xf32>
    %325 = tpu.reciprocal %324 {approx = true} : vector<16x1xf32> -> vector<16x1xf32>
    %326 = vector.broadcast %325 : vector<16x1xf32> to vector<16x16xf32>
    %327 = arith.mulf %322, %326 : vector<16x16xf32>
    %328 = arith.truncf %327 : vector<16x16xf32> to vector<16x16xbf16>
    %cst_111 = arith.constant dense<0.000000e+00> : vector<16x8xf32>
    %329 = tpu.matmul %328, %316, %cst_111 {dimension_numbers = #tpu.dot_dimension_numbers<[1], [0], [0], [1], [0, 0, 1, 1], [], []>} : vector<16x16xbf16>, vector<16x8xbf16>, vector<16x8xf32> -> vector<16x8xf32>
    %330 = vector.extract_strided_slice %311 {offsets = [0, 8], sizes = [16, 8], strides = [1, 1]} : vector<16x128xbf16> to vector<16x8xbf16>
    %331 = vector.extract_strided_slice %312 {offsets = [0, 8], sizes = [16, 8], strides = [1, 1]} : vector<16x128xbf16> to vector<16x8xbf16>
    %332 = vector.extract_strided_slice %313 {offsets = [0, 8], sizes = [16, 8], strides = [1, 1]} : vector<16x128xbf16> to vector<16x8xbf16>
    "tpu.trace_start"() <{level = 10 : i32, message = "qd,kd->qk"}> : () -> ()
    %cst_112 = arith.constant dense<0.000000e+00> : vector<16x16xf32>
    %333 = tpu.matmul %330, %331, %cst_112 {dimension_numbers = #tpu.dot_dimension_numbers<[1], [1], [0], [0], [0, 0, 1, 0], [], []>} : vector<16x8xbf16>, vector<16x8xbf16>, vector<16x16xf32> -> vector<16x16xf32>
    "tpu.trace_stop"() : () -> ()
    %cst_113 = arith.constant dense<0xFF800000> : vector<16xf32>
    %334 = vector.multi_reduction <maximumf>, %333, %cst_113 [1] : vector<16x16xf32> to vector<16xf32>
    %335 = vector.shape_cast %334 : vector<16xf32> to vector<16x1xf32>
    %336 = vector.broadcast %335 : vector<16x1xf32> to vector<16x16xf32>
    %337 = arith.subf %333, %336 : vector<16x16xf32>
    %338 = math.exp %337 : vector<16x16xf32>
    %cst_114 = arith.constant dense<0.000000e+00> : vector<16xf32>
    %339 = vector.multi_reduction <add>, %338, %cst_114 [1] : vector<16x16xf32> to vector<16xf32>
    %340 = vector.shape_cast %339 : vector<16xf32> to vector<16x1xf32>
    %341 = tpu.reciprocal %340 {approx = true} : vector<16x1xf32> -> vector<16x1xf32>
    %342 = vector.broadcast %341 : vector<16x1xf32> to vector<16x16xf32>
    %343 = arith.mulf %338, %342 : vector<16x16xf32>
    %344 = arith.truncf %343 : vector<16x16xf32> to vector<16x16xbf16>
    %cst_115 = arith.constant dense<0.000000e+00> : vector<16x8xf32>
    %345 = tpu.matmul %344, %332, %cst_115 {dimension_numbers = #tpu.dot_dimension_numbers<[1], [0], [0], [1], [0, 0, 1, 1], [], []>} : vector<16x16xbf16>, vector<16x8xbf16>, vector<16x8xf32> -> vector<16x8xf32>
    %346 = vector.extract_strided_slice %311 {offsets = [0, 16], sizes = [16, 8], strides = [1, 1]} : vector<16x128xbf16> to vector<16x8xbf16>
    %347 = vector.extract_strided_slice %312 {offsets = [0, 16], sizes = [16, 8], strides = [1, 1]} : vector<16x128xbf16> to vector<16x8xbf16>
    %348 = vector.extract_strided_slice %313 {offsets = [0, 16], sizes = [16, 8], strides = [1, 1]} : vector<16x128xbf16> to vector<16x8xbf16>
    "tpu.trace_start"() <{level = 10 : i32, message = "qd,kd->qk"}> : () -> ()
    %cst_116 = arith.constant dense<0.000000e+00> : vector<16x16xf32>
    %349 = tpu.matmul %346, %347, %cst_116 {dimension_numbers = #tpu.dot_dimension_numbers<[1], [1], [0], [0], [0, 0, 1, 0], [], []>} : vector<16x8xbf16>, vector<16x8xbf16>, vector<16x16xf32> -> vector<16x16xf32>
    "tpu.trace_stop"() : () -> ()
    %cst_117 = arith.constant dense<0xFF800000> : vector<16xf32>
    %350 = vector.multi_reduction <maximumf>, %349, %cst_117 [1] : vector<16x16xf32> to vector<16xf32>
    %351 = vector.shape_cast %350 : vector<16xf32> to vector<16x1xf32>
    %352 = vector.broadcast %351 : vector<16x1xf32> to vector<16x16xf32>
    %353 = arith.subf %349, %352 : vector<16x16xf32>
    %354 = math.exp %353 : vector<16x16xf32>
    %cst_118 = arith.constant dense<0.000000e+00> : vector<16xf32>
    %355 = vector.multi_reduction <add>, %354, %cst_118 [1] : vector<16x16xf32> to vector<16xf32>
    %356 = vector.shape_cast %355 : vector<16xf32> to vector<16x1xf32>
    %357 = tpu.reciprocal %356 {approx = true} : vector<16x1xf32> -> vector<16x1xf32>
    %358 = vector.broadcast %357 : vector<16x1xf32> to vector<16x16xf32>
    %359 = arith.mulf %354, %358 : vector<16x16xf32>
    %360 = arith.truncf %359 : vector<16x16xf32> to vector<16x16xbf16>
    %cst_119 = arith.constant dense<0.000000e+00> : vector<16x8xf32>
    %361 = tpu.matmul %360, %348, %cst_119 {dimension_numbers = #tpu.dot_dimension_numbers<[1], [0], [0], [1], [0, 0, 1, 1], [], []>} : vector<16x16xbf16>, vector<16x8xbf16>, vector<16x8xf32> -> vector<16x8xf32>
    %362 = vector.extract_strided_slice %311 {offsets = [0, 24], sizes = [16, 8], strides = [1, 1]} : vector<16x128xbf16> to vector<16x8xbf16>
    %363 = vector.extract_strided_slice %312 {offsets = [0, 24], sizes = [16, 8], strides = [1, 1]} : vector<16x128xbf16> to vector<16x8xbf16>
    %364 = vector.extract_strided_slice %313 {offsets = [0, 24], sizes = [16, 8], strides = [1, 1]} : vector<16x128xbf16> to vector<16x8xbf16>
    "tpu.trace_start"() <{level = 10 : i32, message = "qd,kd->qk"}> : () -> ()
    %cst_120 = arith.constant dense<0.000000e+00> : vector<16x16xf32>
    %365 = tpu.matmul %362, %363, %cst_120 {dimension_numbers = #tpu.dot_dimension_numbers<[1], [1], [0], [0], [0, 0, 1, 0], [], []>} : vector<16x8xbf16>, vector<16x8xbf16>, vector<16x16xf32> -> vector<16x16xf32>
    "tpu.trace_stop"() : () -> ()
    %cst_121 = arith.constant dense<0xFF800000> : vector<16xf32>
    %366 = vector.multi_reduction <maximumf>, %365, %cst_121 [1] : vector<16x16xf32> to vector<16xf32>
    %367 = vector.shape_cast %366 : vector<16xf32> to vector<16x1xf32>
    %368 = vector.broadcast %367 : vector<16x1xf32> to vector<16x16xf32>
    %369 = arith.subf %365, %368 : vector<16x16xf32>
    %370 = math.exp %369 : vector<16x16xf32>
    %cst_122 = arith.constant dense<0.000000e+00> : vector<16xf32>
    %371 = vector.multi_reduction <add>, %370, %cst_122 [1] : vector<16x16xf32> to vector<16xf32>
    %372 = vector.shape_cast %371 : vector<16xf32> to vector<16x1xf32>
    %373 = tpu.reciprocal %372 {approx = true} : vector<16x1xf32> -> vector<16x1xf32>
    %374 = vector.broadcast %373 : vector<16x1xf32> to vector<16x16xf32>
    %375 = arith.mulf %370, %374 : vector<16x16xf32>
    %376 = arith.truncf %375 : vector<16x16xf32> to vector<16x16xbf16>
    %cst_123 = arith.constant dense<0.000000e+00> : vector<16x8xf32>
    %377 = tpu.matmul %376, %364, %cst_123 {dimension_numbers = #tpu.dot_dimension_numbers<[1], [0], [0], [1], [0, 0, 1, 1], [], []>} : vector<16x16xbf16>, vector<16x8xbf16>, vector<16x8xf32> -> vector<16x8xf32>
    %378 = vector.extract_strided_slice %311 {offsets = [0, 32], sizes = [16, 8], strides = [1, 1]} : vector<16x128xbf16> to vector<16x8xbf16>
    %379 = vector.extract_strided_slice %312 {offsets = [0, 32], sizes = [16, 8], strides = [1, 1]} : vector<16x128xbf16> to vector<16x8xbf16>
    %380 = vector.extract_strided_slice %313 {offsets = [0, 32], sizes = [16, 8], strides = [1, 1]} : vector<16x128xbf16> to vector<16x8xbf16>
    "tpu.trace_start"() <{level = 10 : i32, message = "qd,kd->qk"}> : () -> ()
    %cst_124 = arith.constant dense<0.000000e+00> : vector<16x16xf32>
    %381 = tpu.matmul %378, %379, %cst_124 {dimension_numbers = #tpu.dot_dimension_numbers<[1], [1], [0], [0], [0, 0, 1, 0], [], []>} : vector<16x8xbf16>, vector<16x8xbf16>, vector<16x16xf32> -> vector<16x16xf32>
    "tpu.trace_stop"() : () -> ()
    %cst_125 = arith.constant dense<0xFF800000> : vector<16xf32>
    %382 = vector.multi_reduction <maximumf>, %381, %cst_125 [1] : vector<16x16xf32> to vector<16xf32>
    %383 = vector.shape_cast %382 : vector<16xf32> to vector<16x1xf32>
    %384 = vector.broadcast %383 : vector<16x1xf32> to vector<16x16xf32>
    %385 = arith.subf %381, %384 : vector<16x16xf32>
    %386 = math.exp %385 : vector<16x16xf32>
    %cst_126 = arith.constant dense<0.000000e+00> : vector<16xf32>
    %387 = vector.multi_reduction <add>, %386, %cst_126 [1] : vector<16x16xf32> to vector<16xf32>
    %388 = vector.shape_cast %387 : vector<16xf32> to vector<16x1xf32>
    %389 = tpu.reciprocal %388 {approx = true} : vector<16x1xf32> -> vector<16x1xf32>
    %390 = vector.broadcast %389 : vector<16x1xf32> to vector<16x16xf32>
    %391 = arith.mulf %386, %390 : vector<16x16xf32>
    %392 = arith.truncf %391 : vector<16x16xf32> to vector<16x16xbf16>
    %cst_127 = arith.constant dense<0.000000e+00> : vector<16x8xf32>
    %393 = tpu.matmul %392, %380, %cst_127 {dimension_numbers = #tpu.dot_dimension_numbers<[1], [0], [0], [1], [0, 0, 1, 1], [], []>} : vector<16x16xbf16>, vector<16x8xbf16>, vector<16x8xf32> -> vector<16x8xf32>
    %394 = vector.extract_strided_slice %311 {offsets = [0, 40], sizes = [16, 8], strides = [1, 1]} : vector<16x128xbf16> to vector<16x8xbf16>
    %395 = vector.extract_strided_slice %312 {offsets = [0, 40], sizes = [16, 8], strides = [1, 1]} : vector<16x128xbf16> to vector<16x8xbf16>
    %396 = vector.extract_strided_slice %313 {offsets = [0, 40], sizes = [16, 8], strides = [1, 1]} : vector<16x128xbf16> to vector<16x8xbf16>
    "tpu.trace_start"() <{level = 10 : i32, message = "qd,kd->qk"}> : () -> ()
    %cst_128 = arith.constant dense<0.000000e+00> : vector<16x16xf32>
    %397 = tpu.matmul %394, %395, %cst_128 {dimension_numbers = #tpu.dot_dimension_numbers<[1], [1], [0], [0], [0, 0, 1, 0], [], []>} : vector<16x8xbf16>, vector<16x8xbf16>, vector<16x16xf32> -> vector<16x16xf32>
    "tpu.trace_stop"() : () -> ()
    %cst_129 = arith.constant dense<0xFF800000> : vector<16xf32>
    %398 = vector.multi_reduction <maximumf>, %397, %cst_129 [1] : vector<16x16xf32> to vector<16xf32>
    %399 = vector.shape_cast %398 : vector<16xf32> to vector<16x1xf32>
    %400 = vector.broadcast %399 : vector<16x1xf32> to vector<16x16xf32>
    %401 = arith.subf %397, %400 : vector<16x16xf32>
    %402 = math.exp %401 : vector<16x16xf32>
    %cst_130 = arith.constant dense<0.000000e+00> : vector<16xf32>
    %403 = vector.multi_reduction <add>, %402, %cst_130 [1] : vector<16x16xf32> to vector<16xf32>
    %404 = vector.shape_cast %403 : vector<16xf32> to vector<16x1xf32>
    %405 = tpu.reciprocal %404 {approx = true} : vector<16x1xf32> -> vector<16x1xf32>
    %406 = vector.broadcast %405 : vector<16x1xf32> to vector<16x16xf32>
    %407 = arith.mulf %402, %406 : vector<16x16xf32>
    %408 = arith.truncf %407 : vector<16x16xf32> to vector<16x16xbf16>
    %cst_131 = arith.constant dense<0.000000e+00> : vector<16x8xf32>
    %409 = tpu.matmul %408, %396, %cst_131 {dimension_numbers = #tpu.dot_dimension_numbers<[1], [0], [0], [1], [0, 0, 1, 1], [], []>} : vector<16x16xbf16>, vector<16x8xbf16>, vector<16x8xf32> -> vector<16x8xf32>
    %410 = vector.extract_strided_slice %311 {offsets = [0, 48], sizes = [16, 8], strides = [1, 1]} : vector<16x128xbf16> to vector<16x8xbf16>
    %411 = vector.extract_strided_slice %312 {offsets = [0, 48], sizes = [16, 8], strides = [1, 1]} : vector<16x128xbf16> to vector<16x8xbf16>
    %412 = vector.extract_strided_slice %313 {offsets = [0, 48], sizes = [16, 8], strides = [1, 1]} : vector<16x128xbf16> to vector<16x8xbf16>
    "tpu.trace_start"() <{level = 10 : i32, message = "qd,kd->qk"}> : () -> ()
    %cst_132 = arith.constant dense<0.000000e+00> : vector<16x16xf32>
    %413 = tpu.matmul %410, %411, %cst_132 {dimension_numbers = #tpu.dot_dimension_numbers<[1], [1], [0], [0], [0, 0, 1, 0], [], []>} : vector<16x8xbf16>, vector<16x8xbf16>, vector<16x16xf32> -> vector<16x16xf32>
    "tpu.trace_stop"() : () -> ()
    %cst_133 = arith.constant dense<0xFF800000> : vector<16xf32>
    %414 = vector.multi_reduction <maximumf>, %413, %cst_133 [1] : vector<16x16xf32> to vector<16xf32>
    %415 = vector.shape_cast %414 : vector<16xf32> to vector<16x1xf32>
    %416 = vector.broadcast %415 : vector<16x1xf32> to vector<16x16xf32>
    %417 = arith.subf %413, %416 : vector<16x16xf32>
    %418 = math.exp %417 : vector<16x16xf32>
    %cst_134 = arith.constant dense<0.000000e+00> : vector<16xf32>
    %419 = vector.multi_reduction <add>, %418, %cst_134 [1] : vector<16x16xf32> to vector<16xf32>
    %420 = vector.shape_cast %419 : vector<16xf32> to vector<16x1xf32>
    %421 = tpu.reciprocal %420 {approx = true} : vector<16x1xf32> -> vector<16x1xf32>
    %422 = vector.broadcast %421 : vector<16x1xf32> to vector<16x16xf32>
    %423 = arith.mulf %418, %422 : vector<16x16xf32>
    %424 = arith.truncf %423 : vector<16x16xf32> to vector<16x16xbf16>
    %cst_135 = arith.constant dense<0.000000e+00> : vector<16x8xf32>
    %425 = tpu.matmul %424, %412, %cst_135 {dimension_numbers = #tpu.dot_dimension_numbers<[1], [0], [0], [1], [0, 0, 1, 1], [], []>} : vector<16x16xbf16>, vector<16x8xbf16>, vector<16x8xf32> -> vector<16x8xf32>
    %426 = vector.extract_strided_slice %311 {offsets = [0, 56], sizes = [16, 8], strides = [1, 1]} : vector<16x128xbf16> to vector<16x8xbf16>
    %427 = vector.extract_strided_slice %312 {offsets = [0, 56], sizes = [16, 8], strides = [1, 1]} : vector<16x128xbf16> to vector<16x8xbf16>
    %428 = vector.extract_strided_slice %313 {offsets = [0, 56], sizes = [16, 8], strides = [1, 1]} : vector<16x128xbf16> to vector<16x8xbf16>
    "tpu.trace_start"() <{level = 10 : i32, message = "qd,kd->qk"}> : () -> ()
    %cst_136 = arith.constant dense<0.000000e+00> : vector<16x16xf32>
    %429 = tpu.matmul %426, %427, %cst_136 {dimension_numbers = #tpu.dot_dimension_numbers<[1], [1], [0], [0], [0, 0, 1, 0], [], []>} : vector<16x8xbf16>, vector<16x8xbf16>, vector<16x16xf32> -> vector<16x16xf32>
    "tpu.trace_stop"() : () -> ()
    %cst_137 = arith.constant dense<0xFF800000> : vector<16xf32>
    %430 = vector.multi_reduction <maximumf>, %429, %cst_137 [1] : vector<16x16xf32> to vector<16xf32>
    %431 = vector.shape_cast %430 : vector<16xf32> to vector<16x1xf32>
    %432 = vector.broadcast %431 : vector<16x1xf32> to vector<16x16xf32>
    %433 = arith.subf %429, %432 : vector<16x16xf32>
    %434 = math.exp %433 : vector<16x16xf32>
    %cst_138 = arith.constant dense<0.000000e+00> : vector<16xf32>
    %435 = vector.multi_reduction <add>, %434, %cst_138 [1] : vector<16x16xf32> to vector<16xf32>
    %436 = vector.shape_cast %435 : vector<16xf32> to vector<16x1xf32>
    %437 = tpu.reciprocal %436 {approx = true} : vector<16x1xf32> -> vector<16x1xf32>
    %438 = vector.broadcast %437 : vector<16x1xf32> to vector<16x16xf32>
    %439 = arith.mulf %434, %438 : vector<16x16xf32>
    %440 = arith.truncf %439 : vector<16x16xf32> to vector<16x16xbf16>
    %cst_139 = arith.constant dense<0.000000e+00> : vector<16x8xf32>
    %441 = tpu.matmul %440, %428, %cst_139 {dimension_numbers = #tpu.dot_dimension_numbers<[1], [0], [0], [1], [0, 0, 1, 1], [], []>} : vector<16x16xbf16>, vector<16x8xbf16>, vector<16x8xf32> -> vector<16x8xf32>
    %442 = vector.extract_strided_slice %311 {offsets = [0, 64], sizes = [16, 8], strides = [1, 1]} : vector<16x128xbf16> to vector<16x8xbf16>
    %443 = vector.extract_strided_slice %312 {offsets = [0, 64], sizes = [16, 8], strides = [1, 1]} : vector<16x128xbf16> to vector<16x8xbf16>
    %444 = vector.extract_strided_slice %313 {offsets = [0, 64], sizes = [16, 8], strides = [1, 1]} : vector<16x128xbf16> to vector<16x8xbf16>
    "tpu.trace_start"() <{level = 10 : i32, message = "qd,kd->qk"}> : () -> ()
    %cst_140 = arith.constant dense<0.000000e+00> : vector<16x16xf32>
    %445 = tpu.matmul %442, %443, %cst_140 {dimension_numbers = #tpu.dot_dimension_numbers<[1], [1], [0], [0], [0, 0, 1, 0], [], []>} : vector<16x8xbf16>, vector<16x8xbf16>, vector<16x16xf32> -> vector<16x16xf32>
    "tpu.trace_stop"() : () -> ()
    %cst_141 = arith.constant dense<0xFF800000> : vector<16xf32>
    %446 = vector.multi_reduction <maximumf>, %445, %cst_141 [1] : vector<16x16xf32> to vector<16xf32>
    %447 = vector.shape_cast %446 : vector<16xf32> to vector<16x1xf32>
    %448 = vector.broadcast %447 : vector<16x1xf32> to vector<16x16xf32>
    %449 = arith.subf %445, %448 : vector<16x16xf32>
    %450 = math.exp %449 : vector<16x16xf32>
    %cst_142 = arith.constant dense<0.000000e+00> : vector<16xf32>
    %451 = vector.multi_reduction <add>, %450, %cst_142 [1] : vector<16x16xf32> to vector<16xf32>
    %452 = vector.shape_cast %451 : vector<16xf32> to vector<16x1xf32>
    %453 = tpu.reciprocal %452 {approx = true} : vector<16x1xf32> -> vector<16x1xf32>
    %454 = vector.broadcast %453 : vector<16x1xf32> to vector<16x16xf32>
    %455 = arith.mulf %450, %454 : vector<16x16xf32>
    %456 = arith.truncf %455 : vector<16x16xf32> to vector<16x16xbf16>
    %cst_143 = arith.constant dense<0.000000e+00> : vector<16x8xf32>
    %457 = tpu.matmul %456, %444, %cst_143 {dimension_numbers = #tpu.dot_dimension_numbers<[1], [0], [0], [1], [0, 0, 1, 1], [], []>} : vector<16x16xbf16>, vector<16x8xbf16>, vector<16x8xf32> -> vector<16x8xf32>
    %458 = vector.extract_strided_slice %311 {offsets = [0, 72], sizes = [16, 8], strides = [1, 1]} : vector<16x128xbf16> to vector<16x8xbf16>
    %459 = vector.extract_strided_slice %312 {offsets = [0, 72], sizes = [16, 8], strides = [1, 1]} : vector<16x128xbf16> to vector<16x8xbf16>
    %460 = vector.extract_strided_slice %313 {offsets = [0, 72], sizes = [16, 8], strides = [1, 1]} : vector<16x128xbf16> to vector<16x8xbf16>
    "tpu.trace_start"() <{level = 10 : i32, message = "qd,kd->qk"}> : () -> ()
    %cst_144 = arith.constant dense<0.000000e+00> : vector<16x16xf32>
    %461 = tpu.matmul %458, %459, %cst_144 {dimension_numbers = #tpu.dot_dimension_numbers<[1], [1], [0], [0], [0, 0, 1, 0], [], []>} : vector<16x8xbf16>, vector<16x8xbf16>, vector<16x16xf32> -> vector<16x16xf32>
    "tpu.trace_stop"() : () -> ()
    %cst_145 = arith.constant dense<0xFF800000> : vector<16xf32>
    %462 = vector.multi_reduction <maximumf>, %461, %cst_145 [1] : vector<16x16xf32> to vector<16xf32>
    %463 = vector.shape_cast %462 : vector<16xf32> to vector<16x1xf32>
    %464 = vector.broadcast %463 : vector<16x1xf32> to vector<16x16xf32>
    %465 = arith.subf %461, %464 : vector<16x16xf32>
    %466 = math.exp %465 : vector<16x16xf32>
    %cst_146 = arith.constant dense<0.000000e+00> : vector<16xf32>
    %467 = vector.multi_reduction <add>, %466, %cst_146 [1] : vector<16x16xf32> to vector<16xf32>
    %468 = vector.shape_cast %467 : vector<16xf32> to vector<16x1xf32>
    %469 = tpu.reciprocal %468 {approx = true} : vector<16x1xf32> -> vector<16x1xf32>
    %470 = vector.broadcast %469 : vector<16x1xf32> to vector<16x16xf32>
    %471 = arith.mulf %466, %470 : vector<16x16xf32>
    %472 = arith.truncf %471 : vector<16x16xf32> to vector<16x16xbf16>
    %cst_147 = arith.constant dense<0.000000e+00> : vector<16x8xf32>
    %473 = tpu.matmul %472, %460, %cst_147 {dimension_numbers = #tpu.dot_dimension_numbers<[1], [0], [0], [1], [0, 0, 1, 1], [], []>} : vector<16x16xbf16>, vector<16x8xbf16>, vector<16x8xf32> -> vector<16x8xf32>
    %474 = vector.extract_strided_slice %311 {offsets = [0, 80], sizes = [16, 8], strides = [1, 1]} : vector<16x128xbf16> to vector<16x8xbf16>
    %475 = vector.extract_strided_slice %312 {offsets = [0, 80], sizes = [16, 8], strides = [1, 1]} : vector<16x128xbf16> to vector<16x8xbf16>
    %476 = vector.extract_strided_slice %313 {offsets = [0, 80], sizes = [16, 8], strides = [1, 1]} : vector<16x128xbf16> to vector<16x8xbf16>
    "tpu.trace_start"() <{level = 10 : i32, message = "qd,kd->qk"}> : () -> ()
    %cst_148 = arith.constant dense<0.000000e+00> : vector<16x16xf32>
    %477 = tpu.matmul %474, %475, %cst_148 {dimension_numbers = #tpu.dot_dimension_numbers<[1], [1], [0], [0], [0, 0, 1, 0], [], []>} : vector<16x8xbf16>, vector<16x8xbf16>, vector<16x16xf32> -> vector<16x16xf32>
    "tpu.trace_stop"() : () -> ()
    %cst_149 = arith.constant dense<0xFF800000> : vector<16xf32>
    %478 = vector.multi_reduction <maximumf>, %477, %cst_149 [1] : vector<16x16xf32> to vector<16xf32>
    %479 = vector.shape_cast %478 : vector<16xf32> to vector<16x1xf32>
    %480 = vector.broadcast %479 : vector<16x1xf32> to vector<16x16xf32>
    %481 = arith.subf %477, %480 : vector<16x16xf32>
    %482 = math.exp %481 : vector<16x16xf32>
    %cst_150 = arith.constant dense<0.000000e+00> : vector<16xf32>
    %483 = vector.multi_reduction <add>, %482, %cst_150 [1] : vector<16x16xf32> to vector<16xf32>
    %484 = vector.shape_cast %483 : vector<16xf32> to vector<16x1xf32>
    %485 = tpu.reciprocal %484 {approx = true} : vector<16x1xf32> -> vector<16x1xf32>
    %486 = vector.broadcast %485 : vector<16x1xf32> to vector<16x16xf32>
    %487 = arith.mulf %482, %486 : vector<16x16xf32>
    %488 = arith.truncf %487 : vector<16x16xf32> to vector<16x16xbf16>
    %cst_151 = arith.constant dense<0.000000e+00> : vector<16x8xf32>
    %489 = tpu.matmul %488, %476, %cst_151 {dimension_numbers = #tpu.dot_dimension_numbers<[1], [0], [0], [1], [0, 0, 1, 1], [], []>} : vector<16x16xbf16>, vector<16x8xbf16>, vector<16x8xf32> -> vector<16x8xf32>
    %490 = vector.extract_strided_slice %311 {offsets = [0, 88], sizes = [16, 8], strides = [1, 1]} : vector<16x128xbf16> to vector<16x8xbf16>
    %491 = vector.extract_strided_slice %312 {offsets = [0, 88], sizes = [16, 8], strides = [1, 1]} : vector<16x128xbf16> to vector<16x8xbf16>
    %492 = vector.extract_strided_slice %313 {offsets = [0, 88], sizes = [16, 8], strides = [1, 1]} : vector<16x128xbf16> to vector<16x8xbf16>
    "tpu.trace_start"() <{level = 10 : i32, message = "qd,kd->qk"}> : () -> ()
    %cst_152 = arith.constant dense<0.000000e+00> : vector<16x16xf32>
    %493 = tpu.matmul %490, %491, %cst_152 {dimension_numbers = #tpu.dot_dimension_numbers<[1], [1], [0], [0], [0, 0, 1, 0], [], []>} : vector<16x8xbf16>, vector<16x8xbf16>, vector<16x16xf32> -> vector<16x16xf32>
    "tpu.trace_stop"() : () -> ()
    %cst_153 = arith.constant dense<0xFF800000> : vector<16xf32>
    %494 = vector.multi_reduction <maximumf>, %493, %cst_153 [1] : vector<16x16xf32> to vector<16xf32>
    %495 = vector.shape_cast %494 : vector<16xf32> to vector<16x1xf32>
    %496 = vector.broadcast %495 : vector<16x1xf32> to vector<16x16xf32>
    %497 = arith.subf %493, %496 : vector<16x16xf32>
    %498 = math.exp %497 : vector<16x16xf32>
    %cst_154 = arith.constant dense<0.000000e+00> : vector<16xf32>
    %499 = vector.multi_reduction <add>, %498, %cst_154 [1] : vector<16x16xf32> to vector<16xf32>
    %500 = vector.shape_cast %499 : vector<16xf32> to vector<16x1xf32>
    %501 = tpu.reciprocal %500 {approx = true} : vector<16x1xf32> -> vector<16x1xf32>
    %502 = vector.broadcast %501 : vector<16x1xf32> to vector<16x16xf32>
    %503 = arith.mulf %498, %502 : vector<16x16xf32>
    %504 = arith.truncf %503 : vector<16x16xf32> to vector<16x16xbf16>
    %cst_155 = arith.constant dense<0.000000e+00> : vector<16x8xf32>
    %505 = tpu.matmul %504, %492, %cst_155 {dimension_numbers = #tpu.dot_dimension_numbers<[1], [0], [0], [1], [0, 0, 1, 1], [], []>} : vector<16x16xbf16>, vector<16x8xbf16>, vector<16x8xf32> -> vector<16x8xf32>
    %506 = tpu.concatenate %329, %345, %361, %377, %393, %409, %425, %441, %457, %473, %489, %505 in 1 : vector<16x8xf32>, vector<16x8xf32>, vector<16x8xf32>, vector<16x8xf32>, vector<16x8xf32>, vector<16x8xf32>, vector<16x8xf32>, vector<16x8xf32>, vector<16x8xf32>, vector<16x8xf32>, vector<16x8xf32>, vector<16x8xf32> -> vector<16x96xf32>
    %507 = arith.truncf %506 : vector<16x96xf32> to vector<16x96xbf16>
    %c1_156 = arith.constant 1 : index
    %c0_157 = arith.constant 0 : index
    %c0_158 = arith.constant 0 : index
    %508 = vector.load %arg4[%c1_156, %c0_157, %c0_158] : memref<2x96x128xbf16, #tpu.memory_space<vmem>>, vector<1x96x128xbf16>
    %509 = vector.shape_cast %508 : vector<1x96x128xbf16> to vector<96x128xbf16>
    %cst_159 = arith.constant dense<0.000000e+00> : vector<16x128xf32>
    %510 = tpu.matmul %507, %509, %cst_159 {dimension_numbers = #tpu.dot_dimension_numbers<[1], [0], [0], [1], [0, 0, 1, 1], [], []>} : vector<16x96xbf16>, vector<96x128xbf16>, vector<16x128xf32> -> vector<16x128xf32>
    %c1_160 = arith.constant 1 : index
    %c0_161 = arith.constant 0 : index
    %c0_162 = arith.constant 0 : index
    %511 = vector.load %arg5[%c1_160, %c0_161, %c0_162] : memref<2x1x128xf32, #tpu.memory_space<vmem>>, vector<1x1x128xf32>
    %512 = vector.shape_cast %511 : vector<1x1x128xf32> to vector<1x128xf32>
    %513 = vector.broadcast %512 : vector<1x128xf32> to vector<16x128xf32>
    %514 = arith.addf %510, %513 : vector<16x128xf32>
    %515 = arith.addf %301, %514 : vector<16x128xf32>
    %c1_163 = arith.constant 1 : index
    %c0_164 = arith.constant 0 : index
    %c0_165 = arith.constant 0 : index
    %516 = vector.load %arg6[%c1_163, %c0_164, %c0_165] : memref<2x1x128xf32, #tpu.memory_space<vmem>>, vector<1x1x128xf32>
    %517 = vector.shape_cast %516 : vector<1x1x128xf32> to vector<1x128xf32>
    %c1_166 = arith.constant 1 : index
    %c0_167 = arith.constant 0 : index
    %c0_168 = arith.constant 0 : index
    %518 = vector.load %arg7[%c1_166, %c0_167, %c0_168] : memref<2x1x128xf32, #tpu.memory_space<vmem>>, vector<1x1x128xf32>
    %519 = vector.shape_cast %518 : vector<1x1x128xf32> to vector<1x128xf32>
    %cst_169 = arith.constant dense<0.000000e+00> : vector<16xf32>
    %520 = vector.multi_reduction <add>, %515, %cst_169 [1] : vector<16x128xf32> to vector<16xf32>
    %521 = vector.shape_cast %520 : vector<16xf32> to vector<16x1xf32>
    %cst_170 = arith.constant 0.010416667 : f32
    %522 = vector.broadcast %cst_170 : f32 to vector<16x1xf32>
    %523 = arith.mulf %521, %522 : vector<16x1xf32>
    %524 = vector.broadcast %523 : vector<16x1xf32> to vector<16x128xf32>
    %525 = arith.subf %515, %524 : vector<16x128xf32>
    %526 = vector.broadcast %5 : vector<1x128xf32> to vector<16x128xf32>
    %527 = arith.mulf %525, %526 : vector<16x128xf32>
    %528 = arith.mulf %527, %527 : vector<16x128xf32>
    %cst_171 = arith.constant dense<0.000000e+00> : vector<16xf32>
    %529 = vector.multi_reduction <add>, %528, %cst_171 [1] : vector<16x128xf32> to vector<16xf32>
    %530 = vector.shape_cast %529 : vector<16xf32> to vector<16x1xf32>
    %cst_172 = arith.constant 0.010416667 : f32
    %531 = vector.broadcast %cst_172 : f32 to vector<16x1xf32>
    %532 = arith.mulf %530, %531 : vector<16x1xf32>
    %cst_173 = arith.constant 9.99999974E-6 : f32
    %533 = vector.broadcast %cst_173 : f32 to vector<16x1xf32>
    %534 = arith.addf %532, %533 : vector<16x1xf32>
    %535 = math.rsqrt %534 : vector<16x1xf32>
    %536 = vector.broadcast %535 : vector<16x1xf32> to vector<16x128xf32>
    %537 = arith.mulf %527, %536 : vector<16x128xf32>
    %538 = vector.broadcast %517 : vector<1x128xf32> to vector<16x128xf32>
    %539 = arith.mulf %537, %538 : vector<16x128xf32>
    %540 = vector.broadcast %519 : vector<1x128xf32> to vector<16x128xf32>
    %541 = arith.addf %539, %540 : vector<16x128xf32>
    %542 = arith.truncf %541 : vector<16x128xf32> to vector<16x128xbf16>
    %c1_174 = arith.constant 1 : index
    %c0_175 = arith.constant 0 : index
    %c0_176 = arith.constant 0 : index
    %543 = vector.load %arg10[%c1_174, %c0_175, %c0_176] : memref<2x128x384xbf16, #tpu.memory_space<vmem>>, vector<1x128x384xbf16>
    %544 = vector.shape_cast %543 : vector<1x128x384xbf16> to vector<128x384xbf16>
    %cst_177 = arith.constant dense<0.000000e+00> : vector<16x384xf32>
    %545 = tpu.matmul %542, %544, %cst_177 {dimension_numbers = #tpu.dot_dimension_numbers<[1], [0], [0], [1], [0, 0, 1, 1], [], []>} : vector<16x128xbf16>, vector<128x384xbf16>, vector<16x384xf32> -> vector<16x384xf32>
    %c1_178 = arith.constant 1 : index
    %c0_179 = arith.constant 0 : index
    %c0_180 = arith.constant 0 : index
    %546 = vector.load %arg11[%c1_178, %c0_179, %c0_180] : memref<2x1x384xf32, #tpu.memory_space<vmem>>, vector<1x1x384xf32>
    %547 = vector.shape_cast %546 : vector<1x1x384xf32> to vector<1x384xf32>
    %548 = vector.broadcast %547 : vector<1x384xf32> to vector<16x384xf32>
    %549 = arith.addf %545, %548 : vector<16x384xf32>
    %550 = arith.mulf %549, %549 : vector<16x384xf32>
    %551 = arith.mulf %549, %550 : vector<16x384xf32>
    %cst_181 = arith.constant 4.471500e-02 : f32
    %552 = vector.broadcast %cst_181 : f32 to vector<16x384xf32>
    %553 = arith.mulf %552, %551 : vector<16x384xf32>
    %554 = arith.addf %549, %553 : vector<16x384xf32>
    %cst_182 = arith.constant 0.797884583 : f32
    %555 = vector.broadcast %cst_182 : f32 to vector<16x384xf32>
    %556 = arith.mulf %555, %554 : vector<16x384xf32>
    %557 = math.tanh %556 : vector<16x384xf32>
    %cst_183 = arith.constant 1.000000e+00 : f32
    %558 = vector.broadcast %cst_183 : f32 to vector<16x384xf32>
    %559 = arith.addf %558, %557 : vector<16x384xf32>
    %cst_184 = arith.constant 5.000000e-01 : f32
    %560 = vector.broadcast %cst_184 : f32 to vector<16x384xf32>
    %561 = arith.mulf %560, %559 : vector<16x384xf32>
    %562 = arith.mulf %549, %561 : vector<16x384xf32>
    %563 = arith.truncf %562 : vector<16x384xf32> to vector<16x384xbf16>
    %c1_185 = arith.constant 1 : index
    %c0_186 = arith.constant 0 : index
    %c0_187 = arith.constant 0 : index
    %564 = vector.load %arg12[%c1_185, %c0_186, %c0_187] : memref<2x384x128xbf16, #tpu.memory_space<vmem>>, vector<1x384x128xbf16>
    %565 = vector.shape_cast %564 : vector<1x384x128xbf16> to vector<384x128xbf16>
    %cst_188 = arith.constant dense<0.000000e+00> : vector<16x128xf32>
    %566 = tpu.matmul %563, %565, %cst_188 {dimension_numbers = #tpu.dot_dimension_numbers<[1], [0], [0], [1], [0, 0, 1, 1], [], []>} : vector<16x384xbf16>, vector<384x128xbf16>, vector<16x128xf32> -> vector<16x128xf32>
    %c1_189 = arith.constant 1 : index
    %c0_190 = arith.constant 0 : index
    %c0_191 = arith.constant 0 : index
    %567 = vector.load %arg13[%c1_189, %c0_190, %c0_191] : memref<2x1x128xf32, #tpu.memory_space<vmem>>, vector<1x1x128xf32>
    %568 = vector.shape_cast %567 : vector<1x1x128xf32> to vector<1x128xf32>
    %569 = vector.broadcast %568 : vector<1x128xf32> to vector<16x128xf32>
    %570 = arith.addf %566, %569 : vector<16x128xf32>
    %571 = arith.addf %541, %570 : vector<16x128xf32>
    %c1_192 = arith.constant 1 : index
    %c0_193 = arith.constant 0 : index
    %c0_194 = arith.constant 0 : index
    %572 = vector.load %arg8[%c1_192, %c0_193, %c0_194] : memref<2x1x128xf32, #tpu.memory_space<vmem>>, vector<1x1x128xf32>
    %573 = vector.shape_cast %572 : vector<1x1x128xf32> to vector<1x128xf32>
    %c1_195 = arith.constant 1 : index
    %c0_196 = arith.constant 0 : index
    %c0_197 = arith.constant 0 : index
    %574 = vector.load %arg9[%c1_195, %c0_196, %c0_197] : memref<2x1x128xf32, #tpu.memory_space<vmem>>, vector<1x1x128xf32>
    %575 = vector.shape_cast %574 : vector<1x1x128xf32> to vector<1x128xf32>
    %cst_198 = arith.constant dense<0.000000e+00> : vector<16xf32>
    %576 = vector.multi_reduction <add>, %571, %cst_198 [1] : vector<16x128xf32> to vector<16xf32>
    %577 = vector.shape_cast %576 : vector<16xf32> to vector<16x1xf32>
    %cst_199 = arith.constant 0.010416667 : f32
    %578 = vector.broadcast %cst_199 : f32 to vector<16x1xf32>
    %579 = arith.mulf %577, %578 : vector<16x1xf32>
    %580 = vector.broadcast %579 : vector<16x1xf32> to vector<16x128xf32>
    %581 = arith.subf %571, %580 : vector<16x128xf32>
    %582 = vector.broadcast %5 : vector<1x128xf32> to vector<16x128xf32>
    %583 = arith.mulf %581, %582 : vector<16x128xf32>
    %584 = arith.mulf %583, %583 : vector<16x128xf32>
    %cst_200 = arith.constant dense<0.000000e+00> : vector<16xf32>
    %585 = vector.multi_reduction <add>, %584, %cst_200 [1] : vector<16x128xf32> to vector<16xf32>
    %586 = vector.shape_cast %585 : vector<16xf32> to vector<16x1xf32>
    %cst_201 = arith.constant 0.010416667 : f32
    %587 = vector.broadcast %cst_201 : f32 to vector<16x1xf32>
    %588 = arith.mulf %586, %587 : vector<16x1xf32>
    %cst_202 = arith.constant 9.99999974E-6 : f32
    %589 = vector.broadcast %cst_202 : f32 to vector<16x1xf32>
    %590 = arith.addf %588, %589 : vector<16x1xf32>
    %591 = math.rsqrt %590 : vector<16x1xf32>
    %592 = vector.broadcast %591 : vector<16x1xf32> to vector<16x128xf32>
    %593 = arith.mulf %583, %592 : vector<16x128xf32>
    %594 = vector.broadcast %573 : vector<1x128xf32> to vector<16x128xf32>
    %595 = arith.mulf %593, %594 : vector<16x128xf32>
    %596 = vector.broadcast %575 : vector<1x128xf32> to vector<16x128xf32>
    %597 = arith.addf %595, %596 : vector<16x128xf32>
    %c0_203 = arith.constant 0 : index
    %c0_204 = arith.constant 0 : index
    %598 = vector.load %arg14[%c0_203, %c0_204] : memref<16x128xf32, #tpu.memory_space<vmem>>, vector<16x128xf32>
    tpu.vector_store %arg14[%c0_203, %c0_204], %597 {strides = array<i32>} : memref<16x128xf32, #tpu.memory_space<vmem>>, vector<16x128xf32>,
    return
  }
  func.func @transform_0(%arg0: i32) -> (i32, i32) {
    %c0_i32 = arith.constant 0 : i32
    %c0_i32_0 = arith.constant 0 : i32
    return %arg0, %c0_i32 : i32, i32
  }
  func.func @transform_1(%arg0: i32) -> (i32, i32, i32) {
    %c0_i32 = arith.constant 0 : i32
    %c0_i32_0 = arith.constant 0 : i32
    %c0_i32_1 = arith.constant 0 : i32
    %c0_i32_2 = arith.constant 0 : i32
    return %c0_i32, %c0_i32_0, %c0_i32_1 : i32, i32, i32
  }
  func.func @transform_2(%arg0: i32) -> (i32, i32, i32) {
    %c0_i32 = arith.constant 0 : i32
    %c0_i32_0 = arith.constant 0 : i32
    %c0_i32_1 = arith.constant 0 : i32
    %c0_i32_2 = arith.constant 0 : i32
    return %c0_i32, %c0_i32_0, %c0_i32_1 : i32, i32, i32
  }
  func.func @transform_3(%arg0: i32) -> (i32, i32, i32) {
    %c0_i32 = arith.constant 0 : i32
    %c0_i32_0 = arith.constant 0 : i32
    %c0_i32_1 = arith.constant 0 : i32
    %c0_i32_2 = arith.constant 0 : i32
    return %c0_i32, %c0_i32_0, %c0_i32_1 : i32, i32, i32
  }
  func.func @transform_4(%arg0: i32) -> (i32, i32, i32) {
    %c0_i32 = arith.constant 0 : i32
    %c0_i32_0 = arith.constant 0 : i32
    %c0_i32_1 = arith.constant 0 : i32
    %c0_i32_2 = arith.constant 0 : i32
    return %c0_i32, %c0_i32_0, %c0_i32_1 : i32, i32, i32
  }
  func.func @transform_5(%arg0: i32) -> (i32, i32, i32) {
    %c0_i32 = arith.constant 0 : i32
    %c0_i32_0 = arith.constant 0 : i32
    %c0_i32_1 = arith.constant 0 : i32
    %c0_i32_2 = arith.constant 0 : i32
    return %c0_i32, %c0_i32_0, %c0_i32_1 : i32, i32, i32
  }
  func.func @transform_6(%arg0: i32) -> (i32, i32, i32) {
    %c0_i32 = arith.constant 0 : i32
    %c0_i32_0 = arith.constant 0 : i32
    %c0_i32_1 = arith.constant 0 : i32
    %c0_i32_2 = arith.constant 0 : i32
    return %c0_i32, %c0_i32_0, %c0_i32_1 : i32, i32, i32
  }
  func.func @transform_7(%arg0: i32) -> (i32, i32, i32) {
    %c0_i32 = arith.constant 0 : i32
    %c0_i32_0 = arith.constant 0 : i32
    %c0_i32_1 = arith.constant 0 : i32
    %c0_i32_2 = arith.constant 0 : i32
    return %c0_i32, %c0_i32_0, %c0_i32_1 : i32, i32, i32
  }
  func.func @transform_8(%arg0: i32) -> (i32, i32, i32) {
    %c0_i32 = arith.constant 0 : i32
    %c0_i32_0 = arith.constant 0 : i32
    %c0_i32_1 = arith.constant 0 : i32
    %c0_i32_2 = arith.constant 0 : i32
    return %c0_i32, %c0_i32_0, %c0_i32_1 : i32, i32, i32
  }
  func.func @transform_9(%arg0: i32) -> (i32, i32, i32) {
    %c0_i32 = arith.constant 0 : i32
    %c0_i32_0 = arith.constant 0 : i32
    %c0_i32_1 = arith.constant 0 : i32
    %c0_i32_2 = arith.constant 0 : i32
    return %c0_i32, %c0_i32_0, %c0_i32_1 : i32, i32, i32
  }
  func.func @transform_10(%arg0: i32) -> (i32, i32, i32) {
    %c0_i32 = arith.constant 0 : i32
    %c0_i32_0 = arith.constant 0 : i32
    %c0_i32_1 = arith.constant 0 : i32
    %c0_i32_2 = arith.constant 0 : i32
    return %c0_i32, %c0_i32_0, %c0_i32_1 : i32, i32, i32
  }
  func.func @transform_11(%arg0: i32) -> (i32, i32, i32) {
    %c0_i32 = arith.constant 0 : i32
    %c0_i32_0 = arith.constant 0 : i32
    %c0_i32_1 = arith.constant 0 : i32
    %c0_i32_2 = arith.constant 0 : i32
    return %c0_i32, %c0_i32_0, %c0_i32_1 : i32, i32, i32
  }
  func.func @transform_12(%arg0: i32) -> (i32, i32, i32) {
    %c0_i32 = arith.constant 0 : i32
    %c0_i32_0 = arith.constant 0 : i32
    %c0_i32_1 = arith.constant 0 : i32
    %c0_i32_2 = arith.constant 0 : i32
    return %c0_i32, %c0_i32_0, %c0_i32_1 : i32, i32, i32
  }
  func.func @transform_13(%arg0: i32) -> (i32, i32) {
    %c0_i32 = arith.constant 0 : i32
    %c0_i32_0 = arith.constant 0 : i32
    return %c0_i32, %arg0 : i32, i32
  }
}

</mosaic_0001>

<llo_original>
// kernel: tpu_custom_call.1
$region0: #{tpu_custom_call.1}
  #allocation0 [shape = 'u32[]', space=smem, size = 0x4, offset = 0x4, fixed_abs, tag = 'smem constant byte address 0x4 - core index']
  #allocation1 [shape = 'u32[144,128]{1,0:T(1,128)}', space=vmem, size = 0x12000, scoped, tag = 'internal scratch']
  %s0 = inlined_call_operand.hbm [shape: f32[32,128], index: 0, kind: input, shape index: {}]
  %s1 = inlined_call_operand.hbm [shape: bf16[2,128,384], index: 1, kind: input, shape index: {}]
  %s2 = inlined_call_operand.vmem [shape: f32[2,1,384], index: 2, kind: input, shape index: {}]
  %s3 = inlined_call_operand.hbm [shape: bf16[2,96,128], index: 3, kind: input, shape index: {}]
  %s4 = inlined_call_operand.vmem [shape: f32[2,1,128], index: 4, kind: input, shape index: {}]
  %s5 = inlined_call_operand.vmem [shape: f32[2,1,128], index: 5, kind: input, shape index: {}]
  %s6 = inlined_call_operand.vmem [shape: f32[2,1,128], index: 6, kind: input, shape index: {}]
  %s7 = inlined_call_operand.vmem [shape: f32[2,1,128], index: 7, kind: input, shape index: {}]
  %s8 = inlined_call_operand.vmem [shape: f32[2,1,128], index: 8, kind: input, shape index: {}]
  %s9 = inlined_call_operand.hbm [shape: bf16[2,128,384], index: 9, kind: input, shape index: {}]
  %s10 = inlined_call_operand.vmem [shape: f32[2,1,384], index: 10, kind: input, shape index: {}]
  %s11 = inlined_call_operand.hbm [shape: bf16[2,384,128], index: 11, kind: input, shape index: {}]
  %s12 = inlined_call_operand.vmem [shape: f32[2,1,128], index: 12, kind: input, shape index: {}]
  %s13 = inlined_call_operand.hbm [shape: f32[16,256], index: 13, kind: output, shape index: {}]
  %s14 = sld [smem:[#allocation0]]
  $region105: #{tpu_custom_call.1} parent=0
    _
  %s16 = ssub.s32 1, %s14
  %s17 = scalar_select 0, %s16, %s14
  $region1: #{tpu_custom_call.1} parent=0
    #allocation2 [shape = 'u8[16384]{0}', space=vmem, size = 0x4000, scoped, tag = 'input window, operand 0']
    #allocation3 [shape = 's32[2]{0}', space=sflag, size = 0x8, scoped, tag = 'scoped memory for tpu_custom_call.1']
    #allocation4 [shape = 's32[2]{0}', space=sflag, size = 0x8, scoped, tag = 'scoped memory for tpu_custom_call.1']
    #allocation5 [shape = 'u8[196608]{0}', space=vmem, size = 0x30000, scoped, tag = 'input window, operand 1, single buffered']
    #allocation6 [shape = 's32[1]{0}', space=sflag, size = 0x4, scoped, tag = 'scoped memory for tpu_custom_call.1']
    #allocation7 [shape = 'u8[49152]{0}', space=vmem, size = 0xc000, scoped, tag = 'input window, operand 3, single buffered']
    #allocation8 [shape = 'u8[196608]{0}', space=vmem, size = 0x30000, scoped, tag = 'input window, operand 9, single buffered']
    #allocation9 [shape = 's32[1]{0}', space=sflag, size = 0x4, scoped, tag = 'scoped memory for tpu_custom_call.1']
    #allocation10 [shape = 'u8[196608]{0}', space=vmem, size = 0x30000, scoped, tag = 'input window, operand 11, single buffered']
    #allocation11 [shape = 'u8[16384]{0}', space=vmem, size = 0x4000, scoped, tag = 'output window, operand 0']
    %18 = vsyncpa [#allocation3], 0
    %s19 = scalar_lea.sflag [#allocation3], 1
    %20 = vsyncpa %s19, 0
    %21 = vsyncpa [#allocation6], 0
    %22 = vsyncpa [#allocation9], 0
    %23 = vsyncpa [#allocation4], 0
    %s24 = scalar_lea.sflag [#allocation4], 1
    %25 = vsyncpa %s24, 0
    loop: start=0, step=1, limit=4
    $region2: #{tpu_custom_call.1} parent=1 // loop_pre_header
      _
    $region3: #{tpu_custom_call.1} parent=1 // loop_header
      %s27 = sphi 0, %s31
      %p28 = scmp.ge.s32.totalorder %s27, 4
      %s37 = sphi 0, %s39
      %s40 = sphi 0, %s37
      %s41 = sphi 0, %s40
      %s57 = sphi 0, %s41
      %s61 = sphi 0, %s61
      %s63 = sphi 0, %s61
      %s64 = sphi 0, %s63
      %s78 = sphi 0, %s64
      %s82 = sphi 0, %s82
      %s84 = sphi 0, %s82
      %s85 = sphi 0, %s84
      %s99 = sphi 0, %s85
      %s103 = sphi 0, %s103
      %s105 = sphi 0, %s103
      %s106 = sphi 0, %s105
      %s120 = sphi 0, %s106
      %s124 = sphi 0, %s124
      %s126 = sphi 0, %s124
      %s127 = sphi 0, %s126
      %s141 = sphi 0, %s127
      %s145 = sphi 0, %s145
      %s147 = sphi 0, %s145
      %s148 = sphi 0, %s147
      %s162 = sphi 0, %s148
      %s166 = sphi 0, %s166
      %s168 = sphi 0, %s166
      %s169 = sphi 0, %s168
      %s183 = sphi 0, %s169
      %s187 = sphi 0, %s187
      %s189 = sphi 0, %s187
      %s190 = sphi 0, %s189
      %s204 = sphi 0, %s190
      %s208 = sphi 0, %s208
      %s210 = sphi 0, %s208
      %s211 = sphi 0, %s210
      %s225 = sphi 0, %s211
      %s229 = sphi 0, %s229
      %s231 = sphi 0, %s229
      %s232 = sphi 0, %s231
      %s246 = sphi 0, %s232
      %s250 = sphi 0, %s250
      %s252 = sphi 0, %s250
      %s253 = sphi 0, %s252
      %s267 = sphi 0, %s253
      %s271 = sphi 0, %s271
      %s273 = sphi 0, %s271
      %s274 = sphi 0, %s273
      %s288 = sphi 0, %s274
      %s292 = sphi 0, %s292
      %s294 = sphi 0, %s292
      %s295 = sphi 0, %s294
      %s309 = sphi 0, %s295
      %s315 = sphi 0, %s317
      %s318 = sphi 0, %s315
      %s319 = sphi 0, %s318
      %s335 = sphi 0, %s319
    $region4: #{tpu_custom_call.1} parent=1 // loop_header_branch
      %30 = sbr.rel (%p28) target = $region8
    $region5: #{tpu_custom_call.1} parent=1 // loop_body
      %s32 = ssub.s32 %s27, 1
      %s33 = ssub.s32 %s27, 2
      %s34 = sadd.s32 %s27, 1
      %s35 = ssub.s32 %s27, %s34
      %p36 = scmp.eq.s32.totalorder %s35, 0
      %s38 = sadd.s32 %s37, 1
      %s39 = scalar_select %p36, %s37, %s38
      %p42 = pneg %p36
      %p43 = scmp.eq.s32.totalorder %s27, 1
      %p44 = por %p42, %p43
      %p45 = scmp.ne.s32.totalorder %s37, %s40
      %p46 = scmp.eq.s32.totalorder %s27, 0
      %p47 = por %p45, %p46
      %p48 = scmp.ne.s32.totalorder %s37, %s40
      %p49 = scmp.eq.s32.totalorder %s32, 1
      %p50 = por %p48, %p49
      %p51 = scmp.ne.s32.totalorder %s40, %s41
      %p52 = scmp.eq.s32.totalorder %s32, 0
      %p53 = por %p51, %p52
      %p54 = scmp.ne.s32.totalorder %s40, %s41
      %p55 = scmp.eq.s32.totalorder %s33, 1
      %p56 = por %p54, %p55
      %p58 = scmp.ne.s32.totalorder %s41, %s57
      %p59 = scmp.eq.s32.totalorder %s33, 0
      %p60 = por %p58, %p59
      %s62 = sadd.s32 %s61, 1
      %p65 = scmp.eq.s32.totalorder %s27, 1
      %p66 = scmp.ne.s32.totalorder %s61, %s63
      %p67 = scmp.eq.s32.totalorder %s27, 0
      %p68 = por %p66, %p67
      %p69 = scmp.ne.s32.totalorder %s61, %s63
      %p70 = scmp.eq.s32.totalorder %s32, 1
      %p71 = por %p69, %p70
      %p72 = scmp.ne.s32.totalorder %s63, %s64
      %p73 = scmp.eq.s32.totalorder %s32, 0
      %p74 = por %p72, %p73
      %p75 = scmp.ne.s32.totalorder %s63, %s64
      %p76 = scmp.eq.s32.totalorder %s33, 1
      %p77 = por %p75, %p76
      %p79 = scmp.ne.s32.totalorder %s64, %s78
      %p80 = scmp.eq.s32.totalorder %s33, 0
      %p81 = por %p79, %p80
      %s83 = sadd.s32 %s82, 1
      %p86 = scmp.eq.s32.totalorder %s27, 1
      %p87 = scmp.ne.s32.totalorder %s82, %s84
      %p88 = scmp.eq.s32.totalorder %s27, 0
      %p89 = por %p87, %p88
      %p90 = scmp.ne.s32.totalorder %s82, %s84
      %p91 = scmp.eq.s32.totalorder %s32, 1
      %p92 = por %p90, %p91
      %p93 = scmp.ne.s32.totalorder %s84, %s85
      %p94 = scmp.eq.s32.totalorder %s32, 0
      %p95 = por %p93, %p94
      %p96 = scmp.ne.s32.totalorder %s84, %s85
      %p97 = scmp.eq.s32.totalorder %s33, 1
      %p98 = por %p96, %p97
      %p100 = scmp.ne.s32.totalorder %s85, %s99
      %p101 = scmp.eq.s32.totalorder %s33, 0
      %p102 = por %p100, %p101
      %s104 = sadd.s32 %s103, 1
      %p107 = scmp.eq.s32.totalorder %s27, 1
      %p108 = scmp.ne.s32.totalorder %s103, %s105
      %p109 = scmp.eq.s32.totalorder %s27, 0
      %p110 = por %p108, %p109
      %p111 = scmp.ne.s32.totalorder %s103, %s105
      %p112 = scmp.eq.s32.totalorder %s32, 1
      %p113 = por %p111, %p112
      %p114 = scmp.ne.s32.totalorder %s105, %s106
      %p115 = scmp.eq.s32.totalorder %s32, 0
      %p116 = por %p114, %p115
      %p117 = scmp.ne.s32.totalorder %s105, %s106
      %p118 = scmp.eq.s32.totalorder %s33, 1
      %p119 = por %p117, %p118
      %p121 = scmp.ne.s32.totalorder %s106, %s120
      %p122 = scmp.eq.s32.totalorder %s33, 0
      %p123 = por %p121, %p122
      %s125 = sadd.s32 %s124, 1
      %p128 = scmp.eq.s32.totalorder %s27, 1
      %p129 = scmp.ne.s32.totalorder %s124, %s126
      %p130 = scmp.eq.s32.totalorder %s27, 0
      %p131 = por %p129, %p130
      %p132 = scmp.ne.s32.totalorder %s124, %s126
      %p133 = scmp.eq.s32.totalorder %s32, 1
      %p134 = por %p132, %p133
      %p135 = scmp.ne.s32.totalorder %s126, %s127
      %p136 = scmp.eq.s32.totalorder %s32, 0
      %p137 = por %p135, %p136
      %p138 = scmp.ne.s32.totalorder %s126, %s127
      %p139 = scmp.eq.s32.totalorder %s33, 1
      %p140 = por %p138, %p139
      %p142 = scmp.ne.s32.totalorder %s127, %s141
      %p143 = scmp.eq.s32.totalorder %s33, 0
      %p144 = por %p142, %p143
      %s146 = sadd.s32 %s145, 1
      %p149 = scmp.eq.s32.totalorder %s27, 1
      %p150 = scmp.ne.s32.totalorder %s145, %s147
      %p151 = scmp.eq.s32.totalorder %s27, 0
      %p152 = por %p150, %p151
      %p153 = scmp.ne.s32.totalorder %s145, %s147
      %p154 = scmp.eq.s32.totalorder %s32, 1
      %p155 = por %p153, %p154
      %p156 = scmp.ne.s32.totalorder %s147, %s148
      %p157 = scmp.eq.s32.totalorder %s32, 0
      %p158 = por %p156, %p157
      %p159 = scmp.ne.s32.totalorder %s147, %s148
      %p160 = scmp.eq.s32.totalorder %s33, 1
      %p161 = por %p159, %p160
      %p163 = scmp.ne.s32.totalorder %s148, %s162
      %p164 = scmp.eq.s32.totalorder %s33, 0
      %p165 = por %p163, %p164
      %s167 = sadd.s32 %s166, 1
      %p170 = scmp.eq.s32.totalorder %s27, 1
      %p171 = scmp.ne.s32.totalorder %s166, %s168
      %p172 = scmp.eq.s32.totalorder %s27, 0
      %p173 = por %p171, %p172
      %p174 = scmp.ne.s32.totalorder %s166, %s168
      %p175 = scmp.eq.s32.totalorder %s32, 1
      %p176 = por %p174, %p175
      %p177 = scmp.ne.s32.totalorder %s168, %s169
      %p178 = scmp.eq.s32.totalorder %s32, 0
      %p179 = por %p177, %p178
      %p180 = scmp.ne.s32.totalorder %s168, %s169
      %p181 = scmp.eq.s32.totalorder %s33, 1
      %p182 = por %p180, %p181
      %p184 = scmp.ne.s32.totalorder %s169, %s183
      %p185 = scmp.eq.s32.totalorder %s33, 0
      %p186 = por %p184, %p185
      %s188 = sadd.s32 %s187, 1
      %p191 = scmp.eq.s32.totalorder %s27, 1
      %p192 = scmp.ne.s32.totalorder %s187, %s189
      %p193 = scmp.eq.s32.totalorder %s27, 0
      %p194 = por %p192, %p193
      %p195 = scmp.ne.s32.totalorder %s187, %s189
      %p196 = scmp.eq.s32.totalorder %s32, 1
      %p197 = por %p195, %p196
      %p198 = scmp.ne.s32.totalorder %s189, %s190
      %p199 = scmp.eq.s32.totalorder %s32, 0
      %p200 = por %p198, %p199
      %p201 = scmp.ne.s32.totalorder %s189, %s190
      %p202 = scmp.eq.s32.totalorder %s33, 1
      %p203 = por %p201, %p202
      %p205 = scmp.ne.s32.totalorder %s190, %s204
      %p206 = scmp.eq.s32.totalorder %s33, 0
      %p207 = por %p205, %p206
      %s209 = sadd.s32 %s208, 1
      %p212 = scmp.eq.s32.totalorder %s27, 1
      %p213 = scmp.ne.s32.totalorder %s208, %s210
      %p214 = scmp.eq.s32.totalorder %s27, 0
      %p215 = por %p213, %p214
      %p216 = scmp.ne.s32.totalorder %s208, %s210
      %p217 = scmp.eq.s32.totalorder %s32, 1
      %p218 = por %p216, %p217
      %p219 = scmp.ne.s32.totalorder %s210, %s211
      %p220 = scmp.eq.s32.totalorder %s32, 0
      %p221 = por %p219, %p220
      %p222 = scmp.ne.s32.totalorder %s210, %s211
      %p223 = scmp.eq.s32.totalorder %s33, 1
      %p224 = por %p222, %p223
      %p226 = scmp.ne.s32.totalorder %s211, %s225
      %p227 = scmp.eq.s32.totalorder %s33, 0
      %p228 = por %p226, %p227
      %s230 = sadd.s32 %s229, 1
      %p233 = scmp.eq.s32.totalorder %s27, 1
      %p234 = scmp.ne.s32.totalorder %s229, %s231
      %p235 = scmp.eq.s32.totalorder %s27, 0
      %p236 = por %p234, %p235
      %p237 = scmp.ne.s32.totalorder %s229, %s231
      %p238 = scmp.eq.s32.totalorder %s32, 1
      %p239 = por %p237, %p238
      %p240 = scmp.ne.s32.totalorder %s231, %s232
      %p241 = scmp.eq.s32.totalorder %s32, 0
      %p242 = por %p240, %p241
      %p243 = scmp.ne.s32.totalorder %s231, %s232
      %p244 = scmp.eq.s32.totalorder %s33, 1
      %p245 = por %p243, %p244
      %p247 = scmp.ne.s32.totalorder %s232, %s246
      %p248 = scmp.eq.s32.totalorder %s33, 0
      %p249 = por %p247, %p248
      %s251 = sadd.s32 %s250, 1
      %p254 = scmp.eq.s32.totalorder %s27, 1
      %p255 = scmp.ne.s32.totalorder %s250, %s252
      %p256 = scmp.eq.s32.totalorder %s27, 0
      %p257 = por %p255, %p256
      %p258 = scmp.ne.s32.totalorder %s250, %s252
      %p259 = scmp.eq.s32.totalorder %s32, 1
      %p260 = por %p258, %p259
      %p261 = scmp.ne.s32.totalorder %s252, %s253
      %p262 = scmp.eq.s32.totalorder %s32, 0
      %p263 = por %p261, %p262
      %p264 = scmp.ne.s32.totalorder %s252, %s253
      %p265 = scmp.eq.s32.totalorder %s33, 1
      %p266 = por %p264, %p265
      %p268 = scmp.ne.s32.totalorder %s253, %s267
      %p269 = scmp.eq.s32.totalorder %s33, 0
      %p270 = por %p268, %p269
      %s272 = sadd.s32 %s271, 1
      %p275 = scmp.eq.s32.totalorder %s27, 1
      %p276 = scmp.ne.s32.totalorder %s271, %s273
      %p277 = scmp.eq.s32.totalorder %s27, 0
      %p278 = por %p276, %p277
      %p279 = scmp.ne.s32.totalorder %s271, %s273
      %p280 = scmp.eq.s32.totalorder %s32, 1
      %p281 = por %p279, %p280
      %p282 = scmp.ne.s32.totalorder %s273, %s274
      %p283 = scmp.eq.s32.totalorder %s32, 0
      %p284 = por %p282, %p283
      %p285 = scmp.ne.s32.totalorder %s273, %s274
      %p286 = scmp.eq.s32.totalorder %s33, 1
      %p287 = por %p285, %p286
      %p289 = scmp.ne.s32.totalorder %s274, %s288
      %p290 = scmp.eq.s32.totalorder %s33, 0
      %p291 = por %p289, %p290
      %s293 = sadd.s32 %s292, 1
      %p296 = scmp.eq.s32.totalorder %s27, 1
      %p297 = scmp.ne.s32.totalorder %s292, %s294
      %p298 = scmp.eq.s32.totalorder %s27, 0
      %p299 = por %p297, %p298
      %p300 = scmp.ne.s32.totalorder %s292, %s294
      %p301 = scmp.eq.s32.totalorder %s32, 1
      %p302 = por %p300, %p301
      %p303 = scmp.ne.s32.totalorder %s294, %s295
      %p304 = scmp.eq.s32.totalorder %s32, 0
      %p305 = por %p303, %p304
      %p306 = scmp.ne.s32.totalorder %s294, %s295
      %p307 = scmp.eq.s32.totalorder %s33, 1
      %p308 = por %p306, %p307
      %p310 = scmp.ne.s32.totalorder %s295, %s309
      %p311 = scmp.eq.s32.totalorder %s33, 0
      %p312 = por %p310, %p311
      %s313 = ssub.s32 %s27, %s34
      %p314 = scmp.eq.s32.totalorder %s313, 0
      %s316 = sadd.s32 %s315, 1
      %s317 = scalar_select %p314, %s315, %s316
      %p320 = pneg %p314
      %p321 = scmp.eq.s32.totalorder %s27, 1
      %p322 = por %p320, %p321
      %p323 = scmp.ne.s32.totalorder %s315, %s318
      %p324 = scmp.eq.s32.totalorder %s27, 0
      %p325 = por %p323, %p324
      %p326 = scmp.ne.s32.totalorder %s315, %s318
      %p327 = scmp.eq.s32.totalorder %s32, 1
      %p328 = por %p326, %p327
      %p329 = scmp.ne.s32.totalorder %s318, %s319
      %p330 = scmp.eq.s32.totalorder %s32, 0
      %p331 = por %p329, %p330
      %p332 = scmp.ne.s32.totalorder %s318, %s319
      %p333 = scmp.eq.s32.totalorder %s33, 1
      %p334 = por %p332, %p333
      %p336 = scmp.ne.s32.totalorder %s319, %s335
      %p337 = scmp.eq.s32.totalorder %s33, 0
      %p338 = por %p336, %p337
      %p339 = scmp.le.s32.totalorder 1, %s27
      %p340 = scmp.lt.s32.totalorder %s27, 3
      %p341 = pnand %p339, %p340
      %p342 = pneg %p341
      // Predicated region
      $region9: #{tpu_custom_call.1} parent=5 // pred_check
        _
      $region10: #{tpu_custom_call.1} parent=5 // pred_check_branch
        %344 = sbr.rel (%p341) target = $region12
      $region11: #{tpu_custom_call.1} parent=5 // pred_region
        %s345 = ssub.s32 %s27, 1
        // Predicated region
        $region13: #{tpu_custom_call.1} parent=11 // pred_check
          %p346 = pneg %p74
        $region14: #{tpu_custom_call.1} parent=11 // pred_check_branch
          %348 = sbr.rel (%p346) target = $region16
        $region15: #{tpu_custom_call.1} parent=11 // pred_region
          %s350 = ssub.s32 6144, 6144
          %351 = vsyncadd [#allocation6], %s350
          %s352 = sshll.u32 [#allocation5], 4
          %s353 = int_to_ptr.vmem [resolvable:$true] %s352
          %358 = dma.hbm_to_vmem [thread:$0]  %s1, 6144, %s353, [#allocation6], 192, 192, 12
        $region16: #{tpu_custom_call.1} parent=11 // pred_fallthru
          _
        // Predicated region
        $region17: #{tpu_custom_call.1} parent=11 // pred_check
          %p359 = pneg %p95
        $region18: #{tpu_custom_call.1} parent=11 // pred_check_branch
          %361 = sbr.rel (%p359) target = $region20
        $region19: #{tpu_custom_call.1} parent=11 // pred_region
          _
        $region20: #{tpu_custom_call.1} parent=11 // pred_fallthru
          _
        // Predicated region
        $region21: #{tpu_custom_call.1} parent=11 // pred_check
          %p362 = pneg %p116
        $region22: #{tpu_custom_call.1} parent=11 // pred_check_branch
          %364 = sbr.rel (%p362) target = $region24
        $region23: #{tpu_custom_call.1} parent=11 // pred_region
          %s366 = ssub.s32 1536, 1536
          %367 = vsyncadd [#allocation6], %s366
          %s368 = sshll.u32 [#allocation7], 4
          %s369 = int_to_ptr.vmem [resolvable:$true] %s368
          %374 = dma.hbm_to_vmem [thread:$0]  %s3, 1536, %s369, [#allocation6], 64, 64, 4
        $region24: #{tpu_custom_call.1} parent=11 // pred_fallthru
          _
        // Predicated region
        $region25: #{tpu_custom_call.1} parent=11 // pred_check
          %p375 = pneg %p137
        $region26: #{tpu_custom_call.1} parent=11 // pred_check_branch
          %377 = sbr.rel (%p375) target = $region28
        $region27: #{tpu_custom_call.1} parent=11 // pred_region
          _
        $region28: #{tpu_custom_call.1} parent=11 // pred_fallthru
          _
        // Predicated region
        $region29: #{tpu_custom_call.1} parent=11 // pred_check
          %p378 = pneg %p158
        $region30: #{tpu_custom_call.1} parent=11 // pred_check_branch
          %380 = sbr.rel (%p378) target = $region32
        $region31: #{tpu_custom_call.1} parent=11 // pred_region
          _
        $region32: #{tpu_custom_call.1} parent=11 // pred_fallthru
          _
        // Predicated region
        $region33: #{tpu_custom_call.1} parent=11 // pred_check
          %p381 = pneg %p179
        $region34: #{tpu_custom_call.1} parent=11 // pred_check_branch
          %383 = sbr.rel (%p381) target = $region36
        $region35: #{tpu_custom_call.1} parent=11 // pred_region
          _
        $region36: #{tpu_custom_call.1} parent=11 // pred_fallthru
          _
        // Predicated region
        $region37: #{tpu_custom_call.1} parent=11 // pred_check
          %p384 = pneg %p200
        $region38: #{tpu_custom_call.1} parent=11 // pred_check_branch
          %386 = sbr.rel (%p384) target = $region40
        $region39: #{tpu_custom_call.1} parent=11 // pred_region
          _
        $region40: #{tpu_custom_call.1} parent=11 // pred_fallthru
          _
        // Predicated region
        $region41: #{tpu_custom_call.1} parent=11 // pred_check
          %p387 = pneg %p221
        $region42: #{tpu_custom_call.1} parent=11 // pred_check_branch
          %389 = sbr.rel (%p387) target = $region44
        $region43: #{tpu_custom_call.1} parent=11 // pred_region
          _
        $region44: #{tpu_custom_call.1} parent=11 // pred_fallthru
          _
        // Predicated region
        $region45: #{tpu_custom_call.1} parent=11 // pred_check
          %p390 = pneg %p242
        $region46: #{tpu_custom_call.1} parent=11 // pred_check_branch
          %392 = sbr.rel (%p390) target = $region48
        $region47: #{tpu_custom_call.1} parent=11 // pred_region
          %s394 = ssub.s32 6144, 6144
          %395 = vsyncadd [#allocation9], %s394
          %s396 = sshll.u32 [#allocation8], 4
          %s397 = int_to_ptr.vmem [resolvable:$true] %s396
          %402 = dma.hbm_to_vmem [thread:$0]  %s9, 6144, %s397, [#allocation9], 192, 192, 12
        $region48: #{tpu_custom_call.1} parent=11 // pred_fallthru
          _
        // Predicated region
        $region49: #{tpu_custom_call.1} parent=11 // pred_check
          %p403 = pneg %p263
        $region50: #{tpu_custom_call.1} parent=11 // pred_check_branch
          %405 = sbr.rel (%p403) target = $region52
        $region51: #{tpu_custom_call.1} parent=11 // pred_region
          _
        $region52: #{tpu_custom_call.1} parent=11 // pred_fallthru
          _
        // Predicated region
        $region53: #{tpu_custom_call.1} parent=11 // pred_check
          %p406 = pneg %p284
        $region54: #{tpu_custom_call.1} parent=11 // pred_check_branch
          %408 = sbr.rel (%p406) target = $region56
        $region55: #{tpu_custom_call.1} parent=11 // pred_region
          %s410 = ssub.s32 6144, 6144
          %411 = vsyncadd [#allocation9], %s410
          %s412 = sshll.u32 [#allocation10], 4
          %s413 = int_to_ptr.vmem [resolvable:$true] %s412
          %418 = dma.hbm_to_vmem [thread:$0]  %s11, 6144, %s413, [#allocation9], 64, 64, 4
        $region56: #{tpu_custom_call.1} parent=11 // pred_fallthru
          _
        // Predicated region
        $region57: #{tpu_custom_call.1} parent=11 // pred_check
          %p419 = pneg %p305
        $region58: #{tpu_custom_call.1} parent=11 // pred_check_branch
          %421 = sbr.rel (%p419) target = $region60
        $region59: #{tpu_custom_call.1} parent=11 // pred_region
          _
        $region60: #{tpu_custom_call.1} parent=11 // pred_fallthru
          _
      $region12: #{tpu_custom_call.1} parent=5 // pred_fallthru
        _
      %p422 = scmp.lt.s32.totalorder %s27, 2
      // Predicated region
      $region61: #{tpu_custom_call.1} parent=5 // pred_check
        %p423 = pneg %p422
      $region62: #{tpu_custom_call.1} parent=5 // pred_check_branch
        %425 = sbr.rel (%p423) target = $region64
      $region63: #{tpu_custom_call.1} parent=5 // pred_region
        // Predicated region
        $region65: #{tpu_custom_call.1} parent=63 // pred_check
          %p426 = pneg %p47
        $region66: #{tpu_custom_call.1} parent=63 // pred_check_branch
          %428 = sbr.rel (%p426) target = $region68
        $region67: #{tpu_custom_call.1} parent=63 // pred_region
          %s429 = sand.u32 %s37, 1
          %s430 = scalar_lea.sflag [#allocation3], %s429
          %s431 = sand.u32 %s37, 1
          %s432 = smul.addr %s431, 16
          %s433 = scalar_lea.vmem [#allocation2], %s432
          %s434 = smul.u32 2, %s27
          %s436 = ssub.s32 256, 256
          %437 = vsyncadd %s430, %s436
          %s438 = smul.addr %s434, 128
          %s439 = scalar_lea.hbm %s0, %s438
          %s440 = sshll.u32 %s433, 4
          %s441 = int_to_ptr.vmem [resolvable:$true] %s440
          %446 = dma.hbm_to_vmem [thread:$0]  %s439, 256, %s441, %s430, 128, 128, 8
        $region68: #{tpu_custom_call.1} parent=63 // pred_fallthru
          _
      $region64: #{tpu_custom_call.1} parent=5 // pred_fallthru
        _
      %p447 = scmp.le.s32.totalorder 1, %s27
      %p448 = scmp.lt.s32.totalorder %s27, 3
      %p449 = pnand %p447, %p448
      %p450 = pneg %p449
      // Predicated region
      $region69: #{tpu_custom_call.1} parent=5 // pred_check
        _
      $region70: #{tpu_custom_call.1} parent=5 // pred_check_branch
        %452 = sbr.rel (%p449) target = $region72
      $region71: #{tpu_custom_call.1} parent=5 // pred_region
        %s453 = ssub.s32 %s27, 1
        %s454 = sand.u32 %s40, 1
        %s455 = scalar_lea.sflag [#allocation3], %s454
        %s456 = sand.u32 %s40, 1
        %s457 = smul.addr %s456, 16
        %s458 = scalar_lea.vmem [#allocation2], %s457
        // Predicated region
        $region73: #{tpu_custom_call.1} parent=71 // pred_check
          %p459 = pneg %p53
        $region74: #{tpu_custom_call.1} parent=71 // pred_check_branch
          %461 = sbr.rel (%p459) target = $region76
        $region75: #{tpu_custom_call.1} parent=71 // pred_region
          %462 = dma.done %s455, 256
        $region76: #{tpu_custom_call.1} parent=71 // pred_fallthru
          _
        // Predicated region
        $region77: #{tpu_custom_call.1} parent=71 // pred_check
          %p463 = pneg %p74
        $region78: #{tpu_custom_call.1} parent=71 // pred_check_branch
          %465 = sbr.rel (%p463) target = $region80
        $region79: #{tpu_custom_call.1} parent=71 // pred_region
          %466 = dma.done [#allocation6], 6144
        $region80: #{tpu_custom_call.1} parent=71 // pred_fallthru
          _
        // Predicated region
        $region81: #{tpu_custom_call.1} parent=71 // pred_check
          %p467 = pneg %p116
        $region82: #{tpu_custom_call.1} parent=71 // pred_check_branch
          %469 = sbr.rel (%p467) target = $region84
        $region83: #{tpu_custom_call.1} parent=71 // pred_region
          %470 = dma.done [#allocation6], 1536
        $region84: #{tpu_custom_call.1} parent=71 // pred_fallthru
          _
        // Predicated region
        $region85: #{tpu_custom_call.1} parent=71 // pred_check
          %p471 = pneg %p242
        $region86: #{tpu_custom_call.1} parent=71 // pred_check_branch
          %473 = sbr.rel (%p471) target = $region88
        $region87: #{tpu_custom_call.1} parent=71 // pred_region
          %474 = dma.done [#allocation9], 6144
        $region88: #{tpu_custom_call.1} parent=71 // pred_fallthru
          _
        // Predicated region
        $region89: #{tpu_custom_call.1} parent=71 // pred_check
          %p475 = pneg %p284
        $region90: #{tpu_custom_call.1} parent=71 // pred_check_branch
          %477 = sbr.rel (%p475) target = $region92
        $region91: #{tpu_custom_call.1} parent=71 // pred_region
          %478 = dma.done [#allocation9], 6144
        $region92: #{tpu_custom_call.1} parent=71 // pred_fallthru
          _
        %s479 = sand.u32 %s40, 1
        %s480 = scalar_lea.sflag [#allocation3], %s479
        %s481 = sand.u32 %s40, 1
        %s482 = smul.addr %s481, 16
        %s483 = scalar_lea.vmem [#allocation2], %s482
        %p484 = pneg %p53
        %p485 = pneg %p50
        %p486 = pneg %p74
        %p487 = pneg %p71
        %p488 = pneg %p95
        %p489 = pneg %p92
        %p490 = pneg %p116
        %p491 = pneg %p113
        %p492 = pneg %p137
        %p493 = pneg %p134
        %p494 = pneg %p158
        %p495 = pneg %p155
        %p496 = pneg %p179
        %p497 = pneg %p176
        %p498 = pneg %p200
        %p499 = pneg %p197
        %p500 = pneg %p221
        %p501 = pneg %p218
        %p502 = pneg %p242
        %p503 = pneg %p239
        %p504 = pneg %p263
        %p505 = pneg %p260
        %p506 = pneg %p284
        %p507 = pneg %p281
        %p508 = pneg %p305
        %p509 = pneg %p302
        %p510 = pneg %p331
        %p511 = pneg %p328
        %s512 = sand.u32 %s318, 1
        %s513 = scalar_lea.sflag [#allocation4], %s512
        %s514 = sand.u32 %s318, 1
        %s515 = smul.addr %s514, 16
        %s516 = scalar_lea.vmem [#allocation11], %s515
        %s517 = smul.u32 2, %s32
        %v519 = vld [vmem:[%s458] sm:$0xff]
        %v520 = vld [vmem:[%s458 + $0x8] sm:$0xff]
        %v521 = vlaneseq
        %v522 = vand.u32 %v521, 127
        %vm523 = vcmp.lt.s32.totalorder %v522, 96
        %v524 = vsel %vm523, 1, 0
        %v525 = vcvt.s32.f32 %v524
        %v526 = vpack.c.bf16 %v520, %v519
        %v527 = vld [vmem:[#allocation5] sm:$0xff]
        %v528 = vld [vmem:[#allocation5 + $0x8] sm:$0xf]
        %v529 = vld [vmem:[#allocation5 + $0xc] sm:$0xff]
        %v530 = vld [vmem:[#allocation5 + $0x14] sm:$0xf]
        %v531 = vld [vmem:[#allocation5 + $0x18] sm:$0xff]
        %v532 = vld [vmem:[#allocation5 + $0x20] sm:$0xf]
        %v533 = vld [vmem:[#allocation5 + $0x24] sm:$0xff]
        %v534 = vld [vmem:[#allocation5 + $0x2c] sm:$0xf]
        %v535 = vld [vmem:[#allocation5 + $0x30] sm:$0xff]
        %v536 = vld [vmem:[#allocation5 + $0x38] sm:$0xf]
        %v537 = vld [vmem:[#allocation5 + $0x3c] sm:$0xff]
        %v538 = vld [vmem:[#allocation5 + $0x44] sm:$0xf]
        %v539 = vld [vmem:[#allocation5 + $0x48] sm:$0xff]
        %v540 = vld [vmem:[#allocation5 + $0x50] sm:$0xf]
        %v541 = vld [vmem:[#allocation5 + $0x54] sm:$0xff]
        %v542 = vld [vmem:[#allocation5 + $0x5c] sm:$0xf]
        %v543 = vld [vmem:[#allocation5 + $0x60] sm:$0xff]
        %v544 = vld [vmem:[#allocation5 + $0x68] sm:$0xf]
        %v545 = vld [vmem:[#allocation5 + $0x6c] sm:$0xff]
        %v546 = vld [vmem:[#allocation5 + $0x74] sm:$0xf]
        %v547 = vld [vmem:[#allocation5 + $0x78] sm:$0xff]
        %v548 = vld [vmem:[#allocation5 + $0x80] sm:$0xf]
        %v549 = vld [vmem:[#allocation5 + $0x84] sm:$0xff]
        %v550 = vld [vmem:[#allocation5 + $0x8c] sm:$0xf]
        %v551 = vld [vmem:[#allocation5 + $0x90] sm:$0xff]
        %v552 = vld [vmem:[#allocation5 + $0x98] sm:$0xf]
        %v553 = vld [vmem:[#allocation5 + $0x9c] sm:$0xff]
        %v554 = vld [vmem:[#allocation5 + $0xa4] sm:$0xf]
        %v555 = vld [vmem:[#allocation5 + $0xa8] sm:$0xff]
        %v556 = vld [vmem:[#allocation5 + $0xb0] sm:$0xf]
        %v557 = vld [vmem:[#allocation5 + $0xb4] sm:$0xff]
        %v558 = vld [vmem:[#allocation5 + $0xbc] sm:$0xf]
        %v559 = vld [vmem:[%s2] sm:$0x7]
        %v561 = vlaneseq
        %v562 = vshrl.u32 %v561, 7
        %v563 = vsub.s32 0, %v562
        %v564 = vrot.slane %v559, %v563
        %v565 = vlaneseq
        %v566 = vshrl.u32 %v565, 7
        %v567 = vsub.s32 1, %v566
        %v568 = vrot.slane %v559, %v567
        %v569 = vlaneseq
        %v570 = vshrl.u32 %v569, 7
        %v571 = vsub.s32 2, %v570
        %v572 = vrot.slane %v559, %v571
        %v608 = vunpack.c.l.b16 %v527
        %v609 = vunpack.c.h.b16 %v527
        %v610 = vunpack.c.l.b16 %v528
        %v611 = vunpack.c.l.b16 %v529
        %v612 = vunpack.c.h.b16 %v529
        %v613 = vunpack.c.l.b16 %v530
        %v614 = vunpack.c.l.b16 %v531
        %v615 = vunpack.c.h.b16 %v531
        %v616 = vunpack.c.l.b16 %v532
        %v617 = vunpack.c.l.b16 %v533
        %v618 = vunpack.c.h.b16 %v533
        %v619 = vunpack.c.l.b16 %v534
        %v620 = vunpack.c.l.b16 %v535
        %v621 = vunpack.c.h.b16 %v535
        %v622 = vunpack.c.l.b16 %v536
        %v623 = vunpack.c.l.b16 %v537
        %v624 = vunpack.c.h.b16 %v537
        %v625 = vunpack.c.l.b16 %v538
        %v626 = vunpack.c.l.b16 %v539
        %v627 = vunpack.c.h.b16 %v539
        %v628 = vunpack.c.l.b16 %v540
        %v629 = vunpack.c.l.b16 %v541
        %v630 = vunpack.c.h.b16 %v541
        %v631 = vunpack.c.l.b16 %v542
        %v632 = vunpack.c.l.b16 %v543
        %v633 = vunpack.c.h.b16 %v543
        %v634 = vunpack.c.l.b16 %v544
        %v635 = vunpack.c.l.b16 %v545
        %v636 = vunpack.c.h.b16 %v545
        %v637 = vunpack.c.l.b16 %v546
        %v638 = vunpack.c.l.b16 %v547
        %v639 = vunpack.c.h.b16 %v547
        %v640 = vunpack.c.l.b16 %v548
        %v641 = vunpack.c.l.b16 %v549
        %v642 = vunpack.c.h.b16 %v549
        %v643 = vunpack.c.l.b16 %v550
        %v644 = vunpack.c.l.b16 %v551
        %v645 = vunpack.c.h.b16 %v551
        %v646 = vunpack.c.l.b16 %v552
        %v647 = vunpack.c.l.b16 %v553
        %v648 = vunpack.c.h.b16 %v553
        %v649 = vunpack.c.l.b16 %v554
        %v650 = vunpack.c.l.b16 %v555
        %v651 = vunpack.c.h.b16 %v555
        %v652 = vunpack.c.l.b16 %v556
        %v653 = vunpack.c.l.b16 %v557
        %v654 = vunpack.c.h.b16 %v557
        %v655 = vunpack.c.l.b16 %v558
        %v656 = vpack.c.b16 %v611, %v608
        %v657 = vpack.c.b16 %v612, %v609
        %v658 = vpack.c.b16 %v613, %v610
        %v659 = vpack.c.b16 %v617, %v614
        %v660 = vpack.c.b16 %v618, %v615
        %v661 = vpack.c.b16 %v619, %v616
        %v662 = vpack.c.b16 %v623, %v620
        %v663 = vpack.c.b16 %v624, %v621
        %v664 = vpack.c.b16 %v625, %v622
        %v665 = vpack.c.b16 %v629, %v626
        %v666 = vpack.c.b16 %v630, %v627
        %v667 = vpack.c.b16 %v631, %v628
        %v668 = vpack.c.b16 %v635, %v632
        %v669 = vpack.c.b16 %v636, %v633
        %v670 = vpack.c.b16 %v637, %v634
        %v671 = vpack.c.b16 %v641, %v638
        %v672 = vpack.c.b16 %v642, %v639
        %v673 = vpack.c.b16 %v643, %v640
        %v674 = vpack.c.b16 %v647, %v644
        %v675 = vpack.c.b16 %v648, %v645
        %v676 = vpack.c.b16 %v649, %v646
        %v677 = vpack.c.b16 %v653, %v650
        %v678 = vpack.c.b16 %v654, %v651
        %v679 = vpack.c.b16 %v655, %v652
        %704 = vmatprep.subr.bf16.mxu0 %v657
        %705 = vmatpush1.bf16.msra.mxu0 %v656
        %706 = vmatprep.subr.bf16.mxu0 %v660
        %707 = vmatpush1.bf16.msra.mxu0 %v659
        %708 = vmatprep.subr.bf16.mxu0 %v663
        %709 = vmatpush1.bf16.msra.mxu0 %v662
        %710 = vmatprep.subr.bf16.mxu0 %v666
        %711 = vmatpush1.bf16.msra.mxu0 %v665
        %712 = vmatprep.subr.bf16.mxu0 %v669
        %713 = vmatpush1.bf16.msra.mxu0 %v668
        %714 = vmatprep.subr.bf16.mxu0 %v672
        %715 = vmatpush1.bf16.msra.mxu0 %v671
        %716 = vmatprep.subr.bf16.mxu0 %v675
        %717 = vmatpush1.bf16.msra.mxu0 %v674
        %718 = vmatprep.subr.bf16.mxu0 %v678
        %719 = vmatpush1.bf16.msra.mxu0 %v677
        %720 = vmatprep.subr.bf16.mxu0 0
        %721 = vmatpush1.bf16.msra.mxu0 0
        %722 = vmatprep.subr.bf16.mxu0 0
        %723 = vmatpush1.bf16.msra.mxu0 0
        %724 = vmatprep.subr.bf16.mxu0 0
        %725 = vmatpush1.bf16.msra.mxu0 0
        %726 = vmatprep.subr.bf16.mxu0 0
        %727 = vmatpush1.bf16.msra.mxu0 0
        %728 = vmatprep.subr.bf16.mxu0 0
        %729 = vmatpush1.bf16.msra.mxu0 0
        %730 = vmatprep.subr.bf16.mxu0 0
        %731 = vmatpush1.bf16.msra.mxu0 0
        %732 = vmatprep.subr.bf16.mxu0 0
        %733 = vmatpush1.bf16.msra.mxu0 0
        %734 = vmatprep.subr.bf16.mxu0 0
        %735 = vmatpush1.bf16.msra.mxu0 0
        %736 = vmatprep.mubr.bf16.mxu0 0
        %737 = vmatmul.mubr.bf16.gmra.mrb[0].mxu0 %v526
        %v738 = vpop.f32.mrb[0].mxu0
        %v739 = vadd.f32 %v564, %v738
        %v740 = vpop.f32.mrb[0].mxu0
        %v741 = vadd.f32 %v568, %v740
        %v742 = vpop.f32.mrb[0].mxu0
        %v743 = vadd.f32 %v564, %v742
        %v744 = vpop.f32.mrb[0].mxu0
        %v745 = vadd.f32 %v568, %v744
        %746 = vdwg.mxu0
        %747 = vmatprep.subr.bf16.mxu0 0
        %748 = vmatpush1.bf16.msra.mxu0 %v658
        %749 = vmatprep.subr.bf16.mxu0 0
        %750 = vmatpush1.bf16.msra.mxu0 %v661
        %751 = vmatprep.subr.bf16.mxu0 0
        %752 = vmatpush1.bf16.msra.mxu0 %v664
        %753 = vmatprep.subr.bf16.mxu0 0
        %754 = vmatpush1.bf16.msra.mxu0 %v667
        %755 = vmatprep.subr.bf16.mxu0 0
        %756 = vmatpush1.bf16.msra.mxu0 %v670
        %757 = vmatprep.subr.bf16.mxu0 0
        %758 = vmatpush1.bf16.msra.mxu0 %v673
        %759 = vmatprep.subr.bf16.mxu0 0
        %760 = vmatpush1.bf16.msra.mxu0 %v676
        %761 = vmatprep.subr.bf16.mxu0 0
        %762 = vmatpush1.bf16.msra.mxu0 %v679
        %763 = vmatprep.subr.bf16.mxu0 0
        %764 = vmatpush1.bf16.msra.mxu0 0
        %765 = vmatprep.subr.bf16.mxu0 0
        %766 = vmatpush1.bf16.msra.mxu0 0
        %767 = vmatprep.subr.bf16.mxu0 0
        %768 = vmatpush1.bf16.msra.mxu0 0
        %769 = vmatprep.subr.bf16.mxu0 0
        %770 = vmatpush1.bf16.msra.mxu0 0
        %771 = vmatprep.subr.bf16.mxu0 0
        %772 = vmatpush1.bf16.msra.mxu0 0
        %773 = vmatprep.subr.bf16.mxu0 0
        %774 = vmatpush1.bf16.msra.mxu0 0
        %775 = vmatprep.subr.bf16.mxu0 0
        %776 = vmatpush1.bf16.msra.mxu0 0
        %777 = vmatprep.subr.bf16.mxu0 0
        %778 = vmatpush1.bf16.msra.mxu0 0
        %779 = vmatprep.mubr.bf16.mxu0 0
        %780 = vmatmul.mubr.bf16.gmra.mrb[0].mxu0 %v526
        %v781 = vpop.f32.mrb[0].mxu0
        %v782 = vadd.f32 %v572, %v781
        %v783 = vpop.f32.mrb[0].mxu0
        %v784 = vpop.f32.mrb[0].mxu0
        %v785 = vadd.f32 %v572, %v784
        %v786 = vpop.f32.mrb[0].mxu0
        %787 = vdwg.mxu0
        %v788 = vpack.c.bf16 %v743, %v739
        %v789 = vpack.c.bf16 %v745, %v741
        %v790 = vpack.c.bf16 %v785, %v782
        %vm791 = vcmask 64512
        %v793 = vsel %vm791, %v788, 0
        %v796 = vsel %vm791, %v789, 0
        %798 = vmatprep.subr.bf16.mxu0 0
        %799 = vmatpush1.bf16.xpose.msra.mxu0 %v796
        %800 = vmatprep.subr.bf16.mxu0 0
        %801 = vmatpush1.bf16.xpose.msra.mxu0 0
        %802 = vmatprep.subr.bf16.mxu0 0
        %803 = vmatpush1.bf16.xpose.msra.mxu0 0
        %804 = vmatprep.subr.bf16.mxu0 0
        %805 = vmatpush1.bf16.xpose.msra.mxu0 0
        %806 = vmatprep.subr.bf16.mxu0 0
        %807 = vmatpush1.bf16.xpose.msra.mxu0 0
        %808 = vmatprep.subr.bf16.mxu0 0
        %809 = vmatpush1.bf16.xpose.msra.mxu0 0
        %810 = vmatprep.subr.bf16.mxu0 0
        %811 = vmatpush1.bf16.xpose.msra.mxu0 0
        %812 = vmatprep.subr.bf16.mxu0 0
        %813 = vmatpush1.bf16.xpose.msra.mxu0 0
        %814 = vmatprep.subr.bf16.mxu0 0
        %815 = vmatpush1.bf16.xpose.msra.mxu0 0
        %816 = vmatprep.subr.bf16.mxu0 0
        %817 = vmatpush1.bf16.xpose.msra.mxu0 0
        %818 = vmatprep.subr.bf16.mxu0 0
        %819 = vmatpush1.bf16.xpose.msra.mxu0 0
        %820 = vmatprep.subr.bf16.mxu0 0
        %821 = vmatpush1.bf16.xpose.msra.mxu0 0
        %822 = vmatprep.subr.bf16.mxu0 0
        %823 = vmatpush1.bf16.xpose.msra.mxu0 0
        %824 = vmatprep.subr.bf16.mxu0 0
        %825 = vmatpush1.bf16.xpose.msra.mxu0 0
        %826 = vmatprep.subr.bf16.mxu0 0
        %827 = vmatpush1.bf16.xpose.msra.mxu0 0
        %828 = vmatprep.subr.bf16.mxu0 0
        %829 = vmatpush1.bf16.xpose.msra.mxu0 0
        %830 = vmatprep.mubr.bf16.mxu0 0
        %831 = vmatmul.mubr.bf16.gmra.mrb[0].mxu0 %v793
        %v832 = vpop.f32.mrb[0].mxu0
        %v833 = vadd.f32 0.0, %v832
        %v834 = vpop.f32.mrb[0].mxu0
        %v835 = vpop.f32.mrb[0].mxu0
        %v836 = vadd.f32 0.0, %v835
        %v837 = vpop.f32.mrb[0].mxu0
        %838 = vdwg.mxu0
        %vm839 = vcmask 130048
        %v840 = vsel %vm839, %v833, -inf
        %841 = vmax.xlane.f32.xlu0 %v840
        %v842 = vpop.xlane.xlu0 %841
        %v843 = vsel %vm839, %v836, -inf
        %844 = vmax.xlane.f32.xlu0 %v843
        %v845 = vpop.xlane.xlu0 %844
        %v846 = vsub.f32 %v833, %v842
        %v847 = vsub.f32 %v836, %v845
        %v848 = vmul.f32 %v846, 1.442695
        %v849 = vpow.pop %v848
        %v850 = vmul.f32 %v847, 1.442695
        %v851 = vpow.pop %v850
        %v852 = vsel %vm839, %v849, 0.0
        %853 = vadd.xlane.f32.xlu0 %v852
        %v854 = vpop.xlane.xlu0 %853
        %v855 = vsel %vm839, %v851, 0.0
        %856 = vadd.xlane.f32.xlu0 %v855
        %v857 = vpop.xlane.xlu0 %856
        %v858 = vrcp.pop %v854
        %v859 = vrcp.pop %v857
        %v860 = vmul.f32 %v849, %v858
        %v861 = vmul.f32 %v851, %v859
        %v862 = vpack.c.bf16 %v861, %v860
        %v864 = vsel %vm839, %v862, 0
        %866 = vmatprep.subr.bf16.mxu0 0
        %867 = vmatpush1.bf16.msra.mxu0 %v790
        %868 = vmatprep.subr.bf16.mxu0 0
        %869 = vmatpush1.bf16.msra.mxu0 0
        %870 = vmatprep.subr.bf16.mxu0 0
        %871 = vmatpush1.bf16.msra.mxu0 0
        %872 = vmatprep.subr.bf16.mxu0 0
        %873 = vmatpush1.bf16.msra.mxu0 0
        %874 = vmatprep.subr.bf16.mxu0 0
        %875 = vmatpush1.bf16.msra.mxu0 0
        %876 = vmatprep.subr.bf16.mxu0 0
        %877 = vmatpush1.bf16.msra.mxu0 0
        %878 = vmatprep.subr.bf16.mxu0 0
        %879 = vmatpush1.bf16.msra.mxu0 0
        %880 = vmatprep.subr.bf16.mxu0 0
        %881 = vmatpush1.bf16.msra.mxu0 0
        %882 = vmatprep.subr.bf16.mxu0 0
        %883 = vmatpush1.bf16.msra.mxu0 0
        %884 = vmatprep.subr.bf16.mxu0 0
        %885 = vmatpush1.bf16.msra.mxu0 0
        %886 = vmatprep.subr.bf16.mxu0 0
        %887 = vmatpush1.bf16.msra.mxu0 0
        %888 = vmatprep.subr.bf16.mxu0 0
        %889 = vmatpush1.bf16.msra.mxu0 0
        %890 = vmatprep.subr.bf16.mxu0 0
        %891 = vmatpush1.bf16.msra.mxu0 0
        %892 = vmatprep.subr.bf16.mxu0 0
        %893 = vmatpush1.bf16.msra.mxu0 0
        %894 = vmatprep.subr.bf16.mxu0 0
        %895 = vmatpush1.bf16.msra.mxu0 0
        %896 = vmatprep.subr.bf16.mxu0 0
        %897 = vmatpush1.bf16.msra.mxu0 0
        %898 = vmatprep.mubr.bf16.mxu0 0
        %899 = vmatmul.mubr.bf16.gmra.mrb[0].mxu0 %v864
        %v900 = vpop.f32.mrb[0].mxu0
        %v901 = vadd.f32 0.0, %v900
        %v902 = vpop.f32.mrb[0].mxu0
        %v903 = vpop.f32.mrb[0].mxu0
        %v904 = vadd.f32 0.0, %v903
        %v905 = vpop.f32.mrb[0].mxu0
        %906 = vdwg.mxu0
        %908 = vrot.lane.b32.xlu0 %v788, 120
        %v909 = vpop.permute.xlu0 %908
        %911 = vrot.lane.b32.xlu0 %v789, 120
        %v912 = vpop.permute.xlu0 %911
        %v914 = vsel %vm791, %v909, 0
        %v917 = vsel %vm791, %v912, 0
        %919 = vmatprep.subr.bf16.mxu0 0
        %920 = vmatpush1.bf16.xpose.msra.mxu0 %v917
        %921 = vmatprep.subr.bf16.mxu0 0
        %922 = vmatpush1.bf16.xpose.msra.mxu0 0
        %923 = vmatprep.subr.bf16.mxu0 0
        %924 = vmatpush1.bf16.xpose.msra.mxu0 0
        %925 = vmatprep.subr.bf16.mxu0 0
        %926 = vmatpush1.bf16.xpose.msra.mxu0 0
        %927 = vmatprep.subr.bf16.mxu0 0
        %928 = vmatpush1.bf16.xpose.msra.mxu0 0
        %929 = vmatprep.subr.bf16.mxu0 0
        %930 = vmatpush1.bf16.xpose.msra.mxu0 0
        %931 = vmatprep.subr.bf16.mxu0 0
        %932 = vmatpush1.bf16.xpose.msra.mxu0 0
        %933 = vmatprep.subr.bf16.mxu0 0
        %934 = vmatpush1.bf16.xpose.msra.mxu0 0
        %935 = vmatprep.subr.bf16.mxu0 0
        %936 = vmatpush1.bf16.xpose.msra.mxu0 0
        %937 = vmatprep.subr.bf16.mxu0 0
        %938 = vmatpush1.bf16.xpose.msra.mxu0 0
        %939 = vmatprep.subr.bf16.mxu0 0
        %940 = vmatpush1.bf16.xpose.msra.mxu0 0
        %941 = vmatprep.subr.bf16.mxu0 0
        %942 = vmatpush1.bf16.xpose.msra.mxu0 0
        %943 = vmatprep.subr.bf16.mxu0 0
        %944 = vmatpush1.bf16.xpose.msra.mxu0 0
        %945 = vmatprep.subr.bf16.mxu0 0
        %946 = vmatpush1.bf16.xpose.msra.mxu0 0
        %947 = vmatprep.subr.bf16.mxu0 0
        %948 = vmatpush1.bf16.xpose.msra.mxu0 0
        %949 = vmatprep.subr.bf16.mxu0 0
        %950 = vmatpush1.bf16.xpose.msra.mxu0 0
        %951 = vmatprep.mubr.bf16.mxu0 0
        %952 = vmatmul.mubr.bf16.gmra.mrb[0].mxu0 %v914
        %v953 = vpop.f32.mrb[0].mxu0
        %v954 = vadd.f32 0.0, %v953
        %v955 = vpop.f32.mrb[0].mxu0
        %v956 = vpop.f32.mrb[0].mxu0
        %v957 = vadd.f32 0.0, %v956
        %v958 = vpop.f32.mrb[0].mxu0
        %959 = vdwg.mxu0
        %v960 = vsel %vm839, %v954, -inf
        %961 = vmax.xlane.f32.xlu0 %v960
        %v962 = vpop.xlane.xlu0 %961
        %v963 = vsel %vm839, %v957, -inf
        %964 = vmax.xlane.f32.xlu0 %v963
        %v965 = vpop.xlane.xlu0 %964
        %v966 = vsub.f32 %v954, %v962
        %v967 = vsub.f32 %v957, %v965
        %v968 = vmul.f32 %v966, 1.442695
        %v969 = vpow.pop %v968
        %v970 = vmul.f32 %v967, 1.442695
        %v971 = vpow.pop %v970
        %v972 = vsel %vm839, %v969, 0.0
        %973 = vadd.xlane.f32.xlu0 %v972
        %v974 = vpop.xlane.xlu0 %973
        %v975 = vsel %vm839, %v971, 0.0
        %976 = vadd.xlane.f32.xlu0 %v975
        %v977 = vpop.xlane.xlu0 %976
        %v978 = vrcp.pop %v974
        %v979 = vrcp.pop %v977
        %v980 = vmul.f32 %v969, %v978
        %v981 = vmul.f32 %v971, %v979
        %v982 = vpack.c.bf16 %v981, %v980
        %984 = vrot.lane.b32.xlu0 %v790, 120
        %v985 = vpop.permute.xlu0 %984
        %v988 = vsel %vm839, %v982, 0
        %990 = vmatprep.subr.bf16.mxu0 0
        %991 = vmatpush1.bf16.msra.mxu0 %v985
        %992 = vmatprep.subr.bf16.mxu0 0
        %993 = vmatpush1.bf16.msra.mxu0 0
        %994 = vmatprep.subr.bf16.mxu0 0
        %995 = vmatpush1.bf16.msra.mxu0 0
        %996 = vmatprep.subr.bf16.mxu0 0
        %997 = vmatpush1.bf16.msra.mxu0 0
        %998 = vmatprep.subr.bf16.mxu0 0
        %999 = vmatpush1.bf16.msra.mxu0 0
        %1000 = vmatprep.subr.bf16.mxu0 0
        %1001 = vmatpush1.bf16.msra.mxu0 0
        %1002 = vmatprep.subr.bf16.mxu0 0
        %1003 = vmatpush1.bf16.msra.mxu0 0
        %1004 = vmatprep.subr.bf16.mxu0 0
        %1005 = vmatpush1.bf16.msra.mxu0 0
        %1006 = vmatprep.subr.bf16.mxu0 0
        %1007 = vmatpush1.bf16.msra.mxu0 0
        %1008 = vmatprep.subr.bf16.mxu0 0
        %1009 = vmatpush1.bf16.msra.mxu0 0
        %1010 = vmatprep.subr.bf16.mxu0 0
        %1011 = vmatpush1.bf16.msra.mxu0 0
        %1012 = vmatprep.subr.bf16.mxu0 0
        %1013 = vmatpush1.bf16.msra.mxu0 0
        %1014 = vmatprep.subr.bf16.mxu0 0
        %1015 = vmatpush1.bf16.msra.mxu0 0
        %1016 = vmatprep.subr.bf16.mxu0 0
        %1017 = vmatpush1.bf16.msra.mxu0 0
        %1018 = vmatprep.subr.bf16.mxu0 0
        %1019 = vmatpush1.bf16.msra.mxu0 0
        %1020 = vmatprep.subr.bf16.mxu0 0
        %1021 = vmatpush1.bf16.msra.mxu0 0
        %1022 = vmatprep.mubr.bf16.mxu0 0
        %1023 = vmatmul.mubr.bf16.gmra.mrb[0].mxu0 %v988
        %v1024 = vpop.f32.mrb[0].mxu0
        %v1025 = vadd.f32 0.0, %v1024
        %v1026 = vpop.f32.mrb[0].mxu0
        %v1027 = vpop.f32.mrb[0].mxu0
        %v1028 = vadd.f32 0.0, %v1027
        %v1029 = vpop.f32.mrb[0].mxu0
        %1030 = vdwg.mxu0
        %1031 = vrot.lane.b32.xlu0 %v788, 112
        %v1032 = vpop.permute.xlu0 %1031
        %1033 = vrot.lane.b32.xlu0 %v789, 112
        %v1034 = vpop.permute.xlu0 %1033
        %v1036 = vsel %vm791, %v1032, 0
        %v1039 = vsel %vm791, %v1034, 0
        %1041 = vmatprep.subr.bf16.mxu0 0
        %1042 = vmatpush1.bf16.xpose.msra.mxu0 %v1039
        %1043 = vmatprep.subr.bf16.mxu0 0
        %1044 = vmatpush1.bf16.xpose.msra.mxu0 0
        %1045 = vmatprep.subr.bf16.mxu0 0
        %1046 = vmatpush1.bf16.xpose.msra.mxu0 0
        %1047 = vmatprep.subr.bf16.mxu0 0
        %1048 = vmatpush1.bf16.xpose.msra.mxu0 0
        %1049 = vmatprep.subr.bf16.mxu0 0
        %1050 = vmatpush1.bf16.xpose.msra.mxu0 0
        %1051 = vmatprep.subr.bf16.mxu0 0
        %1052 = vmatpush1.bf16.xpose.msra.mxu0 0
        %1053 = vmatprep.subr.bf16.mxu0 0
        %1054 = vmatpush1.bf16.xpose.msra.mxu0 0
        %1055 = vmatprep.subr.bf16.mxu0 0
        %1056 = vmatpush1.bf16.xpose.msra.mxu0 0
        %1057 = vmatprep.subr.bf16.mxu0 0
        %1058 = vmatpush1.bf16.xpose.msra.mxu0 0
        %1059 = vmatprep.subr.bf16.mxu0 0
        %1060 = vmatpush1.bf16.xpose.msra.mxu0 0
        %1061 = vmatprep.subr.bf16.mxu0 0
        %1062 = vmatpush1.bf16.xpose.msra.mxu0 0
        %1063 = vmatprep.subr.bf16.mxu0 0
        %1064 = vmatpush1.bf16.xpose.msra.mxu0 0
        %1065 = vmatprep.subr.bf16.mxu0 0
        %1066 = vmatpush1.bf16.xpose.msra.mxu0 0
        %1067 = vmatprep.subr.bf16.mxu0 0
        %1068 = vmatpush1.bf16.xpose.msra.mxu0 0
        %1069 = vmatprep.subr.bf16.mxu0 0
        %1070 = vmatpush1.bf16.xpose.msra.mxu0 0
        %1071 = vmatprep.subr.bf16.mxu0 0
        %1072 = vmatpush1.bf16.xpose.msra.mxu0 0
        %1073 = vmatprep.mubr.bf16.mxu0 0
        %1074 = vmatmul.mubr.bf16.gmra.mrb[0].mxu0 %v1036
        %v1075 = vpop.f32.mrb[0].mxu0
        %v1076 = vadd.f32 0.0, %v1075
        %v1077 = vpop.f32.mrb[0].mxu0
        %v1078 = vpop.f32.mrb[0].mxu0
        %v1079 = vadd.f32 0.0, %v1078
        %v1080 = vpop.f32.mrb[0].mxu0
        %1081 = vdwg.mxu0
        %v1082 = vsel %vm839, %v1076, -inf
        %1083 = vmax.xlane.f32.xlu0 %v1082
        %v1084 = vpop.xlane.xlu0 %1083
        %v1085 = vsel %vm839, %v1079, -inf
        %1086 = vmax.xlane.f32.xlu0 %v1085
        %v1087 = vpop.xlane.xlu0 %1086
        %v1088 = vsub.f32 %v1076, %v1084
        %v1089 = vsub.f32 %v1079, %v1087
        %v1090 = vmul.f32 %v1088, 1.442695
        %v1091 = vpow.pop %v1090
        %v1092 = vmul.f32 %v1089, 1.442695
        %v1093 = vpow.pop %v1092
        %v1094 = vsel %vm839, %v1091, 0.0
        %1095 = vadd.xlane.f32.xlu0 %v1094
        %v1096 = vpop.xlane.xlu0 %1095
        %v1097 = vsel %vm839, %v1093, 0.0
        %1098 = vadd.xlane.f32.xlu0 %v1097
        %v1099 = vpop.xlane.xlu0 %1098
        %v1100 = vrcp.pop %v1096
        %v1101 = vrcp.pop %v1099
        %v1102 = vmul.f32 %v1091, %v1100
        %v1103 = vmul.f32 %v1093, %v1101
        %v1104 = vpack.c.bf16 %v1103, %v1102
        %1105 = vrot.lane.b32.xlu0 %v790, 112
        %v1106 = vpop.permute.xlu0 %1105
        %v1109 = vsel %vm839, %v1104, 0
        %1111 = vmatprep.subr.bf16.mxu0 0
        %1112 = vmatpush1.bf16.msra.mxu0 %v1106
        %1113 = vmatprep.subr.bf16.mxu0 0
        %1114 = vmatpush1.bf16.msra.mxu0 0
        %1115 = vmatprep.subr.bf16.mxu0 0
        %1116 = vmatpush1.bf16.msra.mxu0 0
        %1117 = vmatprep.subr.bf16.mxu0 0
        %1118 = vmatpush1.bf16.msra.mxu0 0
        %1119 = vmatprep.subr.bf16.mxu0 0
        %1120 = vmatpush1.bf16.msra.mxu0 0
        %1121 = vmatprep.subr.bf16.mxu0 0
        %1122 = vmatpush1.bf16.msra.mxu0 0
        %1123 = vmatprep.subr.bf16.mxu0 0
        %1124 = vmatpush1.bf16.msra.mxu0 0
        %1125 = vmatprep.subr.bf16.mxu0 0
        %1126 = vmatpush1.bf16.msra.mxu0 0
        %1127 = vmatprep.subr.bf16.mxu0 0
        %1128 = vmatpush1.bf16.msra.mxu0 0
        %1129 = vmatprep.subr.bf16.mxu0 0
        %1130 = vmatpush1.bf16.msra.mxu0 0
        %1131 = vmatprep.subr.bf16.mxu0 0
        %1132 = vmatpush1.bf16.msra.mxu0 0
        %1133 = vmatprep.subr.bf16.mxu0 0
        %1134 = vmatpush1.bf16.msra.mxu0 0
        %1135 = vmatprep.subr.bf16.mxu0 0
        %1136 = vmatpush1.bf16.msra.mxu0 0
        %1137 = vmatprep.subr.bf16.mxu0 0
        %1138 = vmatpush1.bf16.msra.mxu0 0
        %1139 = vmatprep.subr.bf16.mxu0 0
        %1140 = vmatpush1.bf16.msra.mxu0 0
        %1141 = vmatprep.subr.bf16.mxu0 0
        %1142 = vmatpush1.bf16.msra.mxu0 0
        %1143 = vmatprep.mubr.bf16.mxu0 0
        %1144 = vmatmul.mubr.bf16.gmra.mrb[0].mxu0 %v1109
        %v1145 = vpop.f32.mrb[0].mxu0
        %v1146 = vadd.f32 0.0, %v1145
        %v1147 = vpop.f32.mrb[0].mxu0
        %v1148 = vpop.f32.mrb[0].mxu0
        %v1149 = vadd.f32 0.0, %v1148
        %v1150 = vpop.f32.mrb[0].mxu0
        %1151 = vdwg.mxu0
        %1152 = vrot.lane.b32.xlu0 %v788, 104
        %v1153 = vpop.permute.xlu0 %1152
        %1154 = vrot.lane.b32.xlu0 %v789, 104
        %v1155 = vpop.permute.xlu0 %1154
        %v1157 = vsel %vm791, %v1153, 0
        %v1160 = vsel %vm791, %v1155, 0
        %1162 = vmatprep.subr.bf16.mxu0 0
        %1163 = vmatpush1.bf16.xpose.msra.mxu0 %v1160
        %1164 = vmatprep.subr.bf16.mxu0 0
        %1165 = vmatpush1.bf16.xpose.msra.mxu0 0
        %1166 = vmatprep.subr.bf16.mxu0 0
        %1167 = vmatpush1.bf16.xpose.msra.mxu0 0
        %1168 = vmatprep.subr.bf16.mxu0 0
        %1169 = vmatpush1.bf16.xpose.msra.mxu0 0
        %1170 = vmatprep.subr.bf16.mxu0 0
        %1171 = vmatpush1.bf16.xpose.msra.mxu0 0
        %1172 = vmatprep.subr.bf16.mxu0 0
        %1173 = vmatpush1.bf16.xpose.msra.mxu0 0
        %1174 = vmatprep.subr.bf16.mxu0 0
        %1175 = vmatpush1.bf16.xpose.msra.mxu0 0
        %1176 = vmatprep.subr.bf16.mxu0 0
        %1177 = vmatpush1.bf16.xpose.msra.mxu0 0
        %1178 = vmatprep.subr.bf16.mxu0 0
        %1179 = vmatpush1.bf16.xpose.msra.mxu0 0
        %1180 = vmatprep.subr.bf16.mxu0 0
        %1181 = vmatpush1.bf16.xpose.msra.mxu0 0
        %1182 = vmatprep.subr.bf16.mxu0 0
        %1183 = vmatpush1.bf16.xpose.msra.mxu0 0
        %1184 = vmatprep.subr.bf16.mxu0 0
        %1185 = vmatpush1.bf16.xpose.msra.mxu0 0
        %1186 = vmatprep.subr.bf16.mxu0 0
        %1187 = vmatpush1.bf16.xpose.msra.mxu0 0
        %1188 = vmatprep.subr.bf16.mxu0 0
        %1189 = vmatpush1.bf16.xpose.msra.mxu0 0
        %1190 = vmatprep.subr.bf16.mxu0 0
        %1191 = vmatpush1.bf16.xpose.msra.mxu0 0
        %1192 = vmatprep.subr.bf16.mxu0 0
        %1193 = vmatpush1.bf16.xpose.msra.mxu0 0
        %1194 = vmatprep.mubr.bf16.mxu0 0
        %1195 = vmatmul.mubr.bf16.gmra.mrb[0].mxu0 %v1157
        %v1196 = vpop.f32.mrb[0].mxu0
        %v1197 = vadd.f32 0.0, %v1196
        %v1198 = vpop.f32.mrb[0].mxu0
        %v1199 = vpop.f32.mrb[0].mxu0
        %v1200 = vadd.f32 0.0, %v1199
        %v1201 = vpop.f32.mrb[0].mxu0
        %1202 = vdwg.mxu0
        %v1203 = vsel %vm839, %v1197, -inf
        %1204 = vmax.xlane.f32.xlu0 %v1203
        %v1205 = vpop.xlane.xlu0 %1204
        %v1206 = vsel %vm839, %v1200, -inf
        %1207 = vmax.xlane.f32.xlu0 %v1206
        %v1208 = vpop.xlane.xlu0 %1207
        %v1209 = vsub.f32 %v1197, %v1205
        %v1210 = vsub.f32 %v1200, %v1208
        %v1211 = vmul.f32 %v1209, 1.442695
        %v1212 = vpow.pop %v1211
        %v1213 = vmul.f32 %v1210, 1.442695
        %v1214 = vpow.pop %v1213
        %v1215 = vsel %vm839, %v1212, 0.0
        %1216 = vadd.xlane.f32.xlu0 %v1215
        %v1217 = vpop.xlane.xlu0 %1216
        %v1218 = vsel %vm839, %v1214, 0.0
        %1219 = vadd.xlane.f32.xlu0 %v1218
        %v1220 = vpop.xlane.xlu0 %1219
        %v1221 = vrcp.pop %v1217
        %v1222 = vrcp.pop %v1220
        %v1223 = vmul.f32 %v1212, %v1221
        %v1224 = vmul.f32 %v1214, %v1222
        %v1225 = vpack.c.bf16 %v1224, %v1223
        %1226 = vrot.lane.b32.xlu0 %v790, 104
        %v1227 = vpop.permute.xlu0 %1226
        %v1230 = vsel %vm839, %v1225, 0
        %1232 = vmatprep.subr.bf16.mxu0 0
        %1233 = vmatpush1.bf16.msra.mxu0 %v1227
        %1234 = vmatprep.subr.bf16.mxu0 0
        %1235 = vmatpush1.bf16.msra.mxu0 0
        %1236 = vmatprep.subr.bf16.mxu0 0
        %1237 = vmatpush1.bf16.msra.mxu0 0
        %1238 = vmatprep.subr.bf16.mxu0 0
        %1239 = vmatpush1.bf16.msra.mxu0 0
        %1240 = vmatprep.subr.bf16.mxu0 0
        %1241 = vmatpush1.bf16.msra.mxu0 0
        %1242 = vmatprep.subr.bf16.mxu0 0
        %1243 = vmatpush1.bf16.msra.mxu0 0
        %1244 = vmatprep.subr.bf16.mxu0 0
        %1245 = vmatpush1.bf16.msra.mxu0 0
        %1246 = vmatprep.subr.bf16.mxu0 0
        %1247 = vmatpush1.bf16.msra.mxu0 0
        %1248 = vmatprep.subr.bf16.mxu0 0
        %1249 = vmatpush1.bf16.msra.mxu0 0
        %1250 = vmatprep.subr.bf16.mxu0 0
        %1251 = vmatpush1.bf16.msra.mxu0 0
        %1252 = vmatprep.subr.bf16.mxu0 0
        %1253 = vmatpush1.bf16.msra.mxu0 0
        %1254 = vmatprep.subr.bf16.mxu0 0
        %1255 = vmatpush1.bf16.msra.mxu0 0
        %1256 = vmatprep.subr.bf16.mxu0 0
        %1257 = vmatpush1.bf16.msra.mxu0 0
        %1258 = vmatprep.subr.bf16.mxu0 0
        %1259 = vmatpush1.bf16.msra.mxu0 0
        %1260 = vmatprep.subr.bf16.mxu0 0
        %1261 = vmatpush1.bf16.msra.mxu0 0
        %1262 = vmatprep.subr.bf16.mxu0 0
        %1263 = vmatpush1.bf16.msra.mxu0 0
        %1264 = vmatprep.mubr.bf16.mxu0 0
        %1265 = vmatmul.mubr.bf16.gmra.mrb[0].mxu0 %v1230
        %v1266 = vpop.f32.mrb[0].mxu0
        %v1267 = vadd.f32 0.0, %v1266
        %v1268 = vpop.f32.mrb[0].mxu0
        %v1269 = vpop.f32.mrb[0].mxu0
        %v1270 = vadd.f32 0.0, %v1269
        %v1271 = vpop.f32.mrb[0].mxu0
        %1272 = vdwg.mxu0
        %1273 = vrot.lane.b32.xlu0 %v788, 96
        %v1274 = vpop.permute.xlu0 %1273
        %1275 = vrot.lane.b32.xlu0 %v789, 96
        %v1276 = vpop.permute.xlu0 %1275
        %v1278 = vsel %vm791, %v1274, 0
        %v1281 = vsel %vm791, %v1276, 0
        %1283 = vmatprep.subr.bf16.mxu0 0
        %1284 = vmatpush1.bf16.xpose.msra.mxu0 %v1281
        %1285 = vmatprep.subr.bf16.mxu0 0
        %1286 = vmatpush1.bf16.xpose.msra.mxu0 0
        %1287 = vmatprep.subr.bf16.mxu0 0
        %1288 = vmatpush1.bf16.xpose.msra.mxu0 0
        %1289 = vmatprep.subr.bf16.mxu0 0
        %1290 = vmatpush1.bf16.xpose.msra.mxu0 0
        %1291 = vmatprep.subr.bf16.mxu0 0
        %1292 = vmatpush1.bf16.xpose.msra.mxu0 0
        %1293 = vmatprep.subr.bf16.mxu0 0
        %1294 = vmatpush1.bf16.xpose.msra.mxu0 0
        %1295 = vmatprep.subr.bf16.mxu0 0
        %1296 = vmatpush1.bf16.xpose.msra.mxu0 0
        %1297 = vmatprep.subr.bf16.mxu0 0
        %1298 = vmatpush1.bf16.xpose.msra.mxu0 0
        %1299 = vmatprep.subr.bf16.mxu0 0
        %1300 = vmatpush1.bf16.xpose.msra.mxu0 0
        %1301 = vmatprep.subr.bf16.mxu0 0
        %1302 = vmatpush1.bf16.xpose.msra.mxu0 0
        %1303 = vmatprep.subr.bf16.mxu0 0
        %1304 = vmatpush1.bf16.xpose.msra.mxu0 0
        %1305 = vmatprep.subr.bf16.mxu0 0
        %1306 = vmatpush1.bf16.xpose.msra.mxu0 0
        %1307 = vmatprep.subr.bf16.mxu0 0
        %1308 = vmatpush1.bf16.xpose.msra.mxu0 0
        %1309 = vmatprep.subr.bf16.mxu0 0
        %1310 = vmatpush1.bf16.xpose.msra.mxu0 0
        %1311 = vmatprep.subr.bf16.mxu0 0
        %1312 = vmatpush1.bf16.xpose.msra.mxu0 0
        %1313 = vmatprep.subr.bf16.mxu0 0
        %1314 = vmatpush1.bf16.xpose.msra.mxu0 0
        %1315 = vmatprep.mubr.bf16.mxu0 0
        %1316 = vmatmul.mubr.bf16.gmra.mrb[0].mxu0 %v1278
        %v1317 = vpop.f32.mrb[0].mxu0
        %v1318 = vadd.f32 0.0, %v1317
        %v1319 = vpop.f32.mrb[0].mxu0
        %v1320 = vpop.f32.mrb[0].mxu0
        %v1321 = vadd.f32 0.0, %v1320
        %v1322 = vpop.f32.mrb[0].mxu0
        %1323 = vdwg.mxu0
        %v1324 = vsel %vm839, %v1318, -inf
        %1325 = vmax.xlane.f32.xlu0 %v1324
        %v1326 = vpop.xlane.xlu0 %1325
        %v1327 = vsel %vm839, %v1321, -inf
        %1328 = vmax.xlane.f32.xlu0 %v1327
        %v1329 = vpop.xlane.xlu0 %1328
        %v1330 = vsub.f32 %v1318, %v1326
        %v1331 = vsub.f32 %v1321, %v1329
        %v1332 = vmul.f32 %v1330, 1.442695
        %v1333 = vpow.pop %v1332
        %v1334 = vmul.f32 %v1331, 1.442695
        %v1335 = vpow.pop %v1334
        %v1336 = vsel %vm839, %v1333, 0.0
        %1337 = vadd.xlane.f32.xlu0 %v1336
        %v1338 = vpop.xlane.xlu0 %1337
        %v1339 = vsel %vm839, %v1335, 0.0
        %1340 = vadd.xlane.f32.xlu0 %v1339
        %v1341 = vpop.xlane.xlu0 %1340
        %v1342 = vrcp.pop %v1338
        %v1343 = vrcp.pop %v1341
        %v1344 = vmul.f32 %v1333, %v1342
        %v1345 = vmul.f32 %v1335, %v1343
        %v1346 = vpack.c.bf16 %v1345, %v1344
        %1347 = vrot.lane.b32.xlu0 %v790, 96
        %v1348 = vpop.permute.xlu0 %1347
        %v1351 = vsel %vm839, %v1346, 0
        %1353 = vmatprep.subr.bf16.mxu0 0
        %1354 = vmatpush1.bf16.msra.mxu0 %v1348
        %1355 = vmatprep.subr.bf16.mxu0 0
        %1356 = vmatpush1.bf16.msra.mxu0 0
        %1357 = vmatprep.subr.bf16.mxu0 0
        %1358 = vmatpush1.bf16.msra.mxu0 0
        %1359 = vmatprep.subr.bf16.mxu0 0
        %1360 = vmatpush1.bf16.msra.mxu0 0
        %1361 = vmatprep.subr.bf16.mxu0 0
        %1362 = vmatpush1.bf16.msra.mxu0 0
        %1363 = vmatprep.subr.bf16.mxu0 0
        %1364 = vmatpush1.bf16.msra.mxu0 0
        %1365 = vmatprep.subr.bf16.mxu0 0
        %1366 = vmatpush1.bf16.msra.mxu0 0
        %1367 = vmatprep.subr.bf16.mxu0 0
        %1368 = vmatpush1.bf16.msra.mxu0 0
        %1369 = vmatprep.subr.bf16.mxu0 0
        %1370 = vmatpush1.bf16.msra.mxu0 0
        %1371 = vmatprep.subr.bf16.mxu0 0
        %1372 = vmatpush1.bf16.msra.mxu0 0
        %1373 = vmatprep.subr.bf16.mxu0 0
        %1374 = vmatpush1.bf16.msra.mxu0 0
        %1375 = vmatprep.subr.bf16.mxu0 0
        %1376 = vmatpush1.bf16.msra.mxu0 0
        %1377 = vmatprep.subr.bf16.mxu0 0
        %1378 = vmatpush1.bf16.msra.mxu0 0
        %1379 = vmatprep.subr.bf16.mxu0 0
        %1380 = vmatpush1.bf16.msra.mxu0 0
        %1381 = vmatprep.subr.bf16.mxu0 0
        %1382 = vmatpush1.bf16.msra.mxu0 0
        %1383 = vmatprep.subr.bf16.mxu0 0
        %1384 = vmatpush1.bf16.msra.mxu0 0
        %1385 = vmatprep.mubr.bf16.mxu0 0
        %1386 = vmatmul.mubr.bf16.gmra.mrb[0].mxu0 %v1351
        %v1387 = vpop.f32.mrb[0].mxu0
        %v1388 = vadd.f32 0.0, %v1387
        %v1389 = vpop.f32.mrb[0].mxu0
        %v1390 = vpop.f32.mrb[0].mxu0
        %v1391 = vadd.f32 0.0, %v1390
        %v1392 = vpop.f32.mrb[0].mxu0
        %1393 = vdwg.mxu0
        %1394 = vrot.lane.b32.xlu0 %v788, 88
        %v1395 = vpop.permute.xlu0 %1394
        %1396 = vrot.lane.b32.xlu0 %v789, 88
        %v1397 = vpop.permute.xlu0 %1396
        %v1399 = vsel %vm791, %v1395, 0
        %v1402 = vsel %vm791, %v1397, 0
        %1404 = vmatprep.subr.bf16.mxu0 0
        %1405 = vmatpush1.bf16.xpose.msra.mxu0 %v1402
        %1406 = vmatprep.subr.bf16.mxu0 0
        %1407 = vmatpush1.bf16.xpose.msra.mxu0 0
        %1408 = vmatprep.subr.bf16.mxu0 0
        %1409 = vmatpush1.bf16.xpose.msra.mxu0 0
        %1410 = vmatprep.subr.bf16.mxu0 0
        %1411 = vmatpush1.bf16.xpose.msra.mxu0 0
        %1412 = vmatprep.subr.bf16.mxu0 0
        %1413 = vmatpush1.bf16.xpose.msra.mxu0 0
        %1414 = vmatprep.subr.bf16.mxu0 0
        %1415 = vmatpush1.bf16.xpose.msra.mxu0 0
        %1416 = vmatprep.subr.bf16.mxu0 0
        %1417 = vmatpush1.bf16.xpose.msra.mxu0 0
        %1418 = vmatprep.subr.bf16.mxu0 0
        %1419 = vmatpush1.bf16.xpose.msra.mxu0 0
        %1420 = vmatprep.subr.bf16.mxu0 0
        %1421 = vmatpush1.bf16.xpose.msra.mxu0 0
        %1422 = vmatprep.subr.bf16.mxu0 0
        %1423 = vmatpush1.bf16.xpose.msra.mxu0 0
        %1424 = vmatprep.subr.bf16.mxu0 0
        %1425 = vmatpush1.bf16.xpose.msra.mxu0 0
        %1426 = vmatprep.subr.bf16.mxu0 0
        %1427 = vmatpush1.bf16.xpose.msra.mxu0 0
        %1428 = vmatprep.subr.bf16.mxu0 0
        %1429 = vmatpush1.bf16.xpose.msra.mxu0 0
        %1430 = vmatprep.subr.bf16.mxu0 0
        %1431 = vmatpush1.bf16.xpose.msra.mxu0 0
        %1432 = vmatprep.subr.bf16.mxu0 0
        %1433 = vmatpush1.bf16.xpose.msra.mxu0 0
        %1434 = vmatprep.subr.bf16.mxu0 0
        %1435 = vmatpush1.bf16.xpose.msra.mxu0 0
        %1436 = vmatprep.mubr.bf16.mxu0 0
        %1437 = vmatmul.mubr.bf16.gmra.mrb[0].mxu0 %v1399
        %v1438 = vpop.f32.mrb[0].mxu0
        %v1439 = vadd.f32 0.0, %v1438
        %v1440 = vpop.f32.mrb[0].mxu0
        %v1441 = vpop.f32.mrb[0].mxu0
        %v1442 = vadd.f32 0.0, %v1441
        %v1443 = vpop.f32.mrb[0].mxu0
        %1444 = vdwg.mxu0
        %v1445 = vsel %vm839, %v1439, -inf
        %1446 = vmax.xlane.f32.xlu0 %v1445
        %v1447 = vpop.xlane.xlu0 %1446
        %v1448 = vsel %vm839, %v1442, -inf
        %1449 = vmax.xlane.f32.xlu0 %v1448
        %v1450 = vpop.xlane.xlu0 %1449
        %v1451 = vsub.f32 %v1439, %v1447
        %v1452 = vsub.f32 %v1442, %v1450
        %v1453 = vmul.f32 %v1451, 1.442695
        %v1454 = vpow.pop %v1453
        %v1455 = vmul.f32 %v1452, 1.442695
        %v1456 = vpow.pop %v1455
        %v1457 = vsel %vm839, %v1454, 0.0
        %1458 = vadd.xlane.f32.xlu0 %v1457
        %v1459 = vpop.xlane.xlu0 %1458
        %v1460 = vsel %vm839, %v1456, 0.0
        %1461 = vadd.xlane.f32.xlu0 %v1460
        %v1462 = vpop.xlane.xlu0 %1461
        %v1463 = vrcp.pop %v1459
        %v1464 = vrcp.pop %v1462
        %v1465 = vmul.f32 %v1454, %v1463
        %v1466 = vmul.f32 %v1456, %v1464
        %v1467 = vpack.c.bf16 %v1466, %v1465
        %1468 = vrot.lane.b32.xlu0 %v790, 88
        %v1469 = vpop.permute.xlu0 %1468
        %v1472 = vsel %vm839, %v1467, 0
        %1474 = vmatprep.subr.bf16.mxu0 0
        %1475 = vmatpush1.bf16.msra.mxu0 %v1469
        %1476 = vmatprep.subr.bf16.mxu0 0
        %1477 = vmatpush1.bf16.msra.mxu0 0
        %1478 = vmatprep.subr.bf16.mxu0 0
        %1479 = vmatpush1.bf16.msra.mxu0 0
        %1480 = vmatprep.subr.bf16.mxu0 0
        %1481 = vmatpush1.bf16.msra.mxu0 0
        %1482 = vmatprep.subr.bf16.mxu0 0
        %1483 = vmatpush1.bf16.msra.mxu0 0
        %1484 = vmatprep.subr.bf16.mxu0 0
        %1485 = vmatpush1.bf16.msra.mxu0 0
        %1486 = vmatprep.subr.bf16.mxu0 0
        %1487 = vmatpush1.bf16.msra.mxu0 0
        %1488 = vmatprep.subr.bf16.mxu0 0
        %1489 = vmatpush1.bf16.msra.mxu0 0
        %1490 = vmatprep.subr.bf16.mxu0 0
        %1491 = vmatpush1.bf16.msra.mxu0 0
        %1492 = vmatprep.subr.bf16.mxu0 0
        %1493 = vmatpush1.bf16.msra.mxu0 0
        %1494 = vmatprep.subr.bf16.mxu0 0
        %1495 = vmatpush1.bf16.msra.mxu0 0
        %1496 = vmatprep.subr.bf16.mxu0 0
        %1497 = vmatpush1.bf16.msra.mxu0 0
        %1498 = vmatprep.subr.bf16.mxu0 0
        %1499 = vmatpush1.bf16.msra.mxu0 0
        %1500 = vmatprep.subr.bf16.mxu0 0
        %1501 = vmatpush1.bf16.msra.mxu0 0
        %1502 = vmatprep.subr.bf16.mxu0 0
        %1503 = vmatpush1.bf16.msra.mxu0 0
        %1504 = vmatprep.subr.bf16.mxu0 0
        %1505 = vmatpush1.bf16.msra.mxu0 0
        %1506 = vmatprep.mubr.bf16.mxu0 0
        %1507 = vmatmul.mubr.bf16.gmra.mrb[0].mxu0 %v1472
        %v1508 = vpop.f32.mrb[0].mxu0
        %v1509 = vadd.f32 0.0, %v1508
        %v1510 = vpop.f32.mrb[0].mxu0
        %v1511 = vpop.f32.mrb[0].mxu0
        %v1512 = vadd.f32 0.0, %v1511
        %v1513 = vpop.f32.mrb[0].mxu0
        %1514 = vdwg.mxu0
        %1515 = vrot.lane.b32.xlu0 %v788, 80
        %v1516 = vpop.permute.xlu0 %1515
        %1517 = vrot.lane.b32.xlu0 %v789, 80
        %v1518 = vpop.permute.xlu0 %1517
        %v1520 = vsel %vm791, %v1516, 0
        %v1523 = vsel %vm791, %v1518, 0
        %1525 = vmatprep.subr.bf16.mxu0 0
        %1526 = vmatpush1.bf16.xpose.msra.mxu0 %v1523
        %1527 = vmatprep.subr.bf16.mxu0 0
        %1528 = vmatpush1.bf16.xpose.msra.mxu0 0
        %1529 = vmatprep.subr.bf16.mxu0 0
        %1530 = vmatpush1.bf16.xpose.msra.mxu0 0
        %1531 = vmatprep.subr.bf16.mxu0 0
        %1532 = vmatpush1.bf16.xpose.msra.mxu0 0
        %1533 = vmatprep.subr.bf16.mxu0 0
        %1534 = vmatpush1.bf16.xpose.msra.mxu0 0
        %1535 = vmatprep.subr.bf16.mxu0 0
        %1536 = vmatpush1.bf16.xpose.msra.mxu0 0
        %1537 = vmatprep.subr.bf16.mxu0 0
        %1538 = vmatpush1.bf16.xpose.msra.mxu0 0
        %1539 = vmatprep.subr.bf16.mxu0 0
        %1540 = vmatpush1.bf16.xpose.msra.mxu0 0
        %1541 = vmatprep.subr.bf16.mxu0 0
        %1542 = vmatpush1.bf16.xpose.msra.mxu0 0
        %1543 = vmatprep.subr.bf16.mxu0 0
        %1544 = vmatpush1.bf16.xpose.msra.mxu0 0
        %1545 = vmatprep.subr.bf16.mxu0 0
        %1546 = vmatpush1.bf16.xpose.msra.mxu0 0
        %1547 = vmatprep.subr.bf16.mxu0 0
        %1548 = vmatpush1.bf16.xpose.msra.mxu0 0
        %1549 = vmatprep.subr.bf16.mxu0 0
        %1550 = vmatpush1.bf16.xpose.msra.mxu0 0
        %1551 = vmatprep.subr.bf16.mxu0 0
        %1552 = vmatpush1.bf16.xpose.msra.mxu0 0
        %1553 = vmatprep.subr.bf16.mxu0 0
        %1554 = vmatpush1.bf16.xpose.msra.mxu0 0
        %1555 = vmatprep.subr.bf16.mxu0 0
        %1556 = vmatpush1.bf16.xpose.msra.mxu0 0
        %1557 = vmatprep.mubr.bf16.mxu0 0
        %1558 = vmatmul.mubr.bf16.gmra.mrb[0].mxu0 %v1520
        %v1559 = vpop.f32.mrb[0].mxu0
        %v1560 = vadd.f32 0.0, %v1559
        %v1561 = vpop.f32.mrb[0].mxu0
        %v1562 = vpop.f32.mrb[0].mxu0
        %v1563 = vadd.f32 0.0, %v1562
        %v1564 = vpop.f32.mrb[0].mxu0
        %1565 = vdwg.mxu0
        %v1566 = vsel %vm839, %v1560, -inf
        %1567 = vmax.xlane.f32.xlu0 %v1566
        %v1568 = vpop.xlane.xlu0 %1567
        %v1569 = vsel %vm839, %v1563, -inf
        %1570 = vmax.xlane.f32.xlu0 %v1569
        %v1571 = vpop.xlane.xlu0 %1570
        %v1572 = vsub.f32 %v1560, %v1568
        %v1573 = vsub.f32 %v1563, %v1571
        %v1574 = vmul.f32 %v1572, 1.442695
        %v1575 = vpow.pop %v1574
        %v1576 = vmul.f32 %v1573, 1.442695
        %v1577 = vpow.pop %v1576
        %v1578 = vsel %vm839, %v1575, 0.0
        %1579 = vadd.xlane.f32.xlu0 %v1578
        %v1580 = vpop.xlane.xlu0 %1579
        %v1581 = vsel %vm839, %v1577, 0.0
        %1582 = vadd.xlane.f32.xlu0 %v1581
        %v1583 = vpop.xlane.xlu0 %1582
        %v1584 = vrcp.pop %v1580
        %v1585 = vrcp.pop %v1583
        %v1586 = vmul.f32 %v1575, %v1584
        %v1587 = vmul.f32 %v1577, %v1585
        %v1588 = vpack.c.bf16 %v1587, %v1586
        %1589 = vrot.lane.b32.xlu0 %v790, 80
        %v1590 = vpop.permute.xlu0 %1589
        %v1593 = vsel %vm839, %v1588, 0
        %1595 = vmatprep.subr.bf16.mxu0 0
        %1596 = vmatpush1.bf16.msra.mxu0 %v1590
        %1597 = vmatprep.subr.bf16.mxu0 0
        %1598 = vmatpush1.bf16.msra.mxu0 0
        %1599 = vmatprep.subr.bf16.mxu0 0
        %1600 = vmatpush1.bf16.msra.mxu0 0
        %1601 = vmatprep.subr.bf16.mxu0 0
        %1602 = vmatpush1.bf16.msra.mxu0 0
        %1603 = vmatprep.subr.bf16.mxu0 0
        %1604 = vmatpush1.bf16.msra.mxu0 0
        %1605 = vmatprep.subr.bf16.mxu0 0
        %1606 = vmatpush1.bf16.msra.mxu0 0
        %1607 = vmatprep.subr.bf16.mxu0 0
        %1608 = vmatpush1.bf16.msra.mxu0 0
        %1609 = vmatprep.subr.bf16.mxu0 0
        %1610 = vmatpush1.bf16.msra.mxu0 0
        %1611 = vmatprep.subr.bf16.mxu0 0
        %1612 = vmatpush1.bf16.msra.mxu0 0
        %1613 = vmatprep.subr.bf16.mxu0 0
        %1614 = vmatpush1.bf16.msra.mxu0 0
        %1615 = vmatprep.subr.bf16.mxu0 0
        %1616 = vmatpush1.bf16.msra.mxu0 0
        %1617 = vmatprep.subr.bf16.mxu0 0
        %1618 = vmatpush1.bf16.msra.mxu0 0
        %1619 = vmatprep.subr.bf16.mxu0 0
        %1620 = vmatpush1.bf16.msra.mxu0 0
        %1621 = vmatprep.subr.bf16.mxu0 0
        %1622 = vmatpush1.bf16.msra.mxu0 0
        %1623 = vmatprep.subr.bf16.mxu0 0
        %1624 = vmatpush1.bf16.msra.mxu0 0
        %1625 = vmatprep.subr.bf16.mxu0 0
        %1626 = vmatpush1.bf16.msra.mxu0 0
        %1627 = vmatprep.mubr.bf16.mxu0 0
        %1628 = vmatmul.mubr.bf16.gmra.mrb[0].mxu0 %v1593
        %v1629 = vpop.f32.mrb[0].mxu0
        %v1630 = vadd.f32 0.0, %v1629
        %v1631 = vpop.f32.mrb[0].mxu0
        %v1632 = vpop.f32.mrb[0].mxu0
        %v1633 = vadd.f32 0.0, %v1632
        %v1634 = vpop.f32.mrb[0].mxu0
        %1635 = vdwg.mxu0
        %1636 = vrot.lane.b32.xlu0 %v788, 72
        %v1637 = vpop.permute.xlu0 %1636
        %1638 = vrot.lane.b32.xlu0 %v789, 72
        %v1639 = vpop.permute.xlu0 %1638
        %v1641 = vsel %vm791, %v1637, 0
        %v1644 = vsel %vm791, %v1639, 0
        %1646 = vmatprep.subr.bf16.mxu0 0
        %1647 = vmatpush1.bf16.xpose.msra.mxu0 %v1644
        %1648 = vmatprep.subr.bf16.mxu0 0
        %1649 = vmatpush1.bf16.xpose.msra.mxu0 0
        %1650 = vmatprep.subr.bf16.mxu0 0
        %1651 = vmatpush1.bf16.xpose.msra.mxu0 0
        %1652 = vmatprep.subr.bf16.mxu0 0
        %1653 = vmatpush1.bf16.xpose.msra.mxu0 0
        %1654 = vmatprep.subr.bf16.mxu0 0
        %1655 = vmatpush1.bf16.xpose.msra.mxu0 0
        %1656 = vmatprep.subr.bf16.mxu0 0
        %1657 = vmatpush1.bf16.xpose.msra.mxu0 0
        %1658 = vmatprep.subr.bf16.mxu0 0
        %1659 = vmatpush1.bf16.xpose.msra.mxu0 0
        %1660 = vmatprep.subr.bf16.mxu0 0
        %1661 = vmatpush1.bf16.xpose.msra.mxu0 0
        %1662 = vmatprep.subr.bf16.mxu0 0
        %1663 = vmatpush1.bf16.xpose.msra.mxu0 0
        %1664 = vmatprep.subr.bf16.mxu0 0
        %1665 = vmatpush1.bf16.xpose.msra.mxu0 0
        %1666 = vmatprep.subr.bf16.mxu0 0
        %1667 = vmatpush1.bf16.xpose.msra.mxu0 0
        %1668 = vmatprep.subr.bf16.mxu0 0
        %1669 = vmatpush1.bf16.xpose.msra.mxu0 0
        %1670 = vmatprep.subr.bf16.mxu0 0
        %1671 = vmatpush1.bf16.xpose.msra.mxu0 0
        %1672 = vmatprep.subr.bf16.mxu0 0
        %1673 = vmatpush1.bf16.xpose.msra.mxu0 0
        %1674 = vmatprep.subr.bf16.mxu0 0
        %1675 = vmatpush1.bf16.xpose.msra.mxu0 0
        %1676 = vmatprep.subr.bf16.mxu0 0
        %1677 = vmatpush1.bf16.xpose.msra.mxu0 0
        %1678 = vmatprep.mubr.bf16.mxu0 0
        %1679 = vmatmul.mubr.bf16.gmra.mrb[0].mxu0 %v1641
        %v1680 = vpop.f32.mrb[0].mxu0
        %v1681 = vadd.f32 0.0, %v1680
        %v1682 = vpop.f32.mrb[0].mxu0
        %v1683 = vpop.f32.mrb[0].mxu0
        %v1684 = vadd.f32 0.0, %v1683
        %v1685 = vpop.f32.mrb[0].mxu0
        %1686 = vdwg.mxu0
        %v1687 = vsel %vm839, %v1681, -inf
        %1688 = vmax.xlane.f32.xlu0 %v1687
        %v1689 = vpop.xlane.xlu0 %1688
        %v1690 = vsel %vm839, %v1684, -inf
        %1691 = vmax.xlane.f32.xlu0 %v1690
        %v1692 = vpop.xlane.xlu0 %1691
        %v1693 = vsub.f32 %v1681, %v1689
        %v1694 = vsub.f32 %v1684, %v1692
        %v1695 = vmul.f32 %v1693, 1.442695
        %v1696 = vpow.pop %v1695
        %v1697 = vmul.f32 %v1694, 1.442695
        %v1698 = vpow.pop %v1697
        %v1699 = vsel %vm839, %v1696, 0.0
        %1700 = vadd.xlane.f32.xlu0 %v1699
        %v1701 = vpop.xlane.xlu0 %1700
        %v1702 = vsel %vm839, %v1698, 0.0
        %1703 = vadd.xlane.f32.xlu0 %v1702
        %v1704 = vpop.xlane.xlu0 %1703
        %v1705 = vrcp.pop %v1701
        %v1706 = vrcp.pop %v1704
        %v1707 = vmul.f32 %v1696, %v1705
        %v1708 = vmul.f32 %v1698, %v1706
        %v1709 = vpack.c.bf16 %v1708, %v1707
        %1710 = vrot.lane.b32.xlu0 %v790, 72
        %v1711 = vpop.permute.xlu0 %1710
        %v1714 = vsel %vm839, %v1709, 0
        %1716 = vmatprep.subr.bf16.mxu0 0
        %1717 = vmatpush1.bf16.msra.mxu0 %v1711
        %1718 = vmatprep.subr.bf16.mxu0 0
        %1719 = vmatpush1.bf16.msra.mxu0 0
        %1720 = vmatprep.subr.bf16.mxu0 0
        %1721 = vmatpush1.bf16.msra.mxu0 0
        %1722 = vmatprep.subr.bf16.mxu0 0
        %1723 = vmatpush1.bf16.msra.mxu0 0
        %1724 = vmatprep.subr.bf16.mxu0 0
        %1725 = vmatpush1.bf16.msra.mxu0 0
        %1726 = vmatprep.subr.bf16.mxu0 0
        %1727 = vmatpush1.bf16.msra.mxu0 0
        %1728 = vmatprep.subr.bf16.mxu0 0
        %1729 = vmatpush1.bf16.msra.mxu0 0
        %1730 = vmatprep.subr.bf16.mxu0 0
        %1731 = vmatpush1.bf16.msra.mxu0 0
        %1732 = vmatprep.subr.bf16.mxu0 0
        %1733 = vmatpush1.bf16.msra.mxu0 0
        %1734 = vmatprep.subr.bf16.mxu0 0
        %1735 = vmatpush1.bf16.msra.mxu0 0
        %1736 = vmatprep.subr.bf16.mxu0 0
        %1737 = vmatpush1.bf16.msra.mxu0 0
        %1738 = vmatprep.subr.bf16.mxu0 0
        %1739 = vmatpush1.bf16.msra.mxu0 0
        %1740 = vmatprep.subr.bf16.mxu0 0
        %1741 = vmatpush1.bf16.msra.mxu0 0
        %1742 = vmatprep.subr.bf16.mxu0 0
        %1743 = vmatpush1.bf16.msra.mxu0 0
        %1744 = vmatprep.subr.bf16.mxu0 0
        %1745 = vmatpush1.bf16.msra.mxu0 0
        %1746 = vmatprep.subr.bf16.mxu0 0
        %1747 = vmatpush1.bf16.msra.mxu0 0
        %1748 = vmatprep.mubr.bf16.mxu0 0
        %1749 = vmatmul.mubr.bf16.gmra.mrb[0].mxu0 %v1714
        %v1750 = vpop.f32.mrb[0].mxu0
        %v1751 = vadd.f32 0.0, %v1750
        %v1752 = vpop.f32.mrb[0].mxu0
        %v1753 = vpop.f32.mrb[0].mxu0
        %v1754 = vadd.f32 0.0, %v1753
        %v1755 = vpop.f32.mrb[0].mxu0
        %1756 = vdwg.mxu0
        %1757 = vrot.lane.b32.xlu0 %v788, 64
        %v1758 = vpop.permute.xlu0 %1757
        %1759 = vrot.lane.b32.xlu0 %v789, 64
        %v1760 = vpop.permute.xlu0 %1759
        %v1762 = vsel %vm791, %v1758, 0
        %v1765 = vsel %vm791, %v1760, 0
        %1767 = vmatprep.subr.bf16.mxu0 0
        %1768 = vmatpush1.bf16.xpose.msra.mxu0 %v1765
        %1769 = vmatprep.subr.bf16.mxu0 0
        %1770 = vmatpush1.bf16.xpose.msra.mxu0 0
        %1771 = vmatprep.subr.bf16.mxu0 0
        %1772 = vmatpush1.bf16.xpose.msra.mxu0 0
        %1773 = vmatprep.subr.bf16.mxu0 0
        %1774 = vmatpush1.bf16.xpose.msra.mxu0 0
        %1775 = vmatprep.subr.bf16.mxu0 0
        %1776 = vmatpush1.bf16.xpose.msra.mxu0 0
        %1777 = vmatprep.subr.bf16.mxu0 0
        %1778 = vmatpush1.bf16.xpose.msra.mxu0 0
        %1779 = vmatprep.subr.bf16.mxu0 0
        %1780 = vmatpush1.bf16.xpose.msra.mxu0 0
        %1781 = vmatprep.subr.bf16.mxu0 0
        %1782 = vmatpush1.bf16.xpose.msra.mxu0 0
        %1783 = vmatprep.subr.bf16.mxu0 0
        %1784 = vmatpush1.bf16.xpose.msra.mxu0 0
        %1785 = vmatprep.subr.bf16.mxu0 0
        %1786 = vmatpush1.bf16.xpose.msra.mxu0 0
        %1787 = vmatprep.subr.bf16.mxu0 0
        %1788 = vmatpush1.bf16.xpose.msra.mxu0 0
        %1789 = vmatprep.subr.bf16.mxu0 0
        %1790 = vmatpush1.bf16.xpose.msra.mxu0 0
        %1791 = vmatprep.subr.bf16.mxu0 0
        %1792 = vmatpush1.bf16.xpose.msra.mxu0 0
        %1793 = vmatprep.subr.bf16.mxu0 0
        %1794 = vmatpush1.bf16.xpose.msra.mxu0 0
        %1795 = vmatprep.subr.bf16.mxu0 0
        %1796 = vmatpush1.bf16.xpose.msra.mxu0 0
        %1797 = vmatprep.subr.bf16.mxu0 0
        %1798 = vmatpush1.bf16.xpose.msra.mxu0 0
        %1799 = vmatprep.mubr.bf16.mxu0 0
        %1800 = vmatmul.mubr.bf16.gmra.mrb[0].mxu0 %v1762
        %v1801 = vpop.f32.mrb[0].mxu0
        %v1802 = vadd.f32 0.0, %v1801
        %v1803 = vpop.f32.mrb[0].mxu0
        %v1804 = vpop.f32.mrb[0].mxu0
        %v1805 = vadd.f32 0.0, %v1804
        %v1806 = vpop.f32.mrb[0].mxu0
        %1807 = vdwg.mxu0
        %v1808 = vsel %vm839, %v1802, -inf
        %1809 = vmax.xlane.f32.xlu0 %v1808
        %v1810 = vpop.xlane.xlu0 %1809
        %v1811 = vsel %vm839, %v1805, -inf
        %1812 = vmax.xlane.f32.xlu0 %v1811
        %v1813 = vpop.xlane.xlu0 %1812
        %v1814 = vsub.f32 %v1802, %v1810
        %v1815 = vsub.f32 %v1805, %v1813
        %v1816 = vmul.f32 %v1814, 1.442695
        %v1817 = vpow.pop %v1816
        %v1818 = vmul.f32 %v1815, 1.442695
        %v1819 = vpow.pop %v1818
        %v1820 = vsel %vm839, %v1817, 0.0
        %1821 = vadd.xlane.f32.xlu0 %v1820
        %v1822 = vpop.xlane.xlu0 %1821
        %v1823 = vsel %vm839, %v1819, 0.0
        %1824 = vadd.xlane.f32.xlu0 %v1823
        %v1825 = vpop.xlane.xlu0 %1824
        %v1826 = vrcp.pop %v1822
        %v1827 = vrcp.pop %v1825
        %v1828 = vmul.f32 %v1817, %v1826
        %v1829 = vmul.f32 %v1819, %v1827
        %v1830 = vpack.c.bf16 %v1829, %v1828
        %1831 = vrot.lane.b32.xlu0 %v790, 64
        %v1832 = vpop.permute.xlu0 %1831
        %v1835 = vsel %vm839, %v1830, 0
        %1837 = vmatprep.subr.bf16.mxu0 0
        %1838 = vmatpush1.bf16.msra.mxu0 %v1832
        %1839 = vmatprep.subr.bf16.mxu0 0
        %1840 = vmatpush1.bf16.msra.mxu0 0
        %1841 = vmatprep.subr.bf16.mxu0 0
        %1842 = vmatpush1.bf16.msra.mxu0 0
        %1843 = vmatprep.subr.bf16.mxu0 0
        %1844 = vmatpush1.bf16.msra.mxu0 0
        %1845 = vmatprep.subr.bf16.mxu0 0
        %1846 = vmatpush1.bf16.msra.mxu0 0
        %1847 = vmatprep.subr.bf16.mxu0 0
        %1848 = vmatpush1.bf16.msra.mxu0 0
        %1849 = vmatprep.subr.bf16.mxu0 0
        %1850 = vmatpush1.bf16.msra.mxu0 0
        %1851 = vmatprep.subr.bf16.mxu0 0
        %1852 = vmatpush1.bf16.msra.mxu0 0
        %1853 = vmatprep.subr.bf16.mxu0 0
        %1854 = vmatpush1.bf16.msra.mxu0 0
        %1855 = vmatprep.subr.bf16.mxu0 0
        %1856 = vmatpush1.bf16.msra.mxu0 0
        %1857 = vmatprep.subr.bf16.mxu0 0
        %1858 = vmatpush1.bf16.msra.mxu0 0
        %1859 = vmatprep.subr.bf16.mxu0 0
        %1860 = vmatpush1.bf16.msra.mxu0 0
        %1861 = vmatprep.subr.bf16.mxu0 0
        %1862 = vmatpush1.bf16.msra.mxu0 0
        %1863 = vmatprep.subr.bf16.mxu0 0
        %1864 = vmatpush1.bf16.msra.mxu0 0
        %1865 = vmatprep.subr.bf16.mxu0 0
        %1866 = vmatpush1.bf16.msra.mxu0 0
        %1867 = vmatprep.subr.bf16.mxu0 0
        %1868 = vmatpush1.bf16.msra.mxu0 0
        %1869 = vmatprep.mubr.bf16.mxu0 0
        %1870 = vmatmul.mubr.bf16.gmra.mrb[0].mxu0 %v1835
        %v1871 = vpop.f32.mrb[0].mxu0
        %v1872 = vadd.f32 0.0, %v1871
        %v1873 = vpop.f32.mrb[0].mxu0
        %v1874 = vpop.f32.mrb[0].mxu0
        %v1875 = vadd.f32 0.0, %v1874
        %v1876 = vpop.f32.mrb[0].mxu0
        %1877 = vdwg.mxu0
        %1878 = vrot.lane.b32.xlu0 %v788, 56
        %v1879 = vpop.permute.xlu0 %1878
        %1880 = vrot.lane.b32.xlu0 %v789, 56
        %v1881 = vpop.permute.xlu0 %1880
        %v1883 = vsel %vm791, %v1879, 0
        %v1886 = vsel %vm791, %v1881, 0
        %1888 = vmatprep.subr.bf16.mxu0 0
        %1889 = vmatpush1.bf16.xpose.msra.mxu0 %v1886
        %1890 = vmatprep.subr.bf16.mxu0 0
        %1891 = vmatpush1.bf16.xpose.msra.mxu0 0
        %1892 = vmatprep.subr.bf16.mxu0 0
        %1893 = vmatpush1.bf16.xpose.msra.mxu0 0
        %1894 = vmatprep.subr.bf16.mxu0 0
        %1895 = vmatpush1.bf16.xpose.msra.mxu0 0
        %1896 = vmatprep.subr.bf16.mxu0 0
        %1897 = vmatpush1.bf16.xpose.msra.mxu0 0
        %1898 = vmatprep.subr.bf16.mxu0 0
        %1899 = vmatpush1.bf16.xpose.msra.mxu0 0
        %1900 = vmatprep.subr.bf16.mxu0 0
        %1901 = vmatpush1.bf16.xpose.msra.mxu0 0
        %1902 = vmatprep.subr.bf16.mxu0 0
        %1903 = vmatpush1.bf16.xpose.msra.mxu0 0
        %1904 = vmatprep.subr.bf16.mxu0 0
        %1905 = vmatpush1.bf16.xpose.msra.mxu0 0
        %1906 = vmatprep.subr.bf16.mxu0 0
        %1907 = vmatpush1.bf16.xpose.msra.mxu0 0
        %1908 = vmatprep.subr.bf16.mxu0 0
        %1909 = vmatpush1.bf16.xpose.msra.mxu0 0
        %1910 = vmatprep.subr.bf16.mxu0 0
        %1911 = vmatpush1.bf16.xpose.msra.mxu0 0
        %1912 = vmatprep.subr.bf16.mxu0 0
        %1913 = vmatpush1.bf16.xpose.msra.mxu0 0
        %1914 = vmatprep.subr.bf16.mxu0 0
        %1915 = vmatpush1.bf16.xpose.msra.mxu0 0
        %1916 = vmatprep.subr.bf16.mxu0 0
        %1917 = vmatpush1.bf16.xpose.msra.mxu0 0
        %1918 = vmatprep.subr.bf16.mxu0 0
        %1919 = vmatpush1.bf16.xpose.msra.mxu0 0
        %1920 = vmatprep.mubr.bf16.mxu0 0
        %1921 = vmatmul.mubr.bf16.gmra.mrb[0].mxu0 %v1883
        %v1922 = vpop.f32.mrb[0].mxu0
        %v1923 = vadd.f32 0.0, %v1922
        %v1924 = vpop.f32.mrb[0].mxu0
        %v1925 = vpop.f32.mrb[0].mxu0
        %v1926 = vadd.f32 0.0, %v1925
        %v1927 = vpop.f32.mrb[0].mxu0
        %1928 = vdwg.mxu0
        %v1929 = vsel %vm839, %v1923, -inf
        %1930 = vmax.xlane.f32.xlu0 %v1929
        %v1931 = vpop.xlane.xlu0 %1930
        %v1932 = vsel %vm839, %v1926, -inf
        %1933 = vmax.xlane.f32.xlu0 %v1932
        %v1934 = vpop.xlane.xlu0 %1933
        %v1935 = vsub.f32 %v1923, %v1931
        %v1936 = vsub.f32 %v1926, %v1934
        %v1937 = vmul.f32 %v1935, 1.442695
        %v1938 = vpow.pop %v1937
        %v1939 = vmul.f32 %v1936, 1.442695
        %v1940 = vpow.pop %v1939
        %v1941 = vsel %vm839, %v1938, 0.0
        %1942 = vadd.xlane.f32.xlu0 %v1941
        %v1943 = vpop.xlane.xlu0 %1942
        %v1944 = vsel %vm839, %v1940, 0.0
        %1945 = vadd.xlane.f32.xlu0 %v1944
        %v1946 = vpop.xlane.xlu0 %1945
        %v1947 = vrcp.pop %v1943
        %v1948 = vrcp.pop %v1946
        %v1949 = vmul.f32 %v1938, %v1947
        %v1950 = vmul.f32 %v1940, %v1948
        %v1951 = vpack.c.bf16 %v1950, %v1949
        %1952 = vrot.lane.b32.xlu0 %v790, 56
        %v1953 = vpop.permute.xlu0 %1952
        %v1956 = vsel %vm839, %v1951, 0
        %1958 = vmatprep.subr.bf16.mxu0 0
        %1959 = vmatpush1.bf16.msra.mxu0 %v1953
        %1960 = vmatprep.subr.bf16.mxu0 0
        %1961 = vmatpush1.bf16.msra.mxu0 0
        %1962 = vmatprep.subr.bf16.mxu0 0
        %1963 = vmatpush1.bf16.msra.mxu0 0
        %1964 = vmatprep.subr.bf16.mxu0 0
        %1965 = vmatpush1.bf16.msra.mxu0 0
        %1966 = vmatprep.subr.bf16.mxu0 0
        %1967 = vmatpush1.bf16.msra.mxu0 0
        %1968 = vmatprep.subr.bf16.mxu0 0
        %1969 = vmatpush1.bf16.msra.mxu0 0
        %1970 = vmatprep.subr.bf16.mxu0 0
        %1971 = vmatpush1.bf16.msra.mxu0 0
        %1972 = vmatprep.subr.bf16.mxu0 0
        %1973 = vmatpush1.bf16.msra.mxu0 0
        %1974 = vmatprep.subr.bf16.mxu0 0
        %1975 = vmatpush1.bf16.msra.mxu0 0
        %1976 = vmatprep.subr.bf16.mxu0 0
        %1977 = vmatpush1.bf16.msra.mxu0 0
        %1978 = vmatprep.subr.bf16.mxu0 0
        %1979 = vmatpush1.bf16.msra.mxu0 0
        %1980 = vmatprep.subr.bf16.mxu0 0
        %1981 = vmatpush1.bf16.msra.mxu0 0
        %1982 = vmatprep.subr.bf16.mxu0 0
        %1983 = vmatpush1.bf16.msra.mxu0 0
        %1984 = vmatprep.subr.bf16.mxu0 0
        %1985 = vmatpush1.bf16.msra.mxu0 0
        %1986 = vmatprep.subr.bf16.mxu0 0
        %1987 = vmatpush1.bf16.msra.mxu0 0
        %1988 = vmatprep.subr.bf16.mxu0 0
        %1989 = vmatpush1.bf16.msra.mxu0 0
        %1990 = vmatprep.mubr.bf16.mxu0 0
        %1991 = vmatmul.mubr.bf16.gmra.mrb[0].mxu0 %v1956
        %v1992 = vpop.f32.mrb[0].mxu0
        %v1993 = vadd.f32 0.0, %v1992
        %v1994 = vpop.f32.mrb[0].mxu0
        %v1995 = vpop.f32.mrb[0].mxu0
        %v1996 = vadd.f32 0.0, %v1995
        %v1997 = vpop.f32.mrb[0].mxu0
        %1998 = vdwg.mxu0
        %1999 = vrot.lane.b32.xlu0 %v788, 48
        %v2000 = vpop.permute.xlu0 %1999
        %2001 = vrot.lane.b32.xlu0 %v789, 48
        %v2002 = vpop.permute.xlu0 %2001
        %v2004 = vsel %vm791, %v2000, 0
        %v2007 = vsel %vm791, %v2002, 0
        %2009 = vmatprep.subr.bf16.mxu0 0
        %2010 = vmatpush1.bf16.xpose.msra.mxu0 %v2007
        %2011 = vmatprep.subr.bf16.mxu0 0
        %2012 = vmatpush1.bf16.xpose.msra.mxu0 0
        %2013 = vmatprep.subr.bf16.mxu0 0
        %2014 = vmatpush1.bf16.xpose.msra.mxu0 0
        %2015 = vmatprep.subr.bf16.mxu0 0
        %2016 = vmatpush1.bf16.xpose.msra.mxu0 0
        %2017 = vmatprep.subr.bf16.mxu0 0
        %2018 = vmatpush1.bf16.xpose.msra.mxu0 0
        %2019 = vmatprep.subr.bf16.mxu0 0
        %2020 = vmatpush1.bf16.xpose.msra.mxu0 0
        %2021 = vmatprep.subr.bf16.mxu0 0
        %2022 = vmatpush1.bf16.xpose.msra.mxu0 0
        %2023 = vmatprep.subr.bf16.mxu0 0
        %2024 = vmatpush1.bf16.xpose.msra.mxu0 0
        %2025 = vmatprep.subr.bf16.mxu0 0
        %2026 = vmatpush1.bf16.xpose.msra.mxu0 0
        %2027 = vmatprep.subr.bf16.mxu0 0
        %2028 = vmatpush1.bf16.xpose.msra.mxu0 0
        %2029 = vmatprep.subr.bf16.mxu0 0
        %2030 = vmatpush1.bf16.xpose.msra.mxu0 0
        %2031 = vmatprep.subr.bf16.mxu0 0
        %2032 = vmatpush1.bf16.xpose.msra.mxu0 0
        %2033 = vmatprep.subr.bf16.mxu0 0
        %2034 = vmatpush1.bf16.xpose.msra.mxu0 0
        %2035 = vmatprep.subr.bf16.mxu0 0
        %2036 = vmatpush1.bf16.xpose.msra.mxu0 0
        %2037 = vmatprep.subr.bf16.mxu0 0
        %2038 = vmatpush1.bf16.xpose.msra.mxu0 0
        %2039 = vmatprep.subr.bf16.mxu0 0
        %2040 = vmatpush1.bf16.xpose.msra.mxu0 0
        %2041 = vmatprep.mubr.bf16.mxu0 0
        %2042 = vmatmul.mubr.bf16.gmra.mrb[0].mxu0 %v2004
        %v2043 = vpop.f32.mrb[0].mxu0
        %v2044 = vadd.f32 0.0, %v2043
        %v2045 = vpop.f32.mrb[0].mxu0
        %v2046 = vpop.f32.mrb[0].mxu0
        %v2047 = vadd.f32 0.0, %v2046
        %v2048 = vpop.f32.mrb[0].mxu0
        %2049 = vdwg.mxu0
        %v2050 = vsel %vm839, %v2044, -inf
        %2051 = vmax.xlane.f32.xlu0 %v2050
        %v2052 = vpop.xlane.xlu0 %2051
        %v2053 = vsel %vm839, %v2047, -inf
        %2054 = vmax.xlane.f32.xlu0 %v2053
        %v2055 = vpop.xlane.xlu0 %2054
        %v2056 = vsub.f32 %v2044, %v2052
        %v2057 = vsub.f32 %v2047, %v2055
        %v2058 = vmul.f32 %v2056, 1.442695
        %v2059 = vpow.pop %v2058
        %v2060 = vmul.f32 %v2057, 1.442695
        %v2061 = vpow.pop %v2060
        %v2062 = vsel %vm839, %v2059, 0.0
        %2063 = vadd.xlane.f32.xlu0 %v2062
        %v2064 = vpop.xlane.xlu0 %2063
        %v2065 = vsel %vm839, %v2061, 0.0
        %2066 = vadd.xlane.f32.xlu0 %v2065
        %v2067 = vpop.xlane.xlu0 %2066
        %v2068 = vrcp.pop %v2064
        %v2069 = vrcp.pop %v2067
        %v2070 = vmul.f32 %v2059, %v2068
        %v2071 = vmul.f32 %v2061, %v2069
        %v2072 = vpack.c.bf16 %v2071, %v2070
        %2073 = vrot.lane.b32.xlu0 %v790, 48
        %v2074 = vpop.permute.xlu0 %2073
        %v2077 = vsel %vm839, %v2072, 0
        %2079 = vmatprep.subr.bf16.mxu0 0
        %2080 = vmatpush1.bf16.msra.mxu0 %v2074
        %2081 = vmatprep.subr.bf16.mxu0 0
        %2082 = vmatpush1.bf16.msra.mxu0 0
        %2083 = vmatprep.subr.bf16.mxu0 0
        %2084 = vmatpush1.bf16.msra.mxu0 0
        %2085 = vmatprep.subr.bf16.mxu0 0
        %2086 = vmatpush1.bf16.msra.mxu0 0
        %2087 = vmatprep.subr.bf16.mxu0 0
        %2088 = vmatpush1.bf16.msra.mxu0 0
        %2089 = vmatprep.subr.bf16.mxu0 0
        %2090 = vmatpush1.bf16.msra.mxu0 0
        %2091 = vmatprep.subr.bf16.mxu0 0
        %2092 = vmatpush1.bf16.msra.mxu0 0
        %2093 = vmatprep.subr.bf16.mxu0 0
        %2094 = vmatpush1.bf16.msra.mxu0 0
        %2095 = vmatprep.subr.bf16.mxu0 0
        %2096 = vmatpush1.bf16.msra.mxu0 0
        %2097 = vmatprep.subr.bf16.mxu0 0
        %2098 = vmatpush1.bf16.msra.mxu0 0
        %2099 = vmatprep.subr.bf16.mxu0 0
        %2100 = vmatpush1.bf16.msra.mxu0 0
        %2101 = vmatprep.subr.bf16.mxu0 0
        %2102 = vmatpush1.bf16.msra.mxu0 0
        %2103 = vmatprep.subr.bf16.mxu0 0
        %2104 = vmatpush1.bf16.msra.mxu0 0
        %2105 = vmatprep.subr.bf16.mxu0 0
        %2106 = vmatpush1.bf16.msra.mxu0 0
        %2107 = vmatprep.subr.bf16.mxu0 0
        %2108 = vmatpush1.bf16.msra.mxu0 0
        %2109 = vmatprep.subr.bf16.mxu0 0
        %2110 = vmatpush1.bf16.msra.mxu0 0
        %2111 = vmatprep.mubr.bf16.mxu0 0
        %2112 = vmatmul.mubr.bf16.gmra.mrb[0].mxu0 %v2077
        %v2113 = vpop.f32.mrb[0].mxu0
        %v2114 = vadd.f32 0.0, %v2113
        %v2115 = vpop.f32.mrb[0].mxu0
        %v2116 = vpop.f32.mrb[0].mxu0
        %v2117 = vadd.f32 0.0, %v2116
        %v2118 = vpop.f32.mrb[0].mxu0
        %2119 = vdwg.mxu0
        %2120 = vrot.lane.b32.xlu0 %v788, 40
        %v2121 = vpop.permute.xlu0 %2120
        %2122 = vrot.lane.b32.xlu0 %v789, 40
        %v2123 = vpop.permute.xlu0 %2122
        %v2125 = vsel %vm791, %v2121, 0
        %v2128 = vsel %vm791, %v2123, 0
        %2130 = vmatprep.subr.bf16.mxu0 0
        %2131 = vmatpush1.bf16.xpose.msra.mxu0 %v2128
        %2132 = vmatprep.subr.bf16.mxu0 0
        %2133 = vmatpush1.bf16.xpose.msra.mxu0 0
        %2134 = vmatprep.subr.bf16.mxu0 0
        %2135 = vmatpush1.bf16.xpose.msra.mxu0 0
        %2136 = vmatprep.subr.bf16.mxu0 0
        %2137 = vmatpush1.bf16.xpose.msra.mxu0 0
        %2138 = vmatprep.subr.bf16.mxu0 0
        %2139 = vmatpush1.bf16.xpose.msra.mxu0 0
        %2140 = vmatprep.subr.bf16.mxu0 0
        %2141 = vmatpush1.bf16.xpose.msra.mxu0 0
        %2142 = vmatprep.subr.bf16.mxu0 0
        %2143 = vmatpush1.bf16.xpose.msra.mxu0 0
        %2144 = vmatprep.subr.bf16.mxu0 0
        %2145 = vmatpush1.bf16.xpose.msra.mxu0 0
        %2146 = vmatprep.subr.bf16.mxu0 0
        %2147 = vmatpush1.bf16.xpose.msra.mxu0 0
        %2148 = vmatprep.subr.bf16.mxu0 0
        %2149 = vmatpush1.bf16.xpose.msra.mxu0 0
        %2150 = vmatprep.subr.bf16.mxu0 0
        %2151 = vmatpush1.bf16.xpose.msra.mxu0 0
        %2152 = vmatprep.subr.bf16.mxu0 0
        %2153 = vmatpush1.bf16.xpose.msra.mxu0 0
        %2154 = vmatprep.subr.bf16.mxu0 0
        %2155 = vmatpush1.bf16.xpose.msra.mxu0 0
        %2156 = vmatprep.subr.bf16.mxu0 0
        %2157 = vmatpush1.bf16.xpose.msra.mxu0 0
        %2158 = vmatprep.subr.bf16.mxu0 0
        %2159 = vmatpush1.bf16.xpose.msra.mxu0 0
        %2160 = vmatprep.subr.bf16.mxu0 0
        %2161 = vmatpush1.bf16.xpose.msra.mxu0 0
        %2162 = vmatprep.mubr.bf16.mxu0 0
        %2163 = vmatmul.mubr.bf16.gmra.mrb[0].mxu0 %v2125
        %v2164 = vpop.f32.mrb[0].mxu0
        %v2165 = vadd.f32 0.0, %v2164
        %v2166 = vpop.f32.mrb[0].mxu0
        %v2167 = vpop.f32.mrb[0].mxu0
        %v2168 = vadd.f32 0.0, %v2167
        %v2169 = vpop.f32.mrb[0].mxu0
        %2170 = vdwg.mxu0
        %v2171 = vsel %vm839, %v2165, -inf
        %2172 = vmax.xlane.f32.xlu0 %v2171
        %v2173 = vpop.xlane.xlu0 %2172
        %v2174 = vsel %vm839, %v2168, -inf
        %2175 = vmax.xlane.f32.xlu0 %v2174
        %v2176 = vpop.xlane.xlu0 %2175
        %v2177 = vsub.f32 %v2165, %v2173
        %v2178 = vsub.f32 %v2168, %v2176
        %v2179 = vmul.f32 %v2177, 1.442695
        %v2180 = vpow.pop %v2179
        %v2181 = vmul.f32 %v2178, 1.442695
        %v2182 = vpow.pop %v2181
        %v2183 = vsel %vm839, %v2180, 0.0
        %2184 = vadd.xlane.f32.xlu0 %v2183
        %v2185 = vpop.xlane.xlu0 %2184
        %v2186 = vsel %vm839, %v2182, 0.0
        %2187 = vadd.xlane.f32.xlu0 %v2186
        %v2188 = vpop.xlane.xlu0 %2187
        %v2189 = vrcp.pop %v2185
        %v2190 = vrcp.pop %v2188
        %v2191 = vmul.f32 %v2180, %v2189
        %v2192 = vmul.f32 %v2182, %v2190
        %v2193 = vpack.c.bf16 %v2192, %v2191
        %2194 = vrot.lane.b32.xlu0 %v790, 40
        %v2195 = vpop.permute.xlu0 %2194
        %v2198 = vsel %vm839, %v2193, 0
        %2200 = vmatprep.subr.bf16.mxu0 0
        %2201 = vmatpush1.bf16.msra.mxu0 %v2195
        %2202 = vmatprep.subr.bf16.mxu0 0
        %2203 = vmatpush1.bf16.msra.mxu0 0
        %2204 = vmatprep.subr.bf16.mxu0 0
        %2205 = vmatpush1.bf16.msra.mxu0 0
        %2206 = vmatprep.subr.bf16.mxu0 0
        %2207 = vmatpush1.bf16.msra.mxu0 0
        %2208 = vmatprep.subr.bf16.mxu0 0
        %2209 = vmatpush1.bf16.msra.mxu0 0
        %2210 = vmatprep.subr.bf16.mxu0 0
        %2211 = vmatpush1.bf16.msra.mxu0 0
        %2212 = vmatprep.subr.bf16.mxu0 0
        %2213 = vmatpush1.bf16.msra.mxu0 0
        %2214 = vmatprep.subr.bf16.mxu0 0
        %2215 = vmatpush1.bf16.msra.mxu0 0
        %2216 = vmatprep.subr.bf16.mxu0 0
        %2217 = vmatpush1.bf16.msra.mxu0 0
        %2218 = vmatprep.subr.bf16.mxu0 0
        %2219 = vmatpush1.bf16.msra.mxu0 0
        %2220 = vmatprep.subr.bf16.mxu0 0
        %2221 = vmatpush1.bf16.msra.mxu0 0
        %2222 = vmatprep.subr.bf16.mxu0 0
        %2223 = vmatpush1.bf16.msra.mxu0 0
        %2224 = vmatprep.subr.bf16.mxu0 0
        %2225 = vmatpush1.bf16.msra.mxu0 0
        %2226 = vmatprep.subr.bf16.mxu0 0
        %2227 = vmatpush1.bf16.msra.mxu0 0
        %2228 = vmatprep.subr.bf16.mxu0 0
        %2229 = vmatpush1.bf16.msra.mxu0 0
        %2230 = vmatprep.subr.bf16.mxu0 0
        %2231 = vmatpush1.bf16.msra.mxu0 0
        %2232 = vmatprep.mubr.bf16.mxu0 0
        %2233 = vmatmul.mubr.bf16.gmra.mrb[0].mxu0 %v2198
        %v2234 = vpop.f32.mrb[0].mxu0
        %v2235 = vadd.f32 0.0, %v2234
        %v2236 = vpop.f32.mrb[0].mxu0
        %v2237 = vpop.f32.mrb[0].mxu0
        %v2238 = vadd.f32 0.0, %v2237
        %v2239 = vpop.f32.mrb[0].mxu0
        %2240 = vdwg.mxu0
        %2243 = vrot.lane.b32.xlu0 %v1025, 8
        %v2244 = vpop.permute.xlu0 %2243
        %2245 = vrot.lane.b32.xlu0 %v1028, 8
        %v2246 = vpop.permute.xlu0 %2245
        %2251 = vrot.lane.b32.xlu0 %v1146, 16
        %v2252 = vpop.permute.xlu0 %2251
        %2253 = vrot.lane.b32.xlu0 %v1149, 16
        %v2254 = vpop.permute.xlu0 %2253
        %2259 = vrot.lane.b32.xlu0 %v1267, 24
        %v2260 = vpop.permute.xlu0 %2259
        %2261 = vrot.lane.b32.xlu0 %v1270, 24
        %v2262 = vpop.permute.xlu0 %2261
        %2267 = vrot.lane.b32.xlu0 %v1388, 32
        %v2268 = vpop.permute.xlu0 %2267
        %2269 = vrot.lane.b32.xlu0 %v1391, 32
        %v2270 = vpop.permute.xlu0 %2269
        %2275 = vrot.lane.b32.xlu0 %v1509, 40
        %v2276 = vpop.permute.xlu0 %2275
        %2277 = vrot.lane.b32.xlu0 %v1512, 40
        %v2278 = vpop.permute.xlu0 %2277
        %2283 = vrot.lane.b32.xlu0 %v1630, 48
        %v2284 = vpop.permute.xlu0 %2283
        %2285 = vrot.lane.b32.xlu0 %v1633, 48
        %v2286 = vpop.permute.xlu0 %2285
        %2291 = vrot.lane.b32.xlu0 %v1751, 56
        %v2292 = vpop.permute.xlu0 %2291
        %2293 = vrot.lane.b32.xlu0 %v1754, 56
        %v2294 = vpop.permute.xlu0 %2293
        %2299 = vrot.lane.b32.xlu0 %v1872, 64
        %v2300 = vpop.permute.xlu0 %2299
        %2301 = vrot.lane.b32.xlu0 %v1875, 64
        %v2302 = vpop.permute.xlu0 %2301
        %2307 = vrot.lane.b32.xlu0 %v1993, 72
        %v2308 = vpop.permute.xlu0 %2307
        %2309 = vrot.lane.b32.xlu0 %v1996, 72
        %v2310 = vpop.permute.xlu0 %2309
        %2315 = vrot.lane.b32.xlu0 %v2114, 80
        %v2316 = vpop.permute.xlu0 %2315
        %2317 = vrot.lane.b32.xlu0 %v2117, 80
        %v2318 = vpop.permute.xlu0 %2317
        %2323 = vrot.lane.b32.xlu0 %v2235, 88
        %v2324 = vpop.permute.xlu0 %2323
        %2325 = vrot.lane.b32.xlu0 %v2238, 88
        %v2326 = vpop.permute.xlu0 %2325
        %v2329 = vsel %vm791, %v901, %v2244
        %v2330 = vsel %vm791, %v904, %v2246
        %v2331 = vsel %vm839, %v2329, %v2252
        %v2332 = vsel %vm839, %v2330, %v2254
        %vm2333 = vcmask 195584
        %v2334 = vsel %vm2333, %v2331, %v2260
        %v2335 = vsel %vm2333, %v2332, %v2262
        %vm2336 = vcmask 261120
        %v2337 = vsel %vm2336, %v2334, %v2268
        %v2338 = vsel %vm2336, %v2335, %v2270
        %vm2339 = vcmask 326656
        %v2340 = vsel %vm2339, %v2337, %v2276
        %v2341 = vsel %vm2339, %v2338, %v2278
        %vm2342 = vcmask 392192
        %v2343 = vsel %vm2342, %v2340, %v2284
        %v2344 = vsel %vm2342, %v2341, %v2286
        %vm2345 = vcmask 457728
        %v2346 = vsel %vm2345, %v2343, %v2292
        %v2347 = vsel %vm2345, %v2344, %v2294
        %vm2348 = vcmask 523264
        %v2349 = vsel %vm2348, %v2346, %v2300
        %v2350 = vsel %vm2348, %v2347, %v2302
        %vm2351 = vcmask 588800
        %v2352 = vsel %vm2351, %v2349, %v2308
        %v2353 = vsel %vm2351, %v2350, %v2310
        %vm2354 = vcmask 654336
        %v2355 = vsel %vm2354, %v2352, %v2316
        %v2356 = vsel %vm2354, %v2353, %v2318
        %vm2357 = vcmask 719872
        %v2358 = vsel %vm2357, %v2355, %v2324
        %v2359 = vsel %vm2357, %v2356, %v2326
        %v2360 = vpack.c.bf16 %v2359, %v2358
        %v2361 = vld [vmem:[#allocation7] sm:$0xf]
        %v2362 = vld [vmem:[#allocation7 + $0x4] sm:$0xf]
        %v2363 = vld [vmem:[#allocation7 + $0x8] sm:$0xf]
        %v2364 = vld [vmem:[#allocation7 + $0xc] sm:$0xf]
        %v2365 = vld [vmem:[#allocation7 + $0x10] sm:$0xf]
        %v2366 = vld [vmem:[#allocation7 + $0x14] sm:$0xf]
        %v2367 = vld [vmem:[#allocation7 + $0x18] sm:$0xf]
        %v2368 = vld [vmem:[#allocation7 + $0x1c] sm:$0xf]
        %v2369 = vld [vmem:[#allocation7 + $0x20] sm:$0xf]
        %v2370 = vld [vmem:[#allocation7 + $0x24] sm:$0xf]
        %v2371 = vld [vmem:[#allocation7 + $0x28] sm:$0xf]
        %v2372 = vld [vmem:[#allocation7 + $0x2c] sm:$0xf]
        %v2373 = vld [vmem:[%s4] sm:$0x1]
        %v2375 = vlaneseq
        %v2376 = vshrl.u32 %v2375, 7
        %v2377 = vsub.s32 0, %v2376
        %v2378 = vrot.slane %v2373, %v2377
        %v2392 = vunpack.c.l.b16 %v2361
        %v2393 = vunpack.c.l.b16 %v2362
        %v2394 = vunpack.c.l.b16 %v2363
        %v2395 = vunpack.c.l.b16 %v2364
        %v2396 = vunpack.c.l.b16 %v2365
        %v2397 = vunpack.c.l.b16 %v2366
        %v2398 = vunpack.c.l.b16 %v2367
        %v2399 = vunpack.c.l.b16 %v2368
        %v2400 = vunpack.c.l.b16 %v2369
        %v2401 = vunpack.c.l.b16 %v2370
        %v2402 = vunpack.c.l.b16 %v2371
        %v2403 = vunpack.c.l.b16 %v2372
        %v2404 = vpack.c.b16 %v2393, %v2392
        %v2405 = vpack.c.b16 %v2395, %v2394
        %v2406 = vpack.c.b16 %v2397, %v2396
        %v2407 = vpack.c.b16 %v2399, %v2398
        %v2408 = vpack.c.b16 %v2401, %v2400
        %v2409 = vpack.c.b16 %v2403, %v2402
        %vm2416 = vcmask 785408
        %v2418 = vsel %vm2416, %v2360, 0
        %2420 = vmatprep.subr.bf16.mxu0 0
        %2421 = vmatpush1.bf16.msra.mxu0 %v2404
        %2422 = vmatprep.subr.bf16.mxu0 0
        %2423 = vmatpush1.bf16.msra.mxu0 %v2405
        %2424 = vmatprep.subr.bf16.mxu0 0
        %2425 = vmatpush1.bf16.msra.mxu0 %v2406
        %2426 = vmatprep.subr.bf16.mxu0 0
        %2427 = vmatpush1.bf16.msra.mxu0 %v2407
        %2428 = vmatprep.subr.bf16.mxu0 0
        %2429 = vmatpush1.bf16.msra.mxu0 %v2408
        %2430 = vmatprep.subr.bf16.mxu0 0
        %2431 = vmatpush1.bf16.msra.mxu0 %v2409
        %2432 = vmatprep.subr.bf16.mxu0 0
        %2433 = vmatpush1.bf16.msra.mxu0 0
        %2434 = vmatprep.subr.bf16.mxu0 0
        %2435 = vmatpush1.bf16.msra.mxu0 0
        %2436 = vmatprep.subr.bf16.mxu0 0
        %2437 = vmatpush1.bf16.msra.mxu0 0
        %2438 = vmatprep.subr.bf16.mxu0 0
        %2439 = vmatpush1.bf16.msra.mxu0 0
        %2440 = vmatprep.subr.bf16.mxu0 0
        %2441 = vmatpush1.bf16.msra.mxu0 0
        %2442 = vmatprep.subr.bf16.mxu0 0
        %2443 = vmatpush1.bf16.msra.mxu0 0
        %2444 = vmatprep.subr.bf16.mxu0 0
        %2445 = vmatpush1.bf16.msra.mxu0 0
        %2446 = vmatprep.subr.bf16.mxu0 0
        %2447 = vmatpush1.bf16.msra.mxu0 0
        %2448 = vmatprep.subr.bf16.mxu0 0
        %2449 = vmatpush1.bf16.msra.mxu0 0
        %2450 = vmatprep.subr.bf16.mxu0 0
        %2451 = vmatpush1.bf16.msra.mxu0 0
        %2452 = vmatprep.mubr.bf16.mxu0 0
        %2453 = vmatmul.mubr.bf16.gmra.mrb[0].mxu0 %v2418
        %v2454 = vpop.f32.mrb[0].mxu0
        %v2455 = vadd.f32 %v2378, %v2454
        %v2456 = vpop.f32.mrb[0].mxu0
        %v2457 = vpop.f32.mrb[0].mxu0
        %v2458 = vadd.f32 %v2378, %v2457
        %v2459 = vpop.f32.mrb[0].mxu0
        %2460 = vdwg.mxu0
        %v2461 = vadd.f32 %v519, %v2455
        %v2462 = vadd.f32 %v520, %v2458
        %v2463 = vld [vmem:[%s5] sm:$0x1]
        %v2464 = vld [vmem:[%s6] sm:$0x1]
        %2465 = vadd.xlane.f32.xlu0 %v2461
        %v2466 = vpop.xlane.xlu0 %2465
        %2467 = vadd.xlane.f32.xlu0 %v2462
        %v2468 = vpop.xlane.xlu0 %2467
        %v2469 = vmul.f32 %v2466, 0.010416667
        %v2470 = vmul.f32 %v2468, 0.010416667
        %v2471 = vsub.f32 %v2461, %v2469
        %v2472 = vsub.f32 %v2462, %v2470
        %v2473 = vmul.f32 %v2471, %v525
        %v2474 = vmul.f32 %v2472, %v525
        %v2475 = vmul.f32 %v2473, %v2473
        %v2476 = vmul.f32 %v2474, %v2474
        %2477 = vadd.xlane.f32.xlu0 %v2475
        %v2478 = vpop.xlane.xlu0 %2477
        %2479 = vadd.xlane.f32.xlu0 %v2476
        %v2480 = vpop.xlane.xlu0 %2479
        %v2481 = vmul.f32 %v2478, 0.010416667
        %v2482 = vmul.f32 %v2480, 0.010416667
        %v2483 = vadd.f32 %v2481, 1e-05
        %v2484 = vadd.f32 %v2482, 1e-05
        %v2485 = vrsqrt.pop %v2483
        %v2486 = vrsqrt.pop %v2484
        %v2487 = vmul.f32 %v2473, %v2485
        %v2488 = vmul.f32 %v2474, %v2486
        %v2490 = vlaneseq
        %v2491 = vshrl.u32 %v2490, 7
        %v2492 = vsub.s32 0, %v2491
        %v2493 = vrot.slane %v2463, %v2492
        %v2495 = vmul.f32 %v2487, %v2493
        %v2496 = vmul.f32 %v2488, %v2493
        %v2498 = vlaneseq
        %v2499 = vshrl.u32 %v2498, 7
        %v2500 = vsub.s32 0, %v2499
        %v2501 = vrot.slane %v2464, %v2500
        %v2503 = vadd.f32 %v2495, %v2501
        %v2504 = vadd.f32 %v2496, %v2501
        %v2505 = vpack.c.bf16 %v2504, %v2503
        %v2506 = vld [vmem:[#allocation8] sm:$0xff]
        %v2507 = vld [vmem:[#allocation8 + $0x8] sm:$0xf]
        %v2508 = vld [vmem:[#allocation8 + $0xc] sm:$0xff]
        %v2509 = vld [vmem:[#allocation8 + $0x14] sm:$0xf]
        %v2510 = vld [vmem:[#allocation8 + $0x18] sm:$0xff]
        %v2511 = vld [vmem:[#allocation8 + $0x20] sm:$0xf]
        %v2512 = vld [vmem:[#allocation8 + $0x24] sm:$0xff]
        %v2513 = vld [vmem:[#allocation8 + $0x2c] sm:$0xf]
        %v2514 = vld [vmem:[#allocation8 + $0x30] sm:$0xff]
        %v2515 = vld [vmem:[#allocation8 + $0x38] sm:$0xf]
        %v2516 = vld [vmem:[#allocation8 + $0x3c] sm:$0xff]
        %v2517 = vld [vmem:[#allocation8 + $0x44] sm:$0xf]
        %v2518 = vld [vmem:[#allocation8 + $0x48] sm:$0xff]
        %v2519 = vld [vmem:[#allocation8 + $0x50] sm:$0xf]
        %v2520 = vld [vmem:[#allocation8 + $0x54] sm:$0xff]
        %v2521 = vld [vmem:[#allocation8 + $0x5c] sm:$0xf]
        %v2522 = vld [vmem:[#allocation8 + $0x60] sm:$0xff]
        %v2523 = vld [vmem:[#allocation8 + $0x68] sm:$0xf]
        %v2524 = vld [vmem:[#allocation8 + $0x6c] sm:$0xff]
        %v2525 = vld [vmem:[#allocation8 + $0x74] sm:$0xf]
        %v2526 = vld [vmem:[#allocation8 + $0x78] sm:$0xff]
        %v2527 = vld [vmem:[#allocation8 + $0x80] sm:$0xf]
        %v2528 = vld [vmem:[#allocation8 + $0x84] sm:$0xff]
        %v2529 = vld [vmem:[#allocation8 + $0x8c] sm:$0xf]
        %v2530 = vld [vmem:[#allocation8 + $0x90] sm:$0xff]
        %v2531 = vld [vmem:[#allocation8 + $0x98] sm:$0xf]
        %v2532 = vld [vmem:[#allocation8 + $0x9c] sm:$0xff]
        %v2533 = vld [vmem:[#allocation8 + $0xa4] sm:$0xf]
        %v2534 = vld [vmem:[#allocation8 + $0xa8] sm:$0xff]
        %v2535 = vld [vmem:[#allocation8 + $0xb0] sm:$0xf]
        %v2536 = vld [vmem:[#allocation8 + $0xb4] sm:$0xff]
        %v2537 = vld [vmem:[#allocation8 + $0xbc] sm:$0xf]
        %v2538 = vld [vmem:[%s10] sm:$0x7]
        %v2540 = vlaneseq
        %v2541 = vshrl.u32 %v2540, 7
        %v2542 = vsub.s32 0, %v2541
        %v2543 = vrot.slane %v2538, %v2542
        %v2544 = vlaneseq
        %v2545 = vshrl.u32 %v2544, 7
        %v2546 = vsub.s32 1, %v2545
        %v2547 = vrot.slane %v2538, %v2546
        %v2548 = vlaneseq
        %v2549 = vshrl.u32 %v2548, 7
        %v2550 = vsub.s32 2, %v2549
        %v2551 = vrot.slane %v2538, %v2550
        %v2587 = vunpack.c.l.b16 %v2506
        %v2588 = vunpack.c.h.b16 %v2506
        %v2589 = vunpack.c.l.b16 %v2507
        %v2590 = vunpack.c.l.b16 %v2508
        %v2591 = vunpack.c.h.b16 %v2508
        %v2592 = vunpack.c.l.b16 %v2509
        %v2593 = vunpack.c.l.b16 %v2510
        %v2594 = vunpack.c.h.b16 %v2510
        %v2595 = vunpack.c.l.b16 %v2511
        %v2596 = vunpack.c.l.b16 %v2512
        %v2597 = vunpack.c.h.b16 %v2512
        %v2598 = vunpack.c.l.b16 %v2513
        %v2599 = vunpack.c.l.b16 %v2514
        %v2600 = vunpack.c.h.b16 %v2514
        %v2601 = vunpack.c.l.b16 %v2515
        %v2602 = vunpack.c.l.b16 %v2516
        %v2603 = vunpack.c.h.b16 %v2516
        %v2604 = vunpack.c.l.b16 %v2517
        %v2605 = vunpack.c.l.b16 %v2518
        %v2606 = vunpack.c.h.b16 %v2518
        %v2607 = vunpack.c.l.b16 %v2519
        %v2608 = vunpack.c.l.b16 %v2520
        %v2609 = vunpack.c.h.b16 %v2520
        %v2610 = vunpack.c.l.b16 %v2521
        %v2611 = vunpack.c.l.b16 %v2522
        %v2612 = vunpack.c.h.b16 %v2522
        %v2613 = vunpack.c.l.b16 %v2523
        %v2614 = vunpack.c.l.b16 %v2524
        %v2615 = vunpack.c.h.b16 %v2524
        %v2616 = vunpack.c.l.b16 %v2525
        %v2617 = vunpack.c.l.b16 %v2526
        %v2618 = vunpack.c.h.b16 %v2526
        %v2619 = vunpack.c.l.b16 %v2527
        %v2620 = vunpack.c.l.b16 %v2528
        %v2621 = vunpack.c.h.b16 %v2528
        %v2622 = vunpack.c.l.b16 %v2529
        %v2623 = vunpack.c.l.b16 %v2530
        %v2624 = vunpack.c.h.b16 %v2530
        %v2625 = vunpack.c.l.b16 %v2531
        %v2626 = vunpack.c.l.b16 %v2532
        %v2627 = vunpack.c.h.b16 %v2532
        %v2628 = vunpack.c.l.b16 %v2533
        %v2629 = vunpack.c.l.b16 %v2534
        %v2630 = vunpack.c.h.b16 %v2534
        %v2631 = vunpack.c.l.b16 %v2535
        %v2632 = vunpack.c.l.b16 %v2536
        %v2633 = vunpack.c.h.b16 %v2536
        %v2634 = vunpack.c.l.b16 %v2537
        %v2635 = vpack.c.b16 %v2590, %v2587
        %v2636 = vpack.c.b16 %v2591, %v2588
        %v2637 = vpack.c.b16 %v2592, %v2589
        %v2638 = vpack.c.b16 %v2596, %v2593
        %v2639 = vpack.c.b16 %v2597, %v2594
        %v2640 = vpack.c.b16 %v2598, %v2595
        %v2641 = vpack.c.b16 %v2602, %v2599
        %v2642 = vpack.c.b16 %v2603, %v2600
        %v2643 = vpack.c.b16 %v2604, %v2601
        %v2644 = vpack.c.b16 %v2608, %v2605
        %v2645 = vpack.c.b16 %v2609, %v2606
        %v2646 = vpack.c.b16 %v2610, %v2607
        %v2647 = vpack.c.b16 %v2614, %v2611
        %v2648 = vpack.c.b16 %v2615, %v2612
        %v2649 = vpack.c.b16 %v2616, %v2613
        %v2650 = vpack.c.b16 %v2620, %v2617
        %v2651 = vpack.c.b16 %v2621, %v2618
        %v2652 = vpack.c.b16 %v2622, %v2619
        %v2653 = vpack.c.b16 %v2626, %v2623
        %v2654 = vpack.c.b16 %v2627, %v2624
        %v2655 = vpack.c.b16 %v2628, %v2625
        %v2656 = vpack.c.b16 %v2632, %v2629
        %v2657 = vpack.c.b16 %v2633, %v2630
        %v2658 = vpack.c.b16 %v2634, %v2631
        %2683 = vmatprep.subr.bf16.mxu0 %v2636
        %2684 = vmatpush1.bf16.msra.mxu0 %v2635
        %2685 = vmatprep.subr.bf16.mxu0 %v2639
        %2686 = vmatpush1.bf16.msra.mxu0 %v2638
        %2687 = vmatprep.subr.bf16.mxu0 %v2642
        %2688 = vmatpush1.bf16.msra.mxu0 %v2641
        %2689 = vmatprep.subr.bf16.mxu0 %v2645
        %2690 = vmatpush1.bf16.msra.mxu0 %v2644
        %2691 = vmatprep.subr.bf16.mxu0 %v2648
        %2692 = vmatpush1.bf16.msra.mxu0 %v2647
        %2693 = vmatprep.subr.bf16.mxu0 %v2651
        %2694 = vmatpush1.bf16.msra.mxu0 %v2650
        %2695 = vmatprep.subr.bf16.mxu0 %v2654
        %2696 = vmatpush1.bf16.msra.mxu0 %v2653
        %2697 = vmatprep.subr.bf16.mxu0 %v2657
        %2698 = vmatpush1.bf16.msra.mxu0 %v2656
        %2699 = vmatprep.subr.bf16.mxu0 0
        %2700 = vmatpush1.bf16.msra.mxu0 0
        %2701 = vmatprep.subr.bf16.mxu0 0
        %2702 = vmatpush1.bf16.msra.mxu0 0
        %2703 = vmatprep.subr.bf16.mxu0 0
        %2704 = vmatpush1.bf16.msra.mxu0 0
        %2705 = vmatprep.subr.bf16.mxu0 0
        %2706 = vmatpush1.bf16.msra.mxu0 0
        %2707 = vmatprep.subr.bf16.mxu0 0
        %2708 = vmatpush1.bf16.msra.mxu0 0
        %2709 = vmatprep.subr.bf16.mxu0 0
        %2710 = vmatpush1.bf16.msra.mxu0 0
        %2711 = vmatprep.subr.bf16.mxu0 0
        %2712 = vmatpush1.bf16.msra.mxu0 0
        %2713 = vmatprep.subr.bf16.mxu0 0
        %2714 = vmatpush1.bf16.msra.mxu0 0
        %2715 = vmatprep.mubr.bf16.mxu0 0
        %2716 = vmatmul.mubr.bf16.gmra.mrb[0].mxu0 %v2505
        %v2717 = vpop.f32.mrb[0].mxu0
        %v2718 = vadd.f32 %v2543, %v2717
        %v2719 = vpop.f32.mrb[0].mxu0
        %v2720 = vadd.f32 %v2547, %v2719
        %v2721 = vpop.f32.mrb[0].mxu0
        %v2722 = vadd.f32 %v2543, %v2721
        %v2723 = vpop.f32.mrb[0].mxu0
        %v2724 = vadd.f32 %v2547, %v2723
        %2725 = vdwg.mxu0
        %2726 = vmatprep.subr.bf16.mxu0 0
        %2727 = vmatpush1.bf16.msra.mxu0 %v2637
        %2728 = vmatprep.subr.bf16.mxu0 0
        %2729 = vmatpush1.bf16.msra.mxu0 %v2640
        %2730 = vmatprep.subr.bf16.mxu0 0
        %2731 = vmatpush1.bf16.msra.mxu0 %v2643
        %2732 = vmatprep.subr.bf16.mxu0 0
        %2733 = vmatpush1.bf16.msra.mxu0 %v2646
        %2734 = vmatprep.subr.bf16.mxu0 0
        %2735 = vmatpush1.bf16.msra.mxu0 %v2649
        %2736 = vmatprep.subr.bf16.mxu0 0
        %2737 = vmatpush1.bf16.msra.mxu0 %v2652
        %2738 = vmatprep.subr.bf16.mxu0 0
        %2739 = vmatpush1.bf16.msra.mxu0 %v2655
        %2740 = vmatprep.subr.bf16.mxu0 0
        %2741 = vmatpush1.bf16.msra.mxu0 %v2658
        %2742 = vmatprep.subr.bf16.mxu0 0
        %2743 = vmatpush1.bf16.msra.mxu0 0
        %2744 = vmatprep.subr.bf16.mxu0 0
        %2745 = vmatpush1.bf16.msra.mxu0 0
        %2746 = vmatprep.subr.bf16.mxu0 0
        %2747 = vmatpush1.bf16.msra.mxu0 0
        %2748 = vmatprep.subr.bf16.mxu0 0
        %2749 = vmatpush1.bf16.msra.mxu0 0
        %2750 = vmatprep.subr.bf16.mxu0 0
        %2751 = vmatpush1.bf16.msra.mxu0 0
        %2752 = vmatprep.subr.bf16.mxu0 0
        %2753 = vmatpush1.bf16.msra.mxu0 0
        %2754 = vmatprep.subr.bf16.mxu0 0
        %2755 = vmatpush1.bf16.msra.mxu0 0
        %2756 = vmatprep.subr.bf16.mxu0 0
        %2757 = vmatpush1.bf16.msra.mxu0 0
        %2758 = vmatprep.mubr.bf16.mxu0 0
        %2759 = vmatmul.mubr.bf16.gmra.mrb[0].mxu0 %v2505
        %v2760 = vpop.f32.mrb[0].mxu0
        %v2761 = vadd.f32 %v2551, %v2760
        %v2762 = vpop.f32.mrb[0].mxu0
        %v2763 = vpop.f32.mrb[0].mxu0
        %v2764 = vadd.f32 %v2551, %v2763
        %v2765 = vpop.f32.mrb[0].mxu0
        %2766 = vdwg.mxu0
        %v2767 = vmul.f32 %v2718, %v2718
        %v2768 = vmul.f32 %v2720, %v2720
        %v2769 = vmul.f32 %v2761, %v2761
        %v2770 = vmul.f32 %v2722, %v2722
        %v2771 = vmul.f32 %v2724, %v2724
        %v2772 = vmul.f32 %v2764, %v2764
        %v2773 = vmul.f32 %v2718, %v2767
        %v2774 = vmul.f32 %v2720, %v2768
        %v2775 = vmul.f32 %v2761, %v2769
        %v2776 = vmul.f32 %v2722, %v2770
        %v2777 = vmul.f32 %v2724, %v2771
        %v2778 = vmul.f32 %v2764, %v2772
        %v2779 = vmul.f32 %v2773, 0.044715
        %v2780 = vmul.f32 %v2774, 0.044715
        %v2781 = vmul.f32 %v2775, 0.044715
        %v2782 = vmul.f32 %v2776, 0.044715
        %v2783 = vmul.f32 %v2777, 0.044715
        %v2784 = vmul.f32 %v2778, 0.044715
        %v2785 = vadd.f32 %v2718, %v2779
        %v2786 = vadd.f32 %v2720, %v2780
        %v2787 = vadd.f32 %v2761, %v2781
        %v2788 = vadd.f32 %v2722, %v2782
        %v2789 = vadd.f32 %v2724, %v2783
        %v2790 = vadd.f32 %v2764, %v2784
        %v2791 = vmul.f32 %v2785, 0.7978846
        %v2792 = vmul.f32 %v2786, 0.7978846
        %v2793 = vmul.f32 %v2787, 0.7978846
        %v2794 = vmul.f32 %v2788, 0.7978846
        %v2795 = vmul.f32 %v2789, 0.7978846
        %v2796 = vmul.f32 %v2790, 0.7978846
        %v2797 = vtanh.pop %v2791
        %v2798 = vtanh.pop %v2792
        %v2799 = vtanh.pop %v2793
        %v2800 = vtanh.pop %v2794
        %v2801 = vtanh.pop %v2795
        %v2802 = vtanh.pop %v2796
        %v2803 = vadd.f32 %v2797, 1.0
        %v2804 = vadd.f32 %v2798, 1.0
        %v2805 = vadd.f32 %v2799, 1.0
        %v2806 = vadd.f32 %v2800, 1.0
        %v2807 = vadd.f32 %v2801, 1.0
        %v2808 = vadd.f32 %v2802, 1.0
        %v2809 = vmul.f32 %v2803, 0.5
        %v2810 = vmul.f32 %v2804, 0.5
        %v2811 = vmul.f32 %v2805, 0.5
        %v2812 = vmul.f32 %v2806, 0.5
        %v2813 = vmul.f32 %v2807, 0.5
        %v2814 = vmul.f32 %v2808, 0.5
        %v2815 = vmul.f32 %v2718, %v2809
        %v2816 = vmul.f32 %v2720, %v2810
        %v2817 = vmul.f32 %v2761, %v2811
        %v2818 = vmul.f32 %v2722, %v2812
        %v2819 = vmul.f32 %v2724, %v2813
        %v2820 = vmul.f32 %v2764, %v2814
        %v2821 = vpack.c.bf16 %v2818, %v2815
        %v2822 = vpack.c.bf16 %v2819, %v2816
        %v2823 = vpack.c.bf16 %v2820, %v2817
        %v2824 = vld [vmem:[#allocation10] sm:$0xf]
        %v2825 = vld [vmem:[#allocation10 + $0x4] sm:$0xf]
        %v2826 = vld [vmem:[#allocation10 + $0x8] sm:$0xf]
        %v2827 = vld [vmem:[#allocation10 + $0xc] sm:$0xf]
        %v2828 = vld [vmem:[#allocation10 + $0x10] sm:$0xf]
        %v2829 = vld [vmem:[#allocation10 + $0x14] sm:$0xf]
        %v2830 = vld [vmem:[#allocation10 + $0x18] sm:$0xf]
        %v2831 = vld [vmem:[#allocation10 + $0x1c] sm:$0xf]
        %v2832 = vld [vmem:[#allocation10 + $0x20] sm:$0xf]
        %v2833 = vld [vmem:[#allocation10 + $0x24] sm:$0xf]
        %v2834 = vld [vmem:[#allocation10 + $0x28] sm:$0xf]
        %v2835 = vld [vmem:[#allocation10 + $0x2c] sm:$0xf]
        %v2836 = vld [vmem:[#allocation10 + $0x30] sm:$0xf]
        %v2837 = vld [vmem:[#allocation10 + $0x34] sm:$0xf]
        %v2838 = vld [vmem:[#allocation10 + $0x38] sm:$0xf]
        %v2839 = vld [vmem:[#allocation10 + $0x3c] sm:$0xf]
        %v2840 = vld [vmem:[#allocation10 + $0x40] sm:$0xf]
        %v2841 = vld [vmem:[#allocation10 + $0x44] sm:$0xf]
        %v2842 = vld [vmem:[#allocation10 + $0x48] sm:$0xf]
        %v2843 = vld [vmem:[#allocation10 + $0x4c] sm:$0xf]
        %v2844 = vld [vmem:[#allocation10 + $0x50] sm:$0xf]
        %v2845 = vld [vmem:[#allocation10 + $0x54] sm:$0xf]
        %v2846 = vld [vmem:[#allocation10 + $0x58] sm:$0xf]
        %v2847 = vld [vmem:[#allocation10 + $0x5c] sm:$0xf]
        %v2848 = vld [vmem:[#allocation10 + $0x60] sm:$0xf]
        %v2849 = vld [vmem:[#allocation10 + $0x64] sm:$0xf]
        %v2850 = vld [vmem:[#allocation10 + $0x68] sm:$0xf]
        %v2851 = vld [vmem:[#allocation10 + $0x6c] sm:$0xf]
        %v2852 = vld [vmem:[#allocation10 + $0x70] sm:$0xf]
        %v2853 = vld [vmem:[#allocation10 + $0x74] sm:$0xf]
        %v2854 = vld [vmem:[#allocation10 + $0x78] sm:$0xf]
        %v2855 = vld [vmem:[#allocation10 + $0x7c] sm:$0xf]
        %v2856 = vld [vmem:[#allocation10 + $0x80] sm:$0xf]
        %v2857 = vld [vmem:[#allocation10 + $0x84] sm:$0xf]
        %v2858 = vld [vmem:[#allocation10 + $0x88] sm:$0xf]
        %v2859 = vld [vmem:[#allocation10 + $0x8c] sm:$0xf]
        %v2860 = vld [vmem:[#allocation10 + $0x90] sm:$0xf]
        %v2861 = vld [vmem:[#allocation10 + $0x94] sm:$0xf]
        %v2862 = vld [vmem:[#allocation10 + $0x98] sm:$0xf]
        %v2863 = vld [vmem:[#allocation10 + $0x9c] sm:$0xf]
        %v2864 = vld [vmem:[#allocation10 + $0xa0] sm:$0xf]
        %v2865 = vld [vmem:[#allocation10 + $0xa4] sm:$0xf]
        %v2866 = vld [vmem:[#allocation10 + $0xa8] sm:$0xf]
        %v2867 = vld [vmem:[#allocation10 + $0xac] sm:$0xf]
        %v2868 = vld [vmem:[#allocation10 + $0xb0] sm:$0xf]
        %v2869 = vld [vmem:[#allocation10 + $0xb4] sm:$0xf]
        %v2870 = vld [vmem:[#allocation10 + $0xb8] sm:$0xf]
        %v2871 = vld [vmem:[#allocation10 + $0xbc] sm:$0xf]
        %v2872 = vld [vmem:[%s12] sm:$0x1]
        %v2874 = vlaneseq
        %v2875 = vshrl.u32 %v2874, 7
        %v2876 = vsub.s32 0, %v2875
        %v2877 = vrot.slane %v2872, %v2876
        %v2927 = vunpack.c.l.b16 %v2824
        %v2928 = vunpack.c.l.b16 %v2825
        %v2929 = vunpack.c.l.b16 %v2826
        %v2930 = vunpack.c.l.b16 %v2827
        %v2931 = vunpack.c.l.b16 %v2828
        %v2932 = vunpack.c.l.b16 %v2829
        %v2933 = vunpack.c.l.b16 %v2830
        %v2934 = vunpack.c.l.b16 %v2831
        %v2935 = vunpack.c.l.b16 %v2832
        %v2936 = vunpack.c.l.b16 %v2833
        %v2937 = vunpack.c.l.b16 %v2834
        %v2938 = vunpack.c.l.b16 %v2835
        %v2939 = vunpack.c.l.b16 %v2836
        %v2940 = vunpack.c.l.b16 %v2837
        %v2941 = vunpack.c.l.b16 %v2838
        %v2942 = vunpack.c.l.b16 %v2839
        %v2943 = vunpack.c.l.b16 %v2840
        %v2944 = vunpack.c.l.b16 %v2841
        %v2945 = vunpack.c.l.b16 %v2842
        %v2946 = vunpack.c.l.b16 %v2843
        %v2947 = vunpack.c.l.b16 %v2844
        %v2948 = vunpack.c.l.b16 %v2845
        %v2949 = vunpack.c.l.b16 %v2846
        %v2950 = vunpack.c.l.b16 %v2847
        %v2951 = vunpack.c.l.b16 %v2848
        %v2952 = vunpack.c.l.b16 %v2849
        %v2953 = vunpack.c.l.b16 %v2850
        %v2954 = vunpack.c.l.b16 %v2851
        %v2955 = vunpack.c.l.b16 %v2852
        %v2956 = vunpack.c.l.b16 %v2853
        %v2957 = vunpack.c.l.b16 %v2854
        %v2958 = vunpack.c.l.b16 %v2855
        %v2959 = vunpack.c.l.b16 %v2856
        %v2960 = vunpack.c.l.b16 %v2857
        %v2961 = vunpack.c.l.b16 %v2858
        %v2962 = vunpack.c.l.b16 %v2859
        %v2963 = vunpack.c.l.b16 %v2860
        %v2964 = vunpack.c.l.b16 %v2861
        %v2965 = vunpack.c.l.b16 %v2862
        %v2966 = vunpack.c.l.b16 %v2863
        %v2967 = vunpack.c.l.b16 %v2864
        %v2968 = vunpack.c.l.b16 %v2865
        %v2969 = vunpack.c.l.b16 %v2866
        %v2970 = vunpack.c.l.b16 %v2867
        %v2971 = vunpack.c.l.b16 %v2868
        %v2972 = vunpack.c.l.b16 %v2869
        %v2973 = vunpack.c.l.b16 %v2870
        %v2974 = vunpack.c.l.b16 %v2871
        %v2975 = vpack.c.b16 %v2928, %v2927
        %v2976 = vpack.c.b16 %v2930, %v2929
        %v2977 = vpack.c.b16 %v2932, %v2931
        %v2978 = vpack.c.b16 %v2934, %v2933
        %v2979 = vpack.c.b16 %v2936, %v2935
        %v2980 = vpack.c.b16 %v2938, %v2937
        %v2981 = vpack.c.b16 %v2940, %v2939
        %v2982 = vpack.c.b16 %v2942, %v2941
        %v2983 = vpack.c.b16 %v2944, %v2943
        %v2984 = vpack.c.b16 %v2946, %v2945
        %v2985 = vpack.c.b16 %v2948, %v2947
        %v2986 = vpack.c.b16 %v2950, %v2949
        %v2987 = vpack.c.b16 %v2952, %v2951
        %v2988 = vpack.c.b16 %v2954, %v2953
        %v2989 = vpack.c.b16 %v2956, %v2955
        %v2990 = vpack.c.b16 %v2958, %v2957
        %v2991 = vpack.c.b16 %v2960, %v2959
        %v2992 = vpack.c.b16 %v2962, %v2961
        %v2993 = vpack.c.b16 %v2964, %v2963
        %v2994 = vpack.c.b16 %v2966, %v2965
        %v2995 = vpack.c.b16 %v2968, %v2967
        %v2996 = vpack.c.b16 %v2970, %v2969
        %v2997 = vpack.c.b16 %v2972, %v2971
        %v2998 = vpack.c.b16 %v2974, %v2973
        %3023 = vmatprep.subr.bf16.mxu0 0
        %3024 = vmatpush1.bf16.msra.mxu0 %v2975
        %3025 = vmatprep.subr.bf16.mxu0 0
        %3026 = vmatpush1.bf16.msra.mxu0 %v2976
        %3027 = vmatprep.subr.bf16.mxu0 0
        %3028 = vmatpush1.bf16.msra.mxu0 %v2977
        %3029 = vmatprep.subr.bf16.mxu0 0
        %3030 = vmatpush1.bf16.msra.mxu0 %v2978
        %3031 = vmatprep.subr.bf16.mxu0 0
        %3032 = vmatpush1.bf16.msra.mxu0 %v2979
        %3033 = vmatprep.subr.bf16.mxu0 0
        %3034 = vmatpush1.bf16.msra.mxu0 %v2980
        %3035 = vmatprep.subr.bf16.mxu0 0
        %3036 = vmatpush1.bf16.msra.mxu0 %v2981
        %3037 = vmatprep.subr.bf16.mxu0 0
        %3038 = vmatpush1.bf16.msra.mxu0 %v2982
        %3039 = vmatprep.subr.bf16.mxu0 0
        %3040 = vmatpush1.bf16.msra.mxu0 %v2983
        %3041 = vmatprep.subr.bf16.mxu0 0
        %3042 = vmatpush1.bf16.msra.mxu0 %v2984
        %3043 = vmatprep.subr.bf16.mxu0 0
        %3044 = vmatpush1.bf16.msra.mxu0 %v2985
        %3045 = vmatprep.subr.bf16.mxu0 0
        %3046 = vmatpush1.bf16.msra.mxu0 %v2986
        %3047 = vmatprep.subr.bf16.mxu0 0
        %3048 = vmatpush1.bf16.msra.mxu0 %v2987
        %3049 = vmatprep.subr.bf16.mxu0 0
        %3050 = vmatpush1.bf16.msra.mxu0 %v2988
        %3051 = vmatprep.subr.bf16.mxu0 0
        %3052 = vmatpush1.bf16.msra.mxu0 %v2989
        %3053 = vmatprep.subr.bf16.mxu0 0
        %3054 = vmatpush1.bf16.msra.mxu0 %v2990
        %3055 = vmatprep.mubr.bf16.mxu0 %v2822
        %3056 = vmatmul.mubr.bf16.gmra.mrb[0].mxu0 %v2821
        %v3057 = vpop.f32.mrb[0].mxu0
        %v3058 = vadd.f32 %v2877, %v3057
        %v3059 = vpop.f32.mrb[0].mxu0
        %v3060 = vpop.f32.mrb[0].mxu0
        %v3061 = vadd.f32 %v2877, %v3060
        %v3062 = vpop.f32.mrb[0].mxu0
        %3063 = vdwg.mxu0
        %3064 = vmatprep.subr.bf16.mxu0 0
        %3065 = vmatpush1.bf16.msra.mxu0 %v2991
        %3066 = vmatprep.subr.bf16.mxu0 0
        %3067 = vmatpush1.bf16.msra.mxu0 %v2992
        %3068 = vmatprep.subr.bf16.mxu0 0
        %3069 = vmatpush1.bf16.msra.mxu0 %v2993
        %3070 = vmatprep.subr.bf16.mxu0 0
        %3071 = vmatpush1.bf16.msra.mxu0 %v2994
        %3072 = vmatprep.subr.bf16.mxu0 0
        %3073 = vmatpush1.bf16.msra.mxu0 %v2995
        %3074 = vmatprep.subr.bf16.mxu0 0
        %3075 = vmatpush1.bf16.msra.mxu0 %v2996
        %3076 = vmatprep.subr.bf16.mxu0 0
        %3077 = vmatpush1.bf16.msra.mxu0 %v2997
        %3078 = vmatprep.subr.bf16.mxu0 0
        %3079 = vmatpush1.bf16.msra.mxu0 %v2998
        %3080 = vmatprep.subr.bf16.mxu0 0
        %3081 = vmatpush1.bf16.msra.mxu0 0
        %3082 = vmatprep.subr.bf16.mxu0 0
        %3083 = vmatpush1.bf16.msra.mxu0 0
        %3084 = vmatprep.subr.bf16.mxu0 0
        %3085 = vmatpush1.bf16.msra.mxu0 0
        %3086 = vmatprep.subr.bf16.mxu0 0
        %3087 = vmatpush1.bf16.msra.mxu0 0
        %3088 = vmatprep.subr.bf16.mxu0 0
        %3089 = vmatpush1.bf16.msra.mxu0 0
        %3090 = vmatprep.subr.bf16.mxu0 0
        %3091 = vmatpush1.bf16.msra.mxu0 0
        %3092 = vmatprep.subr.bf16.mxu0 0
        %3093 = vmatpush1.bf16.msra.mxu0 0
        %3094 = vmatprep.subr.bf16.mxu0 0
        %3095 = vmatpush1.bf16.msra.mxu0 0
        %3096 = vmatprep.mubr.bf16.mxu0 0
        %3097 = vmatmul.mubr.bf16.gmra.mrb[0].mxu0 %v2823
        %v3098 = vpop.f32.mrb[0].mxu0
        %v3099 = vadd.f32 %v3058, %v3098
        %v3100 = vpop.f32.mrb[0].mxu0
        %v3101 = vpop.f32.mrb[0].mxu0
        %v3102 = vadd.f32 %v3061, %v3101
        %v3103 = vpop.f32.mrb[0].mxu0
        %3104 = vdwg.mxu0
        %v3105 = vadd.f32 %v2503, %v3099
        %v3106 = vadd.f32 %v2504, %v3102
        %v3107 = vld [vmem:[%s7] sm:$0x1]
        %v3108 = vld [vmem:[%s8] sm:$0x1]
        %3109 = vadd.xlane.f32.xlu0 %v3105
        %v3110 = vpop.xlane.xlu0 %3109
        %3111 = vadd.xlane.f32.xlu0 %v3106
        %v3112 = vpop.xlane.xlu0 %3111
        %v3113 = vmul.f32 %v3110, 0.010416667
        %v3114 = vmul.f32 %v3112, 0.010416667
        %v3115 = vsub.f32 %v3105, %v3113
        %v3116 = vsub.f32 %v3106, %v3114
        %v3117 = vmul.f32 %v3115, %v525
        %v3118 = vmul.f32 %v3116, %v525
        %v3119 = vmul.f32 %v3117, %v3117
        %v3120 = vmul.f32 %v3118, %v3118
        %3121 = vadd.xlane.f32.xlu0 %v3119
        %v3122 = vpop.xlane.xlu0 %3121
        %3123 = vadd.xlane.f32.xlu0 %v3120
        %v3124 = vpop.xlane.xlu0 %3123
        %v3125 = vmul.f32 %v3122, 0.010416667
        %v3126 = vmul.f32 %v3124, 0.010416667
        %v3127 = vadd.f32 %v3125, 1e-05
        %v3128 = vadd.f32 %v3126, 1e-05
        %v3129 = vrsqrt.pop %v3127
        %v3130 = vrsqrt.pop %v3128
        %v3131 = vmul.f32 %v3117, %v3129
        %v3132 = vmul.f32 %v3118, %v3130
        %v3134 = vlaneseq
        %v3135 = vshrl.u32 %v3134, 7
        %v3136 = vsub.s32 0, %v3135
        %v3137 = vrot.slane %v3107, %v3136
        %v3139 = vmul.f32 %v3131, %v3137
        %v3140 = vmul.f32 %v3132, %v3137
        %v3142 = vlaneseq
        %v3143 = vshrl.u32 %v3142, 7
        %v3144 = vsub.s32 0, %v3143
        %v3145 = vrot.slane %v3108, %v3144
        %v3147 = vadd.f32 %v3139, %v3145
        %v3148 = vadd.f32 %v3140, %v3145
        %v3149 = vpack.c.bf16 %v3148, %v3147
        %s3150 = scalar_lea.vmem [#allocation5], 192
        %v3151 = vld [vmem:[%s3150] sm:$0xff]
        %v3152 = vld [vmem:[%s3150 + $0x8] sm:$0xf]
        %v3153 = vld [vmem:[%s3150 + $0xc] sm:$0xff]
        %v3154 = vld [vmem:[%s3150 + $0x14] sm:$0xf]
        %v3155 = vld [vmem:[%s3150 + $0x18] sm:$0xff]
        %v3156 = vld [vmem:[%s3150 + $0x20] sm:$0xf]
        %v3157 = vld [vmem:[%s3150 + $0x24] sm:$0xff]
        %v3158 = vld [vmem:[%s3150 + $0x2c] sm:$0xf]
        %v3159 = vld [vmem:[%s3150 + $0x30] sm:$0xff]
        %v3160 = vld [vmem:[%s3150 + $0x38] sm:$0xf]
        %v3161 = vld [vmem:[%s3150 + $0x3c] sm:$0xff]
        %v3162 = vld [vmem:[%s3150 + $0x44] sm:$0xf]
        %v3163 = vld [vmem:[%s3150 + $0x48] sm:$0xff]
        %v3164 = vld [vmem:[%s3150 + $0x50] sm:$0xf]
        %v3165 = vld [vmem:[%s3150 + $0x54] sm:$0xff]
        %v3166 = vld [vmem:[%s3150 + $0x5c] sm:$0xf]
        %v3167 = vld [vmem:[%s3150 + $0x60] sm:$0xff]
        %v3168 = vld [vmem:[%s3150 + $0x68] sm:$0xf]
        %v3169 = vld [vmem:[%s3150 + $0x6c] sm:$0xff]
        %v3170 = vld [vmem:[%s3150 + $0x74] sm:$0xf]
        %v3171 = vld [vmem:[%s3150 + $0x78] sm:$0xff]
        %v3172 = vld [vmem:[%s3150 + $0x80] sm:$0xf]
        %v3173 = vld [vmem:[%s3150 + $0x84] sm:$0xff]
        %v3174 = vld [vmem:[%s3150 + $0x8c] sm:$0xf]
        %v3175 = vld [vmem:[%s3150 + $0x90] sm:$0xff]
        %v3176 = vld [vmem:[%s3150 + $0x98] sm:$0xf]
        %v3177 = vld [vmem:[%s3150 + $0x9c] sm:$0xff]
        %v3178 = vld [vmem:[%s3150 + $0xa4] sm:$0xf]
        %v3179 = vld [vmem:[%s3150 + $0xa8] sm:$0xff]
        %v3180 = vld [vmem:[%s3150 + $0xb0] sm:$0xf]
        %v3181 = vld [vmem:[%s3150 + $0xb4] sm:$0xff]
        %v3182 = vld [vmem:[%s3150 + $0xbc] sm:$0xf]
        %s3183 = scalar_lea.vmem %s2, 3
        %v3184 = vld [vmem:[%s3183] sm:$0x7]
        %v3186 = vlaneseq
        %v3187 = vshrl.u32 %v3186, 7
        %v3188 = vsub.s32 0, %v3187
        %v3189 = vrot.slane %v3184, %v3188
        %v3190 = vlaneseq
        %v3191 = vshrl.u32 %v3190, 7
        %v3192 = vsub.s32 1, %v3191
        %v3193 = vrot.slane %v3184, %v3192
        %v3194 = vlaneseq
        %v3195 = vshrl.u32 %v3194, 7
        %v3196 = vsub.s32 2, %v3195
        %v3197 = vrot.slane %v3184, %v3196
        %v3233 = vunpack.c.l.b16 %v3151
        %v3234 = vunpack.c.h.b16 %v3151
        %v3235 = vunpack.c.l.b16 %v3152
        %v3236 = vunpack.c.l.b16 %v3153
        %v3237 = vunpack.c.h.b16 %v3153
        %v3238 = vunpack.c.l.b16 %v3154
        %v3239 = vunpack.c.l.b16 %v3155
        %v3240 = vunpack.c.h.b16 %v3155
        %v3241 = vunpack.c.l.b16 %v3156
        %v3242 = vunpack.c.l.b16 %v3157
        %v3243 = vunpack.c.h.b16 %v3157
        %v3244 = vunpack.c.l.b16 %v3158
        %v3245 = vunpack.c.l.b16 %v3159
        %v3246 = vunpack.c.h.b16 %v3159
        %v3247 = vunpack.c.l.b16 %v3160
        %v3248 = vunpack.c.l.b16 %v3161
        %v3249 = vunpack.c.h.b16 %v3161
        %v3250 = vunpack.c.l.b16 %v3162
        %v3251 = vunpack.c.l.b16 %v3163
        %v3252 = vunpack.c.h.b16 %v3163
        %v3253 = vunpack.c.l.b16 %v3164
        %v3254 = vunpack.c.l.b16 %v3165
        %v3255 = vunpack.c.h.b16 %v3165
        %v3256 = vunpack.c.l.b16 %v3166
        %v3257 = vunpack.c.l.b16 %v3167
        %v3258 = vunpack.c.h.b16 %v3167
        %v3259 = vunpack.c.l.b16 %v3168
        %v3260 = vunpack.c.l.b16 %v3169
        %v3261 = vunpack.c.h.b16 %v3169
        %v3262 = vunpack.c.l.b16 %v3170
        %v3263 = vunpack.c.l.b16 %v3171
        %v3264 = vunpack.c.h.b16 %v3171
        %v3265 = vunpack.c.l.b16 %v3172
        %v3266 = vunpack.c.l.b16 %v3173
        %v3267 = vunpack.c.h.b16 %v3173
        %v3268 = vunpack.c.l.b16 %v3174
        %v3269 = vunpack.c.l.b16 %v3175
        %v3270 = vunpack.c.h.b16 %v3175
        %v3271 = vunpack.c.l.b16 %v3176
        %v3272 = vunpack.c.l.b16 %v3177
        %v3273 = vunpack.c.h.b16 %v3177
        %v3274 = vunpack.c.l.b16 %v3178
        %v3275 = vunpack.c.l.b16 %v3179
        %v3276 = vunpack.c.h.b16 %v3179
        %v3277 = vunpack.c.l.b16 %v3180
        %v3278 = vunpack.c.l.b16 %v3181
        %v3279 = vunpack.c.h.b16 %v3181
        %v3280 = vunpack.c.l.b16 %v3182
        %v3281 = vpack.c.b16 %v3236, %v3233
        %v3282 = vpack.c.b16 %v3237, %v3234
        %v3283 = vpack.c.b16 %v3238, %v3235
        %v3284 = vpack.c.b16 %v3242, %v3239
        %v3285 = vpack.c.b16 %v3243, %v3240
        %v3286 = vpack.c.b16 %v3244, %v3241
        %v3287 = vpack.c.b16 %v3248, %v3245
        %v3288 = vpack.c.b16 %v3249, %v3246
        %v3289 = vpack.c.b16 %v3250, %v3247
        %v3290 = vpack.c.b16 %v3254, %v3251
        %v3291 = vpack.c.b16 %v3255, %v3252
        %v3292 = vpack.c.b16 %v3256, %v3253
        %v3293 = vpack.c.b16 %v3260, %v3257
        %v3294 = vpack.c.b16 %v3261, %v3258
        %v3295 = vpack.c.b16 %v3262, %v3259
        %v3296 = vpack.c.b16 %v3266, %v3263
        %v3297 = vpack.c.b16 %v3267, %v3264
        %v3298 = vpack.c.b16 %v3268, %v3265
        %v3299 = vpack.c.b16 %v3272, %v3269
        %v3300 = vpack.c.b16 %v3273, %v3270
        %v3301 = vpack.c.b16 %v3274, %v3271
        %v3302 = vpack.c.b16 %v3278, %v3275
        %v3303 = vpack.c.b16 %v3279, %v3276
        %v3304 = vpack.c.b16 %v3280, %v3277
        %3329 = vmatprep.subr.bf16.mxu0 %v3282
        %3330 = vmatpush1.bf16.msra.mxu0 %v3281
        %3331 = vmatprep.subr.bf16.mxu0 %v3285
        %3332 = vmatpush1.bf16.msra.mxu0 %v3284
        %3333 = vmatprep.subr.bf16.mxu0 %v3288
        %3334 = vmatpush1.bf16.msra.mxu0 %v3287
        %3335 = vmatprep.subr.bf16.mxu0 %v3291
        %3336 = vmatpush1.bf16.msra.mxu0 %v3290
        %3337 = vmatprep.subr.bf16.mxu0 %v3294
        %3338 = vmatpush1.bf16.msra.mxu0 %v3293
        %3339 = vmatprep.subr.bf16.mxu0 %v3297
        %3340 = vmatpush1.bf16.msra.mxu0 %v3296
        %3341 = vmatprep.subr.bf16.mxu0 %v3300
        %3342 = vmatpush1.bf16.msra.mxu0 %v3299
        %3343 = vmatprep.subr.bf16.mxu0 %v3303
        %3344 = vmatpush1.bf16.msra.mxu0 %v3302
        %3345 = vmatprep.subr.bf16.mxu0 0
        %3346 = vmatpush1.bf16.msra.mxu0 0
        %3347 = vmatprep.subr.bf16.mxu0 0
        %3348 = vmatpush1.bf16.msra.mxu0 0
        %3349 = vmatprep.subr.bf16.mxu0 0
        %3350 = vmatpush1.bf16.msra.mxu0 0
        %3351 = vmatprep.subr.bf16.mxu0 0
        %3352 = vmatpush1.bf16.msra.mxu0 0
        %3353 = vmatprep.subr.bf16.mxu0 0
        %3354 = vmatpush1.bf16.msra.mxu0 0
        %3355 = vmatprep.subr.bf16.mxu0 0
        %3356 = vmatpush1.bf16.msra.mxu0 0
        %3357 = vmatprep.subr.bf16.mxu0 0
        %3358 = vmatpush1.bf16.msra.mxu0 0
        %3359 = vmatprep.subr.bf16.mxu0 0
        %3360 = vmatpush1.bf16.msra.mxu0 0
        %3361 = vmatprep.mubr.bf16.mxu0 0
        %3362 = vmatmul.mubr.bf16.gmra.mrb[0].mxu0 %v3149
        %v3363 = vpop.f32.mrb[0].mxu0
        %v3364 = vadd.f32 %v3189, %v3363
        %v3365 = vpop.f32.mrb[0].mxu0
        %v3366 = vadd.f32 %v3193, %v3365
        %v3367 = vpop.f32.mrb[0].mxu0
        %v3368 = vadd.f32 %v3189, %v3367
        %v3369 = vpop.f32.mrb[0].mxu0
        %v3370 = vadd.f32 %v3193, %v3369
        %3371 = vdwg.mxu0
        %3372 = vmatprep.subr.bf16.mxu0 0
        %3373 = vmatpush1.bf16.msra.mxu0 %v3283
        %3374 = vmatprep.subr.bf16.mxu0 0
        %3375 = vmatpush1.bf16.msra.mxu0 %v3286
        %3376 = vmatprep.subr.bf16.mxu0 0
        %3377 = vmatpush1.bf16.msra.mxu0 %v3289
        %3378 = vmatprep.subr.bf16.mxu0 0
        %3379 = vmatpush1.bf16.msra.mxu0 %v3292
        %3380 = vmatprep.subr.bf16.mxu0 0
        %3381 = vmatpush1.bf16.msra.mxu0 %v3295
        %3382 = vmatprep.subr.bf16.mxu0 0
        %3383 = vmatpush1.bf16.msra.mxu0 %v3298
        %3384 = vmatprep.subr.bf16.mxu0 0
        %3385 = vmatpush1.bf16.msra.mxu0 %v3301
        %3386 = vmatprep.subr.bf16.mxu0 0
        %3387 = vmatpush1.bf16.msra.mxu0 %v3304
        %3388 = vmatprep.subr.bf16.mxu0 0
        %3389 = vmatpush1.bf16.msra.mxu0 0
        %3390 = vmatprep.subr.bf16.mxu0 0
        %3391 = vmatpush1.bf16.msra.mxu0 0
        %3392 = vmatprep.subr.bf16.mxu0 0
        %3393 = vmatpush1.bf16.msra.mxu0 0
        %3394 = vmatprep.subr.bf16.mxu0 0
        %3395 = vmatpush1.bf16.msra.mxu0 0
        %3396 = vmatprep.subr.bf16.mxu0 0
        %3397 = vmatpush1.bf16.msra.mxu0 0
        %3398 = vmatprep.subr.bf16.mxu0 0
        %3399 = vmatpush1.bf16.msra.mxu0 0
        %3400 = vmatprep.subr.bf16.mxu0 0
        %3401 = vmatpush1.bf16.msra.mxu0 0
        %3402 = vmatprep.subr.bf16.mxu0 0
        %3403 = vmatpush1.bf16.msra.mxu0 0
        %3404 = vmatprep.mubr.bf16.mxu0 0
        %3405 = vmatmul.mubr.bf16.gmra.mrb[0].mxu0 %v3149
        %v3406 = vpop.f32.mrb[0].mxu0
        %v3407 = vadd.f32 %v3197, %v3406
        %v3408 = vpop.f32.mrb[0].mxu0
        %v3409 = vpop.f32.mrb[0].mxu0
        %v3410 = vadd.f32 %v3197, %v3409
        %v3411 = vpop.f32.mrb[0].mxu0
        %3412 = vdwg.mxu0
        %v3413 = vpack.c.bf16 %v3368, %v3364
        %v3414 = vpack.c.bf16 %v3370, %v3366
        %v3415 = vpack.c.bf16 %v3410, %v3407
        %v3417 = vsel %vm791, %v3413, 0
        %v3420 = vsel %vm791, %v3414, 0
        %3422 = vmatprep.subr.bf16.mxu0 0
        %3423 = vmatpush1.bf16.xpose.msra.mxu0 %v3420
        %3424 = vmatprep.subr.bf16.mxu0 0
        %3425 = vmatpush1.bf16.xpose.msra.mxu0 0
        %3426 = vmatprep.subr.bf16.mxu0 0
        %3427 = vmatpush1.bf16.xpose.msra.mxu0 0
        %3428 = vmatprep.subr.bf16.mxu0 0
        %3429 = vmatpush1.bf16.xpose.msra.mxu0 0
        %3430 = vmatprep.subr.bf16.mxu0 0
        %3431 = vmatpush1.bf16.xpose.msra.mxu0 0
        %3432 = vmatprep.subr.bf16.mxu0 0
        %3433 = vmatpush1.bf16.xpose.msra.mxu0 0
        %3434 = vmatprep.subr.bf16.mxu0 0
        %3435 = vmatpush1.bf16.xpose.msra.mxu0 0
        %3436 = vmatprep.subr.bf16.mxu0 0
        %3437 = vmatpush1.bf16.xpose.msra.mxu0 0
        %3438 = vmatprep.subr.bf16.mxu0 0
        %3439 = vmatpush1.bf16.xpose.msra.mxu0 0
        %3440 = vmatprep.subr.bf16.mxu0 0
        %3441 = vmatpush1.bf16.xpose.msra.mxu0 0
        %3442 = vmatprep.subr.bf16.mxu0 0
        %3443 = vmatpush1.bf16.xpose.msra.mxu0 0
        %3444 = vmatprep.subr.bf16.mxu0 0
        %3445 = vmatpush1.bf16.xpose.msra.mxu0 0
        %3446 = vmatprep.subr.bf16.mxu0 0
        %3447 = vmatpush1.bf16.xpose.msra.mxu0 0
        %3448 = vmatprep.subr.bf16.mxu0 0
        %3449 = vmatpush1.bf16.xpose.msra.mxu0 0
        %3450 = vmatprep.subr.bf16.mxu0 0
        %3451 = vmatpush1.bf16.xpose.msra.mxu0 0
        %3452 = vmatprep.subr.bf16.mxu0 0
        %3453 = vmatpush1.bf16.xpose.msra.mxu0 0
        %3454 = vmatprep.mubr.bf16.mxu0 0
        %3455 = vmatmul.mubr.bf16.gmra.mrb[0].mxu0 %v3417
        %v3456 = vpop.f32.mrb[0].mxu0
        %v3457 = vadd.f32 0.0, %v3456
        %v3458 = vpop.f32.mrb[0].mxu0
        %v3459 = vpop.f32.mrb[0].mxu0
        %v3460 = vadd.f32 0.0, %v3459
        %v3461 = vpop.f32.mrb[0].mxu0
        %3462 = vdwg.mxu0
        %v3463 = vsel %vm839, %v3457, -inf
        %3464 = vmax.xlane.f32.xlu0 %v3463
        %v3465 = vpop.xlane.xlu0 %3464
        %v3466 = vsel %vm839, %v3460, -inf
        %3467 = vmax.xlane.f32.xlu0 %v3466
        %v3468 = vpop.xlane.xlu0 %3467
        %v3469 = vsub.f32 %v3457, %v3465
        %v3470 = vsub.f32 %v3460, %v3468
        %v3471 = vmul.f32 %v3469, 1.442695
        %v3472 = vpow.pop %v3471
        %v3473 = vmul.f32 %v3470, 1.442695
        %v3474 = vpow.pop %v3473
        %v3475 = vsel %vm839, %v3472, 0.0
        %3476 = vadd.xlane.f32.xlu0 %v3475
        %v3477 = vpop.xlane.xlu0 %3476
        %v3478 = vsel %vm839, %v3474, 0.0
        %3479 = vadd.xlane.f32.xlu0 %v3478
        %v3480 = vpop.xlane.xlu0 %3479
        %v3481 = vrcp.pop %v3477
        %v3482 = vrcp.pop %v3480
        %v3483 = vmul.f32 %v3472, %v3481
        %v3484 = vmul.f32 %v3474, %v3482
        %v3485 = vpack.c.bf16 %v3484, %v3483
        %v3487 = vsel %vm839, %v3485, 0
        %3489 = vmatprep.subr.bf16.mxu0 0
        %3490 = vmatpush1.bf16.msra.mxu0 %v3415
        %3491 = vmatprep.subr.bf16.mxu0 0
        %3492 = vmatpush1.bf16.msra.mxu0 0
        %3493 = vmatprep.subr.bf16.mxu0 0
        %3494 = vmatpush1.bf16.msra.mxu0 0
        %3495 = vmatprep.subr.bf16.mxu0 0
        %3496 = vmatpush1.bf16.msra.mxu0 0
        %3497 = vmatprep.subr.bf16.mxu0 0
        %3498 = vmatpush1.bf16.msra.mxu0 0
        %3499 = vmatprep.subr.bf16.mxu0 0
        %3500 = vmatpush1.bf16.msra.mxu0 0
        %3501 = vmatprep.subr.bf16.mxu0 0
        %3502 = vmatpush1.bf16.msra.mxu0 0
        %3503 = vmatprep.subr.bf16.mxu0 0
        %3504 = vmatpush1.bf16.msra.mxu0 0
        %3505 = vmatprep.subr.bf16.mxu0 0
        %3506 = vmatpush1.bf16.msra.mxu0 0
        %3507 = vmatprep.subr.bf16.mxu0 0
        %3508 = vmatpush1.bf16.msra.mxu0 0
        %3509 = vmatprep.subr.bf16.mxu0 0
        %3510 = vmatpush1.bf16.msra.mxu0 0
        %3511 = vmatprep.subr.bf16.mxu0 0
        %3512 = vmatpush1.bf16.msra.mxu0 0
        %3513 = vmatprep.subr.bf16.mxu0 0
        %3514 = vmatpush1.bf16.msra.mxu0 0
        %3515 = vmatprep.subr.bf16.mxu0 0
        %3516 = vmatpush1.bf16.msra.mxu0 0
        %3517 = vmatprep.subr.bf16.mxu0 0
        %3518 = vmatpush1.bf16.msra.mxu0 0
        %3519 = vmatprep.subr.bf16.mxu0 0
        %3520 = vmatpush1.bf16.msra.mxu0 0
        %3521 = vmatprep.mubr.bf16.mxu0 0
        %3522 = vmatmul.mubr.bf16.gmra.mrb[0].mxu0 %v3487
        %v3523 = vpop.f32.mrb[0].mxu0
        %v3524 = vadd.f32 0.0, %v3523
        %v3525 = vpop.f32.mrb[0].mxu0
        %v3526 = vpop.f32.mrb[0].mxu0
        %v3527 = vadd.f32 0.0, %v3526
        %v3528 = vpop.f32.mrb[0].mxu0
        %3529 = vdwg.mxu0
        %3531 = vrot.lane.b32.xlu0 %v3413, 120
        %v3532 = vpop.permute.xlu0 %3531
        %3534 = vrot.lane.b32.xlu0 %v3414, 120
        %v3535 = vpop.permute.xlu0 %3534
        %v3537 = vsel %vm791, %v3532, 0
        %v3540 = vsel %vm791, %v3535, 0
        %3542 = vmatprep.subr.bf16.mxu0 0
        %3543 = vmatpush1.bf16.xpose.msra.mxu0 %v3540
        %3544 = vmatprep.subr.bf16.mxu0 0
        %3545 = vmatpush1.bf16.xpose.msra.mxu0 0
        %3546 = vmatprep.subr.bf16.mxu0 0
        %3547 = vmatpush1.bf16.xpose.msra.mxu0 0
        %3548 = vmatprep.subr.bf16.mxu0 0
        %3549 = vmatpush1.bf16.xpose.msra.mxu0 0
        %3550 = vmatprep.subr.bf16.mxu0 0
        %3551 = vmatpush1.bf16.xpose.msra.mxu0 0
        %3552 = vmatprep.subr.bf16.mxu0 0
        %3553 = vmatpush1.bf16.xpose.msra.mxu0 0
        %3554 = vmatprep.subr.bf16.mxu0 0
        %3555 = vmatpush1.bf16.xpose.msra.mxu0 0
        %3556 = vmatprep.subr.bf16.mxu0 0
        %3557 = vmatpush1.bf16.xpose.msra.mxu0 0
        %3558 = vmatprep.subr.bf16.mxu0 0
        %3559 = vmatpush1.bf16.xpose.msra.mxu0 0
        %3560 = vmatprep.subr.bf16.mxu0 0
        %3561 = vmatpush1.bf16.xpose.msra.mxu0 0
        %3562 = vmatprep.subr.bf16.mxu0 0
        %3563 = vmatpush1.bf16.xpose.msra.mxu0 0
        %3564 = vmatprep.subr.bf16.mxu0 0
        %3565 = vmatpush1.bf16.xpose.msra.mxu0 0
        %3566 = vmatprep.subr.bf16.mxu0 0
        %3567 = vmatpush1.bf16.xpose.msra.mxu0 0
        %3568 = vmatprep.subr.bf16.mxu0 0
        %3569 = vmatpush1.bf16.xpose.msra.mxu0 0
        %3570 = vmatprep.subr.bf16.mxu0 0
        %3571 = vmatpush1.bf16.xpose.msra.mxu0 0
        %3572 = vmatprep.subr.bf16.mxu0 0
        %3573 = vmatpush1.bf16.xpose.msra.mxu0 0
        %3574 = vmatprep.mubr.bf16.mxu0 0
        %3575 = vmatmul.mubr.bf16.gmra.mrb[0].mxu0 %v3537
        %v3576 = vpop.f32.mrb[0].mxu0
        %v3577 = vadd.f32 0.0, %v3576
        %v3578 = vpop.f32.mrb[0].mxu0
        %v3579 = vpop.f32.mrb[0].mxu0
        %v3580 = vadd.f32 0.0, %v3579
        %v3581 = vpop.f32.mrb[0].mxu0
        %3582 = vdwg.mxu0
        %v3583 = vsel %vm839, %v3577, -inf
        %3584 = vmax.xlane.f32.xlu0 %v3583
        %v3585 = vpop.xlane.xlu0 %3584
        %v3586 = vsel %vm839, %v3580, -inf
        %3587 = vmax.xlane.f32.xlu0 %v3586
        %v3588 = vpop.xlane.xlu0 %3587
        %v3589 = vsub.f32 %v3577, %v3585
        %v3590 = vsub.f32 %v3580, %v3588
        %v3591 = vmul.f32 %v3589, 1.442695
        %v3592 = vpow.pop %v3591
        %v3593 = vmul.f32 %v3590, 1.442695
        %v3594 = vpow.pop %v3593
        %v3595 = vsel %vm839, %v3592, 0.0
        %3596 = vadd.xlane.f32.xlu0 %v3595
        %v3597 = vpop.xlane.xlu0 %3596
        %v3598 = vsel %vm839, %v3594, 0.0
        %3599 = vadd.xlane.f32.xlu0 %v3598
        %v3600 = vpop.xlane.xlu0 %3599
        %v3601 = vrcp.pop %v3597
        %v3602 = vrcp.pop %v3600
        %v3603 = vmul.f32 %v3592, %v3601
        %v3604 = vmul.f32 %v3594, %v3602
        %v3605 = vpack.c.bf16 %v3604, %v3603
        %3607 = vrot.lane.b32.xlu0 %v3415, 120
        %v3608 = vpop.permute.xlu0 %3607
        %v3611 = vsel %vm839, %v3605, 0
        %3613 = vmatprep.subr.bf16.mxu0 0
        %3614 = vmatpush1.bf16.msra.mxu0 %v3608
        %3615 = vmatprep.subr.bf16.mxu0 0
        %3616 = vmatpush1.bf16.msra.mxu0 0
        %3617 = vmatprep.subr.bf16.mxu0 0
        %3618 = vmatpush1.bf16.msra.mxu0 0
        %3619 = vmatprep.subr.bf16.mxu0 0
        %3620 = vmatpush1.bf16.msra.mxu0 0
        %3621 = vmatprep.subr.bf16.mxu0 0
        %3622 = vmatpush1.bf16.msra.mxu0 0
        %3623 = vmatprep.subr.bf16.mxu0 0
        %3624 = vmatpush1.bf16.msra.mxu0 0
        %3625 = vmatprep.subr.bf16.mxu0 0
        %3626 = vmatpush1.bf16.msra.mxu0 0
        %3627 = vmatprep.subr.bf16.mxu0 0
        %3628 = vmatpush1.bf16.msra.mxu0 0
        %3629 = vmatprep.subr.bf16.mxu0 0
        %3630 = vmatpush1.bf16.msra.mxu0 0
        %3631 = vmatprep.subr.bf16.mxu0 0
        %3632 = vmatpush1.bf16.msra.mxu0 0
        %3633 = vmatprep.subr.bf16.mxu0 0
        %3634 = vmatpush1.bf16.msra.mxu0 0
        %3635 = vmatprep.subr.bf16.mxu0 0
        %3636 = vmatpush1.bf16.msra.mxu0 0
        %3637 = vmatprep.subr.bf16.mxu0 0
        %3638 = vmatpush1.bf16.msra.mxu0 0
        %3639 = vmatprep.subr.bf16.mxu0 0
        %3640 = vmatpush1.bf16.msra.mxu0 0
        %3641 = vmatprep.subr.bf16.mxu0 0
        %3642 = vmatpush1.bf16.msra.mxu0 0
        %3643 = vmatprep.subr.bf16.mxu0 0
        %3644 = vmatpush1.bf16.msra.mxu0 0
        %3645 = vmatprep.mubr.bf16.mxu0 0
        %3646 = vmatmul.mubr.bf16.gmra.mrb[0].mxu0 %v3611
        %v3647 = vpop.f32.mrb[0].mxu0
        %v3648 = vadd.f32 0.0, %v3647
        %v3649 = vpop.f32.mrb[0].mxu0
        %v3650 = vpop.f32.mrb[0].mxu0
        %v3651 = vadd.f32 0.0, %v3650
        %v3652 = vpop.f32.mrb[0].mxu0
        %3653 = vdwg.mxu0
        %3654 = vrot.lane.b32.xlu0 %v3413, 112
        %v3655 = vpop.permute.xlu0 %3654
        %3656 = vrot.lane.b32.xlu0 %v3414, 112
        %v3657 = vpop.permute.xlu0 %3656
        %v3659 = vsel %vm791, %v3655, 0
        %v3662 = vsel %vm791, %v3657, 0
        %3664 = vmatprep.subr.bf16.mxu0 0
        %3665 = vmatpush1.bf16.xpose.msra.mxu0 %v3662
        %3666 = vmatprep.subr.bf16.mxu0 0
        %3667 = vmatpush1.bf16.xpose.msra.mxu0 0
        %3668 = vmatprep.subr.bf16.mxu0 0
        %3669 = vmatpush1.bf16.xpose.msra.mxu0 0
        %3670 = vmatprep.subr.bf16.mxu0 0
        %3671 = vmatpush1.bf16.xpose.msra.mxu0 0
        %3672 = vmatprep.subr.bf16.mxu0 0
        %3673 = vmatpush1.bf16.xpose.msra.mxu0 0
        %3674 = vmatprep.subr.bf16.mxu0 0
        %3675 = vmatpush1.bf16.xpose.msra.mxu0 0
        %3676 = vmatprep.subr.bf16.mxu0 0
        %3677 = vmatpush1.bf16.xpose.msra.mxu0 0
        %3678 = vmatprep.subr.bf16.mxu0 0
        %3679 = vmatpush1.bf16.xpose.msra.mxu0 0
        %3680 = vmatprep.subr.bf16.mxu0 0
        %3681 = vmatpush1.bf16.xpose.msra.mxu0 0
        %3682 = vmatprep.subr.bf16.mxu0 0
        %3683 = vmatpush1.bf16.xpose.msra.mxu0 0
        %3684 = vmatprep.subr.bf16.mxu0 0
        %3685 = vmatpush1.bf16.xpose.msra.mxu0 0
        %3686 = vmatprep.subr.bf16.mxu0 0
        %3687 = vmatpush1.bf16.xpose.msra.mxu0 0
        %3688 = vmatprep.subr.bf16.mxu0 0
        %3689 = vmatpush1.bf16.xpose.msra.mxu0 0
        %3690 = vmatprep.subr.bf16.mxu0 0
        %3691 = vmatpush1.bf16.xpose.msra.mxu0 0
        %3692 = vmatprep.subr.bf16.mxu0 0
        %3693 = vmatpush1.bf16.xpose.msra.mxu0 0
        %3694 = vmatprep.subr.bf16.mxu0 0
        %3695 = vmatpush1.bf16.xpose.msra.mxu0 0
        %3696 = vmatprep.mubr.bf16.mxu0 0
        %3697 = vmatmul.mubr.bf16.gmra.mrb[0].mxu0 %v3659
        %v3698 = vpop.f32.mrb[0].mxu0
        %v3699 = vadd.f32 0.0, %v3698
        %v3700 = vpop.f32.mrb[0].mxu0
        %v3701 = vpop.f32.mrb[0].mxu0
        %v3702 = vadd.f32 0.0, %v3701
        %v3703 = vpop.f32.mrb[0].mxu0
        %3704 = vdwg.mxu0
        %v3705 = vsel %vm839, %v3699, -inf
        %3706 = vmax.xlane.f32.xlu0 %v3705
        %v3707 = vpop.xlane.xlu0 %3706
        %v3708 = vsel %vm839, %v3702, -inf
        %3709 = vmax.xlane.f32.xlu0 %v3708
        %v3710 = vpop.xlane.xlu0 %3709
        %v3711 = vsub.f32 %v3699, %v3707
        %v3712 = vsub.f32 %v3702, %v3710
        %v3713 = vmul.f32 %v3711, 1.442695
        %v3714 = vpow.pop %v3713
        %v3715 = vmul.f32 %v3712, 1.442695
        %v3716 = vpow.pop %v3715
        %v3717 = vsel %vm839, %v3714, 0.0
        %3718 = vadd.xlane.f32.xlu0 %v3717
        %v3719 = vpop.xlane.xlu0 %3718
        %v3720 = vsel %vm839, %v3716, 0.0
        %3721 = vadd.xlane.f32.xlu0 %v3720
        %v3722 = vpop.xlane.xlu0 %3721
        %v3723 = vrcp.pop %v3719
        %v3724 = vrcp.pop %v3722
        %v3725 = vmul.f32 %v3714, %v3723
        %v3726 = vmul.f32 %v3716, %v3724
        %v3727 = vpack.c.bf16 %v3726, %v3725
        %3728 = vrot.lane.b32.xlu0 %v3415, 112
        %v3729 = vpop.permute.xlu0 %3728
        %v3732 = vsel %vm839, %v3727, 0
        %3734 = vmatprep.subr.bf16.mxu0 0
        %3735 = vmatpush1.bf16.msra.mxu0 %v3729
        %3736 = vmatprep.subr.bf16.mxu0 0
        %3737 = vmatpush1.bf16.msra.mxu0 0
        %3738 = vmatprep.subr.bf16.mxu0 0
        %3739 = vmatpush1.bf16.msra.mxu0 0
        %3740 = vmatprep.subr.bf16.mxu0 0
        %3741 = vmatpush1.bf16.msra.mxu0 0
        %3742 = vmatprep.subr.bf16.mxu0 0
        %3743 = vmatpush1.bf16.msra.mxu0 0
        %3744 = vmatprep.subr.bf16.mxu0 0
        %3745 = vmatpush1.bf16.msra.mxu0 0
        %3746 = vmatprep.subr.bf16.mxu0 0
        %3747 = vmatpush1.bf16.msra.mxu0 0
        %3748 = vmatprep.subr.bf16.mxu0 0
        %3749 = vmatpush1.bf16.msra.mxu0 0
        %3750 = vmatprep.subr.bf16.mxu0 0
        %3751 = vmatpush1.bf16.msra.mxu0 0
        %3752 = vmatprep.subr.bf16.mxu0 0
        %3753 = vmatpush1.bf16.msra.mxu0 0
        %3754 = vmatprep.subr.bf16.mxu0 0
        %3755 = vmatpush1.bf16.msra.mxu0 0
        %3756 = vmatprep.subr.bf16.mxu0 0
        %3757 = vmatpush1.bf16.msra.mxu0 0
        %3758 = vmatprep.subr.bf16.mxu0 0
        %3759 = vmatpush1.bf16.msra.mxu0 0
        %3760 = vmatprep.subr.bf16.mxu0 0
        %3761 = vmatpush1.bf16.msra.mxu0 0
        %3762 = vmatprep.subr.bf16.mxu0 0
        %3763 = vmatpush1.bf16.msra.mxu0 0
        %3764 = vmatprep.subr.bf16.mxu0 0
        %3765 = vmatpush1.bf16.msra.mxu0 0
        %3766 = vmatprep.mubr.bf16.mxu0 0
        %3767 = vmatmul.mubr.bf16.gmra.mrb[0].mxu0 %v3732
        %v3768 = vpop.f32.mrb[0].mxu0
        %v3769 = vadd.f32 0.0, %v3768
        %v3770 = vpop.f32.mrb[0].mxu0
        %v3771 = vpop.f32.mrb[0].mxu0
        %v3772 = vadd.f32 0.0, %v3771
        %v3773 = vpop.f32.mrb[0].mxu0
        %3774 = vdwg.mxu0
        %3775 = vrot.lane.b32.xlu0 %v3413, 104
        %v3776 = vpop.permute.xlu0 %3775
        %3777 = vrot.lane.b32.xlu0 %v3414, 104
        %v3778 = vpop.permute.xlu0 %3777
        %v3780 = vsel %vm791, %v3776, 0
        %v3783 = vsel %vm791, %v3778, 0
        %3785 = vmatprep.subr.bf16.mxu0 0
        %3786 = vmatpush1.bf16.xpose.msra.mxu0 %v3783
        %3787 = vmatprep.subr.bf16.mxu0 0
        %3788 = vmatpush1.bf16.xpose.msra.mxu0 0
        %3789 = vmatprep.subr.bf16.mxu0 0
        %3790 = vmatpush1.bf16.xpose.msra.mxu0 0
        %3791 = vmatprep.subr.bf16.mxu0 0
        %3792 = vmatpush1.bf16.xpose.msra.mxu0 0
        %3793 = vmatprep.subr.bf16.mxu0 0
        %3794 = vmatpush1.bf16.xpose.msra.mxu0 0
        %3795 = vmatprep.subr.bf16.mxu0 0
        %3796 = vmatpush1.bf16.xpose.msra.mxu0 0
        %3797 = vmatprep.subr.bf16.mxu0 0
        %3798 = vmatpush1.bf16.xpose.msra.mxu0 0
        %3799 = vmatprep.subr.bf16.mxu0 0
        %3800 = vmatpush1.bf16.xpose.msra.mxu0 0
        %3801 = vmatprep.subr.bf16.mxu0 0
        %3802 = vmatpush1.bf16.xpose.msra.mxu0 0
        %3803 = vmatprep.subr.bf16.mxu0 0
        %3804 = vmatpush1.bf16.xpose.msra.mxu0 0
        %3805 = vmatprep.subr.bf16.mxu0 0
        %3806 = vmatpush1.bf16.xpose.msra.mxu0 0
        %3807 = vmatprep.subr.bf16.mxu0 0
        %3808 = vmatpush1.bf16.xpose.msra.mxu0 0
        %3809 = vmatprep.subr.bf16.mxu0 0
        %3810 = vmatpush1.bf16.xpose.msra.mxu0 0
        %3811 = vmatprep.subr.bf16.mxu0 0
        %3812 = vmatpush1.bf16.xpose.msra.mxu0 0
        %3813 = vmatprep.subr.bf16.mxu0 0
        %3814 = vmatpush1.bf16.xpose.msra.mxu0 0
        %3815 = vmatprep.subr.bf16.mxu0 0
        %3816 = vmatpush1.bf16.xpose.msra.mxu0 0
        %3817 = vmatprep.mubr.bf16.mxu0 0
        %3818 = vmatmul.mubr.bf16.gmra.mrb[0].mxu0 %v3780
        %v3819 = vpop.f32.mrb[0].mxu0
        %v3820 = vadd.f32 0.0, %v3819
        %v3821 = vpop.f32.mrb[0].mxu0
        %v3822 = vpop.f32.mrb[0].mxu0
        %v3823 = vadd.f32 0.0, %v3822
        %v3824 = vpop.f32.mrb[0].mxu0
        %3825 = vdwg.mxu0
        %v3826 = vsel %vm839, %v3820, -inf
        %3827 = vmax.xlane.f32.xlu0 %v3826
        %v3828 = vpop.xlane.xlu0 %3827
        %v3829 = vsel %vm839, %v3823, -inf
        %3830 = vmax.xlane.f32.xlu0 %v3829
        %v3831 = vpop.xlane.xlu0 %3830
        %v3832 = vsub.f32 %v3820, %v3828
        %v3833 = vsub.f32 %v3823, %v3831
        %v3834 = vmul.f32 %v3832, 1.442695
        %v3835 = vpow.pop %v3834
        %v3836 = vmul.f32 %v3833, 1.442695
        %v3837 = vpow.pop %v3836
        %v3838 = vsel %vm839, %v3835, 0.0
        %3839 = vadd.xlane.f32.xlu0 %v3838
        %v3840 = vpop.xlane.xlu0 %3839
        %v3841 = vsel %vm839, %v3837, 0.0
        %3842 = vadd.xlane.f32.xlu0 %v3841
        %v3843 = vpop.xlane.xlu0 %3842
        %v3844 = vrcp.pop %v3840
        %v3845 = vrcp.pop %v3843
        %v3846 = vmul.f32 %v3835, %v3844
        %v3847 = vmul.f32 %v3837, %v3845
        %v3848 = vpack.c.bf16 %v3847, %v3846
        %3849 = vrot.lane.b32.xlu0 %v3415, 104
        %v3850 = vpop.permute.xlu0 %3849
        %v3853 = vsel %vm839, %v3848, 0
        %3855 = vmatprep.subr.bf16.mxu0 0
        %3856 = vmatpush1.bf16.msra.mxu0 %v3850
        %3857 = vmatprep.subr.bf16.mxu0 0
        %3858 = vmatpush1.bf16.msra.mxu0 0
        %3859 = vmatprep.subr.bf16.mxu0 0
        %3860 = vmatpush1.bf16.msra.mxu0 0
        %3861 = vmatprep.subr.bf16.mxu0 0
        %3862 = vmatpush1.bf16.msra.mxu0 0
        %3863 = vmatprep.subr.bf16.mxu0 0
        %3864 = vmatpush1.bf16.msra.mxu0 0
        %3865 = vmatprep.subr.bf16.mxu0 0
        %3866 = vmatpush1.bf16.msra.mxu0 0
        %3867 = vmatprep.subr.bf16.mxu0 0
        %3868 = vmatpush1.bf16.msra.mxu0 0
        %3869 = vmatprep.subr.bf16.mxu0 0
        %3870 = vmatpush1.bf16.msra.mxu0 0
        %3871 = vmatprep.subr.bf16.mxu0 0
        %3872 = vmatpush1.bf16.msra.mxu0 0
        %3873 = vmatprep.subr.bf16.mxu0 0
        %3874 = vmatpush1.bf16.msra.mxu0 0
        %3875 = vmatprep.subr.bf16.mxu0 0
        %3876 = vmatpush1.bf16.msra.mxu0 0
        %3877 = vmatprep.subr.bf16.mxu0 0
        %3878 = vmatpush1.bf16.msra.mxu0 0
        %3879 = vmatprep.subr.bf16.mxu0 0
        %3880 = vmatpush1.bf16.msra.mxu0 0
        %3881 = vmatprep.subr.bf16.mxu0 0
        %3882 = vmatpush1.bf16.msra.mxu0 0
        %3883 = vmatprep.subr.bf16.mxu0 0
        %3884 = vmatpush1.bf16.msra.mxu0 0
        %3885 = vmatprep.subr.bf16.mxu0 0
        %3886 = vmatpush1.bf16.msra.mxu0 0
        %3887 = vmatprep.mubr.bf16.mxu0 0
        %3888 = vmatmul.mubr.bf16.gmra.mrb[0].mxu0 %v3853
        %v3889 = vpop.f32.mrb[0].mxu0
        %v3890 = vadd.f32 0.0, %v3889
        %v3891 = vpop.f32.mrb[0].mxu0
        %v3892 = vpop.f32.mrb[0].mxu0
        %v3893 = vadd.f32 0.0, %v3892
        %v3894 = vpop.f32.mrb[0].mxu0
        %3895 = vdwg.mxu0
        %3896 = vrot.lane.b32.xlu0 %v3413, 96
        %v3897 = vpop.permute.xlu0 %3896
        %3898 = vrot.lane.b32.xlu0 %v3414, 96
        %v3899 = vpop.permute.xlu0 %3898
        %v3901 = vsel %vm791, %v3897, 0
        %v3904 = vsel %vm791, %v3899, 0
        %3906 = vmatprep.subr.bf16.mxu0 0
        %3907 = vmatpush1.bf16.xpose.msra.mxu0 %v3904
        %3908 = vmatprep.subr.bf16.mxu0 0
        %3909 = vmatpush1.bf16.xpose.msra.mxu0 0
        %3910 = vmatprep.subr.bf16.mxu0 0
        %3911 = vmatpush1.bf16.xpose.msra.mxu0 0
        %3912 = vmatprep.subr.bf16.mxu0 0
        %3913 = vmatpush1.bf16.xpose.msra.mxu0 0
        %3914 = vmatprep.subr.bf16.mxu0 0
        %3915 = vmatpush1.bf16.xpose.msra.mxu0 0
        %3916 = vmatprep.subr.bf16.mxu0 0
        %3917 = vmatpush1.bf16.xpose.msra.mxu0 0
        %3918 = vmatprep.subr.bf16.mxu0 0
        %3919 = vmatpush1.bf16.xpose.msra.mxu0 0
        %3920 = vmatprep.subr.bf16.mxu0 0
        %3921 = vmatpush1.bf16.xpose.msra.mxu0 0
        %3922 = vmatprep.subr.bf16.mxu0 0
        %3923 = vmatpush1.bf16.xpose.msra.mxu0 0
        %3924 = vmatprep.subr.bf16.mxu0 0
        %3925 = vmatpush1.bf16.xpose.msra.mxu0 0
        %3926 = vmatprep.subr.bf16.mxu0 0
        %3927 = vmatpush1.bf16.xpose.msra.mxu0 0
        %3928 = vmatprep.subr.bf16.mxu0 0
        %3929 = vmatpush1.bf16.xpose.msra.mxu0 0
        %3930 = vmatprep.subr.bf16.mxu0 0
        %3931 = vmatpush1.bf16.xpose.msra.mxu0 0
        %3932 = vmatprep.subr.bf16.mxu0 0
        %3933 = vmatpush1.bf16.xpose.msra.mxu0 0
        %3934 = vmatprep.subr.bf16.mxu0 0
        %3935 = vmatpush1.bf16.xpose.msra.mxu0 0
        %3936 = vmatprep.subr.bf16.mxu0 0
        %3937 = vmatpush1.bf16.xpose.msra.mxu0 0
        %3938 = vmatprep.mubr.bf16.mxu0 0
        %3939 = vmatmul.mubr.bf16.gmra.mrb[0].mxu0 %v3901
        %v3940 = vpop.f32.mrb[0].mxu0
        %v3941 = vadd.f32 0.0, %v3940
        %v3942 = vpop.f32.mrb[0].mxu0
        %v3943 = vpop.f32.mrb[0].mxu0
        %v3944 = vadd.f32 0.0, %v3943
        %v3945 = vpop.f32.mrb[0].mxu0
        %3946 = vdwg.mxu0
        %v3947 = vsel %vm839, %v3941, -inf
        %3948 = vmax.xlane.f32.xlu0 %v3947
        %v3949 = vpop.xlane.xlu0 %3948
        %v3950 = vsel %vm839, %v3944, -inf
        %3951 = vmax.xlane.f32.xlu0 %v3950
        %v3952 = vpop.xlane.xlu0 %3951
        %v3953 = vsub.f32 %v3941, %v3949
        %v3954 = vsub.f32 %v3944, %v3952
        %v3955 = vmul.f32 %v3953, 1.442695
        %v3956 = vpow.pop %v3955
        %v3957 = vmul.f32 %v3954, 1.442695
        %v3958 = vpow.pop %v3957
        %v3959 = vsel %vm839, %v3956, 0.0
        %3960 = vadd.xlane.f32.xlu0 %v3959
        %v3961 = vpop.xlane.xlu0 %3960
        %v3962 = vsel %vm839, %v3958, 0.0
        %3963 = vadd.xlane.f32.xlu0 %v3962
        %v3964 = vpop.xlane.xlu0 %3963
        %v3965 = vrcp.pop %v3961
        %v3966 = vrcp.pop %v3964
        %v3967 = vmul.f32 %v3956, %v3965
        %v3968 = vmul.f32 %v3958, %v3966
        %v3969 = vpack.c.bf16 %v3968, %v3967
        %3970 = vrot.lane.b32.xlu0 %v3415, 96
        %v3971 = vpop.permute.xlu0 %3970
        %v3974 = vsel %vm839, %v3969, 0
        %3976 = vmatprep.subr.bf16.mxu0 0
        %3977 = vmatpush1.bf16.msra.mxu0 %v3971
        %3978 = vmatprep.subr.bf16.mxu0 0
        %3979 = vmatpush1.bf16.msra.mxu0 0
        %3980 = vmatprep.subr.bf16.mxu0 0
        %3981 = vmatpush1.bf16.msra.mxu0 0
        %3982 = vmatprep.subr.bf16.mxu0 0
        %3983 = vmatpush1.bf16.msra.mxu0 0
        %3984 = vmatprep.subr.bf16.mxu0 0
        %3985 = vmatpush1.bf16.msra.mxu0 0
        %3986 = vmatprep.subr.bf16.mxu0 0
        %3987 = vmatpush1.bf16.msra.mxu0 0
        %3988 = vmatprep.subr.bf16.mxu0 0
        %3989 = vmatpush1.bf16.msra.mxu0 0
        %3990 = vmatprep.subr.bf16.mxu0 0
        %3991 = vmatpush1.bf16.msra.mxu0 0
        %3992 = vmatprep.subr.bf16.mxu0 0
        %3993 = vmatpush1.bf16.msra.mxu0 0
        %3994 = vmatprep.subr.bf16.mxu0 0
        %3995 = vmatpush1.bf16.msra.mxu0 0
        %3996 = vmatprep.subr.bf16.mxu0 0
        %3997 = vmatpush1.bf16.msra.mxu0 0
        %3998 = vmatprep.subr.bf16.mxu0 0
        %3999 = vmatpush1.bf16.msra.mxu0 0
        %4000 = vmatprep.subr.bf16.mxu0 0
        %4001 = vmatpush1.bf16.msra.mxu0 0
        %4002 = vmatprep.subr.bf16.mxu0 0
        %4003 = vmatpush1.bf16.msra.mxu0 0
        %4004 = vmatprep.subr.bf16.mxu0 0
        %4005 = vmatpush1.bf16.msra.mxu0 0
        %4006 = vmatprep.subr.bf16.mxu0 0
        %4007 = vmatpush1.bf16.msra.mxu0 0
        %4008 = vmatprep.mubr.bf16.mxu0 0
        %4009 = vmatmul.mubr.bf16.gmra.mrb[0].mxu0 %v3974
        %v4010 = vpop.f32.mrb[0].mxu0
        %v4011 = vadd.f32 0.0, %v4010
        %v4012 = vpop.f32.mrb[0].mxu0
        %v4013 = vpop.f32.mrb[0].mxu0
        %v4014 = vadd.f32 0.0, %v4013
        %v4015 = vpop.f32.mrb[0].mxu0
        %4016 = vdwg.mxu0
        %4017 = vrot.lane.b32.xlu0 %v3413, 88
        %v4018 = vpop.permute.xlu0 %4017
        %4019 = vrot.lane.b32.xlu0 %v3414, 88
        %v4020 = vpop.permute.xlu0 %4019
        %v4022 = vsel %vm791, %v4018, 0
        %v4025 = vsel %vm791, %v4020, 0
        %4027 = vmatprep.subr.bf16.mxu0 0
        %4028 = vmatpush1.bf16.xpose.msra.mxu0 %v4025
        %4029 = vmatprep.subr.bf16.mxu0 0
        %4030 = vmatpush1.bf16.xpose.msra.mxu0 0
        %4031 = vmatprep.subr.bf16.mxu0 0
        %4032 = vmatpush1.bf16.xpose.msra.mxu0 0
        %4033 = vmatprep.subr.bf16.mxu0 0
        %4034 = vmatpush1.bf16.xpose.msra.mxu0 0
        %4035 = vmatprep.subr.bf16.mxu0 0
        %4036 = vmatpush1.bf16.xpose.msra.mxu0 0
        %4037 = vmatprep.subr.bf16.mxu0 0
        %4038 = vmatpush1.bf16.xpose.msra.mxu0 0
        %4039 = vmatprep.subr.bf16.mxu0 0
        %4040 = vmatpush1.bf16.xpose.msra.mxu0 0
        %4041 = vmatprep.subr.bf16.mxu0 0
        %4042 = vmatpush1.bf16.xpose.msra.mxu0 0
        %4043 = vmatprep.subr.bf16.mxu0 0
        %4044 = vmatpush1.bf16.xpose.msra.mxu0 0
        %4045 = vmatprep.subr.bf16.mxu0 0
        %4046 = vmatpush1.bf16.xpose.msra.mxu0 0
        %4047 = vmatprep.subr.bf16.mxu0 0
        %4048 = vmatpush1.bf16.xpose.msra.mxu0 0
        %4049 = vmatprep.subr.bf16.mxu0 0
        %4050 = vmatpush1.bf16.xpose.msra.mxu0 0
        %4051 = vmatprep.subr.bf16.mxu0 0
        %4052 = vmatpush1.bf16.xpose.msra.mxu0 0
        %4053 = vmatprep.subr.bf16.mxu0 0
        %4054 = vmatpush1.bf16.xpose.msra.mxu0 0
        %4055 = vmatprep.subr.bf16.mxu0 0
        %4056 = vmatpush1.bf16.xpose.msra.mxu0 0
        %4057 = vmatprep.subr.bf16.mxu0 0
        %4058 = vmatpush1.bf16.xpose.msra.mxu0 0
        %4059 = vmatprep.mubr.bf16.mxu0 0
        %4060 = vmatmul.mubr.bf16.gmra.mrb[0].mxu0 %v4022
        %v4061 = vpop.f32.mrb[0].mxu0
        %v4062 = vadd.f32 0.0, %v4061
        %v4063 = vpop.f32.mrb[0].mxu0
        %v4064 = vpop.f32.mrb[0].mxu0
        %v4065 = vadd.f32 0.0, %v4064
        %v4066 = vpop.f32.mrb[0].mxu0
        %4067 = vdwg.mxu0
        %v4068 = vsel %vm839, %v4062, -inf
        %4069 = vmax.xlane.f32.xlu0 %v4068
        %v4070 = vpop.xlane.xlu0 %4069
        %v4071 = vsel %vm839, %v4065, -inf
        %4072 = vmax.xlane.f32.xlu0 %v4071
        %v4073 = vpop.xlane.xlu0 %4072
        %v4074 = vsub.f32 %v4062, %v4070
        %v4075 = vsub.f32 %v4065, %v4073
        %v4076 = vmul.f32 %v4074, 1.442695
        %v4077 = vpow.pop %v4076
        %v4078 = vmul.f32 %v4075, 1.442695
        %v4079 = vpow.pop %v4078
        %v4080 = vsel %vm839, %v4077, 0.0
        %4081 = vadd.xlane.f32.xlu0 %v4080
        %v4082 = vpop.xlane.xlu0 %4081
        %v4083 = vsel %vm839, %v4079, 0.0
        %4084 = vadd.xlane.f32.xlu0 %v4083
        %v4085 = vpop.xlane.xlu0 %4084
        %v4086 = vrcp.pop %v4082
        %v4087 = vrcp.pop %v4085
        %v4088 = vmul.f32 %v4077, %v4086
        %v4089 = vmul.f32 %v4079, %v4087
        %v4090 = vpack.c.bf16 %v4089, %v4088
        %4091 = vrot.lane.b32.xlu0 %v3415, 88
        %v4092 = vpop.permute.xlu0 %4091
        %v4095 = vsel %vm839, %v4090, 0
        %4097 = vmatprep.subr.bf16.mxu0 0
        %4098 = vmatpush1.bf16.msra.mxu0 %v4092
        %4099 = vmatprep.subr.bf16.mxu0 0
        %4100 = vmatpush1.bf16.msra.mxu0 0
        %4101 = vmatprep.subr.bf16.mxu0 0
        %4102 = vmatpush1.bf16.msra.mxu0 0
        %4103 = vmatprep.subr.bf16.mxu0 0
        %4104 = vmatpush1.bf16.msra.mxu0 0
        %4105 = vmatprep.subr.bf16.mxu0 0
        %4106 = vmatpush1.bf16.msra.mxu0 0
        %4107 = vmatprep.subr.bf16.mxu0 0
        %4108 = vmatpush1.bf16.msra.mxu0 0
        %4109 = vmatprep.subr.bf16.mxu0 0
        %4110 = vmatpush1.bf16.msra.mxu0 0
        %4111 = vmatprep.subr.bf16.mxu0 0
        %4112 = vmatpush1.bf16.msra.mxu0 0
        %4113 = vmatprep.subr.bf16.mxu0 0
        %4114 = vmatpush1.bf16.msra.mxu0 0
        %4115 = vmatprep.subr.bf16.mxu0 0
        %4116 = vmatpush1.bf16.msra.mxu0 0
        %4117 = vmatprep.subr.bf16.mxu0 0
        %4118 = vmatpush1.bf16.msra.mxu0 0
        %4119 = vmatprep.subr.bf16.mxu0 0
        %4120 = vmatpush1.bf16.msra.mxu0 0
        %4121 = vmatprep.subr.bf16.mxu0 0
        %4122 = vmatpush1.bf16.msra.mxu0 0
        %4123 = vmatprep.subr.bf16.mxu0 0
        %4124 = vmatpush1.bf16.msra.mxu0 0
        %4125 = vmatprep.subr.bf16.mxu0 0
        %4126 = vmatpush1.bf16.msra.mxu0 0
        %4127 = vmatprep.subr.bf16.mxu0 0
        %4128 = vmatpush1.bf16.msra.mxu0 0
        %4129 = vmatprep.mubr.bf16.mxu0 0
        %4130 = vmatmul.mubr.bf16.gmra.mrb[0].mxu0 %v4095
        %v4131 = vpop.f32.mrb[0].mxu0
        %v4132 = vadd.f32 0.0, %v4131
        %v4133 = vpop.f32.mrb[0].mxu0
        %v4134 = vpop.f32.mrb[0].mxu0
        %v4135 = vadd.f32 0.0, %v4134
        %v4136 = vpop.f32.mrb[0].mxu0
        %4137 = vdwg.mxu0
        %4138 = vrot.lane.b32.xlu0 %v3413, 80
        %v4139 = vpop.permute.xlu0 %4138
        %4140 = vrot.lane.b32.xlu0 %v3414, 80
        %v4141 = vpop.permute.xlu0 %4140
        %v4143 = vsel %vm791, %v4139, 0
        %v4146 = vsel %vm791, %v4141, 0
        %4148 = vmatprep.subr.bf16.mxu0 0
        %4149 = vmatpush1.bf16.xpose.msra.mxu0 %v4146
        %4150 = vmatprep.subr.bf16.mxu0 0
        %4151 = vmatpush1.bf16.xpose.msra.mxu0 0
        %4152 = vmatprep.subr.bf16.mxu0 0
        %4153 = vmatpush1.bf16.xpose.msra.mxu0 0
        %4154 = vmatprep.subr.bf16.mxu0 0
        %4155 = vmatpush1.bf16.xpose.msra.mxu0 0
        %4156 = vmatprep.subr.bf16.mxu0 0
        %4157 = vmatpush1.bf16.xpose.msra.mxu0 0
        %4158 = vmatprep.subr.bf16.mxu0 0
        %4159 = vmatpush1.bf16.xpose.msra.mxu0 0
        %4160 = vmatprep.subr.bf16.mxu0 0
        %4161 = vmatpush1.bf16.xpose.msra.mxu0 0
        %4162 = vmatprep.subr.bf16.mxu0 0
        %4163 = vmatpush1.bf16.xpose.msra.mxu0 0
        %4164 = vmatprep.subr.bf16.mxu0 0
        %4165 = vmatpush1.bf16.xpose.msra.mxu0 0
        %4166 = vmatprep.subr.bf16.mxu0 0
        %4167 = vmatpush1.bf16.xpose.msra.mxu0 0
        %4168 = vmatprep.subr.bf16.mxu0 0
        %4169 = vmatpush1.bf16.xpose.msra.mxu0 0
        %4170 = vmatprep.subr.bf16.mxu0 0
        %4171 = vmatpush1.bf16.xpose.msra.mxu0 0
        %4172 = vmatprep.subr.bf16.mxu0 0
        %4173 = vmatpush1.bf16.xpose.msra.mxu0 0
        %4174 = vmatprep.subr.bf16.mxu0 0
        %4175 = vmatpush1.bf16.xpose.msra.mxu0 0
        %4176 = vmatprep.subr.bf16.mxu0 0
        %4177 = vmatpush1.bf16.xpose.msra.mxu0 0
        %4178 = vmatprep.subr.bf16.mxu0 0
        %4179 = vmatpush1.bf16.xpose.msra.mxu0 0
        %4180 = vmatprep.mubr.bf16.mxu0 0
        %4181 = vmatmul.mubr.bf16.gmra.mrb[0].mxu0 %v4143
        %v4182 = vpop.f32.mrb[0].mxu0
        %v4183 = vadd.f32 0.0, %v4182
        %v4184 = vpop.f32.mrb[0].mxu0
        %v4185 = vpop.f32.mrb[0].mxu0
        %v4186 = vadd.f32 0.0, %v4185
        %v4187 = vpop.f32.mrb[0].mxu0
        %4188 = vdwg.mxu0
        %v4189 = vsel %vm839, %v4183, -inf
        %4190 = vmax.xlane.f32.xlu0 %v4189
        %v4191 = vpop.xlane.xlu0 %4190
        %v4192 = vsel %vm839, %v4186, -inf
        %4193 = vmax.xlane.f32.xlu0 %v4192
        %v4194 = vpop.xlane.xlu0 %4193
        %v4195 = vsub.f32 %v4183, %v4191
        %v4196 = vsub.f32 %v4186, %v4194
        %v4197 = vmul.f32 %v4195, 1.442695
        %v4198 = vpow.pop %v4197
        %v4199 = vmul.f32 %v4196, 1.442695
        %v4200 = vpow.pop %v4199
        %v4201 = vsel %vm839, %v4198, 0.0
        %4202 = vadd.xlane.f32.xlu0 %v4201
        %v4203 = vpop.xlane.xlu0 %4202
        %v4204 = vsel %vm839, %v4200, 0.0
        %4205 = vadd.xlane.f32.xlu0 %v4204
        %v4206 = vpop.xlane.xlu0 %4205
        %v4207 = vrcp.pop %v4203
        %v4208 = vrcp.pop %v4206
        %v4209 = vmul.f32 %v4198, %v4207
        %v4210 = vmul.f32 %v4200, %v4208
        %v4211 = vpack.c.bf16 %v4210, %v4209
        %4212 = vrot.lane.b32.xlu0 %v3415, 80
        %v4213 = vpop.permute.xlu0 %4212
        %v4216 = vsel %vm839, %v4211, 0
        %4218 = vmatprep.subr.bf16.mxu0 0
        %4219 = vmatpush1.bf16.msra.mxu0 %v4213
        %4220 = vmatprep.subr.bf16.mxu0 0
        %4221 = vmatpush1.bf16.msra.mxu0 0
        %4222 = vmatprep.subr.bf16.mxu0 0
        %4223 = vmatpush1.bf16.msra.mxu0 0
        %4224 = vmatprep.subr.bf16.mxu0 0
        %4225 = vmatpush1.bf16.msra.mxu0 0
        %4226 = vmatprep.subr.bf16.mxu0 0
        %4227 = vmatpush1.bf16.msra.mxu0 0
        %4228 = vmatprep.subr.bf16.mxu0 0
        %4229 = vmatpush1.bf16.msra.mxu0 0
        %4230 = vmatprep.subr.bf16.mxu0 0
        %4231 = vmatpush1.bf16.msra.mxu0 0
        %4232 = vmatprep.subr.bf16.mxu0 0
        %4233 = vmatpush1.bf16.msra.mxu0 0
        %4234 = vmatprep.subr.bf16.mxu0 0
        %4235 = vmatpush1.bf16.msra.mxu0 0
        %4236 = vmatprep.subr.bf16.mxu0 0
        %4237 = vmatpush1.bf16.msra.mxu0 0
        %4238 = vmatprep.subr.bf16.mxu0 0
        %4239 = vmatpush1.bf16.msra.mxu0 0
        %4240 = vmatprep.subr.bf16.mxu0 0
        %4241 = vmatpush1.bf16.msra.mxu0 0
        %4242 = vmatprep.subr.bf16.mxu0 0
        %4243 = vmatpush1.bf16.msra.mxu0 0
        %4244 = vmatprep.subr.bf16.mxu0 0
        %4245 = vmatpush1.bf16.msra.mxu0 0
        %4246 = vmatprep.subr.bf16.mxu0 0
        %4247 = vmatpush1.bf16.msra.mxu0 0
        %4248 = vmatprep.subr.bf16.mxu0 0
        %4249 = vmatpush1.bf16.msra.mxu0 0
        %4250 = vmatprep.mubr.bf16.mxu0 0
        %4251 = vmatmul.mubr.bf16.gmra.mrb[0].mxu0 %v4216
        %v4252 = vpop.f32.mrb[0].mxu0
        %v4253 = vadd.f32 0.0, %v4252
        %v4254 = vpop.f32.mrb[0].mxu0
        %v4255 = vpop.f32.mrb[0].mxu0
        %v4256 = vadd.f32 0.0, %v4255
        %v4257 = vpop.f32.mrb[0].mxu0
        %4258 = vdwg.mxu0
        %4259 = vrot.lane.b32.xlu0 %v3413, 72
        %v4260 = vpop.permute.xlu0 %4259
        %4261 = vrot.lane.b32.xlu0 %v3414, 72
        %v4262 = vpop.permute.xlu0 %4261
        %v4264 = vsel %vm791, %v4260, 0
        %v4267 = vsel %vm791, %v4262, 0
        %4269 = vmatprep.subr.bf16.mxu0 0
        %4270 = vmatpush1.bf16.xpose.msra.mxu0 %v4267
        %4271 = vmatprep.subr.bf16.mxu0 0
        %4272 = vmatpush1.bf16.xpose.msra.mxu0 0
        %4273 = vmatprep.subr.bf16.mxu0 0
        %4274 = vmatpush1.bf16.xpose.msra.mxu0 0
        %4275 = vmatprep.subr.bf16.mxu0 0
        %4276 = vmatpush1.bf16.xpose.msra.mxu0 0
        %4277 = vmatprep.subr.bf16.mxu0 0
        %4278 = vmatpush1.bf16.xpose.msra.mxu0 0
        %4279 = vmatprep.subr.bf16.mxu0 0
        %4280 = vmatpush1.bf16.xpose.msra.mxu0 0
        %4281 = vmatprep.subr.bf16.mxu0 0
        %4282 = vmatpush1.bf16.xpose.msra.mxu0 0
        %4283 = vmatprep.subr.bf16.mxu0 0
        %4284 = vmatpush1.bf16.xpose.msra.mxu0 0
        %4285 = vmatprep.subr.bf16.mxu0 0
        %4286 = vmatpush1.bf16.xpose.msra.mxu0 0
        %4287 = vmatprep.subr.bf16.mxu0 0
        %4288 = vmatpush1.bf16.xpose.msra.mxu0 0
        %4289 = vmatprep.subr.bf16.mxu0 0
        %4290 = vmatpush1.bf16.xpose.msra.mxu0 0
        %4291 = vmatprep.subr.bf16.mxu0 0
        %4292 = vmatpush1.bf16.xpose.msra.mxu0 0
        %4293 = vmatprep.subr.bf16.mxu0 0
        %4294 = vmatpush1.bf16.xpose.msra.mxu0 0
        %4295 = vmatprep.subr.bf16.mxu0 0
        %4296 = vmatpush1.bf16.xpose.msra.mxu0 0
        %4297 = vmatprep.subr.bf16.mxu0 0
        %4298 = vmatpush1.bf16.xpose.msra.mxu0 0
        %4299 = vmatprep.subr.bf16.mxu0 0
        %4300 = vmatpush1.bf16.xpose.msra.mxu0 0
        %4301 = vmatprep.mubr.bf16.mxu0 0
        %4302 = vmatmul.mubr.bf16.gmra.mrb[0].mxu0 %v4264
        %v4303 = vpop.f32.mrb[0].mxu0
        %v4304 = vadd.f32 0.0, %v4303
        %v4305 = vpop.f32.mrb[0].mxu0
        %v4306 = vpop.f32.mrb[0].mxu0
        %v4307 = vadd.f32 0.0, %v4306
        %v4308 = vpop.f32.mrb[0].mxu0
        %4309 = vdwg.mxu0
        %v4310 = vsel %vm839, %v4304, -inf
        %4311 = vmax.xlane.f32.xlu0 %v4310
        %v4312 = vpop.xlane.xlu0 %4311
        %v4313 = vsel %vm839, %v4307, -inf
        %4314 = vmax.xlane.f32.xlu0 %v4313
        %v4315 = vpop.xlane.xlu0 %4314
        %v4316 = vsub.f32 %v4304, %v4312
        %v4317 = vsub.f32 %v4307, %v4315
        %v4318 = vmul.f32 %v4316, 1.442695
        %v4319 = vpow.pop %v4318
        %v4320 = vmul.f32 %v4317, 1.442695
        %v4321 = vpow.pop %v4320
        %v4322 = vsel %vm839, %v4319, 0.0
        %4323 = vadd.xlane.f32.xlu0 %v4322
        %v4324 = vpop.xlane.xlu0 %4323
        %v4325 = vsel %vm839, %v4321, 0.0
        %4326 = vadd.xlane.f32.xlu0 %v4325
        %v4327 = vpop.xlane.xlu0 %4326
        %v4328 = vrcp.pop %v4324
        %v4329 = vrcp.pop %v4327
        %v4330 = vmul.f32 %v4319, %v4328
        %v4331 = vmul.f32 %v4321, %v4329
        %v4332 = vpack.c.bf16 %v4331, %v4330
        %4333 = vrot.lane.b32.xlu0 %v3415, 72
        %v4334 = vpop.permute.xlu0 %4333
        %v4337 = vsel %vm839, %v4332, 0
        %4339 = vmatprep.subr.bf16.mxu0 0
        %4340 = vmatpush1.bf16.msra.mxu0 %v4334
        %4341 = vmatprep.subr.bf16.mxu0 0
        %4342 = vmatpush1.bf16.msra.mxu0 0
        %4343 = vmatprep.subr.bf16.mxu0 0
        %4344 = vmatpush1.bf16.msra.mxu0 0
        %4345 = vmatprep.subr.bf16.mxu0 0
        %4346 = vmatpush1.bf16.msra.mxu0 0
        %4347 = vmatprep.subr.bf16.mxu0 0
        %4348 = vmatpush1.bf16.msra.mxu0 0
        %4349 = vmatprep.subr.bf16.mxu0 0
        %4350 = vmatpush1.bf16.msra.mxu0 0
        %4351 = vmatprep.subr.bf16.mxu0 0
        %4352 = vmatpush1.bf16.msra.mxu0 0
        %4353 = vmatprep.subr.bf16.mxu0 0
        %4354 = vmatpush1.bf16.msra.mxu0 0
        %4355 = vmatprep.subr.bf16.mxu0 0
        %4356 = vmatpush1.bf16.msra.mxu0 0
        %4357 = vmatprep.subr.bf16.mxu0 0
        %4358 = vmatpush1.bf16.msra.mxu0 0
        %4359 = vmatprep.subr.bf16.mxu0 0
        %4360 = vmatpush1.bf16.msra.mxu0 0
        %4361 = vmatprep.subr.bf16.mxu0 0
        %4362 = vmatpush1.bf16.msra.mxu0 0
        %4363 = vmatprep.subr.bf16.mxu0 0
        %4364 = vmatpush1.bf16.msra.mxu0 0
        %4365 = vmatprep.subr.bf16.mxu0 0
        %4366 = vmatpush1.bf16.msra.mxu0 0
        %4367 = vmatprep.subr.bf16.mxu0 0
        %4368 = vmatpush1.bf16.msra.mxu0 0
        %4369 = vmatprep.subr.bf16.mxu0 0
        %4370 = vmatpush1.bf16.msra.mxu0 0
        %4371 = vmatprep.mubr.bf16.mxu0 0
        %4372 = vmatmul.mubr.bf16.gmra.mrb[0].mxu0 %v4337
        %v4373 = vpop.f32.mrb[0].mxu0
        %v4374 = vadd.f32 0.0, %v4373
        %v4375 = vpop.f32.mrb[0].mxu0
        %v4376 = vpop.f32.mrb[0].mxu0
        %v4377 = vadd.f32 0.0, %v4376
        %v4378 = vpop.f32.mrb[0].mxu0
        %4379 = vdwg.mxu0
        %4380 = vrot.lane.b32.xlu0 %v3413, 64
        %v4381 = vpop.permute.xlu0 %4380
        %4382 = vrot.lane.b32.xlu0 %v3414, 64
        %v4383 = vpop.permute.xlu0 %4382
        %v4385 = vsel %vm791, %v4381, 0
        %v4388 = vsel %vm791, %v4383, 0
        %4390 = vmatprep.subr.bf16.mxu0 0
        %4391 = vmatpush1.bf16.xpose.msra.mxu0 %v4388
        %4392 = vmatprep.subr.bf16.mxu0 0
        %4393 = vmatpush1.bf16.xpose.msra.mxu0 0
        %4394 = vmatprep.subr.bf16.mxu0 0
        %4395 = vmatpush1.bf16.xpose.msra.mxu0 0
        %4396 = vmatprep.subr.bf16.mxu0 0
        %4397 = vmatpush1.bf16.xpose.msra.mxu0 0
        %4398 = vmatprep.subr.bf16.mxu0 0
        %4399 = vmatpush1.bf16.xpose.msra.mxu0 0
        %4400 = vmatprep.subr.bf16.mxu0 0
        %4401 = vmatpush1.bf16.xpose.msra.mxu0 0
        %4402 = vmatprep.subr.bf16.mxu0 0
        %4403 = vmatpush1.bf16.xpose.msra.mxu0 0
        %4404 = vmatprep.subr.bf16.mxu0 0
        %4405 = vmatpush1.bf16.xpose.msra.mxu0 0
        %4406 = vmatprep.subr.bf16.mxu0 0
        %4407 = vmatpush1.bf16.xpose.msra.mxu0 0
        %4408 = vmatprep.subr.bf16.mxu0 0
        %4409 = vmatpush1.bf16.xpose.msra.mxu0 0
        %4410 = vmatprep.subr.bf16.mxu0 0
        %4411 = vmatpush1.bf16.xpose.msra.mxu0 0
        %4412 = vmatprep.subr.bf16.mxu0 0
        %4413 = vmatpush1.bf16.xpose.msra.mxu0 0
        %4414 = vmatprep.subr.bf16.mxu0 0
        %4415 = vmatpush1.bf16.xpose.msra.mxu0 0
        %4416 = vmatprep.subr.bf16.mxu0 0
        %4417 = vmatpush1.bf16.xpose.msra.mxu0 0
        %4418 = vmatprep.subr.bf16.mxu0 0
        %4419 = vmatpush1.bf16.xpose.msra.mxu0 0
        %4420 = vmatprep.subr.bf16.mxu0 0
        %4421 = vmatpush1.bf16.xpose.msra.mxu0 0
        %4422 = vmatprep.mubr.bf16.mxu0 0
        %4423 = vmatmul.mubr.bf16.gmra.mrb[0].mxu0 %v4385
        %v4424 = vpop.f32.mrb[0].mxu0
        %v4425 = vadd.f32 0.0, %v4424
        %v4426 = vpop.f32.mrb[0].mxu0
        %v4427 = vpop.f32.mrb[0].mxu0
        %v4428 = vadd.f32 0.0, %v4427
        %v4429 = vpop.f32.mrb[0].mxu0
        %4430 = vdwg.mxu0
        %v4431 = vsel %vm839, %v4425, -inf
        %4432 = vmax.xlane.f32.xlu0 %v4431
        %v4433 = vpop.xlane.xlu0 %4432
        %v4434 = vsel %vm839, %v4428, -inf
        %4435 = vmax.xlane.f32.xlu0 %v4434
        %v4436 = vpop.xlane.xlu0 %4435
        %v4437 = vsub.f32 %v4425, %v4433
        %v4438 = vsub.f32 %v4428, %v4436
        %v4439 = vmul.f32 %v4437, 1.442695
        %v4440 = vpow.pop %v4439
        %v4441 = vmul.f32 %v4438, 1.442695
        %v4442 = vpow.pop %v4441
        %v4443 = vsel %vm839, %v4440, 0.0
        %4444 = vadd.xlane.f32.xlu0 %v4443
        %v4445 = vpop.xlane.xlu0 %4444
        %v4446 = vsel %vm839, %v4442, 0.0
        %4447 = vadd.xlane.f32.xlu0 %v4446
        %v4448 = vpop.xlane.xlu0 %4447
        %v4449 = vrcp.pop %v4445
        %v4450 = vrcp.pop %v4448
        %v4451 = vmul.f32 %v4440, %v4449
        %v4452 = vmul.f32 %v4442, %v4450
        %v4453 = vpack.c.bf16 %v4452, %v4451
        %4454 = vrot.lane.b32.xlu0 %v3415, 64
        %v4455 = vpop.permute.xlu0 %4454
        %v4458 = vsel %vm839, %v4453, 0
        %4460 = vmatprep.subr.bf16.mxu0 0
        %4461 = vmatpush1.bf16.msra.mxu0 %v4455
        %4462 = vmatprep.subr.bf16.mxu0 0
        %4463 = vmatpush1.bf16.msra.mxu0 0
        %4464 = vmatprep.subr.bf16.mxu0 0
        %4465 = vmatpush1.bf16.msra.mxu0 0
        %4466 = vmatprep.subr.bf16.mxu0 0
        %4467 = vmatpush1.bf16.msra.mxu0 0
        %4468 = vmatprep.subr.bf16.mxu0 0
        %4469 = vmatpush1.bf16.msra.mxu0 0
        %4470 = vmatprep.subr.bf16.mxu0 0
        %4471 = vmatpush1.bf16.msra.mxu0 0
        %4472 = vmatprep.subr.bf16.mxu0 0
        %4473 = vmatpush1.bf16.msra.mxu0 0
        %4474 = vmatprep.subr.bf16.mxu0 0
        %4475 = vmatpush1.bf16.msra.mxu0 0
        %4476 = vmatprep.subr.bf16.mxu0 0
        %4477 = vmatpush1.bf16.msra.mxu0 0
        %4478 = vmatprep.subr.bf16.mxu0 0
        %4479 = vmatpush1.bf16.msra.mxu0 0
        %4480 = vmatprep.subr.bf16.mxu0 0
        %4481 = vmatpush1.bf16.msra.mxu0 0
        %4482 = vmatprep.subr.bf16.mxu0 0
        %4483 = vmatpush1.bf16.msra.mxu0 0
        %4484 = vmatprep.subr.bf16.mxu0 0
        %4485 = vmatpush1.bf16.msra.mxu0 0
        %4486 = vmatprep.subr.bf16.mxu0 0
        %4487 = vmatpush1.bf16.msra.mxu0 0
        %4488 = vmatprep.subr.bf16.mxu0 0
        %4489 = vmatpush1.bf16.msra.mxu0 0
        %4490 = vmatprep.subr.bf16.mxu0 0
        %4491 = vmatpush1.bf16.msra.mxu0 0
        %4492 = vmatprep.mubr.bf16.mxu0 0
        %4493 = vmatmul.mubr.bf16.gmra.mrb[0].mxu0 %v4458
        %v4494 = vpop.f32.mrb[0].mxu0
        %v4495 = vadd.f32 0.0, %v4494
        %v4496 = vpop.f32.mrb[0].mxu0
        %v4497 = vpop.f32.mrb[0].mxu0
        %v4498 = vadd.f32 0.0, %v4497
        %v4499 = vpop.f32.mrb[0].mxu0
        %4500 = vdwg.mxu0
        %4501 = vrot.lane.b32.xlu0 %v3413, 56
        %v4502 = vpop.permute.xlu0 %4501
        %4503 = vrot.lane.b32.xlu0 %v3414, 56
        %v4504 = vpop.permute.xlu0 %4503
        %v4506 = vsel %vm791, %v4502, 0
        %v4509 = vsel %vm791, %v4504, 0
        %4511 = vmatprep.subr.bf16.mxu0 0
        %4512 = vmatpush1.bf16.xpose.msra.mxu0 %v4509
        %4513 = vmatprep.subr.bf16.mxu0 0
        %4514 = vmatpush1.bf16.xpose.msra.mxu0 0
        %4515 = vmatprep.subr.bf16.mxu0 0
        %4516 = vmatpush1.bf16.xpose.msra.mxu0 0
        %4517 = vmatprep.subr.bf16.mxu0 0
        %4518 = vmatpush1.bf16.xpose.msra.mxu0 0
        %4519 = vmatprep.subr.bf16.mxu0 0
        %4520 = vmatpush1.bf16.xpose.msra.mxu0 0
        %4521 = vmatprep.subr.bf16.mxu0 0
        %4522 = vmatpush1.bf16.xpose.msra.mxu0 0
        %4523 = vmatprep.subr.bf16.mxu0 0
        %4524 = vmatpush1.bf16.xpose.msra.mxu0 0
        %4525 = vmatprep.subr.bf16.mxu0 0
        %4526 = vmatpush1.bf16.xpose.msra.mxu0 0
        %4527 = vmatprep.subr.bf16.mxu0 0
        %4528 = vmatpush1.bf16.xpose.msra.mxu0 0
        %4529 = vmatprep.subr.bf16.mxu0 0
        %4530 = vmatpush1.bf16.xpose.msra.mxu0 0
        %4531 = vmatprep.subr.bf16.mxu0 0
        %4532 = vmatpush1.bf16.xpose.msra.mxu0 0
        %4533 = vmatprep.subr.bf16.mxu0 0
        %4534 = vmatpush1.bf16.xpose.msra.mxu0 0
        %4535 = vmatprep.subr.bf16.mxu0 0
        %4536 = vmatpush1.bf16.xpose.msra.mxu0 0
        %4537 = vmatprep.subr.bf16.mxu0 0
        %4538 = vmatpush1.bf16.xpose.msra.mxu0 0
        %4539 = vmatprep.subr.bf16.mxu0 0
        %4540 = vmatpush1.bf16.xpose.msra.mxu0 0
        %4541 = vmatprep.subr.bf16.mxu0 0
        %4542 = vmatpush1.bf16.xpose.msra.mxu0 0
        %4543 = vmatprep.mubr.bf16.mxu0 0
        %4544 = vmatmul.mubr.bf16.gmra.mrb[0].mxu0 %v4506
        %v4545 = vpop.f32.mrb[0].mxu0
        %v4546 = vadd.f32 0.0, %v4545
        %v4547 = vpop.f32.mrb[0].mxu0
        %v4548 = vpop.f32.mrb[0].mxu0
        %v4549 = vadd.f32 0.0, %v4548
        %v4550 = vpop.f32.mrb[0].mxu0
        %4551 = vdwg.mxu0
        %v4552 = vsel %vm839, %v4546, -inf
        %4553 = vmax.xlane.f32.xlu0 %v4552
        %v4554 = vpop.xlane.xlu0 %4553
        %v4555 = vsel %vm839, %v4549, -inf
        %4556 = vmax.xlane.f32.xlu0 %v4555
        %v4557 = vpop.xlane.xlu0 %4556
        %v4558 = vsub.f32 %v4546, %v4554
        %v4559 = vsub.f32 %v4549, %v4557
        %v4560 = vmul.f32 %v4558, 1.442695
        %v4561 = vpow.pop %v4560
        %v4562 = vmul.f32 %v4559, 1.442695
        %v4563 = vpow.pop %v4562
        %v4564 = vsel %vm839, %v4561, 0.0
        %4565 = vadd.xlane.f32.xlu0 %v4564
        %v4566 = vpop.xlane.xlu0 %4565
        %v4567 = vsel %vm839, %v4563, 0.0
        %4568 = vadd.xlane.f32.xlu0 %v4567
        %v4569 = vpop.xlane.xlu0 %4568
        %v4570 = vrcp.pop %v4566
        %v4571 = vrcp.pop %v4569
        %v4572 = vmul.f32 %v4561, %v4570
        %v4573 = vmul.f32 %v4563, %v4571
        %v4574 = vpack.c.bf16 %v4573, %v4572
        %4575 = vrot.lane.b32.xlu0 %v3415, 56
        %v4576 = vpop.permute.xlu0 %4575
        %v4579 = vsel %vm839, %v4574, 0
        %4581 = vmatprep.subr.bf16.mxu0 0
        %4582 = vmatpush1.bf16.msra.mxu0 %v4576
        %4583 = vmatprep.subr.bf16.mxu0 0
        %4584 = vmatpush1.bf16.msra.mxu0 0
        %4585 = vmatprep.subr.bf16.mxu0 0
        %4586 = vmatpush1.bf16.msra.mxu0 0
        %4587 = vmatprep.subr.bf16.mxu0 0
        %4588 = vmatpush1.bf16.msra.mxu0 0
        %4589 = vmatprep.subr.bf16.mxu0 0
        %4590 = vmatpush1.bf16.msra.mxu0 0
        %4591 = vmatprep.subr.bf16.mxu0 0
        %4592 = vmatpush1.bf16.msra.mxu0 0
        %4593 = vmatprep.subr.bf16.mxu0 0
        %4594 = vmatpush1.bf16.msra.mxu0 0
        %4595 = vmatprep.subr.bf16.mxu0 0
        %4596 = vmatpush1.bf16.msra.mxu0 0
        %4597 = vmatprep.subr.bf16.mxu0 0
        %4598 = vmatpush1.bf16.msra.mxu0 0
        %4599 = vmatprep.subr.bf16.mxu0 0
        %4600 = vmatpush1.bf16.msra.mxu0 0
        %4601 = vmatprep.subr.bf16.mxu0 0
        %4602 = vmatpush1.bf16.msra.mxu0 0
        %4603 = vmatprep.subr.bf16.mxu0 0
        %4604 = vmatpush1.bf16.msra.mxu0 0
        %4605 = vmatprep.subr.bf16.mxu0 0
        %4606 = vmatpush1.bf16.msra.mxu0 0
        %4607 = vmatprep.subr.bf16.mxu0 0
        %4608 = vmatpush1.bf16.msra.mxu0 0
        %4609 = vmatprep.subr.bf16.mxu0 0
        %4610 = vmatpush1.bf16.msra.mxu0 0
        %4611 = vmatprep.subr.bf16.mxu0 0
        %4612 = vmatpush1.bf16.msra.mxu0 0
        %4613 = vmatprep.mubr.bf16.mxu0 0
        %4614 = vmatmul.mubr.bf16.gmra.mrb[0].mxu0 %v4579
        %v4615 = vpop.f32.mrb[0].mxu0
        %v4616 = vadd.f32 0.0, %v4615
        %v4617 = vpop.f32.mrb[0].mxu0
        %v4618 = vpop.f32.mrb[0].mxu0
        %v4619 = vadd.f32 0.0, %v4618
        %v4620 = vpop.f32.mrb[0].mxu0
        %4621 = vdwg.mxu0
        %4622 = vrot.lane.b32.xlu0 %v3413, 48
        %v4623 = vpop.permute.xlu0 %4622
        %4624 = vrot.lane.b32.xlu0 %v3414, 48
        %v4625 = vpop.permute.xlu0 %4624
        %v4627 = vsel %vm791, %v4623, 0
        %v4630 = vsel %vm791, %v4625, 0
        %4632 = vmatprep.subr.bf16.mxu0 0
        %4633 = vmatpush1.bf16.xpose.msra.mxu0 %v4630
        %4634 = vmatprep.subr.bf16.mxu0 0
        %4635 = vmatpush1.bf16.xpose.msra.mxu0 0
        %4636 = vmatprep.subr.bf16.mxu0 0
        %4637 = vmatpush1.bf16.xpose.msra.mxu0 0
        %4638 = vmatprep.subr.bf16.mxu0 0
        %4639 = vmatpush1.bf16.xpose.msra.mxu0 0
        %4640 = vmatprep.subr.bf16.mxu0 0
        %4641 = vmatpush1.bf16.xpose.msra.mxu0 0
        %4642 = vmatprep.subr.bf16.mxu0 0
        %4643 = vmatpush1.bf16.xpose.msra.mxu0 0
        %4644 = vmatprep.subr.bf16.mxu0 0
        %4645 = vmatpush1.bf16.xpose.msra.mxu0 0
        %4646 = vmatprep.subr.bf16.mxu0 0
        %4647 = vmatpush1.bf16.xpose.msra.mxu0 0
        %4648 = vmatprep.subr.bf16.mxu0 0
        %4649 = vmatpush1.bf16.xpose.msra.mxu0 0
        %4650 = vmatprep.subr.bf16.mxu0 0
        %4651 = vmatpush1.bf16.xpose.msra.mxu0 0
        %4652 = vmatprep.subr.bf16.mxu0 0
        %4653 = vmatpush1.bf16.xpose.msra.mxu0 0
        %4654 = vmatprep.subr.bf16.mxu0 0
        %4655 = vmatpush1.bf16.xpose.msra.mxu0 0
        %4656 = vmatprep.subr.bf16.mxu0 0
        %4657 = vmatpush1.bf16.xpose.msra.mxu0 0
        %4658 = vmatprep.subr.bf16.mxu0 0
        %4659 = vmatpush1.bf16.xpose.msra.mxu0 0
        %4660 = vmatprep.subr.bf16.mxu0 0
        %4661 = vmatpush1.bf16.xpose.msra.mxu0 0
        %4662 = vmatprep.subr.bf16.mxu0 0
        %4663 = vmatpush1.bf16.xpose.msra.mxu0 0
        %4664 = vmatprep.mubr.bf16.mxu0 0
        %4665 = vmatmul.mubr.bf16.gmra.mrb[0].mxu0 %v4627
        %v4666 = vpop.f32.mrb[0].mxu0
        %v4667 = vadd.f32 0.0, %v4666
        %v4668 = vpop.f32.mrb[0].mxu0
        %v4669 = vpop.f32.mrb[0].mxu0
        %v4670 = vadd.f32 0.0, %v4669
        %v4671 = vpop.f32.mrb[0].mxu0
        %4672 = vdwg.mxu0
        %v4673 = vsel %vm839, %v4667, -inf
        %4674 = vmax.xlane.f32.xlu0 %v4673
        %v4675 = vpop.xlane.xlu0 %4674
        %v4676 = vsel %vm839, %v4670, -inf
        %4677 = vmax.xlane.f32.xlu0 %v4676
        %v4678 = vpop.xlane.xlu0 %4677
        %v4679 = vsub.f32 %v4667, %v4675
        %v4680 = vsub.f32 %v4670, %v4678
        %v4681 = vmul.f32 %v4679, 1.442695
        %v4682 = vpow.pop %v4681
        %v4683 = vmul.f32 %v4680, 1.442695
        %v4684 = vpow.pop %v4683
        %v4685 = vsel %vm839, %v4682, 0.0
        %4686 = vadd.xlane.f32.xlu0 %v4685
        %v4687 = vpop.xlane.xlu0 %4686
        %v4688 = vsel %vm839, %v4684, 0.0
        %4689 = vadd.xlane.f32.xlu0 %v4688
        %v4690 = vpop.xlane.xlu0 %4689
        %v4691 = vrcp.pop %v4687
        %v4692 = vrcp.pop %v4690
        %v4693 = vmul.f32 %v4682, %v4691
        %v4694 = vmul.f32 %v4684, %v4692
        %v4695 = vpack.c.bf16 %v4694, %v4693
        %4696 = vrot.lane.b32.xlu0 %v3415, 48
        %v4697 = vpop.permute.xlu0 %4696
        %v4700 = vsel %vm839, %v4695, 0
        %4702 = vmatprep.subr.bf16.mxu0 0
        %4703 = vmatpush1.bf16.msra.mxu0 %v4697
        %4704 = vmatprep.subr.bf16.mxu0 0
        %4705 = vmatpush1.bf16.msra.mxu0 0
        %4706 = vmatprep.subr.bf16.mxu0 0
        %4707 = vmatpush1.bf16.msra.mxu0 0
        %4708 = vmatprep.subr.bf16.mxu0 0
        %4709 = vmatpush1.bf16.msra.mxu0 0
        %4710 = vmatprep.subr.bf16.mxu0 0
        %4711 = vmatpush1.bf16.msra.mxu0 0
        %4712 = vmatprep.subr.bf16.mxu0 0
        %4713 = vmatpush1.bf16.msra.mxu0 0
        %4714 = vmatprep.subr.bf16.mxu0 0
        %4715 = vmatpush1.bf16.msra.mxu0 0
        %4716 = vmatprep.subr.bf16.mxu0 0
        %4717 = vmatpush1.bf16.msra.mxu0 0
        %4718 = vmatprep.subr.bf16.mxu0 0
        %4719 = vmatpush1.bf16.msra.mxu0 0
        %4720 = vmatprep.subr.bf16.mxu0 0
        %4721 = vmatpush1.bf16.msra.mxu0 0
        %4722 = vmatprep.subr.bf16.mxu0 0
        %4723 = vmatpush1.bf16.msra.mxu0 0
        %4724 = vmatprep.subr.bf16.mxu0 0
        %4725 = vmatpush1.bf16.msra.mxu0 0
        %4726 = vmatprep.subr.bf16.mxu0 0
        %4727 = vmatpush1.bf16.msra.mxu0 0
        %4728 = vmatprep.subr.bf16.mxu0 0
        %4729 = vmatpush1.bf16.msra.mxu0 0
        %4730 = vmatprep.subr.bf16.mxu0 0
        %4731 = vmatpush1.bf16.msra.mxu0 0
        %4732 = vmatprep.subr.bf16.mxu0 0
        %4733 = vmatpush1.bf16.msra.mxu0 0
        %4734 = vmatprep.mubr.bf16.mxu0 0
        %4735 = vmatmul.mubr.bf16.gmra.mrb[0].mxu0 %v4700
        %v4736 = vpop.f32.mrb[0].mxu0
        %v4737 = vadd.f32 0.0, %v4736
        %v4738 = vpop.f32.mrb[0].mxu0
        %v4739 = vpop.f32.mrb[0].mxu0
        %v4740 = vadd.f32 0.0, %v4739
        %v4741 = vpop.f32.mrb[0].mxu0
        %4742 = vdwg.mxu0
        %4743 = vrot.lane.b32.xlu0 %v3413, 40
        %v4744 = vpop.permute.xlu0 %4743
        %4745 = vrot.lane.b32.xlu0 %v3414, 40
        %v4746 = vpop.permute.xlu0 %4745
        %v4748 = vsel %vm791, %v4744, 0
        %v4751 = vsel %vm791, %v4746, 0
        %4753 = vmatprep.subr.bf16.mxu0 0
        %4754 = vmatpush1.bf16.xpose.msra.mxu0 %v4751
        %4755 = vmatprep.subr.bf16.mxu0 0
        %4756 = vmatpush1.bf16.xpose.msra.mxu0 0
        %4757 = vmatprep.subr.bf16.mxu0 0
        %4758 = vmatpush1.bf16.xpose.msra.mxu0 0
        %4759 = vmatprep.subr.bf16.mxu0 0
        %4760 = vmatpush1.bf16.xpose.msra.mxu0 0
        %4761 = vmatprep.subr.bf16.mxu0 0
        %4762 = vmatpush1.bf16.xpose.msra.mxu0 0
        %4763 = vmatprep.subr.bf16.mxu0 0
        %4764 = vmatpush1.bf16.xpose.msra.mxu0 0
        %4765 = vmatprep.subr.bf16.mxu0 0
        %4766 = vmatpush1.bf16.xpose.msra.mxu0 0
        %4767 = vmatprep.subr.bf16.mxu0 0
        %4768 = vmatpush1.bf16.xpose.msra.mxu0 0
        %4769 = vmatprep.subr.bf16.mxu0 0
        %4770 = vmatpush1.bf16.xpose.msra.mxu0 0
        %4771 = vmatprep.subr.bf16.mxu0 0
        %4772 = vmatpush1.bf16.xpose.msra.mxu0 0
        %4773 = vmatprep.subr.bf16.mxu0 0
        %4774 = vmatpush1.bf16.xpose.msra.mxu0 0
        %4775 = vmatprep.subr.bf16.mxu0 0
        %4776 = vmatpush1.bf16.xpose.msra.mxu0 0
        %4777 = vmatprep.subr.bf16.mxu0 0
        %4778 = vmatpush1.bf16.xpose.msra.mxu0 0
        %4779 = vmatprep.subr.bf16.mxu0 0
        %4780 = vmatpush1.bf16.xpose.msra.mxu0 0
        %4781 = vmatprep.subr.bf16.mxu0 0
        %4782 = vmatpush1.bf16.xpose.msra.mxu0 0
        %4783 = vmatprep.subr.bf16.mxu0 0
        %4784 = vmatpush1.bf16.xpose.msra.mxu0 0
        %4785 = vmatprep.mubr.bf16.mxu0 0
        %4786 = vmatmul.mubr.bf16.gmra.mrb[0].mxu0 %v4748
        %v4787 = vpop.f32.mrb[0].mxu0
        %v4788 = vadd.f32 0.0, %v4787
        %v4789 = vpop.f32.mrb[0].mxu0
        %v4790 = vpop.f32.mrb[0].mxu0
        %v4791 = vadd.f32 0.0, %v4790
        %v4792 = vpop.f32.mrb[0].mxu0
        %4793 = vdwg.mxu0
        %v4794 = vsel %vm839, %v4788, -inf
        %4795 = vmax.xlane.f32.xlu0 %v4794
        %v4796 = vpop.xlane.xlu0 %4795
        %v4797 = vsel %vm839, %v4791, -inf
        %4798 = vmax.xlane.f32.xlu0 %v4797
        %v4799 = vpop.xlane.xlu0 %4798
        %v4800 = vsub.f32 %v4788, %v4796
        %v4801 = vsub.f32 %v4791, %v4799
        %v4802 = vmul.f32 %v4800, 1.442695
        %v4803 = vpow.pop %v4802
        %v4804 = vmul.f32 %v4801, 1.442695
        %v4805 = vpow.pop %v4804
        %v4806 = vsel %vm839, %v4803, 0.0
        %4807 = vadd.xlane.f32.xlu0 %v4806
        %v4808 = vpop.xlane.xlu0 %4807
        %v4809 = vsel %vm839, %v4805, 0.0
        %4810 = vadd.xlane.f32.xlu0 %v4809
        %v4811 = vpop.xlane.xlu0 %4810
        %v4812 = vrcp.pop %v4808
        %v4813 = vrcp.pop %v4811
        %v4814 = vmul.f32 %v4803, %v4812
        %v4815 = vmul.f32 %v4805, %v4813
        %v4816 = vpack.c.bf16 %v4815, %v4814
        %4817 = vrot.lane.b32.xlu0 %v3415, 40
        %v4818 = vpop.permute.xlu0 %4817
        %v4821 = vsel %vm839, %v4816, 0
        %4823 = vmatprep.subr.bf16.mxu0 0
        %4824 = vmatpush1.bf16.msra.mxu0 %v4818
        %4825 = vmatprep.subr.bf16.mxu0 0
        %4826 = vmatpush1.bf16.msra.mxu0 0
        %4827 = vmatprep.subr.bf16.mxu0 0
        %4828 = vmatpush1.bf16.msra.mxu0 0
        %4829 = vmatprep.subr.bf16.mxu0 0
        %4830 = vmatpush1.bf16.msra.mxu0 0
        %4831 = vmatprep.subr.bf16.mxu0 0
        %4832 = vmatpush1.bf16.msra.mxu0 0
        %4833 = vmatprep.subr.bf16.mxu0 0
        %4834 = vmatpush1.bf16.msra.mxu0 0
        %4835 = vmatprep.subr.bf16.mxu0 0
        %4836 = vmatpush1.bf16.msra.mxu0 0
        %4837 = vmatprep.subr.bf16.mxu0 0
        %4838 = vmatpush1.bf16.msra.mxu0 0
        %4839 = vmatprep.subr.bf16.mxu0 0
        %4840 = vmatpush1.bf16.msra.mxu0 0
        %4841 = vmatprep.subr.bf16.mxu0 0
        %4842 = vmatpush1.bf16.msra.mxu0 0
        %4843 = vmatprep.subr.bf16.mxu0 0
        %4844 = vmatpush1.bf16.msra.mxu0 0
        %4845 = vmatprep.subr.bf16.mxu0 0
        %4846 = vmatpush1.bf16.msra.mxu0 0
        %4847 = vmatprep.subr.bf16.mxu0 0
        %4848 = vmatpush1.bf16.msra.mxu0 0
        %4849 = vmatprep.subr.bf16.mxu0 0
        %4850 = vmatpush1.bf16.msra.mxu0 0
        %4851 = vmatprep.subr.bf16.mxu0 0
        %4852 = vmatpush1.bf16.msra.mxu0 0
        %4853 = vmatprep.subr.bf16.mxu0 0
        %4854 = vmatpush1.bf16.msra.mxu0 0
        %4855 = vmatprep.mubr.bf16.mxu0 0
        %4856 = vmatmul.mubr.bf16.gmra.mrb[0].mxu0 %v4821
        %v4857 = vpop.f32.mrb[0].mxu0
        %v4858 = vadd.f32 0.0, %v4857
        %v4859 = vpop.f32.mrb[0].mxu0
        %v4860 = vpop.f32.mrb[0].mxu0
        %v4861 = vadd.f32 0.0, %v4860
        %v4862 = vpop.f32.mrb[0].mxu0
        %4863 = vdwg.mxu0
        %4866 = vrot.lane.b32.xlu0 %v3648, 8
        %v4867 = vpop.permute.xlu0 %4866
        %4868 = vrot.lane.b32.xlu0 %v3651, 8
        %v4869 = vpop.permute.xlu0 %4868
        %4874 = vrot.lane.b32.xlu0 %v3769, 16
        %v4875 = vpop.permute.xlu0 %4874
        %4876 = vrot.lane.b32.xlu0 %v3772, 16
        %v4877 = vpop.permute.xlu0 %4876
        %4882 = vrot.lane.b32.xlu0 %v3890, 24
        %v4883 = vpop.permute.xlu0 %4882
        %4884 = vrot.lane.b32.xlu0 %v3893, 24
        %v4885 = vpop.permute.xlu0 %4884
        %4890 = vrot.lane.b32.xlu0 %v4011, 32
        %v4891 = vpop.permute.xlu0 %4890
        %4892 = vrot.lane.b32.xlu0 %v4014, 32
        %v4893 = vpop.permute.xlu0 %4892
        %4898 = vrot.lane.b32.xlu0 %v4132, 40
        %v4899 = vpop.permute.xlu0 %4898
        %4900 = vrot.lane.b32.xlu0 %v4135, 40
        %v4901 = vpop.permute.xlu0 %4900
        %4906 = vrot.lane.b32.xlu0 %v4253, 48
        %v4907 = vpop.permute.xlu0 %4906
        %4908 = vrot.lane.b32.xlu0 %v4256, 48
        %v4909 = vpop.permute.xlu0 %4908
        %4914 = vrot.lane.b32.xlu0 %v4374, 56
        %v4915 = vpop.permute.xlu0 %4914
        %4916 = vrot.lane.b32.xlu0 %v4377, 56
        %v4917 = vpop.permute.xlu0 %4916
        %4922 = vrot.lane.b32.xlu0 %v4495, 64
        %v4923 = vpop.permute.xlu0 %4922
        %4924 = vrot.lane.b32.xlu0 %v4498, 64
        %v4925 = vpop.permute.xlu0 %4924
        %4930 = vrot.lane.b32.xlu0 %v4616, 72
        %v4931 = vpop.permute.xlu0 %4930
        %4932 = vrot.lane.b32.xlu0 %v4619, 72
        %v4933 = vpop.permute.xlu0 %4932
        %4938 = vrot.lane.b32.xlu0 %v4737, 80
        %v4939 = vpop.permute.xlu0 %4938
        %4940 = vrot.lane.b32.xlu0 %v4740, 80
        %v4941 = vpop.permute.xlu0 %4940
        %4946 = vrot.lane.b32.xlu0 %v4858, 88
        %v4947 = vpop.permute.xlu0 %4946
        %4948 = vrot.lane.b32.xlu0 %v4861, 88
        %v4949 = vpop.permute.xlu0 %4948
        %v4952 = vsel %vm791, %v3524, %v4867
        %v4953 = vsel %vm791, %v3527, %v4869
        %v4954 = vsel %vm839, %v4952, %v4875
        %v4955 = vsel %vm839, %v4953, %v4877
        %v4956 = vsel %vm2333, %v4954, %v4883
        %v4957 = vsel %vm2333, %v4955, %v4885
        %v4958 = vsel %vm2336, %v4956, %v4891
        %v4959 = vsel %vm2336, %v4957, %v4893
        %v4960 = vsel %vm2339, %v4958, %v4899
        %v4961 = vsel %vm2339, %v4959, %v4901
        %v4962 = vsel %vm2342, %v4960, %v4907
        %v4963 = vsel %vm2342, %v4961, %v4909
        %v4964 = vsel %vm2345, %v4962, %v4915
        %v4965 = vsel %vm2345, %v4963, %v4917
        %v4966 = vsel %vm2348, %v4964, %v4923
        %v4967 = vsel %vm2348, %v4965, %v4925
        %v4968 = vsel %vm2351, %v4966, %v4931
        %v4969 = vsel %vm2351, %v4967, %v4933
        %v4970 = vsel %vm2354, %v4968, %v4939
        %v4971 = vsel %vm2354, %v4969, %v4941
        %v4972 = vsel %vm2357, %v4970, %v4947
        %v4973 = vsel %vm2357, %v4971, %v4949
        %v4974 = vpack.c.bf16 %v4973, %v4972
        %s4975 = scalar_lea.vmem [#allocation7], 48
        %v4976 = vld [vmem:[%s4975] sm:$0xf]
        %v4977 = vld [vmem:[%s4975 + $0x4] sm:$0xf]
        %v4978 = vld [vmem:[%s4975 + $0x8] sm:$0xf]
        %v4979 = vld [vmem:[%s4975 + $0xc] sm:$0xf]
        %v4980 = vld [vmem:[%s4975 + $0x10] sm:$0xf]
        %v4981 = vld [vmem:[%s4975 + $0x14] sm:$0xf]
        %v4982 = vld [vmem:[%s4975 + $0x18] sm:$0xf]
        %v4983 = vld [vmem:[%s4975 + $0x1c] sm:$0xf]
        %v4984 = vld [vmem:[%s4975 + $0x20] sm:$0xf]
        %v4985 = vld [vmem:[%s4975 + $0x24] sm:$0xf]
        %v4986 = vld [vmem:[%s4975 + $0x28] sm:$0xf]
        %v4987 = vld [vmem:[%s4975 + $0x2c] sm:$0xf]
        %s4988 = scalar_lea.vmem %s4, 1
        %v4989 = vld [vmem:[%s4988] sm:$0x1]
        %v4991 = vlaneseq
        %v4992 = vshrl.u32 %v4991, 7
        %v4993 = vsub.s32 0, %v4992
        %v4994 = vrot.slane %v4989, %v4993
        %v5008 = vunpack.c.l.b16 %v4976
        %v5009 = vunpack.c.l.b16 %v4977
        %v5010 = vunpack.c.l.b16 %v4978
        %v5011 = vunpack.c.l.b16 %v4979
        %v5012 = vunpack.c.l.b16 %v4980
        %v5013 = vunpack.c.l.b16 %v4981
        %v5014 = vunpack.c.l.b16 %v4982
        %v5015 = vunpack.c.l.b16 %v4983
        %v5016 = vunpack.c.l.b16 %v4984
        %v5017 = vunpack.c.l.b16 %v4985
        %v5018 = vunpack.c.l.b16 %v4986
        %v5019 = vunpack.c.l.b16 %v4987
        %v5020 = vpack.c.b16 %v5009, %v5008
        %v5021 = vpack.c.b16 %v5011, %v5010
        %v5022 = vpack.c.b16 %v5013, %v5012
        %v5023 = vpack.c.b16 %v5015, %v5014
        %v5024 = vpack.c.b16 %v5017, %v5016
        %v5025 = vpack.c.b16 %v5019, %v5018
        %v5033 = vsel %vm2416, %v4974, 0
        %5035 = vmatprep.subr.bf16.mxu0 0
        %5036 = vmatpush1.bf16.msra.mxu0 %v5020
        %5037 = vmatprep.subr.bf16.mxu0 0
        %5038 = vmatpush1.bf16.msra.mxu0 %v5021
        %5039 = vmatprep.subr.bf16.mxu0 0
        %5040 = vmatpush1.bf16.msra.mxu0 %v5022
        %5041 = vmatprep.subr.bf16.mxu0 0
        %5042 = vmatpush1.bf16.msra.mxu0 %v5023
        %5043 = vmatprep.subr.bf16.mxu0 0
        %5044 = vmatpush1.bf16.msra.mxu0 %v5024
        %5045 = vmatprep.subr.bf16.mxu0 0
        %5046 = vmatpush1.bf16.msra.mxu0 %v5025
        %5047 = vmatprep.subr.bf16.mxu0 0
        %5048 = vmatpush1.bf16.msra.mxu0 0
        %5049 = vmatprep.subr.bf16.mxu0 0
        %5050 = vmatpush1.bf16.msra.mxu0 0
        %5051 = vmatprep.subr.bf16.mxu0 0
        %5052 = vmatpush1.bf16.msra.mxu0 0
        %5053 = vmatprep.subr.bf16.mxu0 0
        %5054 = vmatpush1.bf16.msra.mxu0 0
        %5055 = vmatprep.subr.bf16.mxu0 0
        %5056 = vmatpush1.bf16.msra.mxu0 0
        %5057 = vmatprep.subr.bf16.mxu0 0
        %5058 = vmatpush1.bf16.msra.mxu0 0
        %5059 = vmatprep.subr.bf16.mxu0 0
        %5060 = vmatpush1.bf16.msra.mxu0 0
        %5061 = vmatprep.subr.bf16.mxu0 0
        %5062 = vmatpush1.bf16.msra.mxu0 0
        %5063 = vmatprep.subr.bf16.mxu0 0
        %5064 = vmatpush1.bf16.msra.mxu0 0
        %5065 = vmatprep.subr.bf16.mxu0 0
        %5066 = vmatpush1.bf16.msra.mxu0 0
        %5067 = vmatprep.mubr.bf16.mxu0 0
        %5068 = vmatmul.mubr.bf16.gmra.mrb[0].mxu0 %v5033
        %v5069 = vpop.f32.mrb[0].mxu0
        %v5070 = vadd.f32 %v4994, %v5069
        %v5071 = vpop.f32.mrb[0].mxu0
        %v5072 = vpop.f32.mrb[0].mxu0
        %v5073 = vadd.f32 %v4994, %v5072
        %v5074 = vpop.f32.mrb[0].mxu0
        %5075 = vdwg.mxu0
        %v5076 = vadd.f32 %v3147, %v5070
        %v5077 = vadd.f32 %v3148, %v5073
        %s5078 = scalar_lea.vmem %s5, 1
        %v5079 = vld [vmem:[%s5078] sm:$0x1]
        %s5080 = scalar_lea.vmem %s6, 1
        %v5081 = vld [vmem:[%s5080] sm:$0x1]
        %5082 = vadd.xlane.f32.xlu0 %v5076
        %v5083 = vpop.xlane.xlu0 %5082
        %5084 = vadd.xlane.f32.xlu0 %v5077
        %v5085 = vpop.xlane.xlu0 %5084
        %v5086 = vmul.f32 %v5083, 0.010416667
        %v5087 = vmul.f32 %v5085, 0.010416667
        %v5088 = vsub.f32 %v5076, %v5086
        %v5089 = vsub.f32 %v5077, %v5087
        %v5090 = vmul.f32 %v5088, %v525
        %v5091 = vmul.f32 %v5089, %v525
        %v5092 = vmul.f32 %v5090, %v5090
        %v5093 = vmul.f32 %v5091, %v5091
        %5094 = vadd.xlane.f32.xlu0 %v5092
        %v5095 = vpop.xlane.xlu0 %5094
        %5096 = vadd.xlane.f32.xlu0 %v5093
        %v5097 = vpop.xlane.xlu0 %5096
        %v5098 = vmul.f32 %v5095, 0.010416667
        %v5099 = vmul.f32 %v5097, 0.010416667
        %v5100 = vadd.f32 %v5098, 1e-05
        %v5101 = vadd.f32 %v5099, 1e-05
        %v5102 = vrsqrt.pop %v5100
        %v5103 = vrsqrt.pop %v5101
        %v5104 = vmul.f32 %v5090, %v5102
        %v5105 = vmul.f32 %v5091, %v5103
        %v5107 = vlaneseq
        %v5108 = vshrl.u32 %v5107, 7
        %v5109 = vsub.s32 0, %v5108
        %v5110 = vrot.slane %v5079, %v5109
        %v5112 = vmul.f32 %v5104, %v5110
        %v5113 = vmul.f32 %v5105, %v5110
        %v5115 = vlaneseq
        %v5116 = vshrl.u32 %v5115, 7
        %v5117 = vsub.s32 0, %v5116
        %v5118 = vrot.slane %v5081, %v5117
        %v5120 = vadd.f32 %v5112, %v5118
        %v5121 = vadd.f32 %v5113, %v5118
        %v5122 = vpack.c.bf16 %v5121, %v5120
        %s5123 = scalar_lea.vmem [#allocation8], 192
        %v5124 = vld [vmem:[%s5123] sm:$0xff]
        %v5125 = vld [vmem:[%s5123 + $0x8] sm:$0xf]
        %v5126 = vld [vmem:[%s5123 + $0xc] sm:$0xff]
        %v5127 = vld [vmem:[%s5123 + $0x14] sm:$0xf]
        %v5128 = vld [vmem:[%s5123 + $0x18] sm:$0xff]
        %v5129 = vld [vmem:[%s5123 + $0x20] sm:$0xf]
        %v5130 = vld [vmem:[%s5123 + $0x24] sm:$0xff]
        %v5131 = vld [vmem:[%s5123 + $0x2c] sm:$0xf]
        %v5132 = vld [vmem:[%s5123 + $0x30] sm:$0xff]
        %v5133 = vld [vmem:[%s5123 + $0x38] sm:$0xf]
        %v5134 = vld [vmem:[%s5123 + $0x3c] sm:$0xff]
        %v5135 = vld [vmem:[%s5123 + $0x44] sm:$0xf]
        %v5136 = vld [vmem:[%s5123 + $0x48] sm:$0xff]
        %v5137 = vld [vmem:[%s5123 + $0x50] sm:$0xf]
        %v5138 = vld [vmem:[%s5123 + $0x54] sm:$0xff]
        %v5139 = vld [vmem:[%s5123 + $0x5c] sm:$0xf]
        %v5140 = vld [vmem:[%s5123 + $0x60] sm:$0xff]
        %v5141 = vld [vmem:[%s5123 + $0x68] sm:$0xf]
        %v5142 = vld [vmem:[%s5123 + $0x6c] sm:$0xff]
        %v5143 = vld [vmem:[%s5123 + $0x74] sm:$0xf]
        %v5144 = vld [vmem:[%s5123 + $0x78] sm:$0xff]
        %v5145 = vld [vmem:[%s5123 + $0x80] sm:$0xf]
        %v5146 = vld [vmem:[%s5123 + $0x84] sm:$0xff]
        %v5147 = vld [vmem:[%s5123 + $0x8c] sm:$0xf]
        %v5148 = vld [vmem:[%s5123 + $0x90] sm:$0xff]
        %v5149 = vld [vmem:[%s5123 + $0x98] sm:$0xf]
        %v5150 = vld [vmem:[%s5123 + $0x9c] sm:$0xff]
        %v5151 = vld [vmem:[%s5123 + $0xa4] sm:$0xf]
        %v5152 = vld [vmem:[%s5123 + $0xa8] sm:$0xff]
        %v5153 = vld [vmem:[%s5123 + $0xb0] sm:$0xf]
        %v5154 = vld [vmem:[%s5123 + $0xb4] sm:$0xff]
        %v5155 = vld [vmem:[%s5123 + $0xbc] sm:$0xf]
        %s5156 = scalar_lea.vmem %s10, 3
        %v5157 = vld [vmem:[%s5156] sm:$0x7]
        %v5159 = vlaneseq
        %v5160 = vshrl.u32 %v5159, 7
        %v5161 = vsub.s32 0, %v5160
        %v5162 = vrot.slane %v5157, %v5161
        %v5163 = vlaneseq
        %v5164 = vshrl.u32 %v5163, 7
        %v5165 = vsub.s32 1, %v5164
        %v5166 = vrot.slane %v5157, %v5165
        %v5167 = vlaneseq
        %v5168 = vshrl.u32 %v5167, 7
        %v5169 = vsub.s32 2, %v5168
        %v5170 = vrot.slane %v5157, %v5169
        %v5206 = vunpack.c.l.b16 %v5124
        %v5207 = vunpack.c.h.b16 %v5124
        %v5208 = vunpack.c.l.b16 %v5125
        %v5209 = vunpack.c.l.b16 %v5126
        %v5210 = vunpack.c.h.b16 %v5126
        %v5211 = vunpack.c.l.b16 %v5127
        %v5212 = vunpack.c.l.b16 %v5128
        %v5213 = vunpack.c.h.b16 %v5128
        %v5214 = vunpack.c.l.b16 %v5129
        %v5215 = vunpack.c.l.b16 %v5130
        %v5216 = vunpack.c.h.b16 %v5130
        %v5217 = vunpack.c.l.b16 %v5131
        %v5218 = vunpack.c.l.b16 %v5132
        %v5219 = vunpack.c.h.b16 %v5132
        %v5220 = vunpack.c.l.b16 %v5133
        %v5221 = vunpack.c.l.b16 %v5134
        %v5222 = vunpack.c.h.b16 %v5134
        %v5223 = vunpack.c.l.b16 %v5135
        %v5224 = vunpack.c.l.b16 %v5136
        %v5225 = vunpack.c.h.b16 %v5136
        %v5226 = vunpack.c.l.b16 %v5137
        %v5227 = vunpack.c.l.b16 %v5138
        %v5228 = vunpack.c.h.b16 %v5138
        %v5229 = vunpack.c.l.b16 %v5139
        %v5230 = vunpack.c.l.b16 %v5140
        %v5231 = vunpack.c.h.b16 %v5140
        %v5232 = vunpack.c.l.b16 %v5141
        %v5233 = vunpack.c.l.b16 %v5142
        %v5234 = vunpack.c.h.b16 %v5142
        %v5235 = vunpack.c.l.b16 %v5143
        %v5236 = vunpack.c.l.b16 %v5144
        %v5237 = vunpack.c.h.b16 %v5144
        %v5238 = vunpack.c.l.b16 %v5145
        %v5239 = vunpack.c.l.b16 %v5146
        %v5240 = vunpack.c.h.b16 %v5146
        %v5241 = vunpack.c.l.b16 %v5147
        %v5242 = vunpack.c.l.b16 %v5148
        %v5243 = vunpack.c.h.b16 %v5148
        %v5244 = vunpack.c.l.b16 %v5149
        %v5245 = vunpack.c.l.b16 %v5150
        %v5246 = vunpack.c.h.b16 %v5150
        %v5247 = vunpack.c.l.b16 %v5151
        %v5248 = vunpack.c.l.b16 %v5152
        %v5249 = vunpack.c.h.b16 %v5152
        %v5250 = vunpack.c.l.b16 %v5153
        %v5251 = vunpack.c.l.b16 %v5154
        %v5252 = vunpack.c.h.b16 %v5154
        %v5253 = vunpack.c.l.b16 %v5155
        %v5254 = vpack.c.b16 %v5209, %v5206
        %v5255 = vpack.c.b16 %v5210, %v5207
        %v5256 = vpack.c.b16 %v5211, %v5208
        %v5257 = vpack.c.b16 %v5215, %v5212
        %v5258 = vpack.c.b16 %v5216, %v5213
        %v5259 = vpack.c.b16 %v5217, %v5214
        %v5260 = vpack.c.b16 %v5221, %v5218
        %v5261 = vpack.c.b16 %v5222, %v5219
        %v5262 = vpack.c.b16 %v5223, %v5220
        %v5263 = vpack.c.b16 %v5227, %v5224
        %v5264 = vpack.c.b16 %v5228, %v5225
        %v5265 = vpack.c.b16 %v5229, %v5226
        %v5266 = vpack.c.b16 %v5233, %v5230
        %v5267 = vpack.c.b16 %v5234, %v5231
        %v5268 = vpack.c.b16 %v5235, %v5232
        %v5269 = vpack.c.b16 %v5239, %v5236
        %v5270 = vpack.c.b16 %v5240, %v5237
        %v5271 = vpack.c.b16 %v5241, %v5238
        %v5272 = vpack.c.b16 %v5245, %v5242
        %v5273 = vpack.c.b16 %v5246, %v5243
        %v5274 = vpack.c.b16 %v5247, %v5244
        %v5275 = vpack.c.b16 %v5251, %v5248
        %v5276 = vpack.c.b16 %v5252, %v5249
        %v5277 = vpack.c.b16 %v5253, %v5250
        %5302 = vmatprep.subr.bf16.mxu0 %v5255
        %5303 = vmatpush1.bf16.msra.mxu0 %v5254
        %5304 = vmatprep.subr.bf16.mxu0 %v5258
        %5305 = vmatpush1.bf16.msra.mxu0 %v5257
        %5306 = vmatprep.subr.bf16.mxu0 %v5261
        %5307 = vmatpush1.bf16.msra.mxu0 %v5260
        %5308 = vmatprep.subr.bf16.mxu0 %v5264
        %5309 = vmatpush1.bf16.msra.mxu0 %v5263
        %5310 = vmatprep.subr.bf16.mxu0 %v5267
        %5311 = vmatpush1.bf16.msra.mxu0 %v5266
        %5312 = vmatprep.subr.bf16.mxu0 %v5270
        %5313 = vmatpush1.bf16.msra.mxu0 %v5269
        %5314 = vmatprep.subr.bf16.mxu0 %v5273
        %5315 = vmatpush1.bf16.msra.mxu0 %v5272
        %5316 = vmatprep.subr.bf16.mxu0 %v5276
        %5317 = vmatpush1.bf16.msra.mxu0 %v5275
        %5318 = vmatprep.subr.bf16.mxu0 0
        %5319 = vmatpush1.bf16.msra.mxu0 0
        %5320 = vmatprep.subr.bf16.mxu0 0
        %5321 = vmatpush1.bf16.msra.mxu0 0
        %5322 = vmatprep.subr.bf16.mxu0 0
        %5323 = vmatpush1.bf16.msra.mxu0 0
        %5324 = vmatprep.subr.bf16.mxu0 0
        %5325 = vmatpush1.bf16.msra.mxu0 0
        %5326 = vmatprep.subr.bf16.mxu0 0
        %5327 = vmatpush1.bf16.msra.mxu0 0
        %5328 = vmatprep.subr.bf16.mxu0 0
        %5329 = vmatpush1.bf16.msra.mxu0 0
        %5330 = vmatprep.subr.bf16.mxu0 0
        %5331 = vmatpush1.bf16.msra.mxu0 0
        %5332 = vmatprep.subr.bf16.mxu0 0
        %5333 = vmatpush1.bf16.msra.mxu0 0
        %5334 = vmatprep.mubr.bf16.mxu0 0
        %5335 = vmatmul.mubr.bf16.gmra.mrb[0].mxu0 %v5122
        %v5336 = vpop.f32.mrb[0].mxu0
        %v5337 = vadd.f32 %v5162, %v5336
        %v5338 = vpop.f32.mrb[0].mxu0
        %v5339 = vadd.f32 %v5166, %v5338
        %v5340 = vpop.f32.mrb[0].mxu0
        %v5341 = vadd.f32 %v5162, %v5340
        %v5342 = vpop.f32.mrb[0].mxu0
        %v5343 = vadd.f32 %v5166, %v5342
        %5344 = vdwg.mxu0
        %5345 = vmatprep.subr.bf16.mxu0 0
        %5346 = vmatpush1.bf16.msra.mxu0 %v5256
        %5347 = vmatprep.subr.bf16.mxu0 0
        %5348 = vmatpush1.bf16.msra.mxu0 %v5259
        %5349 = vmatprep.subr.bf16.mxu0 0
        %5350 = vmatpush1.bf16.msra.mxu0 %v5262
        %5351 = vmatprep.subr.bf16.mxu0 0
        %5352 = vmatpush1.bf16.msra.mxu0 %v5265
        %5353 = vmatprep.subr.bf16.mxu0 0
        %5354 = vmatpush1.bf16.msra.mxu0 %v5268
        %5355 = vmatprep.subr.bf16.mxu0 0
        %5356 = vmatpush1.bf16.msra.mxu0 %v5271
        %5357 = vmatprep.subr.bf16.mxu0 0
        %5358 = vmatpush1.bf16.msra.mxu0 %v5274
        %5359 = vmatprep.subr.bf16.mxu0 0
        %5360 = vmatpush1.bf16.msra.mxu0 %v5277
        %5361 = vmatprep.subr.bf16.mxu0 0
        %5362 = vmatpush1.bf16.msra.mxu0 0
        %5363 = vmatprep.subr.bf16.mxu0 0
        %5364 = vmatpush1.bf16.msra.mxu0 0
        %5365 = vmatprep.subr.bf16.mxu0 0
        %5366 = vmatpush1.bf16.msra.mxu0 0
        %5367 = vmatprep.subr.bf16.mxu0 0
        %5368 = vmatpush1.bf16.msra.mxu0 0
        %5369 = vmatprep.subr.bf16.mxu0 0
        %5370 = vmatpush1.bf16.msra.mxu0 0
        %5371 = vmatprep.subr.bf16.mxu0 0
        %5372 = vmatpush1.bf16.msra.mxu0 0
        %5373 = vmatprep.subr.bf16.mxu0 0
        %5374 = vmatpush1.bf16.msra.mxu0 0
        %5375 = vmatprep.subr.bf16.mxu0 0
        %5376 = vmatpush1.bf16.msra.mxu0 0
        %5377 = vmatprep.mubr.bf16.mxu0 0
        %5378 = vmatmul.mubr.bf16.gmra.mrb[0].mxu0 %v5122
        %v5379 = vpop.f32.mrb[0].mxu0
        %v5380 = vadd.f32 %v5170, %v5379
        %v5381 = vpop.f32.mrb[0].mxu0
        %v5382 = vpop.f32.mrb[0].mxu0
        %v5383 = vadd.f32 %v5170, %v5382
        %v5384 = vpop.f32.mrb[0].mxu0
        %5385 = vdwg.mxu0
        %v5386 = vmul.f32 %v5337, %v5337
        %v5387 = vmul.f32 %v5339, %v5339
        %v5388 = vmul.f32 %v5380, %v5380
        %v5389 = vmul.f32 %v5341, %v5341
        %v5390 = vmul.f32 %v5343, %v5343
        %v5391 = vmul.f32 %v5383, %v5383
        %v5392 = vmul.f32 %v5337, %v5386
        %v5393 = vmul.f32 %v5339, %v5387
        %v5394 = vmul.f32 %v5380, %v5388
        %v5395 = vmul.f32 %v5341, %v5389
        %v5396 = vmul.f32 %v5343, %v5390
        %v5397 = vmul.f32 %v5383, %v5391
        %v5398 = vmul.f32 %v5392, 0.044715
        %v5399 = vmul.f32 %v5393, 0.044715
        %v5400 = vmul.f32 %v5394, 0.044715
        %v5401 = vmul.f32 %v5395, 0.044715
        %v5402 = vmul.f32 %v5396, 0.044715
        %v5403 = vmul.f32 %v5397, 0.044715
        %v5404 = vadd.f32 %v5337, %v5398
        %v5405 = vadd.f32 %v5339, %v5399
        %v5406 = vadd.f32 %v5380, %v5400
        %v5407 = vadd.f32 %v5341, %v5401
        %v5408 = vadd.f32 %v5343, %v5402
        %v5409 = vadd.f32 %v5383, %v5403
        %v5410 = vmul.f32 %v5404, 0.7978846
        %v5411 = vmul.f32 %v5405, 0.7978846
        %v5412 = vmul.f32 %v5406, 0.7978846
        %v5413 = vmul.f32 %v5407, 0.7978846
        %v5414 = vmul.f32 %v5408, 0.7978846
        %v5415 = vmul.f32 %v5409, 0.7978846
        %v5416 = vtanh.pop %v5410
        %v5417 = vtanh.pop %v5411
        %v5418 = vtanh.pop %v5412
        %v5419 = vtanh.pop %v5413
        %v5420 = vtanh.pop %v5414
        %v5421 = vtanh.pop %v5415
        %v5422 = vadd.f32 %v5416, 1.0
        %v5423 = vadd.f32 %v5417, 1.0
        %v5424 = vadd.f32 %v5418, 1.0
        %v5425 = vadd.f32 %v5419, 1.0
        %v5426 = vadd.f32 %v5420, 1.0
        %v5427 = vadd.f32 %v5421, 1.0
        %v5428 = vmul.f32 %v5422, 0.5
        %v5429 = vmul.f32 %v5423, 0.5
        %v5430 = vmul.f32 %v5424, 0.5
        %v5431 = vmul.f32 %v5425, 0.5
        %v5432 = vmul.f32 %v5426, 0.5
        %v5433 = vmul.f32 %v5427, 0.5
        %v5434 = vmul.f32 %v5337, %v5428
        %v5435 = vmul.f32 %v5339, %v5429
        %v5436 = vmul.f32 %v5380, %v5430
        %v5437 = vmul.f32 %v5341, %v5431
        %v5438 = vmul.f32 %v5343, %v5432
        %v5439 = vmul.f32 %v5383, %v5433
        %v5440 = vpack.c.bf16 %v5437, %v5434
        %v5441 = vpack.c.bf16 %v5438, %v5435
        %v5442 = vpack.c.bf16 %v5439, %v5436
        %s5443 = scalar_lea.vmem [#allocation10], 192
        %v5444 = vld [vmem:[%s5443] sm:$0xf]
        %v5445 = vld [vmem:[%s5443 + $0x4] sm:$0xf]
        %v5446 = vld [vmem:[%s5443 + $0x8] sm:$0xf]
        %v5447 = vld [vmem:[%s5443 + $0xc] sm:$0xf]
        %v5448 = vld [vmem:[%s5443 + $0x10] sm:$0xf]
        %v5449 = vld [vmem:[%s5443 + $0x14] sm:$0xf]
        %v5450 = vld [vmem:[%s5443 + $0x18] sm:$0xf]
        %v5451 = vld [vmem:[%s5443 + $0x1c] sm:$0xf]
        %v5452 = vld [vmem:[%s5443 + $0x20] sm:$0xf]
        %v5453 = vld [vmem:[%s5443 + $0x24] sm:$0xf]
        %v5454 = vld [vmem:[%s5443 + $0x28] sm:$0xf]
        %v5455 = vld [vmem:[%s5443 + $0x2c] sm:$0xf]
        %v5456 = vld [vmem:[%s5443 + $0x30] sm:$0xf]
        %v5457 = vld [vmem:[%s5443 + $0x34] sm:$0xf]
        %v5458 = vld [vmem:[%s5443 + $0x38] sm:$0xf]
        %v5459 = vld [vmem:[%s5443 + $0x3c] sm:$0xf]
        %v5460 = vld [vmem:[%s5443 + $0x40] sm:$0xf]
        %v5461 = vld [vmem:[%s5443 + $0x44] sm:$0xf]
        %v5462 = vld [vmem:[%s5443 + $0x48] sm:$0xf]
        %v5463 = vld [vmem:[%s5443 + $0x4c] sm:$0xf]
        %v5464 = vld [vmem:[%s5443 + $0x50] sm:$0xf]
        %v5465 = vld [vmem:[%s5443 + $0x54] sm:$0xf]
        %v5466 = vld [vmem:[%s5443 + $0x58] sm:$0xf]
        %v5467 = vld [vmem:[%s5443 + $0x5c] sm:$0xf]
        %v5468 = vld [vmem:[%s5443 + $0x60] sm:$0xf]
        %v5469 = vld [vmem:[%s5443 + $0x64] sm:$0xf]
        %v5470 = vld [vmem:[%s5443 + $0x68] sm:$0xf]
        %v5471 = vld [vmem:[%s5443 + $0x6c] sm:$0xf]
        %v5472 = vld [vmem:[%s5443 + $0x70] sm:$0xf]
        %v5473 = vld [vmem:[%s5443 + $0x74] sm:$0xf]
        %v5474 = vld [vmem:[%s5443 + $0x78] sm:$0xf]
        %v5475 = vld [vmem:[%s5443 + $0x7c] sm:$0xf]
        %v5476 = vld [vmem:[%s5443 + $0x80] sm:$0xf]
        %v5477 = vld [vmem:[%s5443 + $0x84] sm:$0xf]
        %v5478 = vld [vmem:[%s5443 + $0x88] sm:$0xf]
        %v5479 = vld [vmem:[%s5443 + $0x8c] sm:$0xf]
        %v5480 = vld [vmem:[%s5443 + $0x90] sm:$0xf]
        %v5481 = vld [vmem:[%s5443 + $0x94] sm:$0xf]
        %v5482 = vld [vmem:[%s5443 + $0x98] sm:$0xf]
        %v5483 = vld [vmem:[%s5443 + $0x9c] sm:$0xf]
        %v5484 = vld [vmem:[%s5443 + $0xa0] sm:$0xf]
        %v5485 = vld [vmem:[%s5443 + $0xa4] sm:$0xf]
        %v5486 = vld [vmem:[%s5443 + $0xa8] sm:$0xf]
        %v5487 = vld [vmem:[%s5443 + $0xac] sm:$0xf]
        %v5488 = vld [vmem:[%s5443 + $0xb0] sm:$0xf]
        %v5489 = vld [vmem:[%s5443 + $0xb4] sm:$0xf]
        %v5490 = vld [vmem:[%s5443 + $0xb8] sm:$0xf]
        %v5491 = vld [vmem:[%s5443 + $0xbc] sm:$0xf]
        %s5492 = scalar_lea.vmem %s12, 1
        %v5493 = vld [vmem:[%s5492] sm:$0x1]
        %v5495 = vlaneseq
        %v5496 = vshrl.u32 %v5495, 7
        %v5497 = vsub.s32 0, %v5496
        %v5498 = vrot.slane %v5493, %v5497
        %v5548 = vunpack.c.l.b16 %v5444
        %v5549 = vunpack.c.l.b16 %v5445
        %v5550 = vunpack.c.l.b16 %v5446
        %v5551 = vunpack.c.l.b16 %v5447
        %v5552 = vunpack.c.l.b16 %v5448
        %v5553 = vunpack.c.l.b16 %v5449
        %v5554 = vunpack.c.l.b16 %v5450
        %v5555 = vunpack.c.l.b16 %v5451
        %v5556 = vunpack.c.l.b16 %v5452
        %v5557 = vunpack.c.l.b16 %v5453
        %v5558 = vunpack.c.l.b16 %v5454
        %v5559 = vunpack.c.l.b16 %v5455
        %v5560 = vunpack.c.l.b16 %v5456
        %v5561 = vunpack.c.l.b16 %v5457
        %v5562 = vunpack.c.l.b16 %v5458
        %v5563 = vunpack.c.l.b16 %v5459
        %v5564 = vunpack.c.l.b16 %v5460
        %v5565 = vunpack.c.l.b16 %v5461
        %v5566 = vunpack.c.l.b16 %v5462
        %v5567 = vunpack.c.l.b16 %v5463
        %v5568 = vunpack.c.l.b16 %v5464
        %v5569 = vunpack.c.l.b16 %v5465
        %v5570 = vunpack.c.l.b16 %v5466
        %v5571 = vunpack.c.l.b16 %v5467
        %v5572 = vunpack.c.l.b16 %v5468
        %v5573 = vunpack.c.l.b16 %v5469
        %v5574 = vunpack.c.l.b16 %v5470
        %v5575 = vunpack.c.l.b16 %v5471
        %v5576 = vunpack.c.l.b16 %v5472
        %v5577 = vunpack.c.l.b16 %v5473
        %v5578 = vunpack.c.l.b16 %v5474
        %v5579 = vunpack.c.l.b16 %v5475
        %v5580 = vunpack.c.l.b16 %v5476
        %v5581 = vunpack.c.l.b16 %v5477
        %v5582 = vunpack.c.l.b16 %v5478
        %v5583 = vunpack.c.l.b16 %v5479
        %v5584 = vunpack.c.l.b16 %v5480
        %v5585 = vunpack.c.l.b16 %v5481
        %v5586 = vunpack.c.l.b16 %v5482
        %v5587 = vunpack.c.l.b16 %v5483
        %v5588 = vunpack.c.l.b16 %v5484
        %v5589 = vunpack.c.l.b16 %v5485
        %v5590 = vunpack.c.l.b16 %v5486
        %v5591 = vunpack.c.l.b16 %v5487
        %v5592 = vunpack.c.l.b16 %v5488
        %v5593 = vunpack.c.l.b16 %v5489
        %v5594 = vunpack.c.l.b16 %v5490
        %v5595 = vunpack.c.l.b16 %v5491
        %v5596 = vpack.c.b16 %v5549, %v5548
        %v5597 = vpack.c.b16 %v5551, %v5550
        %v5598 = vpack.c.b16 %v5553, %v5552
        %v5599 = vpack.c.b16 %v5555, %v5554
        %v5600 = vpack.c.b16 %v5557, %v5556
        %v5601 = vpack.c.b16 %v5559, %v5558
        %v5602 = vpack.c.b16 %v5561, %v5560
        %v5603 = vpack.c.b16 %v5563, %v5562
        %v5604 = vpack.c.b16 %v5565, %v5564
        %v5605 = vpack.c.b16 %v5567, %v5566
        %v5606 = vpack.c.b16 %v5569, %v5568
        %v5607 = vpack.c.b16 %v5571, %v5570
        %v5608 = vpack.c.b16 %v5573, %v5572
        %v5609 = vpack.c.b16 %v5575, %v5574
        %v5610 = vpack.c.b16 %v5577, %v5576
        %v5611 = vpack.c.b16 %v5579, %v5578
        %v5612 = vpack.c.b16 %v5581, %v5580
        %v5613 = vpack.c.b16 %v5583, %v5582
        %v5614 = vpack.c.b16 %v5585, %v5584
        %v5615 = vpack.c.b16 %v5587, %v5586
        %v5616 = vpack.c.b16 %v5589, %v5588
        %v5617 = vpack.c.b16 %v5591, %v5590
        %v5618 = vpack.c.b16 %v5593, %v5592
        %v5619 = vpack.c.b16 %v5595, %v5594
        %5644 = vmatprep.subr.bf16.mxu0 0
        %5645 = vmatpush1.bf16.msra.mxu0 %v5596
        %5646 = vmatprep.subr.bf16.mxu0 0
        %5647 = vmatpush1.bf16.msra.mxu0 %v5597
        %5648 = vmatprep.subr.bf16.mxu0 0
        %5649 = vmatpush1.bf16.msra.mxu0 %v5598
        %5650 = vmatprep.subr.bf16.mxu0 0
        %5651 = vmatpush1.bf16.msra.mxu0 %v5599
        %5652 = vmatprep.subr.bf16.mxu0 0
        %5653 = vmatpush1.bf16.msra.mxu0 %v5600
        %5654 = vmatprep.subr.bf16.mxu0 0
        %5655 = vmatpush1.bf16.msra.mxu0 %v5601
        %5656 = vmatprep.subr.bf16.mxu0 0
        %5657 = vmatpush1.bf16.msra.mxu0 %v5602
        %5658 = vmatprep.subr.bf16.mxu0 0
        %5659 = vmatpush1.bf16.msra.mxu0 %v5603
        %5660 = vmatprep.subr.bf16.mxu0 0
        %5661 = vmatpush1.bf16.msra.mxu0 %v5604
        %5662 = vmatprep.subr.bf16.mxu0 0
        %5663 = vmatpush1.bf16.msra.mxu0 %v5605
        %5664 = vmatprep.subr.bf16.mxu0 0
        %5665 = vmatpush1.bf16.msra.mxu0 %v5606
        %5666 = vmatprep.subr.bf16.mxu0 0
        %5667 = vmatpush1.bf16.msra.mxu0 %v5607
        %5668 = vmatprep.subr.bf16.mxu0 0
        %5669 = vmatpush1.bf16.msra.mxu0 %v5608
        %5670 = vmatprep.subr.bf16.mxu0 0
        %5671 = vmatpush1.bf16.msra.mxu0 %v5609
        %5672 = vmatprep.subr.bf16.mxu0 0
        %5673 = vmatpush1.bf16.msra.mxu0 %v5610
        %5674 = vmatprep.subr.bf16.mxu0 0
        %5675 = vmatpush1.bf16.msra.mxu0 %v5611
        %5676 = vmatprep.mubr.bf16.mxu0 %v5441
        %5677 = vmatmul.mubr.bf16.gmra.mrb[0].mxu0 %v5440
        %v5678 = vpop.f32.mrb[0].mxu0
        %v5679 = vadd.f32 %v5498, %v5678
        %v5680 = vpop.f32.mrb[0].mxu0
        %v5681 = vpop.f32.mrb[0].mxu0
        %v5682 = vadd.f32 %v5498, %v5681
        %v5683 = vpop.f32.mrb[0].mxu0
        %5684 = vdwg.mxu0
        %5685 = vmatprep.subr.bf16.mxu0 0
        %5686 = vmatpush1.bf16.msra.mxu0 %v5612
        %5687 = vmatprep.subr.bf16.mxu0 0
        %5688 = vmatpush1.bf16.msra.mxu0 %v5613
        %5689 = vmatprep.subr.bf16.mxu0 0
        %5690 = vmatpush1.bf16.msra.mxu0 %v5614
        %5691 = vmatprep.subr.bf16.mxu0 0
        %5692 = vmatpush1.bf16.msra.mxu0 %v5615
        %5693 = vmatprep.subr.bf16.mxu0 0
        %5694 = vmatpush1.bf16.msra.mxu0 %v5616
        %5695 = vmatprep.subr.bf16.mxu0 0
        %5696 = vmatpush1.bf16.msra.mxu0 %v5617
        %5697 = vmatprep.subr.bf16.mxu0 0
        %5698 = vmatpush1.bf16.msra.mxu0 %v5618
        %5699 = vmatprep.subr.bf16.mxu0 0
        %5700 = vmatpush1.bf16.msra.mxu0 %v5619
        %5701 = vmatprep.subr.bf16.mxu0 0
        %5702 = vmatpush1.bf16.msra.mxu0 0
        %5703 = vmatprep.subr.bf16.mxu0 0
        %5704 = vmatpush1.bf16.msra.mxu0 0
        %5705 = vmatprep.subr.bf16.mxu0 0
        %5706 = vmatpush1.bf16.msra.mxu0 0
        %5707 = vmatprep.subr.bf16.mxu0 0
        %5708 = vmatpush1.bf16.msra.mxu0 0
        %5709 = vmatprep.subr.bf16.mxu0 0
        %5710 = vmatpush1.bf16.msra.mxu0 0
        %5711 = vmatprep.subr.bf16.mxu0 0
        %5712 = vmatpush1.bf16.msra.mxu0 0
        %5713 = vmatprep.subr.bf16.mxu0 0
        %5714 = vmatpush1.bf16.msra.mxu0 0
        %5715 = vmatprep.subr.bf16.mxu0 0
        %5716 = vmatpush1.bf16.msra.mxu0 0
        %5717 = vmatprep.mubr.bf16.mxu0 0
        %5718 = vmatmul.mubr.bf16.gmra.mrb[0].mxu0 %v5442
        %v5719 = vpop.f32.mrb[0].mxu0
        %v5720 = vadd.f32 %v5679, %v5719
        %v5721 = vpop.f32.mrb[0].mxu0
        %v5722 = vpop.f32.mrb[0].mxu0
        %v5723 = vadd.f32 %v5682, %v5722
        %v5724 = vpop.f32.mrb[0].mxu0
        %5725 = vdwg.mxu0
        %v5726 = vadd.f32 %v5120, %v5720
        %v5727 = vadd.f32 %v5121, %v5723
        %s5728 = scalar_lea.vmem %s7, 1
        %v5729 = vld [vmem:[%s5728] sm:$0x1]
        %s5730 = scalar_lea.vmem %s8, 1
        %v5731 = vld [vmem:[%s5730] sm:$0x1]
        %5732 = vadd.xlane.f32.xlu0 %v5726
        %v5733 = vpop.xlane.xlu0 %5732
        %5734 = vadd.xlane.f32.xlu0 %v5727
        %v5735 = vpop.xlane.xlu0 %5734
        %v5736 = vmul.f32 %v5733, 0.010416667
        %v5737 = vmul.f32 %v5735, 0.010416667
        %v5738 = vsub.f32 %v5726, %v5736
        %v5739 = vsub.f32 %v5727, %v5737
        %v5740 = vmul.f32 %v5738, %v525
        %v5741 = vmul.f32 %v5739, %v525
        %v5742 = vmul.f32 %v5740, %v5740
        %v5743 = vmul.f32 %v5741, %v5741
        %5744 = vadd.xlane.f32.xlu0 %v5742
        %v5745 = vpop.xlane.xlu0 %5744
        %5746 = vadd.xlane.f32.xlu0 %v5743
        %v5747 = vpop.xlane.xlu0 %5746
        %v5748 = vmul.f32 %v5745, 0.010416667
        %v5749 = vmul.f32 %v5747, 0.010416667
        %v5750 = vadd.f32 %v5748, 1e-05
        %v5751 = vadd.f32 %v5749, 1e-05
        %v5752 = vrsqrt.pop %v5750
        %v5753 = vrsqrt.pop %v5751
        %v5754 = vmul.f32 %v5740, %v5752
        %v5755 = vmul.f32 %v5741, %v5753
        %v5757 = vlaneseq
        %v5758 = vshrl.u32 %v5757, 7
        %v5759 = vsub.s32 0, %v5758
        %v5760 = vrot.slane %v5729, %v5759
        %v5762 = vmul.f32 %v5754, %v5760
        %v5763 = vmul.f32 %v5755, %v5760
        %v5765 = vlaneseq
        %v5766 = vshrl.u32 %v5765, 7
        %v5767 = vsub.s32 0, %v5766
        %v5768 = vrot.slane %v5731, %v5767
        %v5770 = vadd.f32 %v5762, %v5768
        %v5771 = vadd.f32 %v5763, %v5768
        %5772 = vst [vmem:[%s516] sm:$0xff] %v5770
        %5773 = vst [vmem:[%s516 + $0x8] sm:$0xff] %v5771
        %s5774 = sand.u32 %s318, 1
        %s5775 = scalar_lea.sflag [#allocation4], %s5774
        %s5776 = sand.u32 %s318, 1
        %s5777 = smul.addr %s5776, 16
        %s5778 = scalar_lea.vmem [#allocation11], %s5777
        // Predicated region
        $region93: #{tpu_custom_call.1} parent=71 // pred_check
          %p5779 = pneg %p328
        $region94: #{tpu_custom_call.1} parent=71 // pred_check_branch
          %5781 = sbr.rel (%p5779) target = $region96
        $region95: #{tpu_custom_call.1} parent=71 // pred_region
          %s5783 = ssub.s32 256, 256
          %5784 = vsyncadd %s5775, %s5783
          %s5785 = smul.addr %s32, 128
          %s5786 = scalar_lea.hbm %s13, %s5785
          %s5787 = sshll.u32 %s5778, 4
          %s5788 = int_to_ptr.vmem [resolvable:$true] %s5787
          %5793 = dma.vmem_to_hbm [thread:$0]  %s5788, 256, %s5786, %s5775, 128, 256, 8
        $region96: #{tpu_custom_call.1} parent=71 // pred_fallthru
          _
      $region72: #{tpu_custom_call.1} parent=5 // pred_fallthru
        _
      %p5794 = scmp.le.s32.totalorder 2, %s27
      // Predicated region
      $region97: #{tpu_custom_call.1} parent=5 // pred_check
        %p5795 = pneg %p5794
      $region98: #{tpu_custom_call.1} parent=5 // pred_check_branch
        %5797 = sbr.rel (%p5795) target = $region100
      $region99: #{tpu_custom_call.1} parent=5 // pred_region
        %s5798 = ssub.s32 %s27, 2
        // Predicated region
        $region101: #{tpu_custom_call.1} parent=99 // pred_check
          %p5799 = pneg %p334
        $region102: #{tpu_custom_call.1} parent=99 // pred_check_branch
          %5801 = sbr.rel (%p5799) target = $region104
        $region103: #{tpu_custom_call.1} parent=99 // pred_region
          %s5802 = sand.u32 %s319, 1
          %s5803 = scalar_lea.sflag [#allocation4], %s5802
          %s5804 = sand.u32 %s319, 1
          %s5805 = smul.addr %s5804, 16
          %s5806 = scalar_lea.vmem [#allocation11], %s5805
          %5807 = dma.done %s5803, 256
        $region104: #{tpu_custom_call.1} parent=99 // pred_fallthru
          _
      $region100: #{tpu_custom_call.1} parent=5 // pred_fallthru
        _
    $region6: #{tpu_custom_call.1} parent=1 // loop_footer
      %s31 = sadd.s32 1, %s27
    $region7: #{tpu_custom_call.1} parent=1 // loop_footer_branch
      %26 = sbr.rel target = $region3
    $region8: #{tpu_custom_call.1} parent=1 // loop_exit
      _
    %5808 = vsyncpa [#allocation3], 1
    %s5809 = scalar_lea.sflag [#allocation3], 1
    %5810 = vsyncpa %s5809, 1
    %5811 = vsyncpa [#allocation6], 1
    %5812 = vsyncpa [#allocation9], 1
    %5813 = vsyncpa [#allocation4], 1
    %s5814 = scalar_lea.sflag [#allocation4], 1
    %5815 = vsyncpa %s5814, 1

</llo_original>
